<compile_context>
chip_gen: v7x
topology: tpu7x:2x2x1
jax: 0.10.0
libtpu: 0.0.40
codegen_flags: <defaults>
</compile_context>

<pallas_src>
import functools

import jax
import jax.numpy as jnp
from jax import lax
from jax.experimental import pallas as pl
from jax.experimental.pallas import tpu as pltpu

EPS = 1e-5   # nn.BatchNorm2d default eps
LANE = 128


def _round_up(n, m):
    return ((n + m - 1) // m) * m


def _fold_bn(bn):
    gamma, beta, mean, var = bn
    scale = gamma / jnp.sqrt(var + EPS)
    bias = beta - mean * scale
    return scale, bias


# ---------------------------------------------------------------------------
# Kernel 1: fused matmul + bias (+ residual) (+ ReLU)   (1x1 convs)
# ---------------------------------------------------------------------------
def _mm_kernel(*refs, relu, has_residual):
    if has_residual:
        x_ref, w_ref, b_ref, r_ref, o_ref = refs
    else:
        x_ref, w_ref, b_ref, o_ref = refs
        r_ref = None
    y = jnp.dot(x_ref[...].astype(jnp.bfloat16), w_ref[...],
                preferred_element_type=jnp.float32)
    y = y + b_ref[...]
    if r_ref is not None:
        y = y + r_ref[...].astype(jnp.float32)
    if relu:
        y = jnp.maximum(y, 0.0)
    o_ref[...] = y.astype(o_ref.dtype)


def fused_conv1x1(x2d, w_bf16, bias, *, residual=None, relu=True,
                  out_dtype=jnp.float32, tm=256):
    """out = act(x2d @ w + bias [+ residual]), row-tiled on the MXU.

    x2d: (rows, Cin_pad) ; w_bf16: (Cin_pad, Cout_pad) bf16 (BN scale folded);
    bias: (Cout_pad,) f32 ; residual: optional (rows, Cout_pad).
    """
    rows, cin = x2d.shape
    cout = w_bf16.shape[1]
    tm = min(tm, _round_up(rows, 8))
    grid = (pl.cdiv(rows, tm),)

    in_specs = [
        pl.BlockSpec((tm, cin), lambda i: (i, 0)),
        pl.BlockSpec((cin, cout), lambda i: (0, 0)),
        pl.BlockSpec((1, cout), lambda i: (0, 0)),
    ]
    args = [x2d, w_bf16, bias.reshape(1, cout)]
    if residual is not None:
        in_specs.append(pl.BlockSpec((tm, cout), lambda i: (i, 0)))
        args.append(residual)

    return pl.pallas_call(
        functools.partial(_mm_kernel, relu=relu,
                          has_residual=residual is not None),
        out_shape=jax.ShapeDtypeStruct((rows, cout), out_dtype),
        grid_spec=pltpu.PrefetchScalarGridSpec(
            num_scalar_prefetch=0,
            grid=grid,
            in_specs=in_specs,
            out_specs=pl.BlockSpec((tm, cout), lambda i: (i, 0)),
        ),
        compiler_params=pltpu.CompilerParams(
            dimension_semantics=("parallel",)),
    )(*args)


# ---------------------------------------------------------------------------
# Kernel 2: fused 3x3 conv + bias + ReLU (in-kernel patch accumulation)
# ---------------------------------------------------------------------------
def _conv3x3_kernel(x_ref, w_ref, b_ref, o_ref, acc_ref, *, K, H, W, dil):
    # x_ref  : (H + (K-1)*dil, W + (K-1)*dil, Cin_pad)  one padded image
    # w_ref  : (K*K, Cin_pad, Cout_pad) bf16, BN scale folded in
    # b_ref  : (1, Cout_pad) f32
    # o_ref  : (H*W, Cout_pad)
    # acc_ref: VMEM (H*W, Cout_pad) f32 scratch accumulator
    cin = x_ref.shape[-1]
    acc_ref[...] = jnp.zeros_like(acc_ref)
    for ky in range(K):
        for kx in range(K):
            patch = x_ref[ky * dil:ky * dil + H, kx * dil:kx * dil + W, :]
            lhs = patch.reshape(H * W, cin).astype(jnp.bfloat16)
            acc_ref[...] += jnp.dot(lhs, w_ref[ky * K + kx],
                                    preferred_element_type=jnp.float32)
    o_ref[...] = jnp.maximum(acc_ref[...] + b_ref[...], 0.0).astype(o_ref.dtype)


def fused_conv3x3(x_nhwc, w_kkcc_bf16, bias, *, padding, dilation=1,
                  out_dtype=jnp.float32):
    """3x3 conv (stride 1) + folded-BN bias + ReLU; one image per grid step."""
    n, h, w, cin = x_nhwc.shape
    kk, _, cout = w_kkcc_bf16.shape
    k = int(round(kk ** 0.5))
    assert k * k == kk
    ho = h + 2 * padding - dilation * (k - 1)
    wo = w + 2 * padding - dilation * (k - 1)
    assert ho == h and wo == w, "Bottleneck stride-1 config preserves spatial dims"
    # W % 8 keeps the in-kernel (H, W, C) -> (H*W, C) reshape layout-preserving.
    assert wo % 8 == 0 and (ho * wo) % 8 == 0

    xp = jnp.pad(x_nhwc,
                 ((0, 0), (padding, padding), (padding, padding), (0, 0)))
    hp, wp = xp.shape[1], xp.shape[2]

    out = pl.pallas_call(
        functools.partial(_conv3x3_kernel, K=k, H=ho, W=wo, dil=dilation),
        out_shape=jax.ShapeDtypeStruct((n * ho * wo, cout), out_dtype),
        grid_spec=pltpu.PrefetchScalarGridSpec(
            num_scalar_prefetch=0,
            grid=(n,),
            in_specs=[
                pl.BlockSpec((None, hp, wp, cin), lambda i: (i, 0, 0, 0)),
                pl.BlockSpec((kk, cin, cout), lambda i: (0, 0, 0)),
                pl.BlockSpec((1, cout), lambda i: (0, 0)),
            ],
            out_specs=pl.BlockSpec((ho * wo, cout), lambda i: (i, 0)),
            scratch_shapes=[pltpu.VMEM((ho * wo, cout), jnp.float32)],
        ),
        compiler_params=pltpu.CompilerParams(
            dimension_semantics=("parallel",)),
    )(xp, w_kkcc_bf16, bias.reshape(1, cout))
    return out.reshape(n, ho, wo, cout)


# ---------------------------------------------------------------------------
# Weight preparation: fold BN, pad to 128 lanes, cast to bf16
# ---------------------------------------------------------------------------
def _fold_conv1x1(w_pt, bn, cin_pad, cout_pad):
    cout, cin = w_pt.shape[0], w_pt.shape[1]
    scale, bias = _fold_bn(bn)
    wmat = w_pt[:, :, 0, 0].T * scale[None, :]                 # (Cin, Cout)
    wmat = jnp.pad(wmat, ((0, cin_pad - cin), (0, cout_pad - cout)))
    bias = jnp.pad(bias, (0, cout_pad - cout))
    return wmat.astype(jnp.bfloat16), bias.astype(jnp.float32)


def _fold_conv3x3(w_pt, bn, cin_pad, cout_pad):
    cout, cin, k, _ = w_pt.shape
    scale, bias = _fold_bn(bn)
    wk = jnp.transpose(w_pt, (2, 3, 1, 0)) * scale              # (K,K,Cin,Cout)
    wk = wk.reshape(k * k, cin, cout)
    wk = jnp.pad(wk, ((0, 0), (0, cin_pad - cin), (0, cout_pad - cout)))
    bias = jnp.pad(bias, (0, cout_pad - cout))
    return wk.astype(jnp.bfloat16), bias.astype(jnp.float32)


# ---------------------------------------------------------------------------
# Bottleneck forward (default config: stride=1, dilation=1, downsample=None)
# ---------------------------------------------------------------------------
@jax.jit
def bottleneck_forward(x_nchw, params):
    stride, dilation = 1, 1
    padding = 2 - stride
    if dilation > 1:
        padding = dilation

    n, cin, h, w = x_nchw.shape
    planes = params["conv1"].shape[0]
    assert planes == cin, "downsample=None requires planes*expansion == inplanes"
    cp = _round_up(max(cin, planes), LANE)

    # NCHW -> NHWC, zero-pad channels to the 128-lane width once.
    x = jnp.transpose(x_nchw, (0, 2, 3, 1))
    x = jnp.pad(x, ((0, 0), (0, 0), (0, 0), (0, cp - cin)))
    x2d = x.reshape(n * h * w, cp)

    w1, b1 = _fold_conv1x1(params["conv1"], params["bn1"], cp, cp)
    w2, b2 = _fold_conv3x3(params["conv2"], params["bn2"], cp, cp)
    w3, b3 = _fold_conv1x1(params["conv3"], params["bn3"], cp, cp)

    # conv1 + bn1 + relu   (bf16 intermediate: numerically free, halves HBM)
    y = fused_conv1x1(x2d, w1, b1, relu=True, out_dtype=jnp.bfloat16)
    # conv2 + bn2 + relu   (3x3, in-kernel patch accumulation, no HBM im2col)
    y = fused_conv3x3(y.reshape(n, h, w, cp), w2, b2,
                      padding=padding, dilation=dilation,
                      out_dtype=jnp.bfloat16)
    # conv3 + bn3 + residual add + relu, fully fused
    out2d = fused_conv1x1(y.reshape(n * h * w, cp), w3, b3,
                          residual=x2d, relu=True, out_dtype=jnp.float32)

    out = out2d.reshape(n, h, w, cp)[..., :planes]
    return jnp.transpose(out, (0, 3, 1, 2))                     # NHWC -> NCHW


# ---------------------------------------------------------------------------
# Deterministic parameter init (shapes from Bottleneck.__init__)
# ---------------------------------------------------------------------------
def init_bottleneck_params(inplanes, planes, key):
    keys = jax.random.split(key, 6)

    def conv_w(k, cout, cin, ksz):
        fan_in = cin * ksz * ksz
        return jax.random.normal(k, (cout, cin, ksz, ksz),
                                 jnp.float32) / jnp.sqrt(fan_in)

    def bn_p(k, c):
        k1, k2, k3, k4 = jax.random.split(k, 4)
        gamma = 1.0 + 0.1 * jax.random.normal(k1, (c,), jnp.float32)
        beta = 0.1 * jax.random.normal(k2, (c,), jnp.float32)
        mean = 0.1 * jax.random.normal(k3, (c,), jnp.float32)
        var = 1.0 + 0.1 * jax.random.uniform(k4, (c,), jnp.float32)
        return (gamma, beta, mean, var)

    return {
        "conv1": conv_w(keys[0], planes, inplanes, 1),
        "bn1": bn_p(keys[1], planes),
        "conv2": conv_w(keys[2], planes, planes, 3),
        "bn2": bn_p(keys[3], planes),
        "conv3": conv_w(keys[4], planes, planes, 1),
        "bn3": bn_p(keys[5], planes),
    }


# ---------------------------------------------------------------------------
# Pure-JAX reference (lax convs, f32 HIGHEST) for validation
# ---------------------------------------------------------------------------
def reference_forward(x_nchw, params):
    def bn(x, p):
        g, b, m, v = p
        s = g / jnp.sqrt(v + EPS)
        return x * s[None, :, None, None] + (b - m * s)[None, :, None, None]

    def conv(x, w, stride=1, padding=0, dilation=1):
        return lax.conv_general_dilated(
            x, w, (stride, stride), [(padding, padding)] * 2,
            rhs_dilation=(dilation, dilation),
            dimension_numbers=("NCHW", "OIHW", "NCHW"),
            precision=lax.Precision.HIGHEST)

    out = jnp.maximum(bn(conv(x_nchw, params["conv1"]), params["bn1"]), 0.0)
    out = jnp.maximum(bn(conv(out, params["conv2"], 1, 1, 1), params["bn2"]), 0.0)
    out = bn(conv(out, params["conv3"]), params["bn3"])
    return jnp.maximum(out + x_nchw, 0.0)


if __name__ == "__main__":
    inplanes = planes = 64
    N, H, W = 2, 16, 16

    key = jax.random.PRNGKey(0)
    kp, kx = jax.random.split(key)
    params = init_bottleneck_params(inplanes, planes, kp)
    x = jax.random.normal(kx, (N, inplanes, H, W), jnp.float32)

    out = jax.block_until_ready(bottleneck_forward(x, params))

    assert out.shape == (N, planes, H, W), out.shape
    assert bool(jnp.all(jnp.isfinite(out)))
    assert bool(jnp.all(out >= 0.0))        # post-ReLU

    ref = reference_forward(x, params)
    max_err = float(jnp.max(jnp.abs(out - ref)))
    # bf16 MXU inputs vs f32 HIGHEST reference -> small bf16-level differences.
    assert max_err < 5e-2, f"mismatch vs reference: {max_err}"

    print("KERNEL_OK")
</pallas_src>

<mosaic_0001>
module attributes {stable_mosaic.version = 11 : i64} {
  func.func @_mm_kernel(%arg0: i32, %arg1: memref<256x128xf32, #tpu.memory_space<vmem>>, %arg2: memref<128x128xbf16, #tpu.memory_space<vmem>>, %arg3: memref<1x128xf32, #tpu.memory_space<vmem>>, %arg4: memref<256x128xbf16, #tpu.memory_space<vmem>>) attributes {dimension_semantics = [#tpu.dimension_semantics<parallel>], iteration_bounds = array<i64: 2>, scalar_prefetch = 0 : i64, scratch_operands = 0 : i64, tpu.core_type = #tpu.core_type<tc>, window_params = [{transform_indices = @transform_0, window_bounds = array<i64: 256, 128>}, {pipeline_mode = #tpu.pipeline_mode<synchronous>, transform_indices = @transform_1, window_bounds = array<i64: 128, 128>}, {pipeline_mode = #tpu.pipeline_mode<synchronous>, transform_indices = @transform_2, window_bounds = array<i64: 1, 128>}, {transform_indices = @transform_3, window_bounds = array<i64: 256, 128>}]} {
    %c0 = arith.constant 0 : index
    %c0_0 = arith.constant 0 : index
    %0 = vector.load %arg1[%c0, %c0_0] : memref<256x128xf32, #tpu.memory_space<vmem>>, vector<256x128xf32>
    %1 = arith.truncf %0 : vector<256x128xf32> to vector<256x128xbf16>
    %c0_1 = arith.constant 0 : index
    %c0_2 = arith.constant 0 : index
    %2 = vector.load %arg2[%c0_1, %c0_2] : memref<128x128xbf16, #tpu.memory_space<vmem>>, vector<128x128xbf16>
    %cst = arith.constant dense<0.000000e+00> : vector<256x128xf32>
    %3 = tpu.matmul %1, %2, %cst {dimension_numbers = #tpu.dot_dimension_numbers<[1], [0], [0], [1], [0, 0, 1, 1], [], []>} : vector<256x128xbf16>, vector<128x128xbf16>, vector<256x128xf32> -> vector<256x128xf32>
    %c0_3 = arith.constant 0 : index
    %c0_4 = arith.constant 0 : index
    %4 = vector.load %arg3[%c0_3, %c0_4] : memref<1x128xf32, #tpu.memory_space<vmem>>, vector<1x128xf32>
    %5 = vector.broadcast %4 : vector<1x128xf32> to vector<256x128xf32>
    %6 = arith.addf %3, %5 : vector<256x128xf32>
    %cst_5 = arith.constant 0.000000e+00 : f32
    %7 = vector.broadcast %cst_5 : f32 to vector<256x128xf32>
    %8 = arith.maximumf %6, %7 : vector<256x128xf32>
    %9 = arith.truncf %8 : vector<256x128xf32> to vector<256x128xbf16>
    %c0_6 = arith.constant 0 : index
    %c0_7 = arith.constant 0 : index
    %10 = vector.load %arg4[%c0_6, %c0_7] : memref<256x128xbf16, #tpu.memory_space<vmem>>, vector<256x128xbf16>
    tpu.vector_store %arg4[%c0_6, %c0_7], %9 {strides = array<i32>} : memref<256x128xbf16, #tpu.memory_space<vmem>>, vector<256x128xbf16>,
    return
  }
  func.func @transform_0(%arg0: i32) -> (i32, i32) {
    %c0_i32 = arith.constant 0 : i32
    %c0_i32_0 = arith.constant 0 : i32
    return %arg0, %c0_i32 : i32, i32
  }
  func.func @transform_1(%arg0: i32) -> (i32, i32) {
    %c0_i32 = arith.constant 0 : i32
    %c0_i32_0 = arith.constant 0 : i32
    %c0_i32_1 = arith.constant 0 : i32
    return %c0_i32, %c0_i32_0 : i32, i32
  }
  func.func @transform_2(%arg0: i32) -> (i32, i32) {
    %c0_i32 = arith.constant 0 : i32
    %c0_i32_0 = arith.constant 0 : i32
    %c0_i32_1 = arith.constant 0 : i32
    return %c0_i32, %c0_i32_0 : i32, i32
  }
  func.func @transform_3(%arg0: i32) -> (i32, i32) {
    %c0_i32 = arith.constant 0 : i32
    %c0_i32_0 = arith.constant 0 : i32
    return %arg0, %c0_i32 : i32, i32
  }
}

module attributes {stable_mosaic.version = 11 : i64} {
  func.func @_conv3x3_kernel(%arg0: i32, %arg1: memref<1x18x18x128xbf16, #tpu.memory_space<vmem>>, %arg2: memref<9x128x128xbf16, #tpu.memory_space<vmem>>, %arg3: memref<1x128xf32, #tpu.memory_space<vmem>>, %arg4: memref<256x128xbf16, #tpu.memory_space<vmem>>, %arg5: memref<256x128xf32, #tpu.memory_space<vmem>>) attributes {dimension_semantics = [#tpu.dimension_semantics<parallel>], iteration_bounds = array<i64: 2>, scalar_prefetch = 0 : i64, scratch_operands = 1 : i64, tpu.core_type = #tpu.core_type<tc>, window_params = [{transform_indices = @transform_0, window_bounds = array<i64: 1, 18, 18, 128>}, {pipeline_mode = #tpu.pipeline_mode<synchronous>, transform_indices = @transform_1, window_bounds = array<i64: 9, 128, 128>}, {pipeline_mode = #tpu.pipeline_mode<synchronous>, transform_indices = @transform_2, window_bounds = array<i64: 1, 128>}, {transform_indices = @transform_3, window_bounds = array<i64: 256, 128>}]} {
    %cst = arith.constant 0.000000e+00 : f32
    %0 = vector.broadcast %cst : f32 to vector<256x128xf32>
    %c0 = arith.constant 0 : index
    %c0_0 = arith.constant 0 : index
    %1 = vector.load %arg5[%c0, %c0_0] : memref<256x128xf32, #tpu.memory_space<vmem>>, vector<256x128xf32>
    tpu.vector_store %arg5[%c0, %c0_0], %0 {strides = array<i32>} : memref<256x128xf32, #tpu.memory_space<vmem>>, vector<256x128xf32>,
    %c0_1 = arith.constant 0 : index
    %c0_2 = arith.constant 0 : index
    %c0_3 = arith.constant 0 : index
    %c0_4 = arith.constant 0 : index
    %2 = vector.load %arg1[%c0_1, %c0_2, %c0_3, %c0_4] : memref<1x18x18x128xbf16, #tpu.memory_space<vmem>>, vector<1x16x16x128xbf16>
    %3 = vector.shape_cast %2 : vector<1x16x16x128xbf16> to vector<16x16x128xbf16>
    %4 = vector.shape_cast %3 : vector<16x16x128xbf16> to vector<256x128xbf16>
    %c0_5 = arith.constant 0 : index
    %c0_6 = arith.constant 0 : index
    %5 = vector.load %arg5[%c0_5, %c0_6] : memref<256x128xf32, #tpu.memory_space<vmem>>, vector<256x128xf32>
    %c0_7 = arith.constant 0 : index
    %c0_8 = arith.constant 0 : index
    %c0_9 = arith.constant 0 : index
    %6 = vector.load %arg2[%c0_7, %c0_8, %c0_9] : memref<9x128x128xbf16, #tpu.memory_space<vmem>>, vector<1x128x128xbf16>
    %7 = vector.shape_cast %6 : vector<1x128x128xbf16> to vector<128x128xbf16>
    %cst_10 = arith.constant dense<0.000000e+00> : vector<256x128xf32>
    %8 = tpu.matmul %4, %7, %cst_10 {dimension_numbers = #tpu.dot_dimension_numbers<[1], [0], [0], [1], [0, 0, 1, 1], [], []>} : vector<256x128xbf16>, vector<128x128xbf16>, vector<256x128xf32> -> vector<256x128xf32>
    %9 = arith.addf %5, %8 : vector<256x128xf32>
    %c0_11 = arith.constant 0 : index
    %c0_12 = arith.constant 0 : index
    %10 = vector.load %arg5[%c0_11, %c0_12] : memref<256x128xf32, #tpu.memory_space<vmem>>, vector<256x128xf32>
    tpu.vector_store %arg5[%c0_11, %c0_12], %9 {strides = array<i32>} : memref<256x128xf32, #tpu.memory_space<vmem>>, vector<256x128xf32>,
    %c0_13 = arith.constant 0 : index
    %c0_14 = arith.constant 0 : index
    %c1 = arith.constant 1 : index
    %c0_15 = arith.constant 0 : index
    %11 = vector.load %arg1[%c0_13, %c0_14, %c1, %c0_15] : memref<1x18x18x128xbf16, #tpu.memory_space<vmem>>, vector<1x16x16x128xbf16>
    %12 = vector.shape_cast %11 : vector<1x16x16x128xbf16> to vector<16x16x128xbf16>
    %13 = vector.shape_cast %12 : vector<16x16x128xbf16> to vector<256x128xbf16>
    %c0_16 = arith.constant 0 : index
    %c0_17 = arith.constant 0 : index
    %14 = vector.load %arg5[%c0_16, %c0_17] : memref<256x128xf32, #tpu.memory_space<vmem>>, vector<256x128xf32>
    %c1_18 = arith.constant 1 : index
    %c0_19 = arith.constant 0 : index
    %c0_20 = arith.constant 0 : index
    %15 = vector.load %arg2[%c1_18, %c0_19, %c0_20] : memref<9x128x128xbf16, #tpu.memory_space<vmem>>, vector<1x128x128xbf16>
    %16 = vector.shape_cast %15 : vector<1x128x128xbf16> to vector<128x128xbf16>
    %cst_21 = arith.constant dense<0.000000e+00> : vector<256x128xf32>
    %17 = tpu.matmul %13, %16, %cst_21 {dimension_numbers = #tpu.dot_dimension_numbers<[1], [0], [0], [1], [0, 0, 1, 1], [], []>} : vector<256x128xbf16>, vector<128x128xbf16>, vector<256x128xf32> -> vector<256x128xf32>
    %18 = arith.addf %14, %17 : vector<256x128xf32>
    %c0_22 = arith.constant 0 : index
    %c0_23 = arith.constant 0 : index
    %19 = vector.load %arg5[%c0_22, %c0_23] : memref<256x128xf32, #tpu.memory_space<vmem>>, vector<256x128xf32>
    tpu.vector_store %arg5[%c0_22, %c0_23], %18 {strides = array<i32>} : memref<256x128xf32, #tpu.memory_space<vmem>>, vector<256x128xf32>,
    %c0_24 = arith.constant 0 : index
    %c0_25 = arith.constant 0 : index
    %c2 = arith.constant 2 : index
    %c0_26 = arith.constant 0 : index
    %20 = vector.load %arg1[%c0_24, %c0_25, %c2, %c0_26] : memref<1x18x18x128xbf16, #tpu.memory_space<vmem>>, vector<1x16x16x128xbf16>
    %21 = vector.shape_cast %20 : vector<1x16x16x128xbf16> to vector<16x16x128xbf16>
    %22 = vector.shape_cast %21 : vector<16x16x128xbf16> to vector<256x128xbf16>
    %c0_27 = arith.constant 0 : index
    %c0_28 = arith.constant 0 : index
    %23 = vector.load %arg5[%c0_27, %c0_28] : memref<256x128xf32, #tpu.memory_space<vmem>>, vector<256x128xf32>
    %c2_29 = arith.constant 2 : index
    %c0_30 = arith.constant 0 : index
    %c0_31 = arith.constant 0 : index
    %24 = vector.load %arg2[%c2_29, %c0_30, %c0_31] : memref<9x128x128xbf16, #tpu.memory_space<vmem>>, vector<1x128x128xbf16>
    %25 = vector.shape_cast %24 : vector<1x128x128xbf16> to vector<128x128xbf16>
    %cst_32 = arith.constant dense<0.000000e+00> : vector<256x128xf32>
    %26 = tpu.matmul %22, %25, %cst_32 {dimension_numbers = #tpu.dot_dimension_numbers<[1], [0], [0], [1], [0, 0, 1, 1], [], []>} : vector<256x128xbf16>, vector<128x128xbf16>, vector<256x128xf32> -> vector<256x128xf32>
    %27 = arith.addf %23, %26 : vector<256x128xf32>
    %c0_33 = arith.constant 0 : index
    %c0_34 = arith.constant 0 : index
    %28 = vector.load %arg5[%c0_33, %c0_34] : memref<256x128xf32, #tpu.memory_space<vmem>>, vector<256x128xf32>
    tpu.vector_store %arg5[%c0_33, %c0_34], %27 {strides = array<i32>} : memref<256x128xf32, #tpu.memory_space<vmem>>, vector<256x128xf32>,
    %c0_35 = arith.constant 0 : index
    %c1_36 = arith.constant 1 : index
    %c0_37 = arith.constant 0 : index
    %c0_38 = arith.constant 0 : index
    %29 = vector.load %arg1[%c0_35, %c1_36, %c0_37, %c0_38] : memref<1x18x18x128xbf16, #tpu.memory_space<vmem>>, vector<1x16x16x128xbf16>
    %30 = vector.shape_cast %29 : vector<1x16x16x128xbf16> to vector<16x16x128xbf16>
    %31 = vector.shape_cast %30 : vector<16x16x128xbf16> to vector<256x128xbf16>
    %c0_39 = arith.constant 0 : index
    %c0_40 = arith.constant 0 : index
    %32 = vector.load %arg5[%c0_39, %c0_40] : memref<256x128xf32, #tpu.memory_space<vmem>>, vector<256x128xf32>
    %c3 = arith.constant 3 : index
    %c0_41 = arith.constant 0 : index
    %c0_42 = arith.constant 0 : index
    %33 = vector.load %arg2[%c3, %c0_41, %c0_42] : memref<9x128x128xbf16, #tpu.memory_space<vmem>>, vector<1x128x128xbf16>
    %34 = vector.shape_cast %33 : vector<1x128x128xbf16> to vector<128x128xbf16>
    %cst_43 = arith.constant dense<0.000000e+00> : vector<256x128xf32>
    %35 = tpu.matmul %31, %34, %cst_43 {dimension_numbers = #tpu.dot_dimension_numbers<[1], [0], [0], [1], [0, 0, 1, 1], [], []>} : vector<256x128xbf16>, vector<128x128xbf16>, vector<256x128xf32> -> vector<256x128xf32>
    %36 = arith.addf %32, %35 : vector<256x128xf32>
    %c0_44 = arith.constant 0 : index
    %c0_45 = arith.constant 0 : index
    %37 = vector.load %arg5[%c0_44, %c0_45] : memref<256x128xf32, #tpu.memory_space<vmem>>, vector<256x128xf32>
    tpu.vector_store %arg5[%c0_44, %c0_45], %36 {strides = array<i32>} : memref<256x128xf32, #tpu.memory_space<vmem>>, vector<256x128xf32>,
    %c0_46 = arith.constant 0 : index
    %c1_47 = arith.constant 1 : index
    %c1_48 = arith.constant 1 : index
    %c0_49 = arith.constant 0 : index
    %38 = vector.load %arg1[%c0_46, %c1_47, %c1_48, %c0_49] : memref<1x18x18x128xbf16, #tpu.memory_space<vmem>>, vector<1x16x16x128xbf16>
    %39 = vector.shape_cast %38 : vector<1x16x16x128xbf16> to vector<16x16x128xbf16>
    %40 = vector.shape_cast %39 : vector<16x16x128xbf16> to vector<256x128xbf16>
    %c0_50 = arith.constant 0 : index
    %c0_51 = arith.constant 0 : index
    %41 = vector.load %arg5[%c0_50, %c0_51] : memref<256x128xf32, #tpu.memory_space<vmem>>, vector<256x128xf32>
    %c4 = arith.constant 4 : index
    %c0_52 = arith.constant 0 : index
    %c0_53 = arith.constant 0 : index
    %42 = vector.load %arg2[%c4, %c0_52, %c0_53] : memref<9x128x128xbf16, #tpu.memory_space<vmem>>, vector<1x128x128xbf16>
    %43 = vector.shape_cast %42 : vector<1x128x128xbf16> to vector<128x128xbf16>
    %cst_54 = arith.constant dense<0.000000e+00> : vector<256x128xf32>
    %44 = tpu.matmul %40, %43, %cst_54 {dimension_numbers = #tpu.dot_dimension_numbers<[1], [0], [0], [1], [0, 0, 1, 1], [], []>} : vector<256x128xbf16>, vector<128x128xbf16>, vector<256x128xf32> -> vector<256x128xf32>
    %45 = arith.addf %41, %44 : vector<256x128xf32>
    %c0_55 = arith.constant 0 : index
    %c0_56 = arith.constant 0 : index
    %46 = vector.load %arg5[%c0_55, %c0_56] : memref<256x128xf32, #tpu.memory_space<vmem>>, vector<256x128xf32>
    tpu.vector_store %arg5[%c0_55, %c0_56], %45 {strides = array<i32>} : memref<256x128xf32, #tpu.memory_space<vmem>>, vector<256x128xf32>,
    %c0_57 = arith.constant 0 : index
    %c1_58 = arith.constant 1 : index
    %c2_59 = arith.constant 2 : index
    %c0_60 = arith.constant 0 : index
    %47 = vector.load %arg1[%c0_57, %c1_58, %c2_59, %c0_60] : memref<1x18x18x128xbf16, #tpu.memory_space<vmem>>, vector<1x16x16x128xbf16>
    %48 = vector.shape_cast %47 : vector<1x16x16x128xbf16> to vector<16x16x128xbf16>
    %49 = vector.shape_cast %48 : vector<16x16x128xbf16> to vector<256x128xbf16>
    %c0_61 = arith.constant 0 : index
    %c0_62 = arith.constant 0 : index
    %50 = vector.load %arg5[%c0_61, %c0_62] : memref<256x128xf32, #tpu.memory_space<vmem>>, vector<256x128xf32>
    %c5 = arith.constant 5 : index
    %c0_63 = arith.constant 0 : index
    %c0_64 = arith.constant 0 : index
    %51 = vector.load %arg2[%c5, %c0_63, %c0_64] : memref<9x128x128xbf16, #tpu.memory_space<vmem>>, vector<1x128x128xbf16>
    %52 = vector.shape_cast %51 : vector<1x128x128xbf16> to vector<128x128xbf16>
    %cst_65 = arith.constant dense<0.000000e+00> : vector<256x128xf32>
    %53 = tpu.matmul %49, %52, %cst_65 {dimension_numbers = #tpu.dot_dimension_numbers<[1], [0], [0], [1], [0, 0, 1, 1], [], []>} : vector<256x128xbf16>, vector<128x128xbf16>, vector<256x128xf32> -> vector<256x128xf32>
    %54 = arith.addf %50, %53 : vector<256x128xf32>
    %c0_66 = arith.constant 0 : index
    %c0_67 = arith.constant 0 : index
    %55 = vector.load %arg5[%c0_66, %c0_67] : memref<256x128xf32, #tpu.memory_space<vmem>>, vector<256x128xf32>
    tpu.vector_store %arg5[%c0_66, %c0_67], %54 {strides = array<i32>} : memref<256x128xf32, #tpu.memory_space<vmem>>, vector<256x128xf32>,
    %c0_68 = arith.constant 0 : index
    %c2_69 = arith.constant 2 : index
    %c0_70 = arith.constant 0 : index
    %c0_71 = arith.constant 0 : index
    %56 = vector.load %arg1[%c0_68, %c2_69, %c0_70, %c0_71] : memref<1x18x18x128xbf16, #tpu.memory_space<vmem>>, vector<1x16x16x128xbf16>
    %57 = vector.shape_cast %56 : vector<1x16x16x128xbf16> to vector<16x16x128xbf16>
    %58 = vector.shape_cast %57 : vector<16x16x128xbf16> to vector<256x128xbf16>
    %c0_72 = arith.constant 0 : index
    %c0_73 = arith.constant 0 : index
    %59 = vector.load %arg5[%c0_72, %c0_73] : memref<256x128xf32, #tpu.memory_space<vmem>>, vector<256x128xf32>
    %c6 = arith.constant 6 : index
    %c0_74 = arith.constant 0 : index
    %c0_75 = arith.constant 0 : index
    %60 = vector.load %arg2[%c6, %c0_74, %c0_75] : memref<9x128x128xbf16, #tpu.memory_space<vmem>>, vector<1x128x128xbf16>
    %61 = vector.shape_cast %60 : vector<1x128x128xbf16> to vector<128x128xbf16>
    %cst_76 = arith.constant dense<0.000000e+00> : vector<256x128xf32>
    %62 = tpu.matmul %58, %61, %cst_76 {dimension_numbers = #tpu.dot_dimension_numbers<[1], [0], [0], [1], [0, 0, 1, 1], [], []>} : vector<256x128xbf16>, vector<128x128xbf16>, vector<256x128xf32> -> vector<256x128xf32>
    %63 = arith.addf %59, %62 : vector<256x128xf32>
    %c0_77 = arith.constant 0 : index
    %c0_78 = arith.constant 0 : index
    %64 = vector.load %arg5[%c0_77, %c0_78] : memref<256x128xf32, #tpu.memory_space<vmem>>, vector<256x128xf32>
    tpu.vector_store %arg5[%c0_77, %c0_78], %63 {strides = array<i32>} : memref<256x128xf32, #tpu.memory_space<vmem>>, vector<256x128xf32>,
    %c0_79 = arith.constant 0 : index
    %c2_80 = arith.constant 2 : index
    %c1_81 = arith.constant 1 : index
    %c0_82 = arith.constant 0 : index
    %65 = vector.load %arg1[%c0_79, %c2_80, %c1_81, %c0_82] : memref<1x18x18x128xbf16, #tpu.memory_space<vmem>>, vector<1x16x16x128xbf16>
    %66 = vector.shape_cast %65 : vector<1x16x16x128xbf16> to vector<16x16x128xbf16>
    %67 = vector.shape_cast %66 : vector<16x16x128xbf16> to vector<256x128xbf16>
    %c0_83 = arith.constant 0 : index
    %c0_84 = arith.constant 0 : index
    %68 = vector.load %arg5[%c0_83, %c0_84] : memref<256x128xf32, #tpu.memory_space<vmem>>, vector<256x128xf32>
    %c7 = arith.constant 7 : index
    %c0_85 = arith.constant 0 : index
    %c0_86 = arith.constant 0 : index
    %69 = vector.load %arg2[%c7, %c0_85, %c0_86] : memref<9x128x128xbf16, #tpu.memory_space<vmem>>, vector<1x128x128xbf16>
    %70 = vector.shape_cast %69 : vector<1x128x128xbf16> to vector<128x128xbf16>
    %cst_87 = arith.constant dense<0.000000e+00> : vector<256x128xf32>
    %71 = tpu.matmul %67, %70, %cst_87 {dimension_numbers = #tpu.dot_dimension_numbers<[1], [0], [0], [1], [0, 0, 1, 1], [], []>} : vector<256x128xbf16>, vector<128x128xbf16>, vector<256x128xf32> -> vector<256x128xf32>
    %72 = arith.addf %68, %71 : vector<256x128xf32>
    %c0_88 = arith.constant 0 : index
    %c0_89 = arith.constant 0 : index
    %73 = vector.load %arg5[%c0_88, %c0_89] : memref<256x128xf32, #tpu.memory_space<vmem>>, vector<256x128xf32>
    tpu.vector_store %arg5[%c0_88, %c0_89], %72 {strides = array<i32>} : memref<256x128xf32, #tpu.memory_space<vmem>>, vector<256x128xf32>,
    %c0_90 = arith.constant 0 : index
    %c2_91 = arith.constant 2 : index
    %c2_92 = arith.constant 2 : index
    %c0_93 = arith.constant 0 : index
    %74 = vector.load %arg1[%c0_90, %c2_91, %c2_92, %c0_93] : memref<1x18x18x128xbf16, #tpu.memory_space<vmem>>, vector<1x16x16x128xbf16>
    %75 = vector.shape_cast %74 : vector<1x16x16x128xbf16> to vector<16x16x128xbf16>
    %76 = vector.shape_cast %75 : vector<16x16x128xbf16> to vector<256x128xbf16>
    %c0_94 = arith.constant 0 : index
    %c0_95 = arith.constant 0 : index
    %77 = vector.load %arg5[%c0_94, %c0_95] : memref<256x128xf32, #tpu.memory_space<vmem>>, vector<256x128xf32>
    %c8 = arith.constant 8 : index
    %c0_96 = arith.constant 0 : index
    %c0_97 = arith.constant 0 : index
    %78 = vector.load %arg2[%c8, %c0_96, %c0_97] : memref<9x128x128xbf16, #tpu.memory_space<vmem>>, vector<1x128x128xbf16>
    %79 = vector.shape_cast %78 : vector<1x128x128xbf16> to vector<128x128xbf16>
    %cst_98 = arith.constant dense<0.000000e+00> : vector<256x128xf32>
    %80 = tpu.matmul %76, %79, %cst_98 {dimension_numbers = #tpu.dot_dimension_numbers<[1], [0], [0], [1], [0, 0, 1, 1], [], []>} : vector<256x128xbf16>, vector<128x128xbf16>, vector<256x128xf32> -> vector<256x128xf32>
    %81 = arith.addf %77, %80 : vector<256x128xf32>
    %c0_99 = arith.constant 0 : index
    %c0_100 = arith.constant 0 : index
    %82 = vector.load %arg5[%c0_99, %c0_100] : memref<256x128xf32, #tpu.memory_space<vmem>>, vector<256x128xf32>
    tpu.vector_store %arg5[%c0_99, %c0_100], %81 {strides = array<i32>} : memref<256x128xf32, #tpu.memory_space<vmem>>, vector<256x128xf32>,
    %c0_101 = arith.constant 0 : index
    %c0_102 = arith.constant 0 : index
    %83 = vector.load %arg5[%c0_101, %c0_102] : memref<256x128xf32, #tpu.memory_space<vmem>>, vector<256x128xf32>
    %c0_103 = arith.constant 0 : index
    %c0_104 = arith.constant 0 : index
    %84 = vector.load %arg3[%c0_103, %c0_104] : memref<1x128xf32, #tpu.memory_space<vmem>>, vector<1x128xf32>
    %85 = vector.broadcast %84 : vector<1x128xf32> to vector<256x128xf32>
    %86 = arith.addf %83, %85 : vector<256x128xf32>
    %cst_105 = arith.constant 0.000000e+00 : f32
    %87 = vector.broadcast %cst_105 : f32 to vector<256x128xf32>
    %88 = arith.maximumf %86, %87 : vector<256x128xf32>
    %89 = arith.truncf %88 : vector<256x128xf32> to vector<256x128xbf16>
    %c0_106 = arith.constant 0 : index
    %c0_107 = arith.constant 0 : index
    %90 = vector.load %arg4[%c0_106, %c0_107] : memref<256x128xbf16, #tpu.memory_space<vmem>>, vector<256x128xbf16>
    tpu.vector_store %arg4[%c0_106, %c0_107], %89 {strides = array<i32>} : memref<256x128xbf16, #tpu.memory_space<vmem>>, vector<256x128xbf16>,
    return
  }
  func.func @transform_0(%arg0: i32) -> (i32, i32, i32, i32) {
    %c0_i32 = arith.constant 0 : i32
    %c0_i32_0 = arith.constant 0 : i32
    %c0_i32_1 = arith.constant 0 : i32
    %c0_i32_2 = arith.constant 0 : i32
    return %arg0, %c0_i32, %c0_i32_0, %c0_i32_1 : i32, i32, i32, i32
  }
  func.func @transform_1(%arg0: i32) -> (i32, i32, i32) {
    %c0_i32 = arith.constant 0 : i32
    %c0_i32_0 = arith.constant 0 : i32
    %c0_i32_1 = arith.constant 0 : i32
    %c0_i32_2 = arith.constant 0 : i32
    return %c0_i32, %c0_i32_0, %c0_i32_1 : i32, i32, i32
  }
  func.func @transform_2(%arg0: i32) -> (i32, i32) {
    %c0_i32 = arith.constant 0 : i32
    %c0_i32_0 = arith.constant 0 : i32
    %c0_i32_1 = arith.constant 0 : i32
    return %c0_i32, %c0_i32_0 : i32, i32
  }
  func.func @transform_3(%arg0: i32) -> (i32, i32) {
    %c0_i32 = arith.constant 0 : i32
    %c0_i32_0 = arith.constant 0 : i32
    return %arg0, %c0_i32 : i32, i32
  }
}

module attributes {stable_mosaic.version = 11 : i64} {
  func.func @_mm_kernel(%arg0: i32, %arg1: memref<256x128xbf16, #tpu.memory_space<vmem>>, %arg2: memref<128x128xbf16, #tpu.memory_space<vmem>>, %arg3: memref<1x128xf32, #tpu.memory_space<vmem>>, %arg4: memref<256x128xf32, #tpu.memory_space<vmem>>, %arg5: memref<256x128xf32, #tpu.memory_space<vmem>>) attributes {dimension_semantics = [#tpu.dimension_semantics<parallel>], iteration_bounds = array<i64: 2>, scalar_prefetch = 0 : i64, scratch_operands = 0 : i64, tpu.core_type = #tpu.core_type<tc>, window_params = [{transform_indices = @transform_0, window_bounds = array<i64: 256, 128>}, {pipeline_mode = #tpu.pipeline_mode<synchronous>, transform_indices = @transform_1, window_bounds = array<i64: 128, 128>}, {pipeline_mode = #tpu.pipeline_mode<synchronous>, transform_indices = @transform_2, window_bounds = array<i64: 1, 128>}, {transform_indices = @transform_3, window_bounds = array<i64: 256, 128>}, {transform_indices = @transform_4, window_bounds = array<i64: 256, 128>}]} {
    %c0 = arith.constant 0 : index
    %c0_0 = arith.constant 0 : index
    %0 = vector.load %arg1[%c0, %c0_0] : memref<256x128xbf16, #tpu.memory_space<vmem>>, vector<256x128xbf16>
    %c0_1 = arith.constant 0 : index
    %c0_2 = arith.constant 0 : index
    %1 = vector.load %arg2[%c0_1, %c0_2] : memref<128x128xbf16, #tpu.memory_space<vmem>>, vector<128x128xbf16>
    %cst = arith.constant dense<0.000000e+00> : vector<256x128xf32>
    %2 = tpu.matmul %0, %1, %cst {dimension_numbers = #tpu.dot_dimension_numbers<[1], [0], [0], [1], [0, 0, 1, 1], [], []>} : vector<256x128xbf16>, vector<128x128xbf16>, vector<256x128xf32> -> vector<256x128xf32>
    %c0_3 = arith.constant 0 : index
    %c0_4 = arith.constant 0 : index
    %3 = vector.load %arg3[%c0_3, %c0_4] : memref<1x128xf32, #tpu.memory_space<vmem>>, vector<1x128xf32>
    %4 = vector.broadcast %3 : vector<1x128xf32> to vector<256x128xf32>
    %5 = arith.addf %2, %4 : vector<256x128xf32>
    %c0_5 = arith.constant 0 : index
    %c0_6 = arith.constant 0 : index
    %6 = vector.load %arg4[%c0_5, %c0_6] : memref<256x128xf32, #tpu.memory_space<vmem>>, vector<256x128xf32>
    %7 = arith.addf %5, %6 : vector<256x128xf32>
    %cst_7 = arith.constant 0.000000e+00 : f32
    %8 = vector.broadcast %cst_7 : f32 to vector<256x128xf32>
    %9 = arith.maximumf %7, %8 : vector<256x128xf32>
    %c0_8 = arith.constant 0 : index
    %c0_9 = arith.constant 0 : index
    %10 = vector.load %arg5[%c0_8, %c0_9] : memref<256x128xf32, #tpu.memory_space<vmem>>, vector<256x128xf32>
    tpu.vector_store %arg5[%c0_8, %c0_9], %9 {strides = array<i32>} : memref<256x128xf32, #tpu.memory_space<vmem>>, vector<256x128xf32>,
    return
  }
  func.func @transform_0(%arg0: i32) -> (i32, i32) {
    %c0_i32 = arith.constant 0 : i32
    %c0_i32_0 = arith.constant 0 : i32
    return %arg0, %c0_i32 : i32, i32
  }
  func.func @transform_1(%arg0: i32) -> (i32, i32) {
    %c0_i32 = arith.constant 0 : i32
    %c0_i32_0 = arith.constant 0 : i32
    %c0_i32_1 = arith.constant 0 : i32
    return %c0_i32, %c0_i32_0 : i32, i32
  }
  func.func @transform_2(%arg0: i32) -> (i32, i32) {
    %c0_i32 = arith.constant 0 : i32
    %c0_i32_0 = arith.constant 0 : i32
    %c0_i32_1 = arith.constant 0 : i32
    return %c0_i32, %c0_i32_0 : i32, i32
  }
  func.func @transform_3(%arg0: i32) -> (i32, i32) {
    %c0_i32 = arith.constant 0 : i32
    %c0_i32_0 = arith.constant 0 : i32
    return %arg0, %c0_i32 : i32, i32
  }
  func.func @transform_4(%arg0: i32) -> (i32, i32) {
    %c0_i32 = arith.constant 0 : i32
    %c0_i32_0 = arith.constant 0 : i32
    return %arg0, %c0_i32 : i32, i32
  }
}

</mosaic_0001>

<llo_original>
// kernel: bottleneck_forward.3
$region0: #{bottleneck_forward.3}
  #allocation0 [shape = 'u32[]', space=smem, size = 0x4, offset = 0x4, fixed_abs, tag = 'smem constant byte address 0x4 - core index']
  #allocation1 [shape = 'u32[144,128]{1,0:T(1,128)}', space=vmem, size = 0x12000, scoped, tag = 'internal scratch']
  %s0 = inlined_call_operand.vmem [shape: f32[512,128], index: 0, kind: input, shape index: {}]
  %s1 = inlined_call_operand.vmem [shape: bf16[128,128], index: 1, kind: input, shape index: {}]
  %s2 = inlined_call_operand.vmem [shape: f32[1,128], index: 2, kind: input, shape index: {}]
  %s3 = inlined_call_operand.vmem [shape: bf16[512,128], index: 3, kind: output, shape index: {}]
  %s4 = sld [smem:[#allocation0]]
  $region45: #{bottleneck_forward.3} parent=0
    _
  %s6 = ssub.s32 1, %s4
  %s7 = scalar_select 0, %s6, %s4
  loop: start=0, step=1, limit=4
  $region2: #{bottleneck_forward.3} parent=0 // loop_pre_header
    _
  $region3: #{bottleneck_forward.3} parent=0 // loop_header
    %s9 = sphi 0, %s13
    %p10 = scmp.ge.s32.totalorder %s9, 4
    %s19 = sphi 0, %s21
    %s22 = sphi 0, %s19
    %s23 = sphi 0, %s22
    %s39 = sphi 0, %s23
    %s43 = sphi 0, %s43
    %s45 = sphi 0, %s43
    %s46 = sphi 0, %s45
    %s60 = sphi 0, %s46
    %s64 = sphi 0, %s64
    %s66 = sphi 0, %s64
    %s67 = sphi 0, %s66
    %s81 = sphi 0, %s67
    %s87 = sphi 0, %s89
    %s90 = sphi 0, %s87
    %s91 = sphi 0, %s90
    %s107 = sphi 0, %s91
  $region4: #{bottleneck_forward.3} parent=0 // loop_header_branch
    %12 = sbr.rel (%p10) target = $region8
  $region5: #{bottleneck_forward.3} parent=0 // loop_body
    %s14 = ssub.s32 %s9, 1
    %s15 = ssub.s32 %s9, 2
    %s16 = sadd.s32 %s9, 1
    %s17 = ssub.s32 %s9, %s16
    %p18 = scmp.eq.s32.totalorder %s17, 0
    %s20 = sadd.s32 %s19, 1
    %s21 = scalar_select %p18, %s19, %s20
    %p24 = pneg %p18
    %p25 = scmp.eq.s32.totalorder %s9, 1
    %p26 = por %p24, %p25
    %p27 = scmp.ne.s32.totalorder %s19, %s22
    %p28 = scmp.eq.s32.totalorder %s9, 0
    %p29 = por %p27, %p28
    %p30 = scmp.ne.s32.totalorder %s19, %s22
    %p31 = scmp.eq.s32.totalorder %s14, 1
    %p32 = por %p30, %p31
    %p33 = scmp.ne.s32.totalorder %s22, %s23
    %p34 = scmp.eq.s32.totalorder %s14, 0
    %p35 = por %p33, %p34
    %p36 = scmp.ne.s32.totalorder %s22, %s23
    %p37 = scmp.eq.s32.totalorder %s15, 1
    %p38 = por %p36, %p37
    %p40 = scmp.ne.s32.totalorder %s23, %s39
    %p41 = scmp.eq.s32.totalorder %s15, 0
    %p42 = por %p40, %p41
    %s44 = sadd.s32 %s43, 1
    %p47 = scmp.eq.s32.totalorder %s9, 1
    %p48 = scmp.ne.s32.totalorder %s43, %s45
    %p49 = scmp.eq.s32.totalorder %s9, 0
    %p50 = por %p48, %p49
    %p51 = scmp.ne.s32.totalorder %s43, %s45
    %p52 = scmp.eq.s32.totalorder %s14, 1
    %p53 = por %p51, %p52
    %p54 = scmp.ne.s32.totalorder %s45, %s46
    %p55 = scmp.eq.s32.totalorder %s14, 0
    %p56 = por %p54, %p55
    %p57 = scmp.ne.s32.totalorder %s45, %s46
    %p58 = scmp.eq.s32.totalorder %s15, 1
    %p59 = por %p57, %p58
    %p61 = scmp.ne.s32.totalorder %s46, %s60
    %p62 = scmp.eq.s32.totalorder %s15, 0
    %p63 = por %p61, %p62
    %s65 = sadd.s32 %s64, 1
    %p68 = scmp.eq.s32.totalorder %s9, 1
    %p69 = scmp.ne.s32.totalorder %s64, %s66
    %p70 = scmp.eq.s32.totalorder %s9, 0
    %p71 = por %p69, %p70
    %p72 = scmp.ne.s32.totalorder %s64, %s66
    %p73 = scmp.eq.s32.totalorder %s14, 1
    %p74 = por %p72, %p73
    %p75 = scmp.ne.s32.totalorder %s66, %s67
    %p76 = scmp.eq.s32.totalorder %s14, 0
    %p77 = por %p75, %p76
    %p78 = scmp.ne.s32.totalorder %s66, %s67
    %p79 = scmp.eq.s32.totalorder %s15, 1
    %p80 = por %p78, %p79
    %p82 = scmp.ne.s32.totalorder %s67, %s81
    %p83 = scmp.eq.s32.totalorder %s15, 0
    %p84 = por %p82, %p83
    %s85 = ssub.s32 %s9, %s16
    %p86 = scmp.eq.s32.totalorder %s85, 0
    %s88 = sadd.s32 %s87, 1
    %s89 = scalar_select %p86, %s87, %s88
    %p92 = pneg %p86
    %p93 = scmp.eq.s32.totalorder %s9, 1
    %p94 = por %p92, %p93
    %p95 = scmp.ne.s32.totalorder %s87, %s90
    %p96 = scmp.eq.s32.totalorder %s9, 0
    %p97 = por %p95, %p96
    %p98 = scmp.ne.s32.totalorder %s87, %s90
    %p99 = scmp.eq.s32.totalorder %s14, 1
    %p100 = por %p98, %p99
    %p101 = scmp.ne.s32.totalorder %s90, %s91
    %p102 = scmp.eq.s32.totalorder %s14, 0
    %p103 = por %p101, %p102
    %p104 = scmp.ne.s32.totalorder %s90, %s91
    %p105 = scmp.eq.s32.totalorder %s15, 1
    %p106 = por %p104, %p105
    %p108 = scmp.ne.s32.totalorder %s91, %s107
    %p109 = scmp.eq.s32.totalorder %s15, 0
    %p110 = por %p108, %p109
    %p111 = scmp.le.s32.totalorder 1, %s9
    %p112 = scmp.lt.s32.totalorder %s9, 3
    %p113 = pnand %p111, %p112
    %p114 = pneg %p113
    // Predicated region
    $region9: #{bottleneck_forward.3} parent=5 // pred_check
      _
    $region10: #{bottleneck_forward.3} parent=5 // pred_check_branch
      %116 = sbr.rel (%p113) target = $region12
    $region11: #{bottleneck_forward.3} parent=5 // pred_region
      %s117 = ssub.s32 %s9, 1
      // Predicated region
      $region13: #{bottleneck_forward.3} parent=11 // pred_check
        %p118 = pneg %p56
      $region14: #{bottleneck_forward.3} parent=11 // pred_check_branch
        %120 = sbr.rel (%p118) target = $region16
      $region15: #{bottleneck_forward.3} parent=11 // pred_region
        _
      $region16: #{bottleneck_forward.3} parent=11 // pred_fallthru
        _
      // Predicated region
      $region17: #{bottleneck_forward.3} parent=11 // pred_check
        %p121 = pneg %p77
      $region18: #{bottleneck_forward.3} parent=11 // pred_check_branch
        %123 = sbr.rel (%p121) target = $region20
      $region19: #{bottleneck_forward.3} parent=11 // pred_region
        _
      $region20: #{bottleneck_forward.3} parent=11 // pred_fallthru
        _
    $region12: #{bottleneck_forward.3} parent=5 // pred_fallthru
      _
    %p124 = scmp.lt.s32.totalorder %s9, 2
    // Predicated region
    $region21: #{bottleneck_forward.3} parent=5 // pred_check
      %p125 = pneg %p124
    $region22: #{bottleneck_forward.3} parent=5 // pred_check_branch
      %127 = sbr.rel (%p125) target = $region24
    $region23: #{bottleneck_forward.3} parent=5 // pred_region
      // Predicated region
      $region25: #{bottleneck_forward.3} parent=23 // pred_check
        %p128 = pneg %p29
      $region26: #{bottleneck_forward.3} parent=23 // pred_check_branch
        %130 = sbr.rel (%p128) target = $region28
      $region27: #{bottleneck_forward.3} parent=23 // pred_region
        %s131 = smul.u32 32, %s9
        %p132 = scmp.lt.s32.totalorder %s131, 63
        %s133 = scalar_select %p132, %s131, 63
        %s134 = smul.addr %s133, 8
        %s135 = scalar_lea.vmem %s0, %s134
        %s136 = smul.u32 32, %s9
      $region28: #{bottleneck_forward.3} parent=23 // pred_fallthru
        _
    $region24: #{bottleneck_forward.3} parent=5 // pred_fallthru
      _
    %p137 = scmp.le.s32.totalorder 1, %s9
    %p138 = scmp.lt.s32.totalorder %s9, 3
    %p139 = pnand %p137, %p138
    %p140 = pneg %p139
    // Predicated region
    $region29: #{bottleneck_forward.3} parent=5 // pred_check
      _
    $region30: #{bottleneck_forward.3} parent=5 // pred_check_branch
      %142 = sbr.rel (%p139) target = $region32
    $region31: #{bottleneck_forward.3} parent=5 // pred_region
      %s143 = ssub.s32 %s9, 1
      %s144 = smul.u32 32, %s14
      %p145 = scmp.lt.s32.totalorder %s144, 63
      %s146 = scalar_select %p145, %s144, 63
      %s147 = smul.addr %s146, 8
      %s148 = scalar_lea.vmem %s0, %s147
      %p149 = pneg %p35
      %p150 = pneg %p32
      %p151 = pneg %p56
      %p152 = pneg %p53
      %p153 = pneg %p77
      %p154 = pneg %p74
      %p155 = pneg %p103
      %p156 = pneg %p100
      %s157 = smul.u32 32, %s14
      %p158 = scmp.lt.s32.totalorder %s157, 63
      %s159 = scalar_select %p158, %s157, 63
      %s160 = smul.addr %s159, 4
      %s161 = scalar_lea.vmem %s3, %s160
      %s162 = smul.u32 32, %s14
      %p163 = scmp.lt.s32.totalorder %s162, 63
      %s164 = scalar_select %p163, %s162, 63
      %s165 = smul.addr %s164, 8
      %s166 = scalar_lea.vmem %s0, %s165
      %s167 = smul.u32 32, %s14
      %s168 = smul.u32 32, %s14
      %p169 = scmp.lt.s32.totalorder %s168, 63
      %s170 = scalar_select %p169, %s168, 63
      %s171 = smul.addr %s170, 4
      %s172 = scalar_lea.vmem %s3, %s171
      %s173 = smul.u32 32, %s14
      %v175 = vld [vmem:[%s166] sm:$0xff]
      %v176 = vld [vmem:[%s166 + $0x8] sm:$0xff]
      %v177 = vld [vmem:[%s166 + $0x10] sm:$0xff]
      %v178 = vld [vmem:[%s166 + $0x18] sm:$0xff]
      %v179 = vld [vmem:[%s166 + $0x20] sm:$0xff]
      %v180 = vld [vmem:[%s166 + $0x28] sm:$0xff]
      %v181 = vld [vmem:[%s166 + $0x30] sm:$0xff]
      %v182 = vld [vmem:[%s166 + $0x38] sm:$0xff]
      %v183 = vld [vmem:[%s166 + $0x40] sm:$0xff]
      %v184 = vld [vmem:[%s166 + $0x48] sm:$0xff]
      %v185 = vld [vmem:[%s166 + $0x50] sm:$0xff]
      %v186 = vld [vmem:[%s166 + $0x58] sm:$0xff]
      %v187 = vld [vmem:[%s166 + $0x60] sm:$0xff]
      %v188 = vld [vmem:[%s166 + $0x68] sm:$0xff]
      %v189 = vld [vmem:[%s166 + $0x70] sm:$0xff]
      %v190 = vld [vmem:[%s166 + $0x78] sm:$0xff]
      %v191 = vld [vmem:[%s166 + $0x80] sm:$0xff]
      %v192 = vld [vmem:[%s166 + $0x88] sm:$0xff]
      %v193 = vld [vmem:[%s166 + $0x90] sm:$0xff]
      %v194 = vld [vmem:[%s166 + $0x98] sm:$0xff]
      %v195 = vld [vmem:[%s166 + $0xa0] sm:$0xff]
      %v196 = vld [vmem:[%s166 + $0xa8] sm:$0xff]
      %v197 = vld [vmem:[%s166 + $0xb0] sm:$0xff]
      %v198 = vld [vmem:[%s166 + $0xb8] sm:$0xff]
      %v199 = vld [vmem:[%s166 + $0xc0] sm:$0xff]
      %v200 = vld [vmem:[%s166 + $0xc8] sm:$0xff]
      %v201 = vld [vmem:[%s166 + $0xd0] sm:$0xff]
      %v202 = vld [vmem:[%s166 + $0xd8] sm:$0xff]
      %v203 = vld [vmem:[%s166 + $0xe0] sm:$0xff]
      %v204 = vld [vmem:[%s166 + $0xe8] sm:$0xff]
      %v205 = vld [vmem:[%s166 + $0xf0] sm:$0xff]
      %v206 = vld [vmem:[%s166 + $0xf8] sm:$0xff]
      %v207 = vpack.c.bf16 %v176, %v175
      %v208 = vpack.c.bf16 %v178, %v177
      %v209 = vpack.c.bf16 %v180, %v179
      %v210 = vpack.c.bf16 %v182, %v181
      %v211 = vpack.c.bf16 %v184, %v183
      %v212 = vpack.c.bf16 %v186, %v185
      %v213 = vpack.c.bf16 %v188, %v187
      %v214 = vpack.c.bf16 %v190, %v189
      %v215 = vpack.c.bf16 %v192, %v191
      %v216 = vpack.c.bf16 %v194, %v193
      %v217 = vpack.c.bf16 %v196, %v195
      %v218 = vpack.c.bf16 %v198, %v197
      %v219 = vpack.c.bf16 %v200, %v199
      %v220 = vpack.c.bf16 %v202, %v201
      %v221 = vpack.c.bf16 %v204, %v203
      %v222 = vpack.c.bf16 %v206, %v205
      %v223 = vld [vmem:[%s1] sm:$0xf]
      %v224 = vld [vmem:[%s1 + $0x4] sm:$0xf]
      %v225 = vld [vmem:[%s1 + $0x8] sm:$0xf]
      %v226 = vld [vmem:[%s1 + $0xc] sm:$0xf]
      %v227 = vld [vmem:[%s1 + $0x10] sm:$0xf]
      %v228 = vld [vmem:[%s1 + $0x14] sm:$0xf]
      %v229 = vld [vmem:[%s1 + $0x18] sm:$0xf]
      %v230 = vld [vmem:[%s1 + $0x1c] sm:$0xf]
      %v231 = vld [vmem:[%s1 + $0x20] sm:$0xf]
      %v232 = vld [vmem:[%s1 + $0x24] sm:$0xf]
      %v233 = vld [vmem:[%s1 + $0x28] sm:$0xf]
      %v234 = vld [vmem:[%s1 + $0x2c] sm:$0xf]
      %v235 = vld [vmem:[%s1 + $0x30] sm:$0xf]
      %v236 = vld [vmem:[%s1 + $0x34] sm:$0xf]
      %v237 = vld [vmem:[%s1 + $0x38] sm:$0xf]
      %v238 = vld [vmem:[%s1 + $0x3c] sm:$0xf]
      %v239 = vld [vmem:[%s2] sm:$0x1]
      %v241 = vlaneseq
      %v242 = vshrl.u32 %v241, 7
      %v243 = vsub.s32 0, %v242
      %v244 = vrot.slane %v239, %v243
      %v262 = vunpack.c.l.b16 %v223
      %v263 = vunpack.c.l.b16 %v224
      %v264 = vunpack.c.l.b16 %v225
      %v265 = vunpack.c.l.b16 %v226
      %v266 = vunpack.c.l.b16 %v227
      %v267 = vunpack.c.l.b16 %v228
      %v268 = vunpack.c.l.b16 %v229
      %v269 = vunpack.c.l.b16 %v230
      %v270 = vunpack.c.l.b16 %v231
      %v271 = vunpack.c.l.b16 %v232
      %v272 = vunpack.c.l.b16 %v233
      %v273 = vunpack.c.l.b16 %v234
      %v274 = vunpack.c.l.b16 %v235
      %v275 = vunpack.c.l.b16 %v236
      %v276 = vunpack.c.l.b16 %v237
      %v277 = vunpack.c.l.b16 %v238
      %v278 = vpack.c.b16 %v263, %v262
      %v279 = vpack.c.b16 %v265, %v264
      %v280 = vpack.c.b16 %v267, %v266
      %v281 = vpack.c.b16 %v269, %v268
      %v282 = vpack.c.b16 %v271, %v270
      %v283 = vpack.c.b16 %v273, %v272
      %v284 = vpack.c.b16 %v275, %v274
      %v285 = vpack.c.b16 %v277, %v276
      %294 = vmatprep.subr.bf16.mxu0 0
      %295 = vmatpush1.bf16.msra.mxu0 %v278
      %296 = vmatprep.subr.bf16.mxu0 0
      %297 = vmatpush1.bf16.msra.mxu0 %v279
      %298 = vmatprep.subr.bf16.mxu0 0
      %299 = vmatpush1.bf16.msra.mxu0 %v280
      %300 = vmatprep.subr.bf16.mxu0 0
      %301 = vmatpush1.bf16.msra.mxu0 %v281
      %302 = vmatprep.subr.bf16.mxu0 0
      %303 = vmatpush1.bf16.msra.mxu0 %v282
      %304 = vmatprep.subr.bf16.mxu0 0
      %305 = vmatpush1.bf16.msra.mxu0 %v283
      %306 = vmatprep.subr.bf16.mxu0 0
      %307 = vmatpush1.bf16.msra.mxu0 %v284
      %308 = vmatprep.subr.bf16.mxu0 0
      %309 = vmatpush1.bf16.msra.mxu0 %v285
      %310 = vmatprep.subr.bf16.mxu0 0
      %311 = vmatpush1.bf16.msra.mxu0 0
      %312 = vmatprep.subr.bf16.mxu0 0
      %313 = vmatpush1.bf16.msra.mxu0 0
      %314 = vmatprep.subr.bf16.mxu0 0
      %315 = vmatpush1.bf16.msra.mxu0 0
      %316 = vmatprep.subr.bf16.mxu0 0
      %317 = vmatpush1.bf16.msra.mxu0 0
      %318 = vmatprep.subr.bf16.mxu0 0
      %319 = vmatpush1.bf16.msra.mxu0 0
      %320 = vmatprep.subr.bf16.mxu0 0
      %321 = vmatpush1.bf16.msra.mxu0 0
      %322 = vmatprep.subr.bf16.mxu0 0
      %323 = vmatpush1.bf16.msra.mxu0 0
      %324 = vmatprep.subr.bf16.mxu0 0
      %325 = vmatpush1.bf16.msra.mxu0 0
      %326 = vmatprep.mubr.bf16.mxu0 0
      %327 = vmatmul.mubr.bf16.gmra.mrb[0].mxu0 %v207
      %v328 = vpop.f32.mrb[0].mxu0
      %v329 = vadd.f32 %v244, %v328
      %v330 = vpop.f32.mrb[0].mxu0
      %v331 = vpop.f32.mrb[0].mxu0
      %v332 = vadd.f32 %v244, %v331
      %v333 = vpop.f32.mrb[0].mxu0
      %334 = vmatprep.mubr.bf16.mxu0 0
      %335 = vmatmul.mubr.bf16.gmra.mrb[0].mxu0 %v208
      %v336 = vpop.f32.mrb[0].mxu0
      %v337 = vadd.f32 %v244, %v336
      %v338 = vpop.f32.mrb[0].mxu0
      %v339 = vpop.f32.mrb[0].mxu0
      %v340 = vadd.f32 %v244, %v339
      %v341 = vpop.f32.mrb[0].mxu0
      %342 = vmatprep.mubr.bf16.mxu0 0
      %343 = vmatmul.mubr.bf16.gmra.mrb[0].mxu0 %v209
      %v344 = vpop.f32.mrb[0].mxu0
      %v345 = vadd.f32 %v244, %v344
      %v346 = vpop.f32.mrb[0].mxu0
      %v347 = vpop.f32.mrb[0].mxu0
      %v348 = vadd.f32 %v244, %v347
      %v349 = vpop.f32.mrb[0].mxu0
      %350 = vmatprep.mubr.bf16.mxu0 0
      %351 = vmatmul.mubr.bf16.gmra.mrb[0].mxu0 %v210
      %v352 = vpop.f32.mrb[0].mxu0
      %v353 = vadd.f32 %v244, %v352
      %v354 = vpop.f32.mrb[0].mxu0
      %v355 = vpop.f32.mrb[0].mxu0
      %v356 = vadd.f32 %v244, %v355
      %v357 = vpop.f32.mrb[0].mxu0
      %358 = vmatprep.mubr.bf16.mxu0 0
      %359 = vmatmul.mubr.bf16.gmra.mrb[0].mxu0 %v211
      %v360 = vpop.f32.mrb[0].mxu0
      %v361 = vadd.f32 %v244, %v360
      %v362 = vpop.f32.mrb[0].mxu0
      %v363 = vpop.f32.mrb[0].mxu0
      %v364 = vadd.f32 %v244, %v363
      %v365 = vpop.f32.mrb[0].mxu0
      %366 = vmatprep.mubr.bf16.mxu0 0
      %367 = vmatmul.mubr.bf16.gmra.mrb[0].mxu0 %v212
      %v368 = vpop.f32.mrb[0].mxu0
      %v369 = vadd.f32 %v244, %v368
      %v370 = vpop.f32.mrb[0].mxu0
      %v371 = vpop.f32.mrb[0].mxu0
      %v372 = vadd.f32 %v244, %v371
      %v373 = vpop.f32.mrb[0].mxu0
      %374 = vmatprep.mubr.bf16.mxu0 0
      %375 = vmatmul.mubr.bf16.gmra.mrb[0].mxu0 %v213
      %v376 = vpop.f32.mrb[0].mxu0
      %v377 = vadd.f32 %v244, %v376
      %v378 = vpop.f32.mrb[0].mxu0
      %v379 = vpop.f32.mrb[0].mxu0
      %v380 = vadd.f32 %v244, %v379
      %v381 = vpop.f32.mrb[0].mxu0
      %382 = vmatprep.mubr.bf16.mxu0 0
      %383 = vmatmul.mubr.bf16.gmra.mrb[0].mxu0 %v214
      %v384 = vpop.f32.mrb[0].mxu0
      %v385 = vadd.f32 %v244, %v384
      %v386 = vpop.f32.mrb[0].mxu0
      %v387 = vpop.f32.mrb[0].mxu0
      %v388 = vadd.f32 %v244, %v387
      %v389 = vpop.f32.mrb[0].mxu0
      %390 = vmatprep.mubr.bf16.mxu0 0
      %391 = vmatmul.mubr.bf16.gmra.mrb[0].mxu0 %v215
      %v392 = vpop.f32.mrb[0].mxu0
      %v393 = vadd.f32 %v244, %v392
      %v394 = vpop.f32.mrb[0].mxu0
      %v395 = vpop.f32.mrb[0].mxu0
      %v396 = vadd.f32 %v244, %v395
      %v397 = vpop.f32.mrb[0].mxu0
      %398 = vmatprep.mubr.bf16.mxu0 0
      %399 = vmatmul.mubr.bf16.gmra.mrb[0].mxu0 %v216
      %v400 = vpop.f32.mrb[0].mxu0
      %v401 = vadd.f32 %v244, %v400
      %v402 = vpop.f32.mrb[0].mxu0
      %v403 = vpop.f32.mrb[0].mxu0
      %v404 = vadd.f32 %v244, %v403
      %v405 = vpop.f32.mrb[0].mxu0
      %406 = vmatprep.mubr.bf16.mxu0 0
      %407 = vmatmul.mubr.bf16.gmra.mrb[0].mxu0 %v217
      %v408 = vpop.f32.mrb[0].mxu0
      %v409 = vadd.f32 %v244, %v408
      %v410 = vpop.f32.mrb[0].mxu0
      %v411 = vpop.f32.mrb[0].mxu0
      %v412 = vadd.f32 %v244, %v411
      %v413 = vpop.f32.mrb[0].mxu0
      %414 = vmatprep.mubr.bf16.mxu0 0
      %415 = vmatmul.mubr.bf16.gmra.mrb[0].mxu0 %v218
      %v416 = vpop.f32.mrb[0].mxu0
      %v417 = vadd.f32 %v244, %v416
      %v418 = vpop.f32.mrb[0].mxu0
      %v419 = vpop.f32.mrb[0].mxu0
      %v420 = vadd.f32 %v244, %v419
      %v421 = vpop.f32.mrb[0].mxu0
      %422 = vmatprep.mubr.bf16.mxu0 0
      %423 = vmatmul.mubr.bf16.gmra.mrb[0].mxu0 %v219
      %v424 = vpop.f32.mrb[0].mxu0
      %v425 = vadd.f32 %v244, %v424
      %v426 = vpop.f32.mrb[0].mxu0
      %v427 = vpop.f32.mrb[0].mxu0
      %v428 = vadd.f32 %v244, %v427
      %v429 = vpop.f32.mrb[0].mxu0
      %430 = vmatprep.mubr.bf16.mxu0 0
      %431 = vmatmul.mubr.bf16.gmra.mrb[0].mxu0 %v220
      %v432 = vpop.f32.mrb[0].mxu0
      %v433 = vadd.f32 %v244, %v432
      %v434 = vpop.f32.mrb[0].mxu0
      %v435 = vpop.f32.mrb[0].mxu0
      %v436 = vadd.f32 %v244, %v435
      %v437 = vpop.f32.mrb[0].mxu0
      %438 = vmatprep.mubr.bf16.mxu0 0
      %439 = vmatmul.mubr.bf16.gmra.mrb[0].mxu0 %v221
      %v440 = vpop.f32.mrb[0].mxu0
      %v441 = vadd.f32 %v244, %v440
      %v442 = vpop.f32.mrb[0].mxu0
      %v443 = vpop.f32.mrb[0].mxu0
      %v444 = vadd.f32 %v244, %v443
      %v445 = vpop.f32.mrb[0].mxu0
      %446 = vmatprep.mubr.bf16.mxu0 0
      %447 = vmatmul.mubr.bf16.gmra.mrb[0].mxu0 %v222
      %v448 = vpop.f32.mrb[0].mxu0
      %v449 = vadd.f32 %v244, %v448
      %v450 = vpop.f32.mrb[0].mxu0
      %v451 = vpop.f32.mrb[0].mxu0
      %v452 = vadd.f32 %v244, %v451
      %v453 = vpop.f32.mrb[0].mxu0
      %454 = vdwg.mxu0
      %v455 = vmax.f32 %v329, 0.0
      %v456 = vmax.f32 %v332, 0.0
      %v457 = vmax.f32 %v337, 0.0
      %v458 = vmax.f32 %v340, 0.0
      %v459 = vmax.f32 %v345, 0.0
      %v460 = vmax.f32 %v348, 0.0
      %v461 = vmax.f32 %v353, 0.0
      %v462 = vmax.f32 %v356, 0.0
      %v463 = vmax.f32 %v361, 0.0
      %v464 = vmax.f32 %v364, 0.0
      %v465 = vmax.f32 %v369, 0.0
      %v466 = vmax.f32 %v372, 0.0
      %v467 = vmax.f32 %v377, 0.0
      %v468 = vmax.f32 %v380, 0.0
      %v469 = vmax.f32 %v385, 0.0
      %v470 = vmax.f32 %v388, 0.0
      %v471 = vmax.f32 %v393, 0.0
      %v472 = vmax.f32 %v396, 0.0
      %v473 = vmax.f32 %v401, 0.0
      %v474 = vmax.f32 %v404, 0.0
      %v475 = vmax.f32 %v409, 0.0
      %v476 = vmax.f32 %v412, 0.0
      %v477 = vmax.f32 %v417, 0.0
      %v478 = vmax.f32 %v420, 0.0
      %v479 = vmax.f32 %v425, 0.0
      %v480 = vmax.f32 %v428, 0.0
      %v481 = vmax.f32 %v433, 0.0
      %v482 = vmax.f32 %v436, 0.0
      %v483 = vmax.f32 %v441, 0.0
      %v484 = vmax.f32 %v444, 0.0
      %v485 = vmax.f32 %v449, 0.0
      %v486 = vmax.f32 %v452, 0.0
      %v487 = vpack.c.bf16 %v456, %v455
      %v488 = vpack.c.bf16 %v458, %v457
      %v489 = vpack.c.bf16 %v460, %v459
      %v490 = vpack.c.bf16 %v462, %v461
      %v491 = vpack.c.bf16 %v464, %v463
      %v492 = vpack.c.bf16 %v466, %v465
      %v493 = vpack.c.bf16 %v468, %v467
      %v494 = vpack.c.bf16 %v470, %v469
      %v495 = vpack.c.bf16 %v472, %v471
      %v496 = vpack.c.bf16 %v474, %v473
      %v497 = vpack.c.bf16 %v476, %v475
      %v498 = vpack.c.bf16 %v478, %v477
      %v499 = vpack.c.bf16 %v480, %v479
      %v500 = vpack.c.bf16 %v482, %v481
      %v501 = vpack.c.bf16 %v484, %v483
      %v502 = vpack.c.bf16 %v486, %v485
      %v519 = vunpack.c.l.b16 %v487
      %v520 = vunpack.c.h.b16 %v487
      %v521 = vunpack.c.l.b16 %v488
      %v522 = vunpack.c.h.b16 %v488
      %v523 = vunpack.c.l.b16 %v489
      %v524 = vunpack.c.h.b16 %v489
      %v525 = vunpack.c.l.b16 %v490
      %v526 = vunpack.c.h.b16 %v490
      %v527 = vunpack.c.l.b16 %v491
      %v528 = vunpack.c.h.b16 %v491
      %v529 = vunpack.c.l.b16 %v492
      %v530 = vunpack.c.h.b16 %v492
      %v531 = vunpack.c.l.b16 %v493
      %v532 = vunpack.c.h.b16 %v493
      %v533 = vunpack.c.l.b16 %v494
      %v534 = vunpack.c.h.b16 %v494
      %v535 = vunpack.c.l.b16 %v495
      %v536 = vunpack.c.h.b16 %v495
      %v537 = vunpack.c.l.b16 %v496
      %v538 = vunpack.c.h.b16 %v496
      %v539 = vunpack.c.l.b16 %v497
      %v540 = vunpack.c.h.b16 %v497
      %v541 = vunpack.c.l.b16 %v498
      %v542 = vunpack.c.h.b16 %v498
      %v543 = vunpack.c.l.b16 %v499
      %v544 = vunpack.c.h.b16 %v499
      %v545 = vunpack.c.l.b16 %v500
      %v546 = vunpack.c.h.b16 %v500
      %v547 = vunpack.c.l.b16 %v501
      %v548 = vunpack.c.h.b16 %v501
      %v549 = vunpack.c.l.b16 %v502
      %v550 = vunpack.c.h.b16 %v502
      %v551 = vpack.c.b16 %v519, %v519
      %v552 = vpack.c.b16 %v520, %v520
      %v553 = vpack.c.b16 %v521, %v521
      %v554 = vpack.c.b16 %v522, %v522
      %v555 = vpack.c.b16 %v523, %v523
      %v556 = vpack.c.b16 %v524, %v524
      %v557 = vpack.c.b16 %v525, %v525
      %v558 = vpack.c.b16 %v526, %v526
      %v559 = vpack.c.b16 %v527, %v527
      %v560 = vpack.c.b16 %v528, %v528
      %v561 = vpack.c.b16 %v529, %v529
      %v562 = vpack.c.b16 %v530, %v530
      %v563 = vpack.c.b16 %v531, %v531
      %v564 = vpack.c.b16 %v532, %v532
      %v565 = vpack.c.b16 %v533, %v533
      %v566 = vpack.c.b16 %v534, %v534
      %v567 = vpack.c.b16 %v535, %v535
      %v568 = vpack.c.b16 %v536, %v536
      %v569 = vpack.c.b16 %v537, %v537
      %v570 = vpack.c.b16 %v538, %v538
      %v571 = vpack.c.b16 %v539, %v539
      %v572 = vpack.c.b16 %v540, %v540
      %v573 = vpack.c.b16 %v541, %v541
      %v574 = vpack.c.b16 %v542, %v542
      %v575 = vpack.c.b16 %v543, %v543
      %v576 = vpack.c.b16 %v544, %v544
      %v577 = vpack.c.b16 %v545, %v545
      %v578 = vpack.c.b16 %v546, %v546
      %v579 = vpack.c.b16 %v547, %v547
      %v580 = vpack.c.b16 %v548, %v548
      %v581 = vpack.c.b16 %v549, %v549
      %v582 = vpack.c.b16 %v550, %v550
      %615 = vst [vmem:[%s172] sm:$0xf] %v551
      %616 = vst [vmem:[%s172 + $0x4] sm:$0xf] %v552
      %617 = vst [vmem:[%s172 + $0x8] sm:$0xf] %v553
      %618 = vst [vmem:[%s172 + $0xc] sm:$0xf] %v554
      %619 = vst [vmem:[%s172 + $0x10] sm:$0xf] %v555
      %620 = vst [vmem:[%s172 + $0x14] sm:$0xf] %v556
      %621 = vst [vmem:[%s172 + $0x18] sm:$0xf] %v557
      %622 = vst [vmem:[%s172 + $0x1c] sm:$0xf] %v558
      %623 = vst [vmem:[%s172 + $0x20] sm:$0xf] %v559
      %624 = vst [vmem:[%s172 + $0x24] sm:$0xf] %v560
      %625 = vst [vmem:[%s172 + $0x28] sm:$0xf] %v561
      %626 = vst [vmem:[%s172 + $0x2c] sm:$0xf] %v562
      %627 = vst [vmem:[%s172 + $0x30] sm:$0xf] %v563
      %628 = vst [vmem:[%s172 + $0x34] sm:$0xf] %v564
      %629 = vst [vmem:[%s172 + $0x38] sm:$0xf] %v565
      %630 = vst [vmem:[%s172 + $0x3c] sm:$0xf] %v566
      %631 = vst [vmem:[%s172 + $0x40] sm:$0xf] %v567
      %632 = vst [vmem:[%s172 + $0x44] sm:$0xf] %v568
      %633 = vst [vmem:[%s172 + $0x48] sm:$0xf] %v569
      %634 = vst [vmem:[%s172 + $0x4c] sm:$0xf] %v570
      %635 = vst [vmem:[%s172 + $0x50] sm:$0xf] %v571
      %636 = vst [vmem:[%s172 + $0x54] sm:$0xf] %v572
      %637 = vst [vmem:[%s172 + $0x58] sm:$0xf] %v573
      %638 = vst [vmem:[%s172 + $0x5c] sm:$0xf] %v574
      %639 = vst [vmem:[%s172 + $0x60] sm:$0xf] %v575
      %640 = vst [vmem:[%s172 + $0x64] sm:$0xf] %v576
      %641 = vst [vmem:[%s172 + $0x68] sm:$0xf] %v577
      %642 = vst [vmem:[%s172 + $0x6c] sm:$0xf] %v578
      %643 = vst [vmem:[%s172 + $0x70] sm:$0xf] %v579
      %644 = vst [vmem:[%s172 + $0x74] sm:$0xf] %v580
      %645 = vst [vmem:[%s172 + $0x78] sm:$0xf] %v581
      %646 = vst [vmem:[%s172 + $0x7c] sm:$0xf] %v582
      %s647 = smul.u32 32, %s14
      %p648 = scmp.lt.s32.totalorder %s647, 63
      %s649 = scalar_select %p648, %s647, 63
      %s650 = smul.addr %s649, 4
      %s651 = scalar_lea.vmem %s3, %s650
      // Predicated region
      $region33: #{bottleneck_forward.3} parent=31 // pred_check
        %p652 = pneg %p100
      $region34: #{bottleneck_forward.3} parent=31 // pred_check_branch
        %654 = sbr.rel (%p652) target = $region36
      $region35: #{bottleneck_forward.3} parent=31 // pred_region
        %s655 = smul.u32 32, %s14
      $region36: #{bottleneck_forward.3} parent=31 // pred_fallthru
        _
    $region32: #{bottleneck_forward.3} parent=5 // pred_fallthru
      _
    %p656 = scmp.le.s32.totalorder 2, %s9
    // Predicated region
    $region37: #{bottleneck_forward.3} parent=5 // pred_check
      %p657 = pneg %p656
    $region38: #{bottleneck_forward.3} parent=5 // pred_check_branch
      %659 = sbr.rel (%p657) target = $region40
    $region39: #{bottleneck_forward.3} parent=5 // pred_region
      %s660 = ssub.s32 %s9, 2
      // Predicated region
      $region41: #{bottleneck_forward.3} parent=39 // pred_check
        %p661 = pneg %p106
      $region42: #{bottleneck_forward.3} parent=39 // pred_check_branch
        %663 = sbr.rel (%p661) target = $region44
      $region43: #{bottleneck_forward.3} parent=39 // pred_region
        %s664 = smul.u32 32, %s15
        %p665 = scmp.lt.s32.totalorder %s664, 63
        %s666 = scalar_select %p665, %s664, 63
        %s667 = smul.addr %s666, 4
        %s668 = scalar_lea.vmem %s3, %s667
      $region44: #{bottleneck_forward.3} parent=39 // pred_fallthru
        _
    $region40: #{bottleneck_forward.3} parent=5 // pred_fallthru
      _
  $region6: #{bottleneck_forward.3} parent=0 // loop_footer
    %s13 = sadd.s32 1, %s9
  $region7: #{bottleneck_forward.3} parent=0 // loop_footer_branch
    %8 = sbr.rel target = $region3
  $region8: #{bottleneck_forward.3} parent=0 // loop_exit
    _

// kernel: bottleneck_forward.5
$region0: #{bottleneck_forward.5}
  #allocation0 [shape = 'u32[]', space=smem, size = 0x4, offset = 0x4, fixed_abs, tag = 'smem constant byte address 0x4 - core index']
  #allocation1 [shape = 'u32[144,128]{1,0:T(1,128)}', space=vmem, size = 0x12000, scoped, tag = 'internal scratch']
  %s0 = inlined_call_operand.vmem [shape: bf16[512,128], index: 0, kind: input, shape index: {}]
  %s1 = inlined_call_operand.vmem [shape: bf16[128,128], index: 1, kind: input, shape index: {}]
  %s2 = inlined_call_operand.vmem [shape: f32[1,128], index: 2, kind: input, shape index: {}]
  %s3 = inlined_call_operand.vmem [shape: f32[512,128], index: 3, kind: input, shape index: {}]
  %s4 = inlined_call_operand.vmem [shape: f32[512,128], index: 4, kind: output, shape index: {}]
  %s5 = sld [smem:[#allocation0]]
  $region49: #{bottleneck_forward.5} parent=0
    _
  %s7 = ssub.s32 1, %s5
  %s8 = scalar_select 0, %s7, %s5
  loop: start=0, step=1, limit=4
  $region2: #{bottleneck_forward.5} parent=0 // loop_pre_header
    _
  $region3: #{bottleneck_forward.5} parent=0 // loop_header
    %s10 = sphi 0, %s14
    %p11 = scmp.ge.s32.totalorder %s10, 4
    %s20 = sphi 0, %s22
    %s23 = sphi 0, %s20
    %s24 = sphi 0, %s23
    %s40 = sphi 0, %s24
    %s44 = sphi 0, %s44
    %s46 = sphi 0, %s44
    %s47 = sphi 0, %s46
    %s61 = sphi 0, %s47
    %s65 = sphi 0, %s65
    %s67 = sphi 0, %s65
    %s68 = sphi 0, %s67
    %s82 = sphi 0, %s68
    %s88 = sphi 0, %s90
    %s91 = sphi 0, %s88
    %s92 = sphi 0, %s91
    %s108 = sphi 0, %s92
    %s114 = sphi 0, %s116
    %s117 = sphi 0, %s114
    %s118 = sphi 0, %s117
    %s134 = sphi 0, %s118
  $region4: #{bottleneck_forward.5} parent=0 // loop_header_branch
    %13 = sbr.rel (%p11) target = $region8
  $region5: #{bottleneck_forward.5} parent=0 // loop_body
    %s15 = ssub.s32 %s10, 1
    %s16 = ssub.s32 %s10, 2
    %s17 = sadd.s32 %s10, 1
    %s18 = ssub.s32 %s10, %s17
    %p19 = scmp.eq.s32.totalorder %s18, 0
    %s21 = sadd.s32 %s20, 1
    %s22 = scalar_select %p19, %s20, %s21
    %p25 = pneg %p19
    %p26 = scmp.eq.s32.totalorder %s10, 1
    %p27 = por %p25, %p26
    %p28 = scmp.ne.s32.totalorder %s20, %s23
    %p29 = scmp.eq.s32.totalorder %s10, 0
    %p30 = por %p28, %p29
    %p31 = scmp.ne.s32.totalorder %s20, %s23
    %p32 = scmp.eq.s32.totalorder %s15, 1
    %p33 = por %p31, %p32
    %p34 = scmp.ne.s32.totalorder %s23, %s24
    %p35 = scmp.eq.s32.totalorder %s15, 0
    %p36 = por %p34, %p35
    %p37 = scmp.ne.s32.totalorder %s23, %s24
    %p38 = scmp.eq.s32.totalorder %s16, 1
    %p39 = por %p37, %p38
    %p41 = scmp.ne.s32.totalorder %s24, %s40
    %p42 = scmp.eq.s32.totalorder %s16, 0
    %p43 = por %p41, %p42
    %s45 = sadd.s32 %s44, 1
    %p48 = scmp.eq.s32.totalorder %s10, 1
    %p49 = scmp.ne.s32.totalorder %s44, %s46
    %p50 = scmp.eq.s32.totalorder %s10, 0
    %p51 = por %p49, %p50
    %p52 = scmp.ne.s32.totalorder %s44, %s46
    %p53 = scmp.eq.s32.totalorder %s15, 1
    %p54 = por %p52, %p53
    %p55 = scmp.ne.s32.totalorder %s46, %s47
    %p56 = scmp.eq.s32.totalorder %s15, 0
    %p57 = por %p55, %p56
    %p58 = scmp.ne.s32.totalorder %s46, %s47
    %p59 = scmp.eq.s32.totalorder %s16, 1
    %p60 = por %p58, %p59
    %p62 = scmp.ne.s32.totalorder %s47, %s61
    %p63 = scmp.eq.s32.totalorder %s16, 0
    %p64 = por %p62, %p63
    %s66 = sadd.s32 %s65, 1
    %p69 = scmp.eq.s32.totalorder %s10, 1
    %p70 = scmp.ne.s32.totalorder %s65, %s67
    %p71 = scmp.eq.s32.totalorder %s10, 0
    %p72 = por %p70, %p71
    %p73 = scmp.ne.s32.totalorder %s65, %s67
    %p74 = scmp.eq.s32.totalorder %s15, 1
    %p75 = por %p73, %p74
    %p76 = scmp.ne.s32.totalorder %s67, %s68
    %p77 = scmp.eq.s32.totalorder %s15, 0
    %p78 = por %p76, %p77
    %p79 = scmp.ne.s32.totalorder %s67, %s68
    %p80 = scmp.eq.s32.totalorder %s16, 1
    %p81 = por %p79, %p80
    %p83 = scmp.ne.s32.totalorder %s68, %s82
    %p84 = scmp.eq.s32.totalorder %s16, 0
    %p85 = por %p83, %p84
    %s86 = ssub.s32 %s10, %s17
    %p87 = scmp.eq.s32.totalorder %s86, 0
    %s89 = sadd.s32 %s88, 1
    %s90 = scalar_select %p87, %s88, %s89
    %p93 = pneg %p87
    %p94 = scmp.eq.s32.totalorder %s10, 1
    %p95 = por %p93, %p94
    %p96 = scmp.ne.s32.totalorder %s88, %s91
    %p97 = scmp.eq.s32.totalorder %s10, 0
    %p98 = por %p96, %p97
    %p99 = scmp.ne.s32.totalorder %s88, %s91
    %p100 = scmp.eq.s32.totalorder %s15, 1
    %p101 = por %p99, %p100
    %p102 = scmp.ne.s32.totalorder %s91, %s92
    %p103 = scmp.eq.s32.totalorder %s15, 0
    %p104 = por %p102, %p103
    %p105 = scmp.ne.s32.totalorder %s91, %s92
    %p106 = scmp.eq.s32.totalorder %s16, 1
    %p107 = por %p105, %p106
    %p109 = scmp.ne.s32.totalorder %s92, %s108
    %p110 = scmp.eq.s32.totalorder %s16, 0
    %p111 = por %p109, %p110
    %s112 = ssub.s32 %s10, %s17
    %p113 = scmp.eq.s32.totalorder %s112, 0
    %s115 = sadd.s32 %s114, 1
    %s116 = scalar_select %p113, %s114, %s115
    %p119 = pneg %p113
    %p120 = scmp.eq.s32.totalorder %s10, 1
    %p121 = por %p119, %p120
    %p122 = scmp.ne.s32.totalorder %s114, %s117
    %p123 = scmp.eq.s32.totalorder %s10, 0
    %p124 = por %p122, %p123
    %p125 = scmp.ne.s32.totalorder %s114, %s117
    %p126 = scmp.eq.s32.totalorder %s15, 1
    %p127 = por %p125, %p126
    %p128 = scmp.ne.s32.totalorder %s117, %s118
    %p129 = scmp.eq.s32.totalorder %s15, 0
    %p130 = por %p128, %p129
    %p131 = scmp.ne.s32.totalorder %s117, %s118
    %p132 = scmp.eq.s32.totalorder %s16, 1
    %p133 = por %p131, %p132
    %p135 = scmp.ne.s32.totalorder %s118, %s134
    %p136 = scmp.eq.s32.totalorder %s16, 0
    %p137 = por %p135, %p136
    %p138 = scmp.le.s32.totalorder 1, %s10
    %p139 = scmp.lt.s32.totalorder %s10, 3
    %p140 = pnand %p138, %p139
    %p141 = pneg %p140
    // Predicated region
    $region9: #{bottleneck_forward.5} parent=5 // pred_check
      _
    $region10: #{bottleneck_forward.5} parent=5 // pred_check_branch
      %143 = sbr.rel (%p140) target = $region12
    $region11: #{bottleneck_forward.5} parent=5 // pred_region
      %s144 = ssub.s32 %s10, 1
      // Predicated region
      $region13: #{bottleneck_forward.5} parent=11 // pred_check
        %p145 = pneg %p57
      $region14: #{bottleneck_forward.5} parent=11 // pred_check_branch
        %147 = sbr.rel (%p145) target = $region16
      $region15: #{bottleneck_forward.5} parent=11 // pred_region
        _
      $region16: #{bottleneck_forward.5} parent=11 // pred_fallthru
        _
      // Predicated region
      $region17: #{bottleneck_forward.5} parent=11 // pred_check
        %p148 = pneg %p78
      $region18: #{bottleneck_forward.5} parent=11 // pred_check_branch
        %150 = sbr.rel (%p148) target = $region20
      $region19: #{bottleneck_forward.5} parent=11 // pred_region
        _
      $region20: #{bottleneck_forward.5} parent=11 // pred_fallthru
        _
    $region12: #{bottleneck_forward.5} parent=5 // pred_fallthru
      _
    %p151 = scmp.lt.s32.totalorder %s10, 2
    // Predicated region
    $region21: #{bottleneck_forward.5} parent=5 // pred_check
      %p152 = pneg %p151
    $region22: #{bottleneck_forward.5} parent=5 // pred_check_branch
      %154 = sbr.rel (%p152) target = $region24
    $region23: #{bottleneck_forward.5} parent=5 // pred_region
      // Predicated region
      $region25: #{bottleneck_forward.5} parent=23 // pred_check
        %p155 = pneg %p30
      $region26: #{bottleneck_forward.5} parent=23 // pred_check_branch
        %157 = sbr.rel (%p155) target = $region28
      $region27: #{bottleneck_forward.5} parent=23 // pred_region
        %s158 = smul.u32 32, %s10
        %p159 = scmp.lt.s32.totalorder %s158, 63
        %s160 = scalar_select %p159, %s158, 63
        %s161 = smul.addr %s160, 4
        %s162 = scalar_lea.vmem %s0, %s161
        %s163 = smul.u32 32, %s10
      $region28: #{bottleneck_forward.5} parent=23 // pred_fallthru
        _
      // Predicated region
      $region29: #{bottleneck_forward.5} parent=23 // pred_check
        %p164 = pneg %p98
      $region30: #{bottleneck_forward.5} parent=23 // pred_check_branch
        %166 = sbr.rel (%p164) target = $region32
      $region31: #{bottleneck_forward.5} parent=23 // pred_region
        %s167 = smul.u32 32, %s10
        %p168 = scmp.lt.s32.totalorder %s167, 63
        %s169 = scalar_select %p168, %s167, 63
        %s170 = smul.addr %s169, 8
        %s171 = scalar_lea.vmem %s3, %s170
        %s172 = smul.u32 32, %s10
      $region32: #{bottleneck_forward.5} parent=23 // pred_fallthru
        _
    $region24: #{bottleneck_forward.5} parent=5 // pred_fallthru
      _
    %p173 = scmp.le.s32.totalorder 1, %s10
    %p174 = scmp.lt.s32.totalorder %s10, 3
    %p175 = pnand %p173, %p174
    %p176 = pneg %p175
    // Predicated region
    $region33: #{bottleneck_forward.5} parent=5 // pred_check
      _
    $region34: #{bottleneck_forward.5} parent=5 // pred_check_branch
      %178 = sbr.rel (%p175) target = $region36
    $region35: #{bottleneck_forward.5} parent=5 // pred_region
      %s179 = ssub.s32 %s10, 1
      %s180 = smul.u32 32, %s15
      %p181 = scmp.lt.s32.totalorder %s180, 63
      %s182 = scalar_select %p181, %s180, 63
      %s183 = smul.addr %s182, 4
      %s184 = scalar_lea.vmem %s0, %s183
      %p185 = pneg %p36
      %p186 = pneg %p33
      %p187 = pneg %p57
      %p188 = pneg %p54
      %p189 = pneg %p78
      %p190 = pneg %p75
      %s191 = smul.u32 32, %s15
      %p192 = scmp.lt.s32.totalorder %s191, 63
      %s193 = scalar_select %p192, %s191, 63
      %s194 = smul.addr %s193, 8
      %s195 = scalar_lea.vmem %s3, %s194
      %p196 = pneg %p104
      %p197 = pneg %p101
      %p198 = pneg %p130
      %p199 = pneg %p127
      %s200 = smul.u32 32, %s15
      %p201 = scmp.lt.s32.totalorder %s200, 63
      %s202 = scalar_select %p201, %s200, 63
      %s203 = smul.addr %s202, 8
      %s204 = scalar_lea.vmem %s4, %s203
      %s205 = smul.u32 32, %s15
      %p206 = scmp.lt.s32.totalorder %s205, 63
      %s207 = scalar_select %p206, %s205, 63
      %s208 = smul.addr %s207, 4
      %s209 = scalar_lea.vmem %s0, %s208
      %s210 = smul.u32 32, %s15
      %s211 = smul.u32 32, %s15
      %p212 = scmp.lt.s32.totalorder %s211, 63
      %s213 = scalar_select %p212, %s211, 63
      %s214 = smul.addr %s213, 8
      %s215 = scalar_lea.vmem %s3, %s214
      %s216 = smul.u32 32, %s15
      %s217 = smul.u32 32, %s15
      %p218 = scmp.lt.s32.totalorder %s217, 63
      %s219 = scalar_select %p218, %s217, 63
      %s220 = smul.addr %s219, 8
      %s221 = scalar_lea.vmem %s4, %s220
      %s222 = smul.u32 32, %s15
      %v224 = vld [vmem:[%s209] sm:$0xf]
      %v225 = vld [vmem:[%s209 + $0x4] sm:$0xf]
      %v226 = vld [vmem:[%s209 + $0x8] sm:$0xf]
      %v227 = vld [vmem:[%s209 + $0xc] sm:$0xf]
      %v228 = vld [vmem:[%s209 + $0x10] sm:$0xf]
      %v229 = vld [vmem:[%s209 + $0x14] sm:$0xf]
      %v230 = vld [vmem:[%s209 + $0x18] sm:$0xf]
      %v231 = vld [vmem:[%s209 + $0x1c] sm:$0xf]
      %v232 = vld [vmem:[%s209 + $0x20] sm:$0xf]
      %v233 = vld [vmem:[%s209 + $0x24] sm:$0xf]
      %v234 = vld [vmem:[%s209 + $0x28] sm:$0xf]
      %v235 = vld [vmem:[%s209 + $0x2c] sm:$0xf]
      %v236 = vld [vmem:[%s209 + $0x30] sm:$0xf]
      %v237 = vld [vmem:[%s209 + $0x34] sm:$0xf]
      %v238 = vld [vmem:[%s209 + $0x38] sm:$0xf]
      %v239 = vld [vmem:[%s209 + $0x3c] sm:$0xf]
      %v240 = vld [vmem:[%s209 + $0x40] sm:$0xf]
      %v241 = vld [vmem:[%s209 + $0x44] sm:$0xf]
      %v242 = vld [vmem:[%s209 + $0x48] sm:$0xf]
      %v243 = vld [vmem:[%s209 + $0x4c] sm:$0xf]
      %v244 = vld [vmem:[%s209 + $0x50] sm:$0xf]
      %v245 = vld [vmem:[%s209 + $0x54] sm:$0xf]
      %v246 = vld [vmem:[%s209 + $0x58] sm:$0xf]
      %v247 = vld [vmem:[%s209 + $0x5c] sm:$0xf]
      %v248 = vld [vmem:[%s209 + $0x60] sm:$0xf]
      %v249 = vld [vmem:[%s209 + $0x64] sm:$0xf]
      %v250 = vld [vmem:[%s209 + $0x68] sm:$0xf]
      %v251 = vld [vmem:[%s209 + $0x6c] sm:$0xf]
      %v252 = vld [vmem:[%s209 + $0x70] sm:$0xf]
      %v253 = vld [vmem:[%s209 + $0x74] sm:$0xf]
      %v254 = vld [vmem:[%s209 + $0x78] sm:$0xf]
      %v255 = vld [vmem:[%s209 + $0x7c] sm:$0xf]
      %v256 = vld [vmem:[%s1] sm:$0xf]
      %v257 = vld [vmem:[%s1 + $0x4] sm:$0xf]
      %v258 = vld [vmem:[%s1 + $0x8] sm:$0xf]
      %v259 = vld [vmem:[%s1 + $0xc] sm:$0xf]
      %v260 = vld [vmem:[%s1 + $0x10] sm:$0xf]
      %v261 = vld [vmem:[%s1 + $0x14] sm:$0xf]
      %v262 = vld [vmem:[%s1 + $0x18] sm:$0xf]
      %v263 = vld [vmem:[%s1 + $0x1c] sm:$0xf]
      %v264 = vld [vmem:[%s1 + $0x20] sm:$0xf]
      %v265 = vld [vmem:[%s1 + $0x24] sm:$0xf]
      %v266 = vld [vmem:[%s1 + $0x28] sm:$0xf]
      %v267 = vld [vmem:[%s1 + $0x2c] sm:$0xf]
      %v268 = vld [vmem:[%s1 + $0x30] sm:$0xf]
      %v269 = vld [vmem:[%s1 + $0x34] sm:$0xf]
      %v270 = vld [vmem:[%s1 + $0x38] sm:$0xf]
      %v271 = vld [vmem:[%s1 + $0x3c] sm:$0xf]
      %v272 = vld [vmem:[%s2] sm:$0x1]
      %v274 = vlaneseq
      %v275 = vshrl.u32 %v274, 7
      %v276 = vsub.s32 0, %v275
      %v277 = vrot.slane %v272, %v276
      %v311 = vunpack.c.l.b16 %v224
      %v312 = vunpack.c.l.b16 %v225
      %v313 = vunpack.c.l.b16 %v226
      %v314 = vunpack.c.l.b16 %v227
      %v315 = vunpack.c.l.b16 %v228
      %v316 = vunpack.c.l.b16 %v229
      %v317 = vunpack.c.l.b16 %v230
      %v318 = vunpack.c.l.b16 %v231
      %v319 = vunpack.c.l.b16 %v232
      %v320 = vunpack.c.l.b16 %v233
      %v321 = vunpack.c.l.b16 %v234
      %v322 = vunpack.c.l.b16 %v235
      %v323 = vunpack.c.l.b16 %v236
      %v324 = vunpack.c.l.b16 %v237
      %v325 = vunpack.c.l.b16 %v238
      %v326 = vunpack.c.l.b16 %v239
      %v327 = vunpack.c.l.b16 %v240
      %v328 = vunpack.c.l.b16 %v241
      %v329 = vunpack.c.l.b16 %v242
      %v330 = vunpack.c.l.b16 %v243
      %v331 = vunpack.c.l.b16 %v244
      %v332 = vunpack.c.l.b16 %v245
      %v333 = vunpack.c.l.b16 %v246
      %v334 = vunpack.c.l.b16 %v247
      %v335 = vunpack.c.l.b16 %v248
      %v336 = vunpack.c.l.b16 %v249
      %v337 = vunpack.c.l.b16 %v250
      %v338 = vunpack.c.l.b16 %v251
      %v339 = vunpack.c.l.b16 %v252
      %v340 = vunpack.c.l.b16 %v253
      %v341 = vunpack.c.l.b16 %v254
      %v342 = vunpack.c.l.b16 %v255
      %v343 = vpack.c.b16 %v312, %v311
      %v344 = vpack.c.b16 %v314, %v313
      %v345 = vpack.c.b16 %v316, %v315
      %v346 = vpack.c.b16 %v318, %v317
      %v347 = vpack.c.b16 %v320, %v319
      %v348 = vpack.c.b16 %v322, %v321
      %v349 = vpack.c.b16 %v324, %v323
      %v350 = vpack.c.b16 %v326, %v325
      %v351 = vpack.c.b16 %v328, %v327
      %v352 = vpack.c.b16 %v330, %v329
      %v353 = vpack.c.b16 %v332, %v331
      %v354 = vpack.c.b16 %v334, %v333
      %v355 = vpack.c.b16 %v336, %v335
      %v356 = vpack.c.b16 %v338, %v337
      %v357 = vpack.c.b16 %v340, %v339
      %v358 = vpack.c.b16 %v342, %v341
      %v391 = vunpack.c.l.b16 %v256
      %v392 = vunpack.c.l.b16 %v257
      %v393 = vunpack.c.l.b16 %v258
      %v394 = vunpack.c.l.b16 %v259
      %v395 = vunpack.c.l.b16 %v260
      %v396 = vunpack.c.l.b16 %v261
      %v397 = vunpack.c.l.b16 %v262
      %v398 = vunpack.c.l.b16 %v263
      %v399 = vunpack.c.l.b16 %v264
      %v400 = vunpack.c.l.b16 %v265
      %v401 = vunpack.c.l.b16 %v266
      %v402 = vunpack.c.l.b16 %v267
      %v403 = vunpack.c.l.b16 %v268
      %v404 = vunpack.c.l.b16 %v269
      %v405 = vunpack.c.l.b16 %v270
      %v406 = vunpack.c.l.b16 %v271
      %v407 = vpack.c.b16 %v392, %v391
      %v408 = vpack.c.b16 %v394, %v393
      %v409 = vpack.c.b16 %v396, %v395
      %v410 = vpack.c.b16 %v398, %v397
      %v411 = vpack.c.b16 %v400, %v399
      %v412 = vpack.c.b16 %v402, %v401
      %v413 = vpack.c.b16 %v404, %v403
      %v414 = vpack.c.b16 %v406, %v405
      %423 = vmatprep.subr.bf16.mxu0 0
      %424 = vmatpush1.bf16.msra.mxu0 %v407
      %425 = vmatprep.subr.bf16.mxu0 0
      %426 = vmatpush1.bf16.msra.mxu0 %v408
      %427 = vmatprep.subr.bf16.mxu0 0
      %428 = vmatpush1.bf16.msra.mxu0 %v409
      %429 = vmatprep.subr.bf16.mxu0 0
      %430 = vmatpush1.bf16.msra.mxu0 %v410
      %431 = vmatprep.subr.bf16.mxu0 0
      %432 = vmatpush1.bf16.msra.mxu0 %v411
      %433 = vmatprep.subr.bf16.mxu0 0
      %434 = vmatpush1.bf16.msra.mxu0 %v412
      %435 = vmatprep.subr.bf16.mxu0 0
      %436 = vmatpush1.bf16.msra.mxu0 %v413
      %437 = vmatprep.subr.bf16.mxu0 0
      %438 = vmatpush1.bf16.msra.mxu0 %v414
      %439 = vmatprep.subr.bf16.mxu0 0
      %440 = vmatpush1.bf16.msra.mxu0 0
      %441 = vmatprep.subr.bf16.mxu0 0
      %442 = vmatpush1.bf16.msra.mxu0 0
      %443 = vmatprep.subr.bf16.mxu0 0
      %444 = vmatpush1.bf16.msra.mxu0 0
      %445 = vmatprep.subr.bf16.mxu0 0
      %446 = vmatpush1.bf16.msra.mxu0 0
      %447 = vmatprep.subr.bf16.mxu0 0
      %448 = vmatpush1.bf16.msra.mxu0 0
      %449 = vmatprep.subr.bf16.mxu0 0
      %450 = vmatpush1.bf16.msra.mxu0 0
      %451 = vmatprep.subr.bf16.mxu0 0
      %452 = vmatpush1.bf16.msra.mxu0 0
      %453 = vmatprep.subr.bf16.mxu0 0
      %454 = vmatpush1.bf16.msra.mxu0 0
      %455 = vmatprep.mubr.bf16.mxu0 0
      %456 = vmatmul.mubr.bf16.gmra.mrb[0].mxu0 %v343
      %v457 = vpop.f32.mrb[0].mxu0
      %v458 = vadd.f32 %v277, %v457
      %v459 = vpop.f32.mrb[0].mxu0
      %v460 = vpop.f32.mrb[0].mxu0
      %v461 = vadd.f32 %v277, %v460
      %v462 = vpop.f32.mrb[0].mxu0
      %463 = vmatprep.mubr.bf16.mxu0 0
      %464 = vmatmul.mubr.bf16.gmra.mrb[0].mxu0 %v344
      %v465 = vpop.f32.mrb[0].mxu0
      %v466 = vadd.f32 %v277, %v465
      %v467 = vpop.f32.mrb[0].mxu0
      %v468 = vpop.f32.mrb[0].mxu0
      %v469 = vadd.f32 %v277, %v468
      %v470 = vpop.f32.mrb[0].mxu0
      %471 = vmatprep.mubr.bf16.mxu0 0
      %472 = vmatmul.mubr.bf16.gmra.mrb[0].mxu0 %v345
      %v473 = vpop.f32.mrb[0].mxu0
      %v474 = vadd.f32 %v277, %v473
      %v475 = vpop.f32.mrb[0].mxu0
      %v476 = vpop.f32.mrb[0].mxu0
      %v477 = vadd.f32 %v277, %v476
      %v478 = vpop.f32.mrb[0].mxu0
      %479 = vmatprep.mubr.bf16.mxu0 0
      %480 = vmatmul.mubr.bf16.gmra.mrb[0].mxu0 %v346
      %v481 = vpop.f32.mrb[0].mxu0
      %v482 = vadd.f32 %v277, %v481
      %v483 = vpop.f32.mrb[0].mxu0
      %v484 = vpop.f32.mrb[0].mxu0
      %v485 = vadd.f32 %v277, %v484
      %v486 = vpop.f32.mrb[0].mxu0
      %487 = vmatprep.mubr.bf16.mxu0 0
      %488 = vmatmul.mubr.bf16.gmra.mrb[0].mxu0 %v347
      %v489 = vpop.f32.mrb[0].mxu0
      %v490 = vadd.f32 %v277, %v489
      %v491 = vpop.f32.mrb[0].mxu0
      %v492 = vpop.f32.mrb[0].mxu0
      %v493 = vadd.f32 %v277, %v492
      %v494 = vpop.f32.mrb[0].mxu0
      %495 = vmatprep.mubr.bf16.mxu0 0
      %496 = vmatmul.mubr.bf16.gmra.mrb[0].mxu0 %v348
      %v497 = vpop.f32.mrb[0].mxu0
      %v498 = vadd.f32 %v277, %v497
      %v499 = vpop.f32.mrb[0].mxu0
      %v500 = vpop.f32.mrb[0].mxu0
      %v501 = vadd.f32 %v277, %v500
      %v502 = vpop.f32.mrb[0].mxu0
      %503 = vmatprep.mubr.bf16.mxu0 0
      %504 = vmatmul.mubr.bf16.gmra.mrb[0].mxu0 %v349
      %v505 = vpop.f32.mrb[0].mxu0
      %v506 = vadd.f32 %v277, %v505
      %v507 = vpop.f32.mrb[0].mxu0
      %v508 = vpop.f32.mrb[0].mxu0
      %v509 = vadd.f32 %v277, %v508
      %v510 = vpop.f32.mrb[0].mxu0
      %511 = vmatprep.mubr.bf16.mxu0 0
      %512 = vmatmul.mubr.bf16.gmra.mrb[0].mxu0 %v350
      %v513 = vpop.f32.mrb[0].mxu0
      %v514 = vadd.f32 %v277, %v513
      %v515 = vpop.f32.mrb[0].mxu0
      %v516 = vpop.f32.mrb[0].mxu0
      %v517 = vadd.f32 %v277, %v516
      %v518 = vpop.f32.mrb[0].mxu0
      %519 = vmatprep.mubr.bf16.mxu0 0
      %520 = vmatmul.mubr.bf16.gmra.mrb[0].mxu0 %v351
      %v521 = vpop.f32.mrb[0].mxu0
      %v522 = vadd.f32 %v277, %v521
      %v523 = vpop.f32.mrb[0].mxu0
      %v524 = vpop.f32.mrb[0].mxu0
      %v525 = vadd.f32 %v277, %v524
      %v526 = vpop.f32.mrb[0].mxu0
      %527 = vmatprep.mubr.bf16.mxu0 0
      %528 = vmatmul.mubr.bf16.gmra.mrb[0].mxu0 %v352
      %v529 = vpop.f32.mrb[0].mxu0
      %v530 = vadd.f32 %v277, %v529
      %v531 = vpop.f32.mrb[0].mxu0
      %v532 = vpop.f32.mrb[0].mxu0
      %v533 = vadd.f32 %v277, %v532
      %v534 = vpop.f32.mrb[0].mxu0
      %535 = vmatprep.mubr.bf16.mxu0 0
      %536 = vmatmul.mubr.bf16.gmra.mrb[0].mxu0 %v353
      %v537 = vpop.f32.mrb[0].mxu0
      %v538 = vadd.f32 %v277, %v537
      %v539 = vpop.f32.mrb[0].mxu0
      %v540 = vpop.f32.mrb[0].mxu0
      %v541 = vadd.f32 %v277, %v540
      %v542 = vpop.f32.mrb[0].mxu0
      %543 = vmatprep.mubr.bf16.mxu0 0
      %544 = vmatmul.mubr.bf16.gmra.mrb[0].mxu0 %v354
      %v545 = vpop.f32.mrb[0].mxu0
      %v546 = vadd.f32 %v277, %v545
      %v547 = vpop.f32.mrb[0].mxu0
      %v548 = vpop.f32.mrb[0].mxu0
      %v549 = vadd.f32 %v277, %v548
      %v550 = vpop.f32.mrb[0].mxu0
      %551 = vmatprep.mubr.bf16.mxu0 0
      %552 = vmatmul.mubr.bf16.gmra.mrb[0].mxu0 %v355
      %v553 = vpop.f32.mrb[0].mxu0
      %v554 = vadd.f32 %v277, %v553
      %v555 = vpop.f32.mrb[0].mxu0
      %v556 = vpop.f32.mrb[0].mxu0
      %v557 = vadd.f32 %v277, %v556
      %v558 = vpop.f32.mrb[0].mxu0
      %559 = vmatprep.mubr.bf16.mxu0 0
      %560 = vmatmul.mubr.bf16.gmra.mrb[0].mxu0 %v356
      %v561 = vpop.f32.mrb[0].mxu0
      %v562 = vadd.f32 %v277, %v561
      %v563 = vpop.f32.mrb[0].mxu0
      %v564 = vpop.f32.mrb[0].mxu0
      %v565 = vadd.f32 %v277, %v564
      %v566 = vpop.f32.mrb[0].mxu0
      %567 = vmatprep.mubr.bf16.mxu0 0
      %568 = vmatmul.mubr.bf16.gmra.mrb[0].mxu0 %v357
      %v569 = vpop.f32.mrb[0].mxu0
      %v570 = vadd.f32 %v277, %v569
      %v571 = vpop.f32.mrb[0].mxu0
      %v572 = vpop.f32.mrb[0].mxu0
      %v573 = vadd.f32 %v277, %v572
      %v574 = vpop.f32.mrb[0].mxu0
      %575 = vmatprep.mubr.bf16.mxu0 0
      %576 = vmatmul.mubr.bf16.gmra.mrb[0].mxu0 %v358
      %v577 = vpop.f32.mrb[0].mxu0
      %v578 = vadd.f32 %v277, %v577
      %v579 = vpop.f32.mrb[0].mxu0
      %v580 = vpop.f32.mrb[0].mxu0
      %v581 = vadd.f32 %v277, %v580
      %v582 = vpop.f32.mrb[0].mxu0
      %583 = vdwg.mxu0
      %v584 = vld [vmem:[%s215] sm:$0xff]
      %v585 = vld [vmem:[%s215 + $0x8] sm:$0xff]
      %v586 = vld [vmem:[%s215 + $0x10] sm:$0xff]
      %v587 = vld [vmem:[%s215 + $0x18] sm:$0xff]
      %v588 = vld [vmem:[%s215 + $0x20] sm:$0xff]
      %v589 = vld [vmem:[%s215 + $0x28] sm:$0xff]
      %v590 = vld [vmem:[%s215 + $0x30] sm:$0xff]
      %v591 = vld [vmem:[%s215 + $0x38] sm:$0xff]
      %v592 = vld [vmem:[%s215 + $0x40] sm:$0xff]
      %v593 = vld [vmem:[%s215 + $0x48] sm:$0xff]
      %v594 = vld [vmem:[%s215 + $0x50] sm:$0xff]
      %v595 = vld [vmem:[%s215 + $0x58] sm:$0xff]
      %v596 = vld [vmem:[%s215 + $0x60] sm:$0xff]
      %v597 = vld [vmem:[%s215 + $0x68] sm:$0xff]
      %v598 = vld [vmem:[%s215 + $0x70] sm:$0xff]
      %v599 = vld [vmem:[%s215 + $0x78] sm:$0xff]
      %v600 = vld [vmem:[%s215 + $0x80] sm:$0xff]
      %v601 = vld [vmem:[%s215 + $0x88] sm:$0xff]
      %v602 = vld [vmem:[%s215 + $0x90] sm:$0xff]
      %v603 = vld [vmem:[%s215 + $0x98] sm:$0xff]
      %v604 = vld [vmem:[%s215 + $0xa0] sm:$0xff]
      %v605 = vld [vmem:[%s215 + $0xa8] sm:$0xff]
      %v606 = vld [vmem:[%s215 + $0xb0] sm:$0xff]
      %v607 = vld [vmem:[%s215 + $0xb8] sm:$0xff]
      %v608 = vld [vmem:[%s215 + $0xc0] sm:$0xff]
      %v609 = vld [vmem:[%s215 + $0xc8] sm:$0xff]
      %v610 = vld [vmem:[%s215 + $0xd0] sm:$0xff]
      %v611 = vld [vmem:[%s215 + $0xd8] sm:$0xff]
      %v612 = vld [vmem:[%s215 + $0xe0] sm:$0xff]
      %v613 = vld [vmem:[%s215 + $0xe8] sm:$0xff]
      %v614 = vld [vmem:[%s215 + $0xf0] sm:$0xff]
      %v615 = vld [vmem:[%s215 + $0xf8] sm:$0xff]
      %v616 = vadd.f32 %v458, %v584
      %v617 = vadd.f32 %v461, %v585
      %v618 = vadd.f32 %v466, %v586
      %v619 = vadd.f32 %v469, %v587
      %v620 = vadd.f32 %v474, %v588
      %v621 = vadd.f32 %v477, %v589
      %v622 = vadd.f32 %v482, %v590
      %v623 = vadd.f32 %v485, %v591
      %v624 = vadd.f32 %v490, %v592
      %v625 = vadd.f32 %v493, %v593
      %v626 = vadd.f32 %v498, %v594
      %v627 = vadd.f32 %v501, %v595
      %v628 = vadd.f32 %v506, %v596
      %v629 = vadd.f32 %v509, %v597
      %v630 = vadd.f32 %v514, %v598
      %v631 = vadd.f32 %v517, %v599
      %v632 = vadd.f32 %v522, %v600
      %v633 = vadd.f32 %v525, %v601
      %v634 = vadd.f32 %v530, %v602
      %v635 = vadd.f32 %v533, %v603
      %v636 = vadd.f32 %v538, %v604
      %v637 = vadd.f32 %v541, %v605
      %v638 = vadd.f32 %v546, %v606
      %v639 = vadd.f32 %v549, %v607
      %v640 = vadd.f32 %v554, %v608
      %v641 = vadd.f32 %v557, %v609
      %v642 = vadd.f32 %v562, %v610
      %v643 = vadd.f32 %v565, %v611
      %v644 = vadd.f32 %v570, %v612
      %v645 = vadd.f32 %v573, %v613
      %v646 = vadd.f32 %v578, %v614
      %v647 = vadd.f32 %v581, %v615
      %v648 = vmax.f32 %v616, 0.0
      %v649 = vmax.f32 %v617, 0.0
      %v650 = vmax.f32 %v618, 0.0
      %v651 = vmax.f32 %v619, 0.0
      %v652 = vmax.f32 %v620, 0.0
      %v653 = vmax.f32 %v621, 0.0
      %v654 = vmax.f32 %v622, 0.0
      %v655 = vmax.f32 %v623, 0.0
      %v656 = vmax.f32 %v624, 0.0
      %v657 = vmax.f32 %v625, 0.0
      %v658 = vmax.f32 %v626, 0.0
      %v659 = vmax.f32 %v627, 0.0
      %v660 = vmax.f32 %v628, 0.0
      %v661 = vmax.f32 %v629, 0.0
      %v662 = vmax.f32 %v630, 0.0
      %v663 = vmax.f32 %v631, 0.0
      %v664 = vmax.f32 %v632, 0.0
      %v665 = vmax.f32 %v633, 0.0
      %v666 = vmax.f32 %v634, 0.0
      %v667 = vmax.f32 %v635, 0.0
      %v668 = vmax.f32 %v636, 0.0
      %v669 = vmax.f32 %v637, 0.0
      %v670 = vmax.f32 %v638, 0.0
      %v671 = vmax.f32 %v639, 0.0
      %v672 = vmax.f32 %v640, 0.0
      %v673 = vmax.f32 %v641, 0.0
      %v674 = vmax.f32 %v642, 0.0
      %v675 = vmax.f32 %v643, 0.0
      %v676 = vmax.f32 %v644, 0.0
      %v677 = vmax.f32 %v645, 0.0
      %v678 = vmax.f32 %v646, 0.0
      %v679 = vmax.f32 %v647, 0.0
      %680 = vst [vmem:[%s221] sm:$0xff] %v648
      %681 = vst [vmem:[%s221 + $0x8] sm:$0xff] %v649
      %682 = vst [vmem:[%s221 + $0x10] sm:$0xff] %v650
      %683 = vst [vmem:[%s221 + $0x18] sm:$0xff] %v651
      %684 = vst [vmem:[%s221 + $0x20] sm:$0xff] %v652
      %685 = vst [vmem:[%s221 + $0x28] sm:$0xff] %v653
      %686 = vst [vmem:[%s221 + $0x30] sm:$0xff] %v654
      %687 = vst [vmem:[%s221 + $0x38] sm:$0xff] %v655
      %688 = vst [vmem:[%s221 + $0x40] sm:$0xff] %v656
      %689 = vst [vmem:[%s221 + $0x48] sm:$0xff] %v657
      %690 = vst [vmem:[%s221 + $0x50] sm:$0xff] %v658
      %691 = vst [vmem:[%s221 + $0x58] sm:$0xff] %v659
      %692 = vst [vmem:[%s221 + $0x60] sm:$0xff] %v660
      %693 = vst [vmem:[%s221 + $0x68] sm:$0xff] %v661
      %694 = vst [vmem:[%s221 + $0x70] sm:$0xff] %v662
      %695 = vst [vmem:[%s221 + $0x78] sm:$0xff] %v663
      %696 = vst [vmem:[%s221 + $0x80] sm:$0xff] %v664
      %697 = vst [vmem:[%s221 + $0x88] sm:$0xff] %v665
      %698 = vst [vmem:[%s221 + $0x90] sm:$0xff] %v666
      %699 = vst [vmem:[%s221 + $0x98] sm:$0xff] %v667
      %700 = vst [vmem:[%s221 + $0xa0] sm:$0xff] %v668
      %701 = vst [vmem:[%s221 + $0xa8] sm:$0xff] %v669
      %702 = vst [vmem:[%s221 + $0xb0] sm:$0xff] %v670
      %703 = vst [vmem:[%s221 + $0xb8] sm:$0xff] %v671
      %704 = vst [vmem:[%s221 + $0xc0] sm:$0xff] %v672
      %705 = vst [vmem:[%s221 + $0xc8] sm:$0xff] %v673
      %706 = vst [vmem:[%s221 + $0xd0] sm:$0xff] %v674
      %707 = vst [vmem:[%s221 + $0xd8] sm:$0xff] %v675
      %708 = vst [vmem:[%s221 + $0xe0] sm:$0xff] %v676
      %709 = vst [vmem:[%s221 + $0xe8] sm:$0xff] %v677
      %710 = vst [vmem:[%s221 + $0xf0] sm:$0xff] %v678
      %711 = vst [vmem:[%s221 + $0xf8] sm:$0xff] %v679
      %s712 = smul.u32 32, %s15
      %p713 = scmp.lt.s32.totalorder %s712, 63
      %s714 = scalar_select %p713, %s712, 63
      %s715 = smul.addr %s714, 8
      %s716 = scalar_lea.vmem %s4, %s715
      // Predicated region
      $region37: #{bottleneck_forward.5} parent=35 // pred_check
        %p717 = pneg %p127
      $region38: #{bottleneck_forward.5} parent=35 // pred_check_branch
        %719 = sbr.rel (%p717) target = $region40
      $region39: #{bottleneck_forward.5} parent=35 // pred_region
        %s720 = smul.u32 32, %s15
      $region40: #{bottleneck_forward.5} parent=35 // pred_fallthru
        _
    $region36: #{bottleneck_forward.5} parent=5 // pred_fallthru
      _
    %p721 = scmp.le.s32.totalorder 2, %s10
    // Predicated region
    $region41: #{bottleneck_forward.5} parent=5 // pred_check
      %p722 = pneg %p721
    $region42: #{bottleneck_forward.5} parent=5 // pred_check_branch
      %724 = sbr.rel (%p722) target = $region44
    $region43: #{bottleneck_forward.5} parent=5 // pred_region
      %s725 = ssub.s32 %s10, 2
      // Predicated region
      $region45: #{bottleneck_forward.5} parent=43 // pred_check
        %p726 = pneg %p133
      $region46: #{bottleneck_forward.5} parent=43 // pred_check_branch
        %728 = sbr.rel (%p726) target = $region48
      $region47: #{bottleneck_forward.5} parent=43 // pred_region
        %s729 = smul.u32 32, %s16
        %p730 = scmp.lt.s32.totalorder %s729, 63
        %s731 = scalar_select %p730, %s729, 63
        %s732 = smul.addr %s731, 8
        %s733 = scalar_lea.vmem %s4, %s732
      $region48: #{bottleneck_forward.5} parent=43 // pred_fallthru
        _
    $region44: #{bottleneck_forward.5} parent=5 // pred_fallthru
      _
  $region6: #{bottleneck_forward.5} parent=0 // loop_footer
    %s14 = sadd.s32 1, %s10
  $region7: #{bottleneck_forward.5} parent=0 // loop_footer_branch
    %9 = sbr.rel target = $region3
  $region8: #{bottleneck_forward.5} parent=0 // loop_exit
    _

// kernel: bottleneck_forward.4
$region0: #{bottleneck_forward.4}
  #allocation0 [shape = 'u32[]', space=smem, size = 0x4, offset = 0x4, fixed_abs, tag = 'smem constant byte address 0x4 - core index']
  #allocation1 [shape = 'u32[144,128]{1,0:T(1,128)}', space=vmem, size = 0x12000, scoped, tag = 'internal scratch']
  #allocation2 [shape = 'f32[256,128]{1,0:T(8,128)}', space=vmem, size = 0x20000, scoped, tag = 'scratch operand']
  %s0 = inlined_call_operand.vmem [shape: bf16[2,18,18,128], index: 0, kind: input, shape index: {}]
  %s1 = inlined_call_operand.vmem [shape: bf16[9,128,128], index: 1, kind: input, shape index: {}]
  %s2 = inlined_call_operand.vmem [shape: f32[1,128], index: 2, kind: input, shape index: {}]
  %s3 = inlined_call_operand.vmem [shape: bf16[512,128], index: 3, kind: output, shape index: {}]
  %s4 = sld [smem:[#allocation0]]
  $region45: #{bottleneck_forward.4} parent=0
    _
  %s6 = ssub.s32 1, %s4
  %s7 = scalar_select 0, %s6, %s4
  loop: start=0, step=1, limit=4
  $region2: #{bottleneck_forward.4} parent=0 // loop_pre_header
    _
  $region3: #{bottleneck_forward.4} parent=0 // loop_header
    %s9 = sphi 0, %s13
    %p10 = scmp.ge.s32.totalorder %s9, 4
    %s19 = sphi 0, %s21
    %s22 = sphi 0, %s19
    %s23 = sphi 0, %s22
    %s39 = sphi 0, %s23
    %s43 = sphi 0, %s43
    %s45 = sphi 0, %s43
    %s46 = sphi 0, %s45
    %s60 = sphi 0, %s46
    %s64 = sphi 0, %s64
    %s66 = sphi 0, %s64
    %s67 = sphi 0, %s66
    %s81 = sphi 0, %s67
    %s87 = sphi 0, %s89
    %s90 = sphi 0, %s87
    %s91 = sphi 0, %s90
    %s107 = sphi 0, %s91
  $region4: #{bottleneck_forward.4} parent=0 // loop_header_branch
    %12 = sbr.rel (%p10) target = $region8
  $region5: #{bottleneck_forward.4} parent=0 // loop_body
    %s14 = ssub.s32 %s9, 1
    %s15 = ssub.s32 %s9, 2
    %s16 = sadd.s32 %s9, 1
    %s17 = ssub.s32 %s9, %s16
    %p18 = scmp.eq.s32.totalorder %s17, 0
    %s20 = sadd.s32 %s19, 1
    %s21 = scalar_select %p18, %s19, %s20
    %p24 = pneg %p18
    %p25 = scmp.eq.s32.totalorder %s9, 1
    %p26 = por %p24, %p25
    %p27 = scmp.ne.s32.totalorder %s19, %s22
    %p28 = scmp.eq.s32.totalorder %s9, 0
    %p29 = por %p27, %p28
    %p30 = scmp.ne.s32.totalorder %s19, %s22
    %p31 = scmp.eq.s32.totalorder %s14, 1
    %p32 = por %p30, %p31
    %p33 = scmp.ne.s32.totalorder %s22, %s23
    %p34 = scmp.eq.s32.totalorder %s14, 0
    %p35 = por %p33, %p34
    %p36 = scmp.ne.s32.totalorder %s22, %s23
    %p37 = scmp.eq.s32.totalorder %s15, 1
    %p38 = por %p36, %p37
    %p40 = scmp.ne.s32.totalorder %s23, %s39
    %p41 = scmp.eq.s32.totalorder %s15, 0
    %p42 = por %p40, %p41
    %s44 = sadd.s32 %s43, 1
    %p47 = scmp.eq.s32.totalorder %s9, 1
    %p48 = scmp.ne.s32.totalorder %s43, %s45
    %p49 = scmp.eq.s32.totalorder %s9, 0
    %p50 = por %p48, %p49
    %p51 = scmp.ne.s32.totalorder %s43, %s45
    %p52 = scmp.eq.s32.totalorder %s14, 1
    %p53 = por %p51, %p52
    %p54 = scmp.ne.s32.totalorder %s45, %s46
    %p55 = scmp.eq.s32.totalorder %s14, 0
    %p56 = por %p54, %p55
    %p57 = scmp.ne.s32.totalorder %s45, %s46
    %p58 = scmp.eq.s32.totalorder %s15, 1
    %p59 = por %p57, %p58
    %p61 = scmp.ne.s32.totalorder %s46, %s60
    %p62 = scmp.eq.s32.totalorder %s15, 0
    %p63 = por %p61, %p62
    %s65 = sadd.s32 %s64, 1
    %p68 = scmp.eq.s32.totalorder %s9, 1
    %p69 = scmp.ne.s32.totalorder %s64, %s66
    %p70 = scmp.eq.s32.totalorder %s9, 0
    %p71 = por %p69, %p70
    %p72 = scmp.ne.s32.totalorder %s64, %s66
    %p73 = scmp.eq.s32.totalorder %s14, 1
    %p74 = por %p72, %p73
    %p75 = scmp.ne.s32.totalorder %s66, %s67
    %p76 = scmp.eq.s32.totalorder %s14, 0
    %p77 = por %p75, %p76
    %p78 = scmp.ne.s32.totalorder %s66, %s67
    %p79 = scmp.eq.s32.totalorder %s15, 1
    %p80 = por %p78, %p79
    %p82 = scmp.ne.s32.totalorder %s67, %s81
    %p83 = scmp.eq.s32.totalorder %s15, 0
    %p84 = por %p82, %p83
    %s85 = ssub.s32 %s9, %s16
    %p86 = scmp.eq.s32.totalorder %s85, 0
    %s88 = sadd.s32 %s87, 1
    %s89 = scalar_select %p86, %s87, %s88
    %p92 = pneg %p86
    %p93 = scmp.eq.s32.totalorder %s9, 1
    %p94 = por %p92, %p93
    %p95 = scmp.ne.s32.totalorder %s87, %s90
    %p96 = scmp.eq.s32.totalorder %s9, 0
    %p97 = por %p95, %p96
    %p98 = scmp.ne.s32.totalorder %s87, %s90
    %p99 = scmp.eq.s32.totalorder %s14, 1
    %p100 = por %p98, %p99
    %p101 = scmp.ne.s32.totalorder %s90, %s91
    %p102 = scmp.eq.s32.totalorder %s14, 0
    %p103 = por %p101, %p102
    %p104 = scmp.ne.s32.totalorder %s90, %s91
    %p105 = scmp.eq.s32.totalorder %s15, 1
    %p106 = por %p104, %p105
    %p108 = scmp.ne.s32.totalorder %s91, %s107
    %p109 = scmp.eq.s32.totalorder %s15, 0
    %p110 = por %p108, %p109
    %p111 = scmp.le.s32.totalorder 1, %s9
    %p112 = scmp.lt.s32.totalorder %s9, 3
    %p113 = pnand %p111, %p112
    %p114 = pneg %p113
    // Predicated region
    $region9: #{bottleneck_forward.4} parent=5 // pred_check
      _
    $region10: #{bottleneck_forward.4} parent=5 // pred_check_branch
      %116 = sbr.rel (%p113) target = $region12
    $region11: #{bottleneck_forward.4} parent=5 // pred_region
      %s117 = ssub.s32 %s9, 1
      // Predicated region
      $region13: #{bottleneck_forward.4} parent=11 // pred_check
        %p118 = pneg %p56
      $region14: #{bottleneck_forward.4} parent=11 // pred_check_branch
        %120 = sbr.rel (%p118) target = $region16
      $region15: #{bottleneck_forward.4} parent=11 // pred_region
        _
      $region16: #{bottleneck_forward.4} parent=11 // pred_fallthru
        _
      // Predicated region
      $region17: #{bottleneck_forward.4} parent=11 // pred_check
        %p121 = pneg %p77
      $region18: #{bottleneck_forward.4} parent=11 // pred_check_branch
        %123 = sbr.rel (%p121) target = $region20
      $region19: #{bottleneck_forward.4} parent=11 // pred_region
        _
      $region20: #{bottleneck_forward.4} parent=11 // pred_fallthru
        _
    $region12: #{bottleneck_forward.4} parent=5 // pred_fallthru
      _
    %p124 = scmp.lt.s32.totalorder %s9, 2
    // Predicated region
    $region21: #{bottleneck_forward.4} parent=5 // pred_check
      %p125 = pneg %p124
    $region22: #{bottleneck_forward.4} parent=5 // pred_check_branch
      %127 = sbr.rel (%p125) target = $region24
    $region23: #{bottleneck_forward.4} parent=5 // pred_region
      // Predicated region
      $region25: #{bottleneck_forward.4} parent=23 // pred_check
        %p128 = pneg %p29
      $region26: #{bottleneck_forward.4} parent=23 // pred_check_branch
        %130 = sbr.rel (%p128) target = $region28
      $region27: #{bottleneck_forward.4} parent=23 // pred_region
        %p131 = scmp.lt.s32.totalorder %s9, 1
        %s132 = scalar_select %p131, %s9, 1
        %s133 = smul.addr %s132, 54
        %s134 = smul.addr %s133, 4
        %s135 = scalar_lea.vmem %s0, %s134
      $region28: #{bottleneck_forward.4} parent=23 // pred_fallthru
        _
    $region24: #{bottleneck_forward.4} parent=5 // pred_fallthru
      _
    %p136 = scmp.le.s32.totalorder 1, %s9
    %p137 = scmp.lt.s32.totalorder %s9, 3
    %p138 = pnand %p136, %p137
    %p139 = pneg %p138
    // Predicated region
    $region29: #{bottleneck_forward.4} parent=5 // pred_check
      _
    $region30: #{bottleneck_forward.4} parent=5 // pred_check_branch
      %141 = sbr.rel (%p138) target = $region32
    $region31: #{bottleneck_forward.4} parent=5 // pred_region
      %s142 = ssub.s32 %s9, 1
      %p143 = scmp.lt.s32.totalorder %s14, 1
      %s144 = scalar_select %p143, %s14, 1
      %s145 = smul.addr %s144, 54
      %s146 = smul.addr %s145, 4
      %s147 = scalar_lea.vmem %s0, %s146
      %p148 = pneg %p35
      %p149 = pneg %p32
      %p150 = pneg %p56
      %p151 = pneg %p53
      %p152 = pneg %p77
      %p153 = pneg %p74
      %p154 = pneg %p103
      %p155 = pneg %p100
      %s156 = smul.u32 32, %s14
      %p157 = scmp.lt.s32.totalorder %s156, 63
      %s158 = scalar_select %p157, %s156, 63
      %s159 = smul.addr %s158, 4
      %s160 = scalar_lea.vmem %s3, %s159
      %p161 = scmp.lt.s32.totalorder %s14, 1
      %s162 = scalar_select %p161, %s14, 1
      %s163 = smul.addr %s162, 54
      %s164 = smul.addr %s163, 4
      %s165 = scalar_lea.vmem %s0, %s164
      %s166 = smul.u32 32, %s14
      %p167 = scmp.lt.s32.totalorder %s166, 63
      %s168 = scalar_select %p167, %s166, 63
      %s169 = smul.addr %s168, 4
      %s170 = scalar_lea.vmem %s3, %s169
      %s171 = smul.u32 32, %s14
      %173 = vst [vmem:[#allocation2] sm:$0xff] 0.0
      %174 = vst [vmem:[#allocation2 + $0x8] sm:$0xff] 0.0
      %175 = vst [vmem:[#allocation2 + $0x10] sm:$0xff] 0.0
      %176 = vst [vmem:[#allocation2 + $0x18] sm:$0xff] 0.0
      %177 = vst [vmem:[#allocation2 + $0x20] sm:$0xff] 0.0
      %178 = vst [vmem:[#allocation2 + $0x28] sm:$0xff] 0.0
      %179 = vst [vmem:[#allocation2 + $0x30] sm:$0xff] 0.0
      %180 = vst [vmem:[#allocation2 + $0x38] sm:$0xff] 0.0
      %181 = vst [vmem:[#allocation2 + $0x40] sm:$0xff] 0.0
      %182 = vst [vmem:[#allocation2 + $0x48] sm:$0xff] 0.0
      %183 = vst [vmem:[#allocation2 + $0x50] sm:$0xff] 0.0
      %184 = vst [vmem:[#allocation2 + $0x58] sm:$0xff] 0.0
      %185 = vst [vmem:[#allocation2 + $0x60] sm:$0xff] 0.0
      %186 = vst [vmem:[#allocation2 + $0x68] sm:$0xff] 0.0
      %187 = vst [vmem:[#allocation2 + $0x70] sm:$0xff] 0.0
      %188 = vst [vmem:[#allocation2 + $0x78] sm:$0xff] 0.0
      %189 = vst [vmem:[#allocation2 + $0x80] sm:$0xff] 0.0
      %190 = vst [vmem:[#allocation2 + $0x88] sm:$0xff] 0.0
      %191 = vst [vmem:[#allocation2 + $0x90] sm:$0xff] 0.0
      %192 = vst [vmem:[#allocation2 + $0x98] sm:$0xff] 0.0
      %193 = vst [vmem:[#allocation2 + $0xa0] sm:$0xff] 0.0
      %194 = vst [vmem:[#allocation2 + $0xa8] sm:$0xff] 0.0
      %195 = vst [vmem:[#allocation2 + $0xb0] sm:$0xff] 0.0
      %196 = vst [vmem:[#allocation2 + $0xb8] sm:$0xff] 0.0
      %197 = vst [vmem:[#allocation2 + $0xc0] sm:$0xff] 0.0
      %198 = vst [vmem:[#allocation2 + $0xc8] sm:$0xff] 0.0
      %199 = vst [vmem:[#allocation2 + $0xd0] sm:$0xff] 0.0
      %200 = vst [vmem:[#allocation2 + $0xd8] sm:$0xff] 0.0
      %201 = vst [vmem:[#allocation2 + $0xe0] sm:$0xff] 0.0
      %202 = vst [vmem:[#allocation2 + $0xe8] sm:$0xff] 0.0
      %203 = vst [vmem:[#allocation2 + $0xf0] sm:$0xff] 0.0
      %204 = vst [vmem:[#allocation2 + $0xf8] sm:$0xff] 0.0
      %v205 = vld [vmem:[%s165] sm:$0xf]
      %v206 = vld [vmem:[%s165 + $0x4] sm:$0xf]
      %v207 = vld [vmem:[%s165 + $0xc] sm:$0xf]
      %v208 = vld [vmem:[%s165 + $0x10] sm:$0xf]
      %v209 = vld [vmem:[%s165 + $0x18] sm:$0xf]
      %v210 = vld [vmem:[%s165 + $0x1c] sm:$0xf]
      %v211 = vld [vmem:[%s165 + $0x24] sm:$0xf]
      %v212 = vld [vmem:[%s165 + $0x28] sm:$0xf]
      %v213 = vld [vmem:[%s165 + $0x30] sm:$0xf]
      %v214 = vld [vmem:[%s165 + $0x34] sm:$0xf]
      %v215 = vld [vmem:[%s165 + $0x3c] sm:$0xf]
      %v216 = vld [vmem:[%s165 + $0x40] sm:$0xf]
      %v217 = vld [vmem:[%s165 + $0x48] sm:$0xf]
      %v218 = vld [vmem:[%s165 + $0x4c] sm:$0xf]
      %v219 = vld [vmem:[%s165 + $0x54] sm:$0xf]
      %v220 = vld [vmem:[%s165 + $0x58] sm:$0xf]
      %v221 = vld [vmem:[%s165 + $0x60] sm:$0xf]
      %v222 = vld [vmem:[%s165 + $0x64] sm:$0xf]
      %v223 = vld [vmem:[%s165 + $0x6c] sm:$0xf]
      %v224 = vld [vmem:[%s165 + $0x70] sm:$0xf]
      %v225 = vld [vmem:[%s165 + $0x78] sm:$0xf]
      %v226 = vld [vmem:[%s165 + $0x7c] sm:$0xf]
      %v227 = vld [vmem:[%s165 + $0x84] sm:$0xf]
      %v228 = vld [vmem:[%s165 + $0x88] sm:$0xf]
      %v229 = vld [vmem:[%s165 + $0x90] sm:$0xf]
      %v230 = vld [vmem:[%s165 + $0x94] sm:$0xf]
      %v231 = vld [vmem:[%s165 + $0x9c] sm:$0xf]
      %v232 = vld [vmem:[%s165 + $0xa0] sm:$0xf]
      %v233 = vld [vmem:[%s165 + $0xa8] sm:$0xf]
      %v234 = vld [vmem:[%s165 + $0xac] sm:$0xf]
      %v235 = vld [vmem:[%s165 + $0xb4] sm:$0xf]
      %v236 = vld [vmem:[%s165 + $0xb8] sm:$0xf]
      %v237 = vld [vmem:[#allocation2] sm:$0xff]
      %v238 = vld [vmem:[#allocation2 + $0x8] sm:$0xff]
      %v239 = vld [vmem:[#allocation2 + $0x10] sm:$0xff]
      %v240 = vld [vmem:[#allocation2 + $0x18] sm:$0xff]
      %v241 = vld [vmem:[#allocation2 + $0x20] sm:$0xff]
      %v242 = vld [vmem:[#allocation2 + $0x28] sm:$0xff]
      %v243 = vld [vmem:[#allocation2 + $0x30] sm:$0xff]
      %v244 = vld [vmem:[#allocation2 + $0x38] sm:$0xff]
      %v245 = vld [vmem:[#allocation2 + $0x40] sm:$0xff]
      %v246 = vld [vmem:[#allocation2 + $0x48] sm:$0xff]
      %v247 = vld [vmem:[#allocation2 + $0x50] sm:$0xff]
      %v248 = vld [vmem:[#allocation2 + $0x58] sm:$0xff]
      %v249 = vld [vmem:[#allocation2 + $0x60] sm:$0xff]
      %v250 = vld [vmem:[#allocation2 + $0x68] sm:$0xff]
      %v251 = vld [vmem:[#allocation2 + $0x70] sm:$0xff]
      %v252 = vld [vmem:[#allocation2 + $0x78] sm:$0xff]
      %v253 = vld [vmem:[#allocation2 + $0x80] sm:$0xff]
      %v254 = vld [vmem:[#allocation2 + $0x88] sm:$0xff]
      %v255 = vld [vmem:[#allocation2 + $0x90] sm:$0xff]
      %v256 = vld [vmem:[#allocation2 + $0x98] sm:$0xff]
      %v257 = vld [vmem:[#allocation2 + $0xa0] sm:$0xff]
      %v258 = vld [vmem:[#allocation2 + $0xa8] sm:$0xff]
      %v259 = vld [vmem:[#allocation2 + $0xb0] sm:$0xff]
      %v260 = vld [vmem:[#allocation2 + $0xb8] sm:$0xff]
      %v261 = vld [vmem:[#allocation2 + $0xc0] sm:$0xff]
      %v262 = vld [vmem:[#allocation2 + $0xc8] sm:$0xff]
      %v263 = vld [vmem:[#allocation2 + $0xd0] sm:$0xff]
      %v264 = vld [vmem:[#allocation2 + $0xd8] sm:$0xff]
      %v265 = vld [vmem:[#allocation2 + $0xe0] sm:$0xff]
      %v266 = vld [vmem:[#allocation2 + $0xe8] sm:$0xff]
      %v267 = vld [vmem:[#allocation2 + $0xf0] sm:$0xff]
      %v268 = vld [vmem:[#allocation2 + $0xf8] sm:$0xff]
      %v269 = vld [vmem:[%s1] sm:$0xf]
      %v270 = vld [vmem:[%s1 + $0x4] sm:$0xf]
      %v271 = vld [vmem:[%s1 + $0x8] sm:$0xf]
      %v272 = vld [vmem:[%s1 + $0xc] sm:$0xf]
      %v273 = vld [vmem:[%s1 + $0x10] sm:$0xf]
      %v274 = vld [vmem:[%s1 + $0x14] sm:$0xf]
      %v275 = vld [vmem:[%s1 + $0x18] sm:$0xf]
      %v276 = vld [vmem:[%s1 + $0x1c] sm:$0xf]
      %v277 = vld [vmem:[%s1 + $0x20] sm:$0xf]
      %v278 = vld [vmem:[%s1 + $0x24] sm:$0xf]
      %v279 = vld [vmem:[%s1 + $0x28] sm:$0xf]
      %v280 = vld [vmem:[%s1 + $0x2c] sm:$0xf]
      %v281 = vld [vmem:[%s1 + $0x30] sm:$0xf]
      %v282 = vld [vmem:[%s1 + $0x34] sm:$0xf]
      %v283 = vld [vmem:[%s1 + $0x38] sm:$0xf]
      %v284 = vld [vmem:[%s1 + $0x3c] sm:$0xf]
      %v317 = vunpack.c.l.b16 %v205
      %v318 = vunpack.c.l.b16 %v206
      %v319 = vunpack.c.l.b16 %v207
      %v320 = vunpack.c.l.b16 %v208
      %v321 = vunpack.c.l.b16 %v209
      %v322 = vunpack.c.l.b16 %v210
      %v323 = vunpack.c.l.b16 %v211
      %v324 = vunpack.c.l.b16 %v212
      %v325 = vunpack.c.l.b16 %v213
      %v326 = vunpack.c.l.b16 %v214
      %v327 = vunpack.c.l.b16 %v215
      %v328 = vunpack.c.l.b16 %v216
      %v329 = vunpack.c.l.b16 %v217
      %v330 = vunpack.c.l.b16 %v218
      %v331 = vunpack.c.l.b16 %v219
      %v332 = vunpack.c.l.b16 %v220
      %v333 = vunpack.c.l.b16 %v221
      %v334 = vunpack.c.l.b16 %v222
      %v335 = vunpack.c.l.b16 %v223
      %v336 = vunpack.c.l.b16 %v224
      %v337 = vunpack.c.l.b16 %v225
      %v338 = vunpack.c.l.b16 %v226
      %v339 = vunpack.c.l.b16 %v227
      %v340 = vunpack.c.l.b16 %v228
      %v341 = vunpack.c.l.b16 %v229
      %v342 = vunpack.c.l.b16 %v230
      %v343 = vunpack.c.l.b16 %v231
      %v344 = vunpack.c.l.b16 %v232
      %v345 = vunpack.c.l.b16 %v233
      %v346 = vunpack.c.l.b16 %v234
      %v347 = vunpack.c.l.b16 %v235
      %v348 = vunpack.c.l.b16 %v236
      %v349 = vpack.c.b16 %v318, %v317
      %v350 = vpack.c.b16 %v320, %v319
      %v351 = vpack.c.b16 %v322, %v321
      %v352 = vpack.c.b16 %v324, %v323
      %v353 = vpack.c.b16 %v326, %v325
      %v354 = vpack.c.b16 %v328, %v327
      %v355 = vpack.c.b16 %v330, %v329
      %v356 = vpack.c.b16 %v332, %v331
      %v357 = vpack.c.b16 %v334, %v333
      %v358 = vpack.c.b16 %v336, %v335
      %v359 = vpack.c.b16 %v338, %v337
      %v360 = vpack.c.b16 %v340, %v339
      %v361 = vpack.c.b16 %v342, %v341
      %v362 = vpack.c.b16 %v344, %v343
      %v363 = vpack.c.b16 %v346, %v345
      %v364 = vpack.c.b16 %v348, %v347
      %v397 = vunpack.c.l.b16 %v269
      %v398 = vunpack.c.l.b16 %v270
      %v399 = vunpack.c.l.b16 %v271
      %v400 = vunpack.c.l.b16 %v272
      %v401 = vunpack.c.l.b16 %v273
      %v402 = vunpack.c.l.b16 %v274
      %v403 = vunpack.c.l.b16 %v275
      %v404 = vunpack.c.l.b16 %v276
      %v405 = vunpack.c.l.b16 %v277
      %v406 = vunpack.c.l.b16 %v278
      %v407 = vunpack.c.l.b16 %v279
      %v408 = vunpack.c.l.b16 %v280
      %v409 = vunpack.c.l.b16 %v281
      %v410 = vunpack.c.l.b16 %v282
      %v411 = vunpack.c.l.b16 %v283
      %v412 = vunpack.c.l.b16 %v284
      %v413 = vpack.c.b16 %v398, %v397
      %v414 = vpack.c.b16 %v400, %v399
      %v415 = vpack.c.b16 %v402, %v401
      %v416 = vpack.c.b16 %v404, %v403
      %v417 = vpack.c.b16 %v406, %v405
      %v418 = vpack.c.b16 %v408, %v407
      %v419 = vpack.c.b16 %v410, %v409
      %v420 = vpack.c.b16 %v412, %v411
      %429 = vmatprep.subr.bf16.mxu0 0
      %430 = vmatpush1.bf16.msra.mxu0 %v413
      %431 = vmatprep.subr.bf16.mxu0 0
      %432 = vmatpush1.bf16.msra.mxu0 %v414
      %433 = vmatprep.subr.bf16.mxu0 0
      %434 = vmatpush1.bf16.msra.mxu0 %v415
      %435 = vmatprep.subr.bf16.mxu0 0
      %436 = vmatpush1.bf16.msra.mxu0 %v416
      %437 = vmatprep.subr.bf16.mxu0 0
      %438 = vmatpush1.bf16.msra.mxu0 %v417
      %439 = vmatprep.subr.bf16.mxu0 0
      %440 = vmatpush1.bf16.msra.mxu0 %v418
      %441 = vmatprep.subr.bf16.mxu0 0
      %442 = vmatpush1.bf16.msra.mxu0 %v419
      %443 = vmatprep.subr.bf16.mxu0 0
      %444 = vmatpush1.bf16.msra.mxu0 %v420
      %445 = vmatprep.subr.bf16.mxu0 0
      %446 = vmatpush1.bf16.msra.mxu0 0
      %447 = vmatprep.subr.bf16.mxu0 0
      %448 = vmatpush1.bf16.msra.mxu0 0
      %449 = vmatprep.subr.bf16.mxu0 0
      %450 = vmatpush1.bf16.msra.mxu0 0
      %451 = vmatprep.subr.bf16.mxu0 0
      %452 = vmatpush1.bf16.msra.mxu0 0
      %453 = vmatprep.subr.bf16.mxu0 0
      %454 = vmatpush1.bf16.msra.mxu0 0
      %455 = vmatprep.subr.bf16.mxu0 0
      %456 = vmatpush1.bf16.msra.mxu0 0
      %457 = vmatprep.subr.bf16.mxu0 0
      %458 = vmatpush1.bf16.msra.mxu0 0
      %459 = vmatprep.subr.bf16.mxu0 0
      %460 = vmatpush1.bf16.msra.mxu0 0
      %461 = vmatprep.mubr.bf16.mxu0 0
      %462 = vmatmul.mubr.bf16.gmra.mrb[0].mxu0 %v349
      %v463 = vpop.f32.mrb[0].mxu0
      %v464 = vadd.f32 0.0, %v463
      %v465 = vpop.f32.mrb[0].mxu0
      %v466 = vpop.f32.mrb[0].mxu0
      %v467 = vadd.f32 0.0, %v466
      %v468 = vpop.f32.mrb[0].mxu0
      %469 = vmatprep.mubr.bf16.mxu0 0
      %470 = vmatmul.mubr.bf16.gmra.mrb[0].mxu0 %v350
      %v471 = vpop.f32.mrb[0].mxu0
      %v472 = vadd.f32 0.0, %v471
      %v473 = vpop.f32.mrb[0].mxu0
      %v474 = vpop.f32.mrb[0].mxu0
      %v475 = vadd.f32 0.0, %v474
      %v476 = vpop.f32.mrb[0].mxu0
      %477 = vmatprep.mubr.bf16.mxu0 0
      %478 = vmatmul.mubr.bf16.gmra.mrb[0].mxu0 %v351
      %v479 = vpop.f32.mrb[0].mxu0
      %v480 = vadd.f32 0.0, %v479
      %v481 = vpop.f32.mrb[0].mxu0
      %v482 = vpop.f32.mrb[0].mxu0
      %v483 = vadd.f32 0.0, %v482
      %v484 = vpop.f32.mrb[0].mxu0
      %485 = vmatprep.mubr.bf16.mxu0 0
      %486 = vmatmul.mubr.bf16.gmra.mrb[0].mxu0 %v352
      %v487 = vpop.f32.mrb[0].mxu0
      %v488 = vadd.f32 0.0, %v487
      %v489 = vpop.f32.mrb[0].mxu0
      %v490 = vpop.f32.mrb[0].mxu0
      %v491 = vadd.f32 0.0, %v490
      %v492 = vpop.f32.mrb[0].mxu0
      %493 = vmatprep.mubr.bf16.mxu0 0
      %494 = vmatmul.mubr.bf16.gmra.mrb[0].mxu0 %v353
      %v495 = vpop.f32.mrb[0].mxu0
      %v496 = vadd.f32 0.0, %v495
      %v497 = vpop.f32.mrb[0].mxu0
      %v498 = vpop.f32.mrb[0].mxu0
      %v499 = vadd.f32 0.0, %v498
      %v500 = vpop.f32.mrb[0].mxu0
      %501 = vmatprep.mubr.bf16.mxu0 0
      %502 = vmatmul.mubr.bf16.gmra.mrb[0].mxu0 %v354
      %v503 = vpop.f32.mrb[0].mxu0
      %v504 = vadd.f32 0.0, %v503
      %v505 = vpop.f32.mrb[0].mxu0
      %v506 = vpop.f32.mrb[0].mxu0
      %v507 = vadd.f32 0.0, %v506
      %v508 = vpop.f32.mrb[0].mxu0
      %509 = vmatprep.mubr.bf16.mxu0 0
      %510 = vmatmul.mubr.bf16.gmra.mrb[0].mxu0 %v355
      %v511 = vpop.f32.mrb[0].mxu0
      %v512 = vadd.f32 0.0, %v511
      %v513 = vpop.f32.mrb[0].mxu0
      %v514 = vpop.f32.mrb[0].mxu0
      %v515 = vadd.f32 0.0, %v514
      %v516 = vpop.f32.mrb[0].mxu0
      %517 = vmatprep.mubr.bf16.mxu0 0
      %518 = vmatmul.mubr.bf16.gmra.mrb[0].mxu0 %v356
      %v519 = vpop.f32.mrb[0].mxu0
      %v520 = vadd.f32 0.0, %v519
      %v521 = vpop.f32.mrb[0].mxu0
      %v522 = vpop.f32.mrb[0].mxu0
      %v523 = vadd.f32 0.0, %v522
      %v524 = vpop.f32.mrb[0].mxu0
      %525 = vmatprep.mubr.bf16.mxu0 0
      %526 = vmatmul.mubr.bf16.gmra.mrb[0].mxu0 %v357
      %v527 = vpop.f32.mrb[0].mxu0
      %v528 = vadd.f32 0.0, %v527
      %v529 = vpop.f32.mrb[0].mxu0
      %v530 = vpop.f32.mrb[0].mxu0
      %v531 = vadd.f32 0.0, %v530
      %v532 = vpop.f32.mrb[0].mxu0
      %533 = vmatprep.mubr.bf16.mxu0 0
      %534 = vmatmul.mubr.bf16.gmra.mrb[0].mxu0 %v358
      %v535 = vpop.f32.mrb[0].mxu0
      %v536 = vadd.f32 0.0, %v535
      %v537 = vpop.f32.mrb[0].mxu0
      %v538 = vpop.f32.mrb[0].mxu0
      %v539 = vadd.f32 0.0, %v538
      %v540 = vpop.f32.mrb[0].mxu0
      %541 = vmatprep.mubr.bf16.mxu0 0
      %542 = vmatmul.mubr.bf16.gmra.mrb[0].mxu0 %v359
      %v543 = vpop.f32.mrb[0].mxu0
      %v544 = vadd.f32 0.0, %v543
      %v545 = vpop.f32.mrb[0].mxu0
      %v546 = vpop.f32.mrb[0].mxu0
      %v547 = vadd.f32 0.0, %v546
      %v548 = vpop.f32.mrb[0].mxu0
      %549 = vmatprep.mubr.bf16.mxu0 0
      %550 = vmatmul.mubr.bf16.gmra.mrb[0].mxu0 %v360
      %v551 = vpop.f32.mrb[0].mxu0
      %v552 = vadd.f32 0.0, %v551
      %v553 = vpop.f32.mrb[0].mxu0
      %v554 = vpop.f32.mrb[0].mxu0
      %v555 = vadd.f32 0.0, %v554
      %v556 = vpop.f32.mrb[0].mxu0
      %557 = vmatprep.mubr.bf16.mxu0 0
      %558 = vmatmul.mubr.bf16.gmra.mrb[0].mxu0 %v361
      %v559 = vpop.f32.mrb[0].mxu0
      %v560 = vadd.f32 0.0, %v559
      %v561 = vpop.f32.mrb[0].mxu0
      %v562 = vpop.f32.mrb[0].mxu0
      %v563 = vadd.f32 0.0, %v562
      %v564 = vpop.f32.mrb[0].mxu0
      %565 = vmatprep.mubr.bf16.mxu0 0
      %566 = vmatmul.mubr.bf16.gmra.mrb[0].mxu0 %v362
      %v567 = vpop.f32.mrb[0].mxu0
      %v568 = vadd.f32 0.0, %v567
      %v569 = vpop.f32.mrb[0].mxu0
      %v570 = vpop.f32.mrb[0].mxu0
      %v571 = vadd.f32 0.0, %v570
      %v572 = vpop.f32.mrb[0].mxu0
      %573 = vmatprep.mubr.bf16.mxu0 0
      %574 = vmatmul.mubr.bf16.gmra.mrb[0].mxu0 %v363
      %v575 = vpop.f32.mrb[0].mxu0
      %v576 = vadd.f32 0.0, %v575
      %v577 = vpop.f32.mrb[0].mxu0
      %v578 = vpop.f32.mrb[0].mxu0
      %v579 = vadd.f32 0.0, %v578
      %v580 = vpop.f32.mrb[0].mxu0
      %581 = vmatprep.mubr.bf16.mxu0 0
      %582 = vmatmul.mubr.bf16.gmra.mrb[0].mxu0 %v364
      %v583 = vpop.f32.mrb[0].mxu0
      %v584 = vadd.f32 0.0, %v583
      %v585 = vpop.f32.mrb[0].mxu0
      %v586 = vpop.f32.mrb[0].mxu0
      %v587 = vadd.f32 0.0, %v586
      %v588 = vpop.f32.mrb[0].mxu0
      %589 = vdwg.mxu0
      %v590 = vadd.f32 %v237, %v464
      %v591 = vadd.f32 %v238, %v467
      %v592 = vadd.f32 %v239, %v472
      %v593 = vadd.f32 %v240, %v475
      %v594 = vadd.f32 %v241, %v480
      %v595 = vadd.f32 %v242, %v483
      %v596 = vadd.f32 %v243, %v488
      %v597 = vadd.f32 %v244, %v491
      %v598 = vadd.f32 %v245, %v496
      %v599 = vadd.f32 %v246, %v499
      %v600 = vadd.f32 %v247, %v504
      %v601 = vadd.f32 %v248, %v507
      %v602 = vadd.f32 %v249, %v512
      %v603 = vadd.f32 %v250, %v515
      %v604 = vadd.f32 %v251, %v520
      %v605 = vadd.f32 %v252, %v523
      %v606 = vadd.f32 %v253, %v528
      %v607 = vadd.f32 %v254, %v531
      %v608 = vadd.f32 %v255, %v536
      %v609 = vadd.f32 %v256, %v539
      %v610 = vadd.f32 %v257, %v544
      %v611 = vadd.f32 %v258, %v547
      %v612 = vadd.f32 %v259, %v552
      %v613 = vadd.f32 %v260, %v555
      %v614 = vadd.f32 %v261, %v560
      %v615 = vadd.f32 %v262, %v563
      %v616 = vadd.f32 %v263, %v568
      %v617 = vadd.f32 %v264, %v571
      %v618 = vadd.f32 %v265, %v576
      %v619 = vadd.f32 %v266, %v579
      %v620 = vadd.f32 %v267, %v584
      %v621 = vadd.f32 %v268, %v587
      %622 = vst [vmem:[#allocation2] sm:$0xff] %v590
      %623 = vst [vmem:[#allocation2 + $0x8] sm:$0xff] %v591
      %624 = vst [vmem:[#allocation2 + $0x10] sm:$0xff] %v592
      %625 = vst [vmem:[#allocation2 + $0x18] sm:$0xff] %v593
      %626 = vst [vmem:[#allocation2 + $0x20] sm:$0xff] %v594
      %627 = vst [vmem:[#allocation2 + $0x28] sm:$0xff] %v595
      %628 = vst [vmem:[#allocation2 + $0x30] sm:$0xff] %v596
      %629 = vst [vmem:[#allocation2 + $0x38] sm:$0xff] %v597
      %630 = vst [vmem:[#allocation2 + $0x40] sm:$0xff] %v598
      %631 = vst [vmem:[#allocation2 + $0x48] sm:$0xff] %v599
      %632 = vst [vmem:[#allocation2 + $0x50] sm:$0xff] %v600
      %633 = vst [vmem:[#allocation2 + $0x58] sm:$0xff] %v601
      %634 = vst [vmem:[#allocation2 + $0x60] sm:$0xff] %v602
      %635 = vst [vmem:[#allocation2 + $0x68] sm:$0xff] %v603
      %636 = vst [vmem:[#allocation2 + $0x70] sm:$0xff] %v604
      %637 = vst [vmem:[#allocation2 + $0x78] sm:$0xff] %v605
      %638 = vst [vmem:[#allocation2 + $0x80] sm:$0xff] %v606
      %639 = vst [vmem:[#allocation2 + $0x88] sm:$0xff] %v607
      %640 = vst [vmem:[#allocation2 + $0x90] sm:$0xff] %v608
      %641 = vst [vmem:[#allocation2 + $0x98] sm:$0xff] %v609
      %642 = vst [vmem:[#allocation2 + $0xa0] sm:$0xff] %v610
      %643 = vst [vmem:[#allocation2 + $0xa8] sm:$0xff] %v611
      %644 = vst [vmem:[#allocation2 + $0xb0] sm:$0xff] %v612
      %645 = vst [vmem:[#allocation2 + $0xb8] sm:$0xff] %v613
      %646 = vst [vmem:[#allocation2 + $0xc0] sm:$0xff] %v614
      %647 = vst [vmem:[#allocation2 + $0xc8] sm:$0xff] %v615
      %648 = vst [vmem:[#allocation2 + $0xd0] sm:$0xff] %v616
      %649 = vst [vmem:[#allocation2 + $0xd8] sm:$0xff] %v617
      %650 = vst [vmem:[#allocation2 + $0xe0] sm:$0xff] %v618
      %651 = vst [vmem:[#allocation2 + $0xe8] sm:$0xff] %v619
      %652 = vst [vmem:[#allocation2 + $0xf0] sm:$0xff] %v620
      %653 = vst [vmem:[#allocation2 + $0xf8] sm:$0xff] %v621
      %v654 = vld [vmem:[%s165] sm:$0xf]
      %v655 = vld [vmem:[%s165 + $0x4] sm:$0xf]
      %v656 = vld [vmem:[%s165 + $0x8] sm:$0x1]
      %v657 = vld [vmem:[%s165 + $0xc] sm:$0xf]
      %v658 = vld [vmem:[%s165 + $0x10] sm:$0xf]
      %v659 = vld [vmem:[%s165 + $0x14] sm:$0x1]
      %v660 = vld [vmem:[%s165 + $0x18] sm:$0xf]
      %v661 = vld [vmem:[%s165 + $0x1c] sm:$0xf]
      %v662 = vld [vmem:[%s165 + $0x20] sm:$0x1]
      %v663 = vld [vmem:[%s165 + $0x24] sm:$0xf]
      %v664 = vld [vmem:[%s165 + $0x28] sm:$0xf]
      %v665 = vld [vmem:[%s165 + $0x2c] sm:$0x1]
      %v666 = vld [vmem:[%s165 + $0x30] sm:$0xf]
      %v667 = vld [vmem:[%s165 + $0x34] sm:$0xf]
      %v668 = vld [vmem:[%s165 + $0x38] sm:$0x1]
      %v669 = vld [vmem:[%s165 + $0x3c] sm:$0xf]
      %v670 = vld [vmem:[%s165 + $0x40] sm:$0xf]
      %v671 = vld [vmem:[%s165 + $0x44] sm:$0x1]
      %v672 = vld [vmem:[%s165 + $0x48] sm:$0xf]
      %v673 = vld [vmem:[%s165 + $0x4c] sm:$0xf]
      %v674 = vld [vmem:[%s165 + $0x50] sm:$0x1]
      %v675 = vld [vmem:[%s165 + $0x54] sm:$0xf]
      %v676 = vld [vmem:[%s165 + $0x58] sm:$0xf]
      %v677 = vld [vmem:[%s165 + $0x5c] sm:$0x1]
      %v678 = vld [vmem:[%s165 + $0x60] sm:$0xf]
      %v679 = vld [vmem:[%s165 + $0x64] sm:$0xf]
      %v680 = vld [vmem:[%s165 + $0x68] sm:$0x1]
      %v681 = vld [vmem:[%s165 + $0x6c] sm:$0xf]
      %v682 = vld [vmem:[%s165 + $0x70] sm:$0xf]
      %v683 = vld [vmem:[%s165 + $0x74] sm:$0x1]
      %v684 = vld [vmem:[%s165 + $0x78] sm:$0xf]
      %v685 = vld [vmem:[%s165 + $0x7c] sm:$0xf]
      %v686 = vld [vmem:[%s165 + $0x80] sm:$0x1]
      %v687 = vld [vmem:[%s165 + $0x84] sm:$0xf]
      %v688 = vld [vmem:[%s165 + $0x88] sm:$0xf]
      %v689 = vld [vmem:[%s165 + $0x8c] sm:$0x1]
      %v690 = vld [vmem:[%s165 + $0x90] sm:$0xf]
      %v691 = vld [vmem:[%s165 + $0x94] sm:$0xf]
      %v692 = vld [vmem:[%s165 + $0x98] sm:$0x1]
      %v693 = vld [vmem:[%s165 + $0x9c] sm:$0xf]
      %v694 = vld [vmem:[%s165 + $0xa0] sm:$0xf]
      %v695 = vld [vmem:[%s165 + $0xa4] sm:$0x1]
      %v696 = vld [vmem:[%s165 + $0xa8] sm:$0xf]
      %v697 = vld [vmem:[%s165 + $0xac] sm:$0xf]
      %v698 = vld [vmem:[%s165 + $0xb0] sm:$0x1]
      %v699 = vld [vmem:[%s165 + $0xb4] sm:$0xf]
      %v700 = vld [vmem:[%s165 + $0xb8] sm:$0xf]
      %v701 = vld [vmem:[%s165 + $0xbc] sm:$0x1]
      %vm702 = vsmask.f32 3328
      %vm703 = vsmask.f32 7440
      %vm704 = vmor %vm702, %vm703
      %v706 = vshrl.u32 %v654, 16
      %v708 = vrot.slane %v706, 4
      %v709 = vshll.u32 %v654, 16
      %v711 = vrot.slane %v709, 5
      %v712 = vor.u32 %v708, %v711
      %v713 = vrot.slane %v712, 4
      %v715 = vshll.u32 %v655, 16
      %v717 = vrot.slane %v715, 5
      %v718 = vsel %vm704, %v713, %v717
      %v719 = vshrl.u32 %v655, 16
      %v721 = vrot.slane %v719, 4
      %v722 = vor.u32 %v721, %v717
      %v723 = vrot.slane %v722, 4
      %v725 = vshll.u32 %v656, 16
      %v727 = vrot.slane %v725, 5
      %v728 = vsel %vm704, %v723, %v727
      %v730 = vshrl.u32 %v657, 16
      %v732 = vrot.slane %v730, 4
      %v733 = vshll.u32 %v657, 16
      %v735 = vrot.slane %v733, 5
      %v736 = vor.u32 %v732, %v735
      %v737 = vrot.slane %v736, 4
      %v739 = vshll.u32 %v658, 16
      %v741 = vrot.slane %v739, 5
      %v742 = vsel %vm704, %v737, %v741
      %v743 = vshrl.u32 %v658, 16
      %v745 = vrot.slane %v743, 4
      %v746 = vor.u32 %v745, %v741
      %v747 = vrot.slane %v746, 4
      %v749 = vshll.u32 %v659, 16
      %v751 = vrot.slane %v749, 5
      %v752 = vsel %vm704, %v747, %v751
      %v754 = vshrl.u32 %v660, 16
      %v756 = vrot.slane %v754, 4
      %v757 = vshll.u32 %v660, 16
      %v759 = vrot.slane %v757, 5
      %v760 = vor.u32 %v756, %v759
      %v761 = vrot.slane %v760, 4
      %v763 = vshll.u32 %v661, 16
      %v765 = vrot.slane %v763, 5
      %v766 = vsel %vm704, %v761, %v765
      %v767 = vshrl.u32 %v661, 16
      %v769 = vrot.slane %v767, 4
      %v770 = vor.u32 %v769, %v765
      %v771 = vrot.slane %v770, 4
      %v773 = vshll.u32 %v662, 16
      %v775 = vrot.slane %v773, 5
      %v776 = vsel %vm704, %v771, %v775
      %v778 = vshrl.u32 %v663, 16
      %v780 = vrot.slane %v778, 4
      %v781 = vshll.u32 %v663, 16
      %v783 = vrot.slane %v781, 5
      %v784 = vor.u32 %v780, %v783
      %v785 = vrot.slane %v784, 4
      %v787 = vshll.u32 %v664, 16
      %v789 = vrot.slane %v787, 5
      %v790 = vsel %vm704, %v785, %v789
      %v791 = vshrl.u32 %v664, 16
      %v793 = vrot.slane %v791, 4
      %v794 = vor.u32 %v793, %v789
      %v795 = vrot.slane %v794, 4
      %v797 = vshll.u32 %v665, 16
      %v799 = vrot.slane %v797, 5
      %v800 = vsel %vm704, %v795, %v799
      %v802 = vshrl.u32 %v666, 16
      %v804 = vrot.slane %v802, 4
      %v805 = vshll.u32 %v666, 16
      %v807 = vrot.slane %v805, 5
      %v808 = vor.u32 %v804, %v807
      %v809 = vrot.slane %v808, 4
      %v811 = vshll.u32 %v667, 16
      %v813 = vrot.slane %v811, 5
      %v814 = vsel %vm704, %v809, %v813
      %v815 = vshrl.u32 %v667, 16
      %v817 = vrot.slane %v815, 4
      %v818 = vor.u32 %v817, %v813
      %v819 = vrot.slane %v818, 4
      %v821 = vshll.u32 %v668, 16
      %v823 = vrot.slane %v821, 5
      %v824 = vsel %vm704, %v819, %v823
      %v826 = vshrl.u32 %v669, 16
      %v828 = vrot.slane %v826, 4
      %v829 = vshll.u32 %v669, 16
      %v831 = vrot.slane %v829, 5
      %v832 = vor.u32 %v828, %v831
      %v833 = vrot.slane %v832, 4
      %v835 = vshll.u32 %v670, 16
      %v837 = vrot.slane %v835, 5
      %v838 = vsel %vm704, %v833, %v837
      %v839 = vshrl.u32 %v670, 16
      %v841 = vrot.slane %v839, 4
      %v842 = vor.u32 %v841, %v837
      %v843 = vrot.slane %v842, 4
      %v845 = vshll.u32 %v671, 16
      %v847 = vrot.slane %v845, 5
      %v848 = vsel %vm704, %v843, %v847
      %v850 = vshrl.u32 %v672, 16
      %v852 = vrot.slane %v850, 4
      %v853 = vshll.u32 %v672, 16
      %v855 = vrot.slane %v853, 5
      %v856 = vor.u32 %v852, %v855
      %v857 = vrot.slane %v856, 4
      %v859 = vshll.u32 %v673, 16
      %v861 = vrot.slane %v859, 5
      %v862 = vsel %vm704, %v857, %v861
      %v863 = vshrl.u32 %v673, 16
      %v865 = vrot.slane %v863, 4
      %v866 = vor.u32 %v865, %v861
      %v867 = vrot.slane %v866, 4
      %v869 = vshll.u32 %v674, 16
      %v871 = vrot.slane %v869, 5
      %v872 = vsel %vm704, %v867, %v871
      %v874 = vshrl.u32 %v675, 16
      %v876 = vrot.slane %v874, 4
      %v877 = vshll.u32 %v675, 16
      %v879 = vrot.slane %v877, 5
      %v880 = vor.u32 %v876, %v879
      %v881 = vrot.slane %v880, 4
      %v883 = vshll.u32 %v676, 16
      %v885 = vrot.slane %v883, 5
      %v886 = vsel %vm704, %v881, %v885
      %v887 = vshrl.u32 %v676, 16
      %v889 = vrot.slane %v887, 4
      %v890 = vor.u32 %v889, %v885
      %v891 = vrot.slane %v890, 4
      %v893 = vshll.u32 %v677, 16
      %v895 = vrot.slane %v893, 5
      %v896 = vsel %vm704, %v891, %v895
      %v898 = vshrl.u32 %v678, 16
      %v900 = vrot.slane %v898, 4
      %v901 = vshll.u32 %v678, 16
      %v903 = vrot.slane %v901, 5
      %v904 = vor.u32 %v900, %v903
      %v905 = vrot.slane %v904, 4
      %v907 = vshll.u32 %v679, 16
      %v909 = vrot.slane %v907, 5
      %v910 = vsel %vm704, %v905, %v909
      %v911 = vshrl.u32 %v679, 16
      %v913 = vrot.slane %v911, 4
      %v914 = vor.u32 %v913, %v909
      %v915 = vrot.slane %v914, 4
      %v917 = vshll.u32 %v680, 16
      %v919 = vrot.slane %v917, 5
      %v920 = vsel %vm704, %v915, %v919
      %v922 = vshrl.u32 %v681, 16
      %v924 = vrot.slane %v922, 4
      %v925 = vshll.u32 %v681, 16
      %v927 = vrot.slane %v925, 5
      %v928 = vor.u32 %v924, %v927
      %v929 = vrot.slane %v928, 4
      %v931 = vshll.u32 %v682, 16
      %v933 = vrot.slane %v931, 5
      %v934 = vsel %vm704, %v929, %v933
      %v935 = vshrl.u32 %v682, 16
      %v937 = vrot.slane %v935, 4
      %v938 = vor.u32 %v937, %v933
      %v939 = vrot.slane %v938, 4
      %v941 = vshll.u32 %v683, 16
      %v943 = vrot.slane %v941, 5
      %v944 = vsel %vm704, %v939, %v943
      %v946 = vshrl.u32 %v684, 16
      %v948 = vrot.slane %v946, 4
      %v949 = vshll.u32 %v684, 16
      %v951 = vrot.slane %v949, 5
      %v952 = vor.u32 %v948, %v951
      %v953 = vrot.slane %v952, 4
      %v955 = vshll.u32 %v685, 16
      %v957 = vrot.slane %v955, 5
      %v958 = vsel %vm704, %v953, %v957
      %v959 = vshrl.u32 %v685, 16
      %v961 = vrot.slane %v959, 4
      %v962 = vor.u32 %v961, %v957
      %v963 = vrot.slane %v962, 4
      %v965 = vshll.u32 %v686, 16
      %v967 = vrot.slane %v965, 5
      %v968 = vsel %vm704, %v963, %v967
      %v970 = vshrl.u32 %v687, 16
      %v972 = vrot.slane %v970, 4
      %v973 = vshll.u32 %v687, 16
      %v975 = vrot.slane %v973, 5
      %v976 = vor.u32 %v972, %v975
      %v977 = vrot.slane %v976, 4
      %v979 = vshll.u32 %v688, 16
      %v981 = vrot.slane %v979, 5
      %v982 = vsel %vm704, %v977, %v981
      %v983 = vshrl.u32 %v688, 16
      %v985 = vrot.slane %v983, 4
      %v986 = vor.u32 %v985, %v981
      %v987 = vrot.slane %v986, 4
      %v989 = vshll.u32 %v689, 16
      %v991 = vrot.slane %v989, 5
      %v992 = vsel %vm704, %v987, %v991
      %v994 = vshrl.u32 %v690, 16
      %v996 = vrot.slane %v994, 4
      %v997 = vshll.u32 %v690, 16
      %v999 = vrot.slane %v997, 5
      %v1000 = vor.u32 %v996, %v999
      %v1001 = vrot.slane %v1000, 4
      %v1003 = vshll.u32 %v691, 16
      %v1005 = vrot.slane %v1003, 5
      %v1006 = vsel %vm704, %v1001, %v1005
      %v1007 = vshrl.u32 %v691, 16
      %v1009 = vrot.slane %v1007, 4
      %v1010 = vor.u32 %v1009, %v1005
      %v1011 = vrot.slane %v1010, 4
      %v1013 = vshll.u32 %v692, 16
      %v1015 = vrot.slane %v1013, 5
      %v1016 = vsel %vm704, %v1011, %v1015
      %v1018 = vshrl.u32 %v693, 16
      %v1020 = vrot.slane %v1018, 4
      %v1021 = vshll.u32 %v693, 16
      %v1023 = vrot.slane %v1021, 5
      %v1024 = vor.u32 %v1020, %v1023
      %v1025 = vrot.slane %v1024, 4
      %v1027 = vshll.u32 %v694, 16
      %v1029 = vrot.slane %v1027, 5
      %v1030 = vsel %vm704, %v1025, %v1029
      %v1031 = vshrl.u32 %v694, 16
      %v1033 = vrot.slane %v1031, 4
      %v1034 = vor.u32 %v1033, %v1029
      %v1035 = vrot.slane %v1034, 4
      %v1037 = vshll.u32 %v695, 16
      %v1039 = vrot.slane %v1037, 5
      %v1040 = vsel %vm704, %v1035, %v1039
      %v1042 = vshrl.u32 %v696, 16
      %v1044 = vrot.slane %v1042, 4
      %v1045 = vshll.u32 %v696, 16
      %v1047 = vrot.slane %v1045, 5
      %v1048 = vor.u32 %v1044, %v1047
      %v1049 = vrot.slane %v1048, 4
      %v1051 = vshll.u32 %v697, 16
      %v1053 = vrot.slane %v1051, 5
      %v1054 = vsel %vm704, %v1049, %v1053
      %v1055 = vshrl.u32 %v697, 16
      %v1057 = vrot.slane %v1055, 4
      %v1058 = vor.u32 %v1057, %v1053
      %v1059 = vrot.slane %v1058, 4
      %v1061 = vshll.u32 %v698, 16
      %v1063 = vrot.slane %v1061, 5
      %v1064 = vsel %vm704, %v1059, %v1063
      %v1066 = vshrl.u32 %v699, 16
      %v1068 = vrot.slane %v1066, 4
      %v1069 = vshll.u32 %v699, 16
      %v1071 = vrot.slane %v1069, 5
      %v1072 = vor.u32 %v1068, %v1071
      %v1073 = vrot.slane %v1072, 4
      %v1075 = vshll.u32 %v700, 16
      %v1077 = vrot.slane %v1075, 5
      %v1078 = vsel %vm704, %v1073, %v1077
      %v1079 = vshrl.u32 %v700, 16
      %v1081 = vrot.slane %v1079, 4
      %v1082 = vor.u32 %v1081, %v1077
      %v1083 = vrot.slane %v1082, 4
      %v1085 = vshll.u32 %v701, 16
      %v1087 = vrot.slane %v1085, 5
      %v1088 = vsel %vm704, %v1083, %v1087
      %v1089 = vld [vmem:[#allocation2] sm:$0xff]
      %v1090 = vld [vmem:[#allocation2 + $0x8] sm:$0xff]
      %v1091 = vld [vmem:[#allocation2 + $0x10] sm:$0xff]
      %v1092 = vld [vmem:[#allocation2 + $0x18] sm:$0xff]
      %v1093 = vld [vmem:[#allocation2 + $0x20] sm:$0xff]
      %v1094 = vld [vmem:[#allocation2 + $0x28] sm:$0xff]
      %v1095 = vld [vmem:[#allocation2 + $0x30] sm:$0xff]
      %v1096 = vld [vmem:[#allocation2 + $0x38] sm:$0xff]
      %v1097 = vld [vmem:[#allocation2 + $0x40] sm:$0xff]
      %v1098 = vld [vmem:[#allocation2 + $0x48] sm:$0xff]
      %v1099 = vld [vmem:[#allocation2 + $0x50] sm:$0xff]
      %v1100 = vld [vmem:[#allocation2 + $0x58] sm:$0xff]
      %v1101 = vld [vmem:[#allocation2 + $0x60] sm:$0xff]
      %v1102 = vld [vmem:[#allocation2 + $0x68] sm:$0xff]
      %v1103 = vld [vmem:[#allocation2 + $0x70] sm:$0xff]
      %v1104 = vld [vmem:[#allocation2 + $0x78] sm:$0xff]
      %v1105 = vld [vmem:[#allocation2 + $0x80] sm:$0xff]
      %v1106 = vld [vmem:[#allocation2 + $0x88] sm:$0xff]
      %v1107 = vld [vmem:[#allocation2 + $0x90] sm:$0xff]
      %v1108 = vld [vmem:[#allocation2 + $0x98] sm:$0xff]
      %v1109 = vld [vmem:[#allocation2 + $0xa0] sm:$0xff]
      %v1110 = vld [vmem:[#allocation2 + $0xa8] sm:$0xff]
      %v1111 = vld [vmem:[#allocation2 + $0xb0] sm:$0xff]
      %v1112 = vld [vmem:[#allocation2 + $0xb8] sm:$0xff]
      %v1113 = vld [vmem:[#allocation2 + $0xc0] sm:$0xff]
      %v1114 = vld [vmem:[#allocation2 + $0xc8] sm:$0xff]
      %v1115 = vld [vmem:[#allocation2 + $0xd0] sm:$0xff]
      %v1116 = vld [vmem:[#allocation2 + $0xd8] sm:$0xff]
      %v1117 = vld [vmem:[#allocation2 + $0xe0] sm:$0xff]
      %v1118 = vld [vmem:[#allocation2 + $0xe8] sm:$0xff]
      %v1119 = vld [vmem:[#allocation2 + $0xf0] sm:$0xff]
      %v1120 = vld [vmem:[#allocation2 + $0xf8] sm:$0xff]
      %s1121 = scalar_lea.vmem %s1, 64
      %v1122 = vld [vmem:[%s1121] sm:$0xf]
      %v1123 = vld [vmem:[%s1121 + $0x4] sm:$0xf]
      %v1124 = vld [vmem:[%s1121 + $0x8] sm:$0xf]
      %v1125 = vld [vmem:[%s1121 + $0xc] sm:$0xf]
      %v1126 = vld [vmem:[%s1121 + $0x10] sm:$0xf]
      %v1127 = vld [vmem:[%s1121 + $0x14] sm:$0xf]
      %v1128 = vld [vmem:[%s1121 + $0x18] sm:$0xf]
      %v1129 = vld [vmem:[%s1121 + $0x1c] sm:$0xf]
      %v1130 = vld [vmem:[%s1121 + $0x20] sm:$0xf]
      %v1131 = vld [vmem:[%s1121 + $0x24] sm:$0xf]
      %v1132 = vld [vmem:[%s1121 + $0x28] sm:$0xf]
      %v1133 = vld [vmem:[%s1121 + $0x2c] sm:$0xf]
      %v1134 = vld [vmem:[%s1121 + $0x30] sm:$0xf]
      %v1135 = vld [vmem:[%s1121 + $0x34] sm:$0xf]
      %v1136 = vld [vmem:[%s1121 + $0x38] sm:$0xf]
      %v1137 = vld [vmem:[%s1121 + $0x3c] sm:$0xf]
      %v1138 = vunpack.c.l.b16 %v718
      %v1139 = vunpack.c.l.b16 %v728
      %v1140 = vunpack.c.l.b16 %v742
      %v1141 = vunpack.c.l.b16 %v752
      %v1142 = vunpack.c.l.b16 %v766
      %v1143 = vunpack.c.l.b16 %v776
      %v1144 = vunpack.c.l.b16 %v790
      %v1145 = vunpack.c.l.b16 %v800
      %v1146 = vunpack.c.l.b16 %v814
      %v1147 = vunpack.c.l.b16 %v824
      %v1148 = vunpack.c.l.b16 %v838
      %v1149 = vunpack.c.l.b16 %v848
      %v1150 = vunpack.c.l.b16 %v862
      %v1151 = vunpack.c.l.b16 %v872
      %v1152 = vunpack.c.l.b16 %v886
      %v1153 = vunpack.c.l.b16 %v896
      %v1154 = vunpack.c.l.b16 %v910
      %v1155 = vunpack.c.l.b16 %v920
      %v1156 = vunpack.c.l.b16 %v934
      %v1157 = vunpack.c.l.b16 %v944
      %v1158 = vunpack.c.l.b16 %v958
      %v1159 = vunpack.c.l.b16 %v968
      %v1160 = vunpack.c.l.b16 %v982
      %v1161 = vunpack.c.l.b16 %v992
      %v1162 = vunpack.c.l.b16 %v1006
      %v1163 = vunpack.c.l.b16 %v1016
      %v1164 = vunpack.c.l.b16 %v1030
      %v1165 = vunpack.c.l.b16 %v1040
      %v1166 = vunpack.c.l.b16 %v1054
      %v1167 = vunpack.c.l.b16 %v1064
      %v1168 = vunpack.c.l.b16 %v1078
      %v1169 = vunpack.c.l.b16 %v1088
      %v1170 = vpack.c.b16 %v1139, %v1138
      %v1171 = vpack.c.b16 %v1141, %v1140
      %v1172 = vpack.c.b16 %v1143, %v1142
      %v1173 = vpack.c.b16 %v1145, %v1144
      %v1174 = vpack.c.b16 %v1147, %v1146
      %v1175 = vpack.c.b16 %v1149, %v1148
      %v1176 = vpack.c.b16 %v1151, %v1150
      %v1177 = vpack.c.b16 %v1153, %v1152
      %v1178 = vpack.c.b16 %v1155, %v1154
      %v1179 = vpack.c.b16 %v1157, %v1156
      %v1180 = vpack.c.b16 %v1159, %v1158
      %v1181 = vpack.c.b16 %v1161, %v1160
      %v1182 = vpack.c.b16 %v1163, %v1162
      %v1183 = vpack.c.b16 %v1165, %v1164
      %v1184 = vpack.c.b16 %v1167, %v1166
      %v1185 = vpack.c.b16 %v1169, %v1168
      %v1218 = vunpack.c.l.b16 %v1122
      %v1219 = vunpack.c.l.b16 %v1123
      %v1220 = vunpack.c.l.b16 %v1124
      %v1221 = vunpack.c.l.b16 %v1125
      %v1222 = vunpack.c.l.b16 %v1126
      %v1223 = vunpack.c.l.b16 %v1127
      %v1224 = vunpack.c.l.b16 %v1128
      %v1225 = vunpack.c.l.b16 %v1129
      %v1226 = vunpack.c.l.b16 %v1130
      %v1227 = vunpack.c.l.b16 %v1131
      %v1228 = vunpack.c.l.b16 %v1132
      %v1229 = vunpack.c.l.b16 %v1133
      %v1230 = vunpack.c.l.b16 %v1134
      %v1231 = vunpack.c.l.b16 %v1135
      %v1232 = vunpack.c.l.b16 %v1136
      %v1233 = vunpack.c.l.b16 %v1137
      %v1234 = vpack.c.b16 %v1219, %v1218
      %v1235 = vpack.c.b16 %v1221, %v1220
      %v1236 = vpack.c.b16 %v1223, %v1222
      %v1237 = vpack.c.b16 %v1225, %v1224
      %v1238 = vpack.c.b16 %v1227, %v1226
      %v1239 = vpack.c.b16 %v1229, %v1228
      %v1240 = vpack.c.b16 %v1231, %v1230
      %v1241 = vpack.c.b16 %v1233, %v1232
      %1250 = vmatprep.subr.bf16.mxu0 0
      %1251 = vmatpush1.bf16.msra.mxu0 %v1234
      %1252 = vmatprep.subr.bf16.mxu0 0
      %1253 = vmatpush1.bf16.msra.mxu0 %v1235
      %1254 = vmatprep.subr.bf16.mxu0 0
      %1255 = vmatpush1.bf16.msra.mxu0 %v1236
      %1256 = vmatprep.subr.bf16.mxu0 0
      %1257 = vmatpush1.bf16.msra.mxu0 %v1237
      %1258 = vmatprep.subr.bf16.mxu0 0
      %1259 = vmatpush1.bf16.msra.mxu0 %v1238
      %1260 = vmatprep.subr.bf16.mxu0 0
      %1261 = vmatpush1.bf16.msra.mxu0 %v1239
      %1262 = vmatprep.subr.bf16.mxu0 0
      %1263 = vmatpush1.bf16.msra.mxu0 %v1240
      %1264 = vmatprep.subr.bf16.mxu0 0
      %1265 = vmatpush1.bf16.msra.mxu0 %v1241
      %1266 = vmatprep.subr.bf16.mxu0 0
      %1267 = vmatpush1.bf16.msra.mxu0 0
      %1268 = vmatprep.subr.bf16.mxu0 0
      %1269 = vmatpush1.bf16.msra.mxu0 0
      %1270 = vmatprep.subr.bf16.mxu0 0
      %1271 = vmatpush1.bf16.msra.mxu0 0
      %1272 = vmatprep.subr.bf16.mxu0 0
      %1273 = vmatpush1.bf16.msra.mxu0 0
      %1274 = vmatprep.subr.bf16.mxu0 0
      %1275 = vmatpush1.bf16.msra.mxu0 0
      %1276 = vmatprep.subr.bf16.mxu0 0
      %1277 = vmatpush1.bf16.msra.mxu0 0
      %1278 = vmatprep.subr.bf16.mxu0 0
      %1279 = vmatpush1.bf16.msra.mxu0 0
      %1280 = vmatprep.subr.bf16.mxu0 0
      %1281 = vmatpush1.bf16.msra.mxu0 0
      %1282 = vmatprep.mubr.bf16.mxu0 0
      %1283 = vmatmul.mubr.bf16.gmra.mrb[0].mxu0 %v1170
      %v1284 = vpop.f32.mrb[0].mxu0
      %v1285 = vadd.f32 0.0, %v1284
      %v1286 = vpop.f32.mrb[0].mxu0
      %v1287 = vpop.f32.mrb[0].mxu0
      %v1288 = vadd.f32 0.0, %v1287
      %v1289 = vpop.f32.mrb[0].mxu0
      %1290 = vmatprep.mubr.bf16.mxu0 0
      %1291 = vmatmul.mubr.bf16.gmra.mrb[0].mxu0 %v1171
      %v1292 = vpop.f32.mrb[0].mxu0
      %v1293 = vadd.f32 0.0, %v1292
      %v1294 = vpop.f32.mrb[0].mxu0
      %v1295 = vpop.f32.mrb[0].mxu0
      %v1296 = vadd.f32 0.0, %v1295
      %v1297 = vpop.f32.mrb[0].mxu0
      %1298 = vmatprep.mubr.bf16.mxu0 0
      %1299 = vmatmul.mubr.bf16.gmra.mrb[0].mxu0 %v1172
      %v1300 = vpop.f32.mrb[0].mxu0
      %v1301 = vadd.f32 0.0, %v1300
      %v1302 = vpop.f32.mrb[0].mxu0
      %v1303 = vpop.f32.mrb[0].mxu0
      %v1304 = vadd.f32 0.0, %v1303
      %v1305 = vpop.f32.mrb[0].mxu0
      %1306 = vmatprep.mubr.bf16.mxu0 0
      %1307 = vmatmul.mubr.bf16.gmra.mrb[0].mxu0 %v1173
      %v1308 = vpop.f32.mrb[0].mxu0
      %v1309 = vadd.f32 0.0, %v1308
      %v1310 = vpop.f32.mrb[0].mxu0
      %v1311 = vpop.f32.mrb[0].mxu0
      %v1312 = vadd.f32 0.0, %v1311
      %v1313 = vpop.f32.mrb[0].mxu0
      %1314 = vmatprep.mubr.bf16.mxu0 0
      %1315 = vmatmul.mubr.bf16.gmra.mrb[0].mxu0 %v1174
      %v1316 = vpop.f32.mrb[0].mxu0
      %v1317 = vadd.f32 0.0, %v1316
      %v1318 = vpop.f32.mrb[0].mxu0
      %v1319 = vpop.f32.mrb[0].mxu0
      %v1320 = vadd.f32 0.0, %v1319
      %v1321 = vpop.f32.mrb[0].mxu0
      %1322 = vmatprep.mubr.bf16.mxu0 0
      %1323 = vmatmul.mubr.bf16.gmra.mrb[0].mxu0 %v1175
      %v1324 = vpop.f32.mrb[0].mxu0
      %v1325 = vadd.f32 0.0, %v1324
      %v1326 = vpop.f32.mrb[0].mxu0
      %v1327 = vpop.f32.mrb[0].mxu0
      %v1328 = vadd.f32 0.0, %v1327
      %v1329 = vpop.f32.mrb[0].mxu0
      %1330 = vmatprep.mubr.bf16.mxu0 0
      %1331 = vmatmul.mubr.bf16.gmra.mrb[0].mxu0 %v1176
      %v1332 = vpop.f32.mrb[0].mxu0
      %v1333 = vadd.f32 0.0, %v1332
      %v1334 = vpop.f32.mrb[0].mxu0
      %v1335 = vpop.f32.mrb[0].mxu0
      %v1336 = vadd.f32 0.0, %v1335
      %v1337 = vpop.f32.mrb[0].mxu0
      %1338 = vmatprep.mubr.bf16.mxu0 0
      %1339 = vmatmul.mubr.bf16.gmra.mrb[0].mxu0 %v1177
      %v1340 = vpop.f32.mrb[0].mxu0
      %v1341 = vadd.f32 0.0, %v1340
      %v1342 = vpop.f32.mrb[0].mxu0
      %v1343 = vpop.f32.mrb[0].mxu0
      %v1344 = vadd.f32 0.0, %v1343
      %v1345 = vpop.f32.mrb[0].mxu0
      %1346 = vmatprep.mubr.bf16.mxu0 0
      %1347 = vmatmul.mubr.bf16.gmra.mrb[0].mxu0 %v1178
      %v1348 = vpop.f32.mrb[0].mxu0
      %v1349 = vadd.f32 0.0, %v1348
      %v1350 = vpop.f32.mrb[0].mxu0
      %v1351 = vpop.f32.mrb[0].mxu0
      %v1352 = vadd.f32 0.0, %v1351
      %v1353 = vpop.f32.mrb[0].mxu0
      %1354 = vmatprep.mubr.bf16.mxu0 0
      %1355 = vmatmul.mubr.bf16.gmra.mrb[0].mxu0 %v1179
      %v1356 = vpop.f32.mrb[0].mxu0
      %v1357 = vadd.f32 0.0, %v1356
      %v1358 = vpop.f32.mrb[0].mxu0
      %v1359 = vpop.f32.mrb[0].mxu0
      %v1360 = vadd.f32 0.0, %v1359
      %v1361 = vpop.f32.mrb[0].mxu0
      %1362 = vmatprep.mubr.bf16.mxu0 0
      %1363 = vmatmul.mubr.bf16.gmra.mrb[0].mxu0 %v1180
      %v1364 = vpop.f32.mrb[0].mxu0
      %v1365 = vadd.f32 0.0, %v1364
      %v1366 = vpop.f32.mrb[0].mxu0
      %v1367 = vpop.f32.mrb[0].mxu0
      %v1368 = vadd.f32 0.0, %v1367
      %v1369 = vpop.f32.mrb[0].mxu0
      %1370 = vmatprep.mubr.bf16.mxu0 0
      %1371 = vmatmul.mubr.bf16.gmra.mrb[0].mxu0 %v1181
      %v1372 = vpop.f32.mrb[0].mxu0
      %v1373 = vadd.f32 0.0, %v1372
      %v1374 = vpop.f32.mrb[0].mxu0
      %v1375 = vpop.f32.mrb[0].mxu0
      %v1376 = vadd.f32 0.0, %v1375
      %v1377 = vpop.f32.mrb[0].mxu0
      %1378 = vmatprep.mubr.bf16.mxu0 0
      %1379 = vmatmul.mubr.bf16.gmra.mrb[0].mxu0 %v1182
      %v1380 = vpop.f32.mrb[0].mxu0
      %v1381 = vadd.f32 0.0, %v1380
      %v1382 = vpop.f32.mrb[0].mxu0
      %v1383 = vpop.f32.mrb[0].mxu0
      %v1384 = vadd.f32 0.0, %v1383
      %v1385 = vpop.f32.mrb[0].mxu0
      %1386 = vmatprep.mubr.bf16.mxu0 0
      %1387 = vmatmul.mubr.bf16.gmra.mrb[0].mxu0 %v1183
      %v1388 = vpop.f32.mrb[0].mxu0
      %v1389 = vadd.f32 0.0, %v1388
      %v1390 = vpop.f32.mrb[0].mxu0
      %v1391 = vpop.f32.mrb[0].mxu0
      %v1392 = vadd.f32 0.0, %v1391
      %v1393 = vpop.f32.mrb[0].mxu0
      %1394 = vmatprep.mubr.bf16.mxu0 0
      %1395 = vmatmul.mubr.bf16.gmra.mrb[0].mxu0 %v1184
      %v1396 = vpop.f32.mrb[0].mxu0
      %v1397 = vadd.f32 0.0, %v1396
      %v1398 = vpop.f32.mrb[0].mxu0
      %v1399 = vpop.f32.mrb[0].mxu0
      %v1400 = vadd.f32 0.0, %v1399
      %v1401 = vpop.f32.mrb[0].mxu0
      %1402 = vmatprep.mubr.bf16.mxu0 0
      %1403 = vmatmul.mubr.bf16.gmra.mrb[0].mxu0 %v1185
      %v1404 = vpop.f32.mrb[0].mxu0
      %v1405 = vadd.f32 0.0, %v1404
      %v1406 = vpop.f32.mrb[0].mxu0
      %v1407 = vpop.f32.mrb[0].mxu0
      %v1408 = vadd.f32 0.0, %v1407
      %v1409 = vpop.f32.mrb[0].mxu0
      %1410 = vdwg.mxu0
      %v1411 = vadd.f32 %v1089, %v1285
      %v1412 = vadd.f32 %v1090, %v1288
      %v1413 = vadd.f32 %v1091, %v1293
      %v1414 = vadd.f32 %v1092, %v1296
      %v1415 = vadd.f32 %v1093, %v1301
      %v1416 = vadd.f32 %v1094, %v1304
      %v1417 = vadd.f32 %v1095, %v1309
      %v1418 = vadd.f32 %v1096, %v1312
      %v1419 = vadd.f32 %v1097, %v1317
      %v1420 = vadd.f32 %v1098, %v1320
      %v1421 = vadd.f32 %v1099, %v1325
      %v1422 = vadd.f32 %v1100, %v1328
      %v1423 = vadd.f32 %v1101, %v1333
      %v1424 = vadd.f32 %v1102, %v1336
      %v1425 = vadd.f32 %v1103, %v1341
      %v1426 = vadd.f32 %v1104, %v1344
      %v1427 = vadd.f32 %v1105, %v1349
      %v1428 = vadd.f32 %v1106, %v1352
      %v1429 = vadd.f32 %v1107, %v1357
      %v1430 = vadd.f32 %v1108, %v1360
      %v1431 = vadd.f32 %v1109, %v1365
      %v1432 = vadd.f32 %v1110, %v1368
      %v1433 = vadd.f32 %v1111, %v1373
      %v1434 = vadd.f32 %v1112, %v1376
      %v1435 = vadd.f32 %v1113, %v1381
      %v1436 = vadd.f32 %v1114, %v1384
      %v1437 = vadd.f32 %v1115, %v1389
      %v1438 = vadd.f32 %v1116, %v1392
      %v1439 = vadd.f32 %v1117, %v1397
      %v1440 = vadd.f32 %v1118, %v1400
      %v1441 = vadd.f32 %v1119, %v1405
      %v1442 = vadd.f32 %v1120, %v1408
      %1443 = vst [vmem:[#allocation2] sm:$0xff] %v1411
      %1444 = vst [vmem:[#allocation2 + $0x8] sm:$0xff] %v1412
      %1445 = vst [vmem:[#allocation2 + $0x10] sm:$0xff] %v1413
      %1446 = vst [vmem:[#allocation2 + $0x18] sm:$0xff] %v1414
      %1447 = vst [vmem:[#allocation2 + $0x20] sm:$0xff] %v1415
      %1448 = vst [vmem:[#allocation2 + $0x28] sm:$0xff] %v1416
      %1449 = vst [vmem:[#allocation2 + $0x30] sm:$0xff] %v1417
      %1450 = vst [vmem:[#allocation2 + $0x38] sm:$0xff] %v1418
      %1451 = vst [vmem:[#allocation2 + $0x40] sm:$0xff] %v1419
      %1452 = vst [vmem:[#allocation2 + $0x48] sm:$0xff] %v1420
      %1453 = vst [vmem:[#allocation2 + $0x50] sm:$0xff] %v1421
      %1454 = vst [vmem:[#allocation2 + $0x58] sm:$0xff] %v1422
      %1455 = vst [vmem:[#allocation2 + $0x60] sm:$0xff] %v1423
      %1456 = vst [vmem:[#allocation2 + $0x68] sm:$0xff] %v1424
      %1457 = vst [vmem:[#allocation2 + $0x70] sm:$0xff] %v1425
      %1458 = vst [vmem:[#allocation2 + $0x78] sm:$0xff] %v1426
      %1459 = vst [vmem:[#allocation2 + $0x80] sm:$0xff] %v1427
      %1460 = vst [vmem:[#allocation2 + $0x88] sm:$0xff] %v1428
      %1461 = vst [vmem:[#allocation2 + $0x90] sm:$0xff] %v1429
      %1462 = vst [vmem:[#allocation2 + $0x98] sm:$0xff] %v1430
      %1463 = vst [vmem:[#allocation2 + $0xa0] sm:$0xff] %v1431
      %1464 = vst [vmem:[#allocation2 + $0xa8] sm:$0xff] %v1432
      %1465 = vst [vmem:[#allocation2 + $0xb0] sm:$0xff] %v1433
      %1466 = vst [vmem:[#allocation2 + $0xb8] sm:$0xff] %v1434
      %1467 = vst [vmem:[#allocation2 + $0xc0] sm:$0xff] %v1435
      %1468 = vst [vmem:[#allocation2 + $0xc8] sm:$0xff] %v1436
      %1469 = vst [vmem:[#allocation2 + $0xd0] sm:$0xff] %v1437
      %1470 = vst [vmem:[#allocation2 + $0xd8] sm:$0xff] %v1438
      %1471 = vst [vmem:[#allocation2 + $0xe0] sm:$0xff] %v1439
      %1472 = vst [vmem:[#allocation2 + $0xe8] sm:$0xff] %v1440
      %1473 = vst [vmem:[#allocation2 + $0xf0] sm:$0xff] %v1441
      %1474 = vst [vmem:[#allocation2 + $0xf8] sm:$0xff] %v1442
      %v1475 = vld [vmem:[%s165] sm:$0xe]
      %v1476 = vld [vmem:[%s165 + $0x4] sm:$0xf]
      %v1477 = vld [vmem:[%s165 + $0x8] sm:$0x1]
      %v1478 = vld [vmem:[%s165 + $0xc] sm:$0xe]
      %v1479 = vld [vmem:[%s165 + $0x10] sm:$0xf]
      %v1480 = vld [vmem:[%s165 + $0x14] sm:$0x1]
      %v1481 = vld [vmem:[%s165 + $0x18] sm:$0xe]
      %v1482 = vld [vmem:[%s165 + $0x1c] sm:$0xf]
      %v1483 = vld [vmem:[%s165 + $0x20] sm:$0x1]
      %v1484 = vld [vmem:[%s165 + $0x24] sm:$0xe]
      %v1485 = vld [vmem:[%s165 + $0x28] sm:$0xf]
      %v1486 = vld [vmem:[%s165 + $0x2c] sm:$0x1]
      %v1487 = vld [vmem:[%s165 + $0x30] sm:$0xe]
      %v1488 = vld [vmem:[%s165 + $0x34] sm:$0xf]
      %v1489 = vld [vmem:[%s165 + $0x38] sm:$0x1]
      %v1490 = vld [vmem:[%s165 + $0x3c] sm:$0xe]
      %v1491 = vld [vmem:[%s165 + $0x40] sm:$0xf]
      %v1492 = vld [vmem:[%s165 + $0x44] sm:$0x1]
      %v1493 = vld [vmem:[%s165 + $0x48] sm:$0xe]
      %v1494 = vld [vmem:[%s165 + $0x4c] sm:$0xf]
      %v1495 = vld [vmem:[%s165 + $0x50] sm:$0x1]
      %v1496 = vld [vmem:[%s165 + $0x54] sm:$0xe]
      %v1497 = vld [vmem:[%s165 + $0x58] sm:$0xf]
      %v1498 = vld [vmem:[%s165 + $0x5c] sm:$0x1]
      %v1499 = vld [vmem:[%s165 + $0x60] sm:$0xe]
      %v1500 = vld [vmem:[%s165 + $0x64] sm:$0xf]
      %v1501 = vld [vmem:[%s165 + $0x68] sm:$0x1]
      %v1502 = vld [vmem:[%s165 + $0x6c] sm:$0xe]
      %v1503 = vld [vmem:[%s165 + $0x70] sm:$0xf]
      %v1504 = vld [vmem:[%s165 + $0x74] sm:$0x1]
      %v1505 = vld [vmem:[%s165 + $0x78] sm:$0xe]
      %v1506 = vld [vmem:[%s165 + $0x7c] sm:$0xf]
      %v1507 = vld [vmem:[%s165 + $0x80] sm:$0x1]
      %v1508 = vld [vmem:[%s165 + $0x84] sm:$0xe]
      %v1509 = vld [vmem:[%s165 + $0x88] sm:$0xf]
      %v1510 = vld [vmem:[%s165 + $0x8c] sm:$0x1]
      %v1511 = vld [vmem:[%s165 + $0x90] sm:$0xe]
      %v1512 = vld [vmem:[%s165 + $0x94] sm:$0xf]
      %v1513 = vld [vmem:[%s165 + $0x98] sm:$0x1]
      %v1514 = vld [vmem:[%s165 + $0x9c] sm:$0xe]
      %v1515 = vld [vmem:[%s165 + $0xa0] sm:$0xf]
      %v1516 = vld [vmem:[%s165 + $0xa4] sm:$0x1]
      %v1517 = vld [vmem:[%s165 + $0xa8] sm:$0xe]
      %v1518 = vld [vmem:[%s165 + $0xac] sm:$0xf]
      %v1519 = vld [vmem:[%s165 + $0xb0] sm:$0x1]
      %v1520 = vld [vmem:[%s165 + $0xb4] sm:$0xe]
      %v1521 = vld [vmem:[%s165 + $0xb8] sm:$0xf]
      %v1522 = vld [vmem:[%s165 + $0xbc] sm:$0x1]
      %vm1571 = vcmask 1042432
      %vm1572 = vcmask 1046532
      %vm1573 = vmor %vm1571, %vm1572
      %v1574 = vrot.slane %v1475, 5
      %v1575 = vrot.slane %v1574, 4
      %v1576 = vrot.slane %v1476, 5
      %v1577 = vsel %vm1573, %v1575, %v1576
      %v1578 = vrot.slane %v1576, 4
      %v1579 = vrot.slane %v1477, 5
      %v1580 = vsel %vm1573, %v1578, %v1579
      %v1581 = vrot.slane %v1478, 5
      %v1582 = vrot.slane %v1581, 4
      %v1583 = vrot.slane %v1479, 5
      %v1584 = vsel %vm1573, %v1582, %v1583
      %v1585 = vrot.slane %v1583, 4
      %v1586 = vrot.slane %v1480, 5
      %v1587 = vsel %vm1573, %v1585, %v1586
      %v1588 = vrot.slane %v1481, 5
      %v1589 = vrot.slane %v1588, 4
      %v1590 = vrot.slane %v1482, 5
      %v1591 = vsel %vm1573, %v1589, %v1590
      %v1592 = vrot.slane %v1590, 4
      %v1593 = vrot.slane %v1483, 5
      %v1594 = vsel %vm1573, %v1592, %v1593
      %v1595 = vrot.slane %v1484, 5
      %v1596 = vrot.slane %v1595, 4
      %v1597 = vrot.slane %v1485, 5
      %v1598 = vsel %vm1573, %v1596, %v1597
      %v1599 = vrot.slane %v1597, 4
      %v1600 = vrot.slane %v1486, 5
      %v1601 = vsel %vm1573, %v1599, %v1600
      %v1602 = vrot.slane %v1487, 5
      %v1603 = vrot.slane %v1602, 4
      %v1604 = vrot.slane %v1488, 5
      %v1605 = vsel %vm1573, %v1603, %v1604
      %v1606 = vrot.slane %v1604, 4
      %v1607 = vrot.slane %v1489, 5
      %v1608 = vsel %vm1573, %v1606, %v1607
      %v1609 = vrot.slane %v1490, 5
      %v1610 = vrot.slane %v1609, 4
      %v1611 = vrot.slane %v1491, 5
      %v1612 = vsel %vm1573, %v1610, %v1611
      %v1613 = vrot.slane %v1611, 4
      %v1614 = vrot.slane %v1492, 5
      %v1615 = vsel %vm1573, %v1613, %v1614
      %v1616 = vrot.slane %v1493, 5
      %v1617 = vrot.slane %v1616, 4
      %v1618 = vrot.slane %v1494, 5
      %v1619 = vsel %vm1573, %v1617, %v1618
      %v1620 = vrot.slane %v1618, 4
      %v1621 = vrot.slane %v1495, 5
      %v1622 = vsel %vm1573, %v1620, %v1621
      %v1623 = vrot.slane %v1496, 5
      %v1624 = vrot.slane %v1623, 4
      %v1625 = vrot.slane %v1497, 5
      %v1626 = vsel %vm1573, %v1624, %v1625
      %v1627 = vrot.slane %v1625, 4
      %v1628 = vrot.slane %v1498, 5
      %v1629 = vsel %vm1573, %v1627, %v1628
      %v1630 = vrot.slane %v1499, 5
      %v1631 = vrot.slane %v1630, 4
      %v1632 = vrot.slane %v1500, 5
      %v1633 = vsel %vm1573, %v1631, %v1632
      %v1634 = vrot.slane %v1632, 4
      %v1635 = vrot.slane %v1501, 5
      %v1636 = vsel %vm1573, %v1634, %v1635
      %v1637 = vrot.slane %v1502, 5
      %v1638 = vrot.slane %v1637, 4
      %v1639 = vrot.slane %v1503, 5
      %v1640 = vsel %vm1573, %v1638, %v1639
      %v1641 = vrot.slane %v1639, 4
      %v1642 = vrot.slane %v1504, 5
      %v1643 = vsel %vm1573, %v1641, %v1642
      %v1644 = vrot.slane %v1505, 5
      %v1645 = vrot.slane %v1644, 4
      %v1646 = vrot.slane %v1506, 5
      %v1647 = vsel %vm1573, %v1645, %v1646
      %v1648 = vrot.slane %v1646, 4
      %v1649 = vrot.slane %v1507, 5
      %v1650 = vsel %vm1573, %v1648, %v1649
      %v1651 = vrot.slane %v1508, 5
      %v1652 = vrot.slane %v1651, 4
      %v1653 = vrot.slane %v1509, 5
      %v1654 = vsel %vm1573, %v1652, %v1653
      %v1655 = vrot.slane %v1653, 4
      %v1656 = vrot.slane %v1510, 5
      %v1657 = vsel %vm1573, %v1655, %v1656
      %v1658 = vrot.slane %v1511, 5
      %v1659 = vrot.slane %v1658, 4
      %v1660 = vrot.slane %v1512, 5
      %v1661 = vsel %vm1573, %v1659, %v1660
      %v1662 = vrot.slane %v1660, 4
      %v1663 = vrot.slane %v1513, 5
      %v1664 = vsel %vm1573, %v1662, %v1663
      %v1665 = vrot.slane %v1514, 5
      %v1666 = vrot.slane %v1665, 4
      %v1667 = vrot.slane %v1515, 5
      %v1668 = vsel %vm1573, %v1666, %v1667
      %v1669 = vrot.slane %v1667, 4
      %v1670 = vrot.slane %v1516, 5
      %v1671 = vsel %vm1573, %v1669, %v1670
      %v1672 = vrot.slane %v1517, 5
      %v1673 = vrot.slane %v1672, 4
      %v1674 = vrot.slane %v1518, 5
      %v1675 = vsel %vm1573, %v1673, %v1674
      %v1676 = vrot.slane %v1674, 4
      %v1677 = vrot.slane %v1519, 5
      %v1678 = vsel %vm1573, %v1676, %v1677
      %v1679 = vrot.slane %v1520, 5
      %v1680 = vrot.slane %v1679, 4
      %v1681 = vrot.slane %v1521, 5
      %v1682 = vsel %vm1573, %v1680, %v1681
      %v1683 = vrot.slane %v1681, 4
      %v1684 = vrot.slane %v1522, 5
      %v1685 = vsel %vm1573, %v1683, %v1684
      %v1686 = vld [vmem:[#allocation2] sm:$0xff]
      %v1687 = vld [vmem:[#allocation2 + $0x8] sm:$0xff]
      %v1688 = vld [vmem:[#allocation2 + $0x10] sm:$0xff]
      %v1689 = vld [vmem:[#allocation2 + $0x18] sm:$0xff]
      %v1690 = vld [vmem:[#allocation2 + $0x20] sm:$0xff]
      %v1691 = vld [vmem:[#allocation2 + $0x28] sm:$0xff]
      %v1692 = vld [vmem:[#allocation2 + $0x30] sm:$0xff]
      %v1693 = vld [vmem:[#allocation2 + $0x38] sm:$0xff]
      %v1694 = vld [vmem:[#allocation2 + $0x40] sm:$0xff]
      %v1695 = vld [vmem:[#allocation2 + $0x48] sm:$0xff]
      %v1696 = vld [vmem:[#allocation2 + $0x50] sm:$0xff]
      %v1697 = vld [vmem:[#allocation2 + $0x58] sm:$0xff]
      %v1698 = vld [vmem:[#allocation2 + $0x60] sm:$0xff]
      %v1699 = vld [vmem:[#allocation2 + $0x68] sm:$0xff]
      %v1700 = vld [vmem:[#allocation2 + $0x70] sm:$0xff]
      %v1701 = vld [vmem:[#allocation2 + $0x78] sm:$0xff]
      %v1702 = vld [vmem:[#allocation2 + $0x80] sm:$0xff]
      %v1703 = vld [vmem:[#allocation2 + $0x88] sm:$0xff]
      %v1704 = vld [vmem:[#allocation2 + $0x90] sm:$0xff]
      %v1705 = vld [vmem:[#allocation2 + $0x98] sm:$0xff]
      %v1706 = vld [vmem:[#allocation2 + $0xa0] sm:$0xff]
      %v1707 = vld [vmem:[#allocation2 + $0xa8] sm:$0xff]
      %v1708 = vld [vmem:[#allocation2 + $0xb0] sm:$0xff]
      %v1709 = vld [vmem:[#allocation2 + $0xb8] sm:$0xff]
      %v1710 = vld [vmem:[#allocation2 + $0xc0] sm:$0xff]
      %v1711 = vld [vmem:[#allocation2 + $0xc8] sm:$0xff]
      %v1712 = vld [vmem:[#allocation2 + $0xd0] sm:$0xff]
      %v1713 = vld [vmem:[#allocation2 + $0xd8] sm:$0xff]
      %v1714 = vld [vmem:[#allocation2 + $0xe0] sm:$0xff]
      %v1715 = vld [vmem:[#allocation2 + $0xe8] sm:$0xff]
      %v1716 = vld [vmem:[#allocation2 + $0xf0] sm:$0xff]
      %v1717 = vld [vmem:[#allocation2 + $0xf8] sm:$0xff]
      %s1718 = scalar_lea.vmem %s1, 128
      %v1719 = vld [vmem:[%s1718] sm:$0xf]
      %v1720 = vld [vmem:[%s1718 + $0x4] sm:$0xf]
      %v1721 = vld [vmem:[%s1718 + $0x8] sm:$0xf]
      %v1722 = vld [vmem:[%s1718 + $0xc] sm:$0xf]
      %v1723 = vld [vmem:[%s1718 + $0x10] sm:$0xf]
      %v1724 = vld [vmem:[%s1718 + $0x14] sm:$0xf]
      %v1725 = vld [vmem:[%s1718 + $0x18] sm:$0xf]
      %v1726 = vld [vmem:[%s1718 + $0x1c] sm:$0xf]
      %v1727 = vld [vmem:[%s1718 + $0x20] sm:$0xf]
      %v1728 = vld [vmem:[%s1718 + $0x24] sm:$0xf]
      %v1729 = vld [vmem:[%s1718 + $0x28] sm:$0xf]
      %v1730 = vld [vmem:[%s1718 + $0x2c] sm:$0xf]
      %v1731 = vld [vmem:[%s1718 + $0x30] sm:$0xf]
      %v1732 = vld [vmem:[%s1718 + $0x34] sm:$0xf]
      %v1733 = vld [vmem:[%s1718 + $0x38] sm:$0xf]
      %v1734 = vld [vmem:[%s1718 + $0x3c] sm:$0xf]
      %v1735 = vunpack.c.l.b16 %v1577
      %v1736 = vunpack.c.l.b16 %v1580
      %v1737 = vunpack.c.l.b16 %v1584
      %v1738 = vunpack.c.l.b16 %v1587
      %v1739 = vunpack.c.l.b16 %v1591
      %v1740 = vunpack.c.l.b16 %v1594
      %v1741 = vunpack.c.l.b16 %v1598
      %v1742 = vunpack.c.l.b16 %v1601
      %v1743 = vunpack.c.l.b16 %v1605
      %v1744 = vunpack.c.l.b16 %v1608
      %v1745 = vunpack.c.l.b16 %v1612
      %v1746 = vunpack.c.l.b16 %v1615
      %v1747 = vunpack.c.l.b16 %v1619
      %v1748 = vunpack.c.l.b16 %v1622
      %v1749 = vunpack.c.l.b16 %v1626
      %v1750 = vunpack.c.l.b16 %v1629
      %v1751 = vunpack.c.l.b16 %v1633
      %v1752 = vunpack.c.l.b16 %v1636
      %v1753 = vunpack.c.l.b16 %v1640
      %v1754 = vunpack.c.l.b16 %v1643
      %v1755 = vunpack.c.l.b16 %v1647
      %v1756 = vunpack.c.l.b16 %v1650
      %v1757 = vunpack.c.l.b16 %v1654
      %v1758 = vunpack.c.l.b16 %v1657
      %v1759 = vunpack.c.l.b16 %v1661
      %v1760 = vunpack.c.l.b16 %v1664
      %v1761 = vunpack.c.l.b16 %v1668
      %v1762 = vunpack.c.l.b16 %v1671
      %v1763 = vunpack.c.l.b16 %v1675
      %v1764 = vunpack.c.l.b16 %v1678
      %v1765 = vunpack.c.l.b16 %v1682
      %v1766 = vunpack.c.l.b16 %v1685
      %v1767 = vpack.c.b16 %v1736, %v1735
      %v1768 = vpack.c.b16 %v1738, %v1737
      %v1769 = vpack.c.b16 %v1740, %v1739
      %v1770 = vpack.c.b16 %v1742, %v1741
      %v1771 = vpack.c.b16 %v1744, %v1743
      %v1772 = vpack.c.b16 %v1746, %v1745
      %v1773 = vpack.c.b16 %v1748, %v1747
      %v1774 = vpack.c.b16 %v1750, %v1749
      %v1775 = vpack.c.b16 %v1752, %v1751
      %v1776 = vpack.c.b16 %v1754, %v1753
      %v1777 = vpack.c.b16 %v1756, %v1755
      %v1778 = vpack.c.b16 %v1758, %v1757
      %v1779 = vpack.c.b16 %v1760, %v1759
      %v1780 = vpack.c.b16 %v1762, %v1761
      %v1781 = vpack.c.b16 %v1764, %v1763
      %v1782 = vpack.c.b16 %v1766, %v1765
      %v1815 = vunpack.c.l.b16 %v1719
      %v1816 = vunpack.c.l.b16 %v1720
      %v1817 = vunpack.c.l.b16 %v1721
      %v1818 = vunpack.c.l.b16 %v1722
      %v1819 = vunpack.c.l.b16 %v1723
      %v1820 = vunpack.c.l.b16 %v1724
      %v1821 = vunpack.c.l.b16 %v1725
      %v1822 = vunpack.c.l.b16 %v1726
      %v1823 = vunpack.c.l.b16 %v1727
      %v1824 = vunpack.c.l.b16 %v1728
      %v1825 = vunpack.c.l.b16 %v1729
      %v1826 = vunpack.c.l.b16 %v1730
      %v1827 = vunpack.c.l.b16 %v1731
      %v1828 = vunpack.c.l.b16 %v1732
      %v1829 = vunpack.c.l.b16 %v1733
      %v1830 = vunpack.c.l.b16 %v1734
      %v1831 = vpack.c.b16 %v1816, %v1815
      %v1832 = vpack.c.b16 %v1818, %v1817
      %v1833 = vpack.c.b16 %v1820, %v1819
      %v1834 = vpack.c.b16 %v1822, %v1821
      %v1835 = vpack.c.b16 %v1824, %v1823
      %v1836 = vpack.c.b16 %v1826, %v1825
      %v1837 = vpack.c.b16 %v1828, %v1827
      %v1838 = vpack.c.b16 %v1830, %v1829
      %1847 = vmatprep.subr.bf16.mxu0 0
      %1848 = vmatpush1.bf16.msra.mxu0 %v1831
      %1849 = vmatprep.subr.bf16.mxu0 0
      %1850 = vmatpush1.bf16.msra.mxu0 %v1832
      %1851 = vmatprep.subr.bf16.mxu0 0
      %1852 = vmatpush1.bf16.msra.mxu0 %v1833
      %1853 = vmatprep.subr.bf16.mxu0 0
      %1854 = vmatpush1.bf16.msra.mxu0 %v1834
      %1855 = vmatprep.subr.bf16.mxu0 0
      %1856 = vmatpush1.bf16.msra.mxu0 %v1835
      %1857 = vmatprep.subr.bf16.mxu0 0
      %1858 = vmatpush1.bf16.msra.mxu0 %v1836
      %1859 = vmatprep.subr.bf16.mxu0 0
      %1860 = vmatpush1.bf16.msra.mxu0 %v1837
      %1861 = vmatprep.subr.bf16.mxu0 0
      %1862 = vmatpush1.bf16.msra.mxu0 %v1838
      %1863 = vmatprep.subr.bf16.mxu0 0
      %1864 = vmatpush1.bf16.msra.mxu0 0
      %1865 = vmatprep.subr.bf16.mxu0 0
      %1866 = vmatpush1.bf16.msra.mxu0 0
      %1867 = vmatprep.subr.bf16.mxu0 0
      %1868 = vmatpush1.bf16.msra.mxu0 0
      %1869 = vmatprep.subr.bf16.mxu0 0
      %1870 = vmatpush1.bf16.msra.mxu0 0
      %1871 = vmatprep.subr.bf16.mxu0 0
      %1872 = vmatpush1.bf16.msra.mxu0 0
      %1873 = vmatprep.subr.bf16.mxu0 0
      %1874 = vmatpush1.bf16.msra.mxu0 0
      %1875 = vmatprep.subr.bf16.mxu0 0
      %1876 = vmatpush1.bf16.msra.mxu0 0
      %1877 = vmatprep.subr.bf16.mxu0 0
      %1878 = vmatpush1.bf16.msra.mxu0 0
      %1879 = vmatprep.mubr.bf16.mxu0 0
      %1880 = vmatmul.mubr.bf16.gmra.mrb[0].mxu0 %v1767
      %v1881 = vpop.f32.mrb[0].mxu0
      %v1882 = vadd.f32 0.0, %v1881
      %v1883 = vpop.f32.mrb[0].mxu0
      %v1884 = vpop.f32.mrb[0].mxu0
      %v1885 = vadd.f32 0.0, %v1884
      %v1886 = vpop.f32.mrb[0].mxu0
      %1887 = vmatprep.mubr.bf16.mxu0 0
      %1888 = vmatmul.mubr.bf16.gmra.mrb[0].mxu0 %v1768
      %v1889 = vpop.f32.mrb[0].mxu0
      %v1890 = vadd.f32 0.0, %v1889
      %v1891 = vpop.f32.mrb[0].mxu0
      %v1892 = vpop.f32.mrb[0].mxu0
      %v1893 = vadd.f32 0.0, %v1892
      %v1894 = vpop.f32.mrb[0].mxu0
      %1895 = vmatprep.mubr.bf16.mxu0 0
      %1896 = vmatmul.mubr.bf16.gmra.mrb[0].mxu0 %v1769
      %v1897 = vpop.f32.mrb[0].mxu0
      %v1898 = vadd.f32 0.0, %v1897
      %v1899 = vpop.f32.mrb[0].mxu0
      %v1900 = vpop.f32.mrb[0].mxu0
      %v1901 = vadd.f32 0.0, %v1900
      %v1902 = vpop.f32.mrb[0].mxu0
      %1903 = vmatprep.mubr.bf16.mxu0 0
      %1904 = vmatmul.mubr.bf16.gmra.mrb[0].mxu0 %v1770
      %v1905 = vpop.f32.mrb[0].mxu0
      %v1906 = vadd.f32 0.0, %v1905
      %v1907 = vpop.f32.mrb[0].mxu0
      %v1908 = vpop.f32.mrb[0].mxu0
      %v1909 = vadd.f32 0.0, %v1908
      %v1910 = vpop.f32.mrb[0].mxu0
      %1911 = vmatprep.mubr.bf16.mxu0 0
      %1912 = vmatmul.mubr.bf16.gmra.mrb[0].mxu0 %v1771
      %v1913 = vpop.f32.mrb[0].mxu0
      %v1914 = vadd.f32 0.0, %v1913
      %v1915 = vpop.f32.mrb[0].mxu0
      %v1916 = vpop.f32.mrb[0].mxu0
      %v1917 = vadd.f32 0.0, %v1916
      %v1918 = vpop.f32.mrb[0].mxu0
      %1919 = vmatprep.mubr.bf16.mxu0 0
      %1920 = vmatmul.mubr.bf16.gmra.mrb[0].mxu0 %v1772
      %v1921 = vpop.f32.mrb[0].mxu0
      %v1922 = vadd.f32 0.0, %v1921
      %v1923 = vpop.f32.mrb[0].mxu0
      %v1924 = vpop.f32.mrb[0].mxu0
      %v1925 = vadd.f32 0.0, %v1924
      %v1926 = vpop.f32.mrb[0].mxu0
      %1927 = vmatprep.mubr.bf16.mxu0 0
      %1928 = vmatmul.mubr.bf16.gmra.mrb[0].mxu0 %v1773
      %v1929 = vpop.f32.mrb[0].mxu0
      %v1930 = vadd.f32 0.0, %v1929
      %v1931 = vpop.f32.mrb[0].mxu0
      %v1932 = vpop.f32.mrb[0].mxu0
      %v1933 = vadd.f32 0.0, %v1932
      %v1934 = vpop.f32.mrb[0].mxu0
      %1935 = vmatprep.mubr.bf16.mxu0 0
      %1936 = vmatmul.mubr.bf16.gmra.mrb[0].mxu0 %v1774
      %v1937 = vpop.f32.mrb[0].mxu0
      %v1938 = vadd.f32 0.0, %v1937
      %v1939 = vpop.f32.mrb[0].mxu0
      %v1940 = vpop.f32.mrb[0].mxu0
      %v1941 = vadd.f32 0.0, %v1940
      %v1942 = vpop.f32.mrb[0].mxu0
      %1943 = vmatprep.mubr.bf16.mxu0 0
      %1944 = vmatmul.mubr.bf16.gmra.mrb[0].mxu0 %v1775
      %v1945 = vpop.f32.mrb[0].mxu0
      %v1946 = vadd.f32 0.0, %v1945
      %v1947 = vpop.f32.mrb[0].mxu0
      %v1948 = vpop.f32.mrb[0].mxu0
      %v1949 = vadd.f32 0.0, %v1948
      %v1950 = vpop.f32.mrb[0].mxu0
      %1951 = vmatprep.mubr.bf16.mxu0 0
      %1952 = vmatmul.mubr.bf16.gmra.mrb[0].mxu0 %v1776
      %v1953 = vpop.f32.mrb[0].mxu0
      %v1954 = vadd.f32 0.0, %v1953
      %v1955 = vpop.f32.mrb[0].mxu0
      %v1956 = vpop.f32.mrb[0].mxu0
      %v1957 = vadd.f32 0.0, %v1956
      %v1958 = vpop.f32.mrb[0].mxu0
      %1959 = vmatprep.mubr.bf16.mxu0 0
      %1960 = vmatmul.mubr.bf16.gmra.mrb[0].mxu0 %v1777
      %v1961 = vpop.f32.mrb[0].mxu0
      %v1962 = vadd.f32 0.0, %v1961
      %v1963 = vpop.f32.mrb[0].mxu0
      %v1964 = vpop.f32.mrb[0].mxu0
      %v1965 = vadd.f32 0.0, %v1964
      %v1966 = vpop.f32.mrb[0].mxu0
      %1967 = vmatprep.mubr.bf16.mxu0 0
      %1968 = vmatmul.mubr.bf16.gmra.mrb[0].mxu0 %v1778
      %v1969 = vpop.f32.mrb[0].mxu0
      %v1970 = vadd.f32 0.0, %v1969
      %v1971 = vpop.f32.mrb[0].mxu0
      %v1972 = vpop.f32.mrb[0].mxu0
      %v1973 = vadd.f32 0.0, %v1972
      %v1974 = vpop.f32.mrb[0].mxu0
      %1975 = vmatprep.mubr.bf16.mxu0 0
      %1976 = vmatmul.mubr.bf16.gmra.mrb[0].mxu0 %v1779
      %v1977 = vpop.f32.mrb[0].mxu0
      %v1978 = vadd.f32 0.0, %v1977
      %v1979 = vpop.f32.mrb[0].mxu0
      %v1980 = vpop.f32.mrb[0].mxu0
      %v1981 = vadd.f32 0.0, %v1980
      %v1982 = vpop.f32.mrb[0].mxu0
      %1983 = vmatprep.mubr.bf16.mxu0 0
      %1984 = vmatmul.mubr.bf16.gmra.mrb[0].mxu0 %v1780
      %v1985 = vpop.f32.mrb[0].mxu0
      %v1986 = vadd.f32 0.0, %v1985
      %v1987 = vpop.f32.mrb[0].mxu0
      %v1988 = vpop.f32.mrb[0].mxu0
      %v1989 = vadd.f32 0.0, %v1988
      %v1990 = vpop.f32.mrb[0].mxu0
      %1991 = vmatprep.mubr.bf16.mxu0 0
      %1992 = vmatmul.mubr.bf16.gmra.mrb[0].mxu0 %v1781
      %v1993 = vpop.f32.mrb[0].mxu0
      %v1994 = vadd.f32 0.0, %v1993
      %v1995 = vpop.f32.mrb[0].mxu0
      %v1996 = vpop.f32.mrb[0].mxu0
      %v1997 = vadd.f32 0.0, %v1996
      %v1998 = vpop.f32.mrb[0].mxu0
      %1999 = vmatprep.mubr.bf16.mxu0 0
      %2000 = vmatmul.mubr.bf16.gmra.mrb[0].mxu0 %v1782
      %v2001 = vpop.f32.mrb[0].mxu0
      %v2002 = vadd.f32 0.0, %v2001
      %v2003 = vpop.f32.mrb[0].mxu0
      %v2004 = vpop.f32.mrb[0].mxu0
      %v2005 = vadd.f32 0.0, %v2004
      %v2006 = vpop.f32.mrb[0].mxu0
      %2007 = vdwg.mxu0
      %v2008 = vadd.f32 %v1686, %v1882
      %v2009 = vadd.f32 %v1687, %v1885
      %v2010 = vadd.f32 %v1688, %v1890
      %v2011 = vadd.f32 %v1689, %v1893
      %v2012 = vadd.f32 %v1690, %v1898
      %v2013 = vadd.f32 %v1691, %v1901
      %v2014 = vadd.f32 %v1692, %v1906
      %v2015 = vadd.f32 %v1693, %v1909
      %v2016 = vadd.f32 %v1694, %v1914
      %v2017 = vadd.f32 %v1695, %v1917
      %v2018 = vadd.f32 %v1696, %v1922
      %v2019 = vadd.f32 %v1697, %v1925
      %v2020 = vadd.f32 %v1698, %v1930
      %v2021 = vadd.f32 %v1699, %v1933
      %v2022 = vadd.f32 %v1700, %v1938
      %v2023 = vadd.f32 %v1701, %v1941
      %v2024 = vadd.f32 %v1702, %v1946
      %v2025 = vadd.f32 %v1703, %v1949
      %v2026 = vadd.f32 %v1704, %v1954
      %v2027 = vadd.f32 %v1705, %v1957
      %v2028 = vadd.f32 %v1706, %v1962
      %v2029 = vadd.f32 %v1707, %v1965
      %v2030 = vadd.f32 %v1708, %v1970
      %v2031 = vadd.f32 %v1709, %v1973
      %v2032 = vadd.f32 %v1710, %v1978
      %v2033 = vadd.f32 %v1711, %v1981
      %v2034 = vadd.f32 %v1712, %v1986
      %v2035 = vadd.f32 %v1713, %v1989
      %v2036 = vadd.f32 %v1714, %v1994
      %v2037 = vadd.f32 %v1715, %v1997
      %v2038 = vadd.f32 %v1716, %v2002
      %v2039 = vadd.f32 %v1717, %v2005
      %2040 = vst [vmem:[#allocation2] sm:$0xff] %v2008
      %2041 = vst [vmem:[#allocation2 + $0x8] sm:$0xff] %v2009
      %2042 = vst [vmem:[#allocation2 + $0x10] sm:$0xff] %v2010
      %2043 = vst [vmem:[#allocation2 + $0x18] sm:$0xff] %v2011
      %2044 = vst [vmem:[#allocation2 + $0x20] sm:$0xff] %v2012
      %2045 = vst [vmem:[#allocation2 + $0x28] sm:$0xff] %v2013
      %2046 = vst [vmem:[#allocation2 + $0x30] sm:$0xff] %v2014
      %2047 = vst [vmem:[#allocation2 + $0x38] sm:$0xff] %v2015
      %2048 = vst [vmem:[#allocation2 + $0x40] sm:$0xff] %v2016
      %2049 = vst [vmem:[#allocation2 + $0x48] sm:$0xff] %v2017
      %2050 = vst [vmem:[#allocation2 + $0x50] sm:$0xff] %v2018
      %2051 = vst [vmem:[#allocation2 + $0x58] sm:$0xff] %v2019
      %2052 = vst [vmem:[#allocation2 + $0x60] sm:$0xff] %v2020
      %2053 = vst [vmem:[#allocation2 + $0x68] sm:$0xff] %v2021
      %2054 = vst [vmem:[#allocation2 + $0x70] sm:$0xff] %v2022
      %2055 = vst [vmem:[#allocation2 + $0x78] sm:$0xff] %v2023
      %2056 = vst [vmem:[#allocation2 + $0x80] sm:$0xff] %v2024
      %2057 = vst [vmem:[#allocation2 + $0x88] sm:$0xff] %v2025
      %2058 = vst [vmem:[#allocation2 + $0x90] sm:$0xff] %v2026
      %2059 = vst [vmem:[#allocation2 + $0x98] sm:$0xff] %v2027
      %2060 = vst [vmem:[#allocation2 + $0xa0] sm:$0xff] %v2028
      %2061 = vst [vmem:[#allocation2 + $0xa8] sm:$0xff] %v2029
      %2062 = vst [vmem:[#allocation2 + $0xb0] sm:$0xff] %v2030
      %2063 = vst [vmem:[#allocation2 + $0xb8] sm:$0xff] %v2031
      %2064 = vst [vmem:[#allocation2 + $0xc0] sm:$0xff] %v2032
      %2065 = vst [vmem:[#allocation2 + $0xc8] sm:$0xff] %v2033
      %2066 = vst [vmem:[#allocation2 + $0xd0] sm:$0xff] %v2034
      %2067 = vst [vmem:[#allocation2 + $0xd8] sm:$0xff] %v2035
      %2068 = vst [vmem:[#allocation2 + $0xe0] sm:$0xff] %v2036
      %2069 = vst [vmem:[#allocation2 + $0xe8] sm:$0xff] %v2037
      %2070 = vst [vmem:[#allocation2 + $0xf0] sm:$0xff] %v2038
      %2071 = vst [vmem:[#allocation2 + $0xf8] sm:$0xff] %v2039
      %s2072 = scalar_lea.vmem %s165, 12
      %v2073 = vld [vmem:[%s2072] sm:$0xf]
      %v2074 = vld [vmem:[%s2072 + $0x4] sm:$0xf]
      %v2075 = vld [vmem:[%s2072 + $0xc] sm:$0xf]
      %v2076 = vld [vmem:[%s2072 + $0x10] sm:$0xf]
      %v2077 = vld [vmem:[%s2072 + $0x18] sm:$0xf]
      %v2078 = vld [vmem:[%s2072 + $0x1c] sm:$0xf]
      %v2079 = vld [vmem:[%s2072 + $0x24] sm:$0xf]
      %v2080 = vld [vmem:[%s2072 + $0x28] sm:$0xf]
      %v2081 = vld [vmem:[%s2072 + $0x30] sm:$0xf]
      %v2082 = vld [vmem:[%s2072 + $0x34] sm:$0xf]
      %v2083 = vld [vmem:[%s2072 + $0x3c] sm:$0xf]
      %v2084 = vld [vmem:[%s2072 + $0x40] sm:$0xf]
      %v2085 = vld [vmem:[%s2072 + $0x48] sm:$0xf]
      %v2086 = vld [vmem:[%s2072 + $0x4c] sm:$0xf]
      %v2087 = vld [vmem:[%s2072 + $0x54] sm:$0xf]
      %v2088 = vld [vmem:[%s2072 + $0x58] sm:$0xf]
      %v2089 = vld [vmem:[%s2072 + $0x60] sm:$0xf]
      %v2090 = vld [vmem:[%s2072 + $0x64] sm:$0xf]
      %v2091 = vld [vmem:[%s2072 + $0x6c] sm:$0xf]
      %v2092 = vld [vmem:[%s2072 + $0x70] sm:$0xf]
      %v2093 = vld [vmem:[%s2072 + $0x78] sm:$0xf]
      %v2094 = vld [vmem:[%s2072 + $0x7c] sm:$0xf]
      %v2095 = vld [vmem:[%s2072 + $0x84] sm:$0xf]
      %v2096 = vld [vmem:[%s2072 + $0x88] sm:$0xf]
      %v2097 = vld [vmem:[%s2072 + $0x90] sm:$0xf]
      %v2098 = vld [vmem:[%s2072 + $0x94] sm:$0xf]
      %v2099 = vld [vmem:[%s2072 + $0x9c] sm:$0xf]
      %v2100 = vld [vmem:[%s2072 + $0xa0] sm:$0xf]
      %v2101 = vld [vmem:[%s2072 + $0xa8] sm:$0xf]
      %v2102 = vld [vmem:[%s2072 + $0xac] sm:$0xf]
      %v2103 = vld [vmem:[%s2072 + $0xb4] sm:$0xf]
      %v2104 = vld [vmem:[%s2072 + $0xb8] sm:$0xf]
      %v2105 = vld [vmem:[#allocation2] sm:$0xff]
      %v2106 = vld [vmem:[#allocation2 + $0x8] sm:$0xff]
      %v2107 = vld [vmem:[#allocation2 + $0x10] sm:$0xff]
      %v2108 = vld [vmem:[#allocation2 + $0x18] sm:$0xff]
      %v2109 = vld [vmem:[#allocation2 + $0x20] sm:$0xff]
      %v2110 = vld [vmem:[#allocation2 + $0x28] sm:$0xff]
      %v2111 = vld [vmem:[#allocation2 + $0x30] sm:$0xff]
      %v2112 = vld [vmem:[#allocation2 + $0x38] sm:$0xff]
      %v2113 = vld [vmem:[#allocation2 + $0x40] sm:$0xff]
      %v2114 = vld [vmem:[#allocation2 + $0x48] sm:$0xff]
      %v2115 = vld [vmem:[#allocation2 + $0x50] sm:$0xff]
      %v2116 = vld [vmem:[#allocation2 + $0x58] sm:$0xff]
      %v2117 = vld [vmem:[#allocation2 + $0x60] sm:$0xff]
      %v2118 = vld [vmem:[#allocation2 + $0x68] sm:$0xff]
      %v2119 = vld [vmem:[#allocation2 + $0x70] sm:$0xff]
      %v2120 = vld [vmem:[#allocation2 + $0x78] sm:$0xff]
      %v2121 = vld [vmem:[#allocation2 + $0x80] sm:$0xff]
      %v2122 = vld [vmem:[#allocation2 + $0x88] sm:$0xff]
      %v2123 = vld [vmem:[#allocation2 + $0x90] sm:$0xff]
      %v2124 = vld [vmem:[#allocation2 + $0x98] sm:$0xff]
      %v2125 = vld [vmem:[#allocation2 + $0xa0] sm:$0xff]
      %v2126 = vld [vmem:[#allocation2 + $0xa8] sm:$0xff]
      %v2127 = vld [vmem:[#allocation2 + $0xb0] sm:$0xff]
      %v2128 = vld [vmem:[#allocation2 + $0xb8] sm:$0xff]
      %v2129 = vld [vmem:[#allocation2 + $0xc0] sm:$0xff]
      %v2130 = vld [vmem:[#allocation2 + $0xc8] sm:$0xff]
      %v2131 = vld [vmem:[#allocation2 + $0xd0] sm:$0xff]
      %v2132 = vld [vmem:[#allocation2 + $0xd8] sm:$0xff]
      %v2133 = vld [vmem:[#allocation2 + $0xe0] sm:$0xff]
      %v2134 = vld [vmem:[#allocation2 + $0xe8] sm:$0xff]
      %v2135 = vld [vmem:[#allocation2 + $0xf0] sm:$0xff]
      %v2136 = vld [vmem:[#allocation2 + $0xf8] sm:$0xff]
      %s2137 = scalar_lea.vmem %s1, 192
      %v2138 = vld [vmem:[%s2137] sm:$0xf]
      %v2139 = vld [vmem:[%s2137 + $0x4] sm:$0xf]
      %v2140 = vld [vmem:[%s2137 + $0x8] sm:$0xf]
      %v2141 = vld [vmem:[%s2137 + $0xc] sm:$0xf]
      %v2142 = vld [vmem:[%s2137 + $0x10] sm:$0xf]
      %v2143 = vld [vmem:[%s2137 + $0x14] sm:$0xf]
      %v2144 = vld [vmem:[%s2137 + $0x18] sm:$0xf]
      %v2145 = vld [vmem:[%s2137 + $0x1c] sm:$0xf]
      %v2146 = vld [vmem:[%s2137 + $0x20] sm:$0xf]
      %v2147 = vld [vmem:[%s2137 + $0x24] sm:$0xf]
      %v2148 = vld [vmem:[%s2137 + $0x28] sm:$0xf]
      %v2149 = vld [vmem:[%s2137 + $0x2c] sm:$0xf]
      %v2150 = vld [vmem:[%s2137 + $0x30] sm:$0xf]
      %v2151 = vld [vmem:[%s2137 + $0x34] sm:$0xf]
      %v2152 = vld [vmem:[%s2137 + $0x38] sm:$0xf]
      %v2153 = vld [vmem:[%s2137 + $0x3c] sm:$0xf]
      %v2186 = vunpack.c.l.b16 %v2073
      %v2187 = vunpack.c.l.b16 %v2074
      %v2188 = vunpack.c.l.b16 %v2075
      %v2189 = vunpack.c.l.b16 %v2076
      %v2190 = vunpack.c.l.b16 %v2077
      %v2191 = vunpack.c.l.b16 %v2078
      %v2192 = vunpack.c.l.b16 %v2079
      %v2193 = vunpack.c.l.b16 %v2080
      %v2194 = vunpack.c.l.b16 %v2081
      %v2195 = vunpack.c.l.b16 %v2082
      %v2196 = vunpack.c.l.b16 %v2083
      %v2197 = vunpack.c.l.b16 %v2084
      %v2198 = vunpack.c.l.b16 %v2085
      %v2199 = vunpack.c.l.b16 %v2086
      %v2200 = vunpack.c.l.b16 %v2087
      %v2201 = vunpack.c.l.b16 %v2088
      %v2202 = vunpack.c.l.b16 %v2089
      %v2203 = vunpack.c.l.b16 %v2090
      %v2204 = vunpack.c.l.b16 %v2091
      %v2205 = vunpack.c.l.b16 %v2092
      %v2206 = vunpack.c.l.b16 %v2093
      %v2207 = vunpack.c.l.b16 %v2094
      %v2208 = vunpack.c.l.b16 %v2095
      %v2209 = vunpack.c.l.b16 %v2096
      %v2210 = vunpack.c.l.b16 %v2097
      %v2211 = vunpack.c.l.b16 %v2098
      %v2212 = vunpack.c.l.b16 %v2099
      %v2213 = vunpack.c.l.b16 %v2100
      %v2214 = vunpack.c.l.b16 %v2101
      %v2215 = vunpack.c.l.b16 %v2102
      %v2216 = vunpack.c.l.b16 %v2103
      %v2217 = vunpack.c.l.b16 %v2104
      %v2218 = vpack.c.b16 %v2187, %v2186
      %v2219 = vpack.c.b16 %v2189, %v2188
      %v2220 = vpack.c.b16 %v2191, %v2190
      %v2221 = vpack.c.b16 %v2193, %v2192
      %v2222 = vpack.c.b16 %v2195, %v2194
      %v2223 = vpack.c.b16 %v2197, %v2196
      %v2224 = vpack.c.b16 %v2199, %v2198
      %v2225 = vpack.c.b16 %v2201, %v2200
      %v2226 = vpack.c.b16 %v2203, %v2202
      %v2227 = vpack.c.b16 %v2205, %v2204
      %v2228 = vpack.c.b16 %v2207, %v2206
      %v2229 = vpack.c.b16 %v2209, %v2208
      %v2230 = vpack.c.b16 %v2211, %v2210
      %v2231 = vpack.c.b16 %v2213, %v2212
      %v2232 = vpack.c.b16 %v2215, %v2214
      %v2233 = vpack.c.b16 %v2217, %v2216
      %v2266 = vunpack.c.l.b16 %v2138
      %v2267 = vunpack.c.l.b16 %v2139
      %v2268 = vunpack.c.l.b16 %v2140
      %v2269 = vunpack.c.l.b16 %v2141
      %v2270 = vunpack.c.l.b16 %v2142
      %v2271 = vunpack.c.l.b16 %v2143
      %v2272 = vunpack.c.l.b16 %v2144
      %v2273 = vunpack.c.l.b16 %v2145
      %v2274 = vunpack.c.l.b16 %v2146
      %v2275 = vunpack.c.l.b16 %v2147
      %v2276 = vunpack.c.l.b16 %v2148
      %v2277 = vunpack.c.l.b16 %v2149
      %v2278 = vunpack.c.l.b16 %v2150
      %v2279 = vunpack.c.l.b16 %v2151
      %v2280 = vunpack.c.l.b16 %v2152
      %v2281 = vunpack.c.l.b16 %v2153
      %v2282 = vpack.c.b16 %v2267, %v2266
      %v2283 = vpack.c.b16 %v2269, %v2268
      %v2284 = vpack.c.b16 %v2271, %v2270
      %v2285 = vpack.c.b16 %v2273, %v2272
      %v2286 = vpack.c.b16 %v2275, %v2274
      %v2287 = vpack.c.b16 %v2277, %v2276
      %v2288 = vpack.c.b16 %v2279, %v2278
      %v2289 = vpack.c.b16 %v2281, %v2280
      %2298 = vmatprep.subr.bf16.mxu0 0
      %2299 = vmatpush1.bf16.msra.mxu0 %v2282
      %2300 = vmatprep.subr.bf16.mxu0 0
      %2301 = vmatpush1.bf16.msra.mxu0 %v2283
      %2302 = vmatprep.subr.bf16.mxu0 0
      %2303 = vmatpush1.bf16.msra.mxu0 %v2284
      %2304 = vmatprep.subr.bf16.mxu0 0
      %2305 = vmatpush1.bf16.msra.mxu0 %v2285
      %2306 = vmatprep.subr.bf16.mxu0 0
      %2307 = vmatpush1.bf16.msra.mxu0 %v2286
      %2308 = vmatprep.subr.bf16.mxu0 0
      %2309 = vmatpush1.bf16.msra.mxu0 %v2287
      %2310 = vmatprep.subr.bf16.mxu0 0
      %2311 = vmatpush1.bf16.msra.mxu0 %v2288
      %2312 = vmatprep.subr.bf16.mxu0 0
      %2313 = vmatpush1.bf16.msra.mxu0 %v2289
      %2314 = vmatprep.subr.bf16.mxu0 0
      %2315 = vmatpush1.bf16.msra.mxu0 0
      %2316 = vmatprep.subr.bf16.mxu0 0
      %2317 = vmatpush1.bf16.msra.mxu0 0
      %2318 = vmatprep.subr.bf16.mxu0 0
      %2319 = vmatpush1.bf16.msra.mxu0 0
      %2320 = vmatprep.subr.bf16.mxu0 0
      %2321 = vmatpush1.bf16.msra.mxu0 0
      %2322 = vmatprep.subr.bf16.mxu0 0
      %2323 = vmatpush1.bf16.msra.mxu0 0
      %2324 = vmatprep.subr.bf16.mxu0 0
      %2325 = vmatpush1.bf16.msra.mxu0 0
      %2326 = vmatprep.subr.bf16.mxu0 0
      %2327 = vmatpush1.bf16.msra.mxu0 0
      %2328 = vmatprep.subr.bf16.mxu0 0
      %2329 = vmatpush1.bf16.msra.mxu0 0
      %2330 = vmatprep.mubr.bf16.mxu0 0
      %2331 = vmatmul.mubr.bf16.gmra.mrb[0].mxu0 %v2218
      %v2332 = vpop.f32.mrb[0].mxu0
      %v2333 = vadd.f32 0.0, %v2332
      %v2334 = vpop.f32.mrb[0].mxu0
      %v2335 = vpop.f32.mrb[0].mxu0
      %v2336 = vadd.f32 0.0, %v2335
      %v2337 = vpop.f32.mrb[0].mxu0
      %2338 = vmatprep.mubr.bf16.mxu0 0
      %2339 = vmatmul.mubr.bf16.gmra.mrb[0].mxu0 %v2219
      %v2340 = vpop.f32.mrb[0].mxu0
      %v2341 = vadd.f32 0.0, %v2340
      %v2342 = vpop.f32.mrb[0].mxu0
      %v2343 = vpop.f32.mrb[0].mxu0
      %v2344 = vadd.f32 0.0, %v2343
      %v2345 = vpop.f32.mrb[0].mxu0
      %2346 = vmatprep.mubr.bf16.mxu0 0
      %2347 = vmatmul.mubr.bf16.gmra.mrb[0].mxu0 %v2220
      %v2348 = vpop.f32.mrb[0].mxu0
      %v2349 = vadd.f32 0.0, %v2348
      %v2350 = vpop.f32.mrb[0].mxu0
      %v2351 = vpop.f32.mrb[0].mxu0
      %v2352 = vadd.f32 0.0, %v2351
      %v2353 = vpop.f32.mrb[0].mxu0
      %2354 = vmatprep.mubr.bf16.mxu0 0
      %2355 = vmatmul.mubr.bf16.gmra.mrb[0].mxu0 %v2221
      %v2356 = vpop.f32.mrb[0].mxu0
      %v2357 = vadd.f32 0.0, %v2356
      %v2358 = vpop.f32.mrb[0].mxu0
      %v2359 = vpop.f32.mrb[0].mxu0
      %v2360 = vadd.f32 0.0, %v2359
      %v2361 = vpop.f32.mrb[0].mxu0
      %2362 = vmatprep.mubr.bf16.mxu0 0
      %2363 = vmatmul.mubr.bf16.gmra.mrb[0].mxu0 %v2222
      %v2364 = vpop.f32.mrb[0].mxu0
      %v2365 = vadd.f32 0.0, %v2364
      %v2366 = vpop.f32.mrb[0].mxu0
      %v2367 = vpop.f32.mrb[0].mxu0
      %v2368 = vadd.f32 0.0, %v2367
      %v2369 = vpop.f32.mrb[0].mxu0
      %2370 = vmatprep.mubr.bf16.mxu0 0
      %2371 = vmatmul.mubr.bf16.gmra.mrb[0].mxu0 %v2223
      %v2372 = vpop.f32.mrb[0].mxu0
      %v2373 = vadd.f32 0.0, %v2372
      %v2374 = vpop.f32.mrb[0].mxu0
      %v2375 = vpop.f32.mrb[0].mxu0
      %v2376 = vadd.f32 0.0, %v2375
      %v2377 = vpop.f32.mrb[0].mxu0
      %2378 = vmatprep.mubr.bf16.mxu0 0
      %2379 = vmatmul.mubr.bf16.gmra.mrb[0].mxu0 %v2224
      %v2380 = vpop.f32.mrb[0].mxu0
      %v2381 = vadd.f32 0.0, %v2380
      %v2382 = vpop.f32.mrb[0].mxu0
      %v2383 = vpop.f32.mrb[0].mxu0
      %v2384 = vadd.f32 0.0, %v2383
      %v2385 = vpop.f32.mrb[0].mxu0
      %2386 = vmatprep.mubr.bf16.mxu0 0
      %2387 = vmatmul.mubr.bf16.gmra.mrb[0].mxu0 %v2225
      %v2388 = vpop.f32.mrb[0].mxu0
      %v2389 = vadd.f32 0.0, %v2388
      %v2390 = vpop.f32.mrb[0].mxu0
      %v2391 = vpop.f32.mrb[0].mxu0
      %v2392 = vadd.f32 0.0, %v2391
      %v2393 = vpop.f32.mrb[0].mxu0
      %2394 = vmatprep.mubr.bf16.mxu0 0
      %2395 = vmatmul.mubr.bf16.gmra.mrb[0].mxu0 %v2226
      %v2396 = vpop.f32.mrb[0].mxu0
      %v2397 = vadd.f32 0.0, %v2396
      %v2398 = vpop.f32.mrb[0].mxu0
      %v2399 = vpop.f32.mrb[0].mxu0
      %v2400 = vadd.f32 0.0, %v2399
      %v2401 = vpop.f32.mrb[0].mxu0
      %2402 = vmatprep.mubr.bf16.mxu0 0
      %2403 = vmatmul.mubr.bf16.gmra.mrb[0].mxu0 %v2227
      %v2404 = vpop.f32.mrb[0].mxu0
      %v2405 = vadd.f32 0.0, %v2404
      %v2406 = vpop.f32.mrb[0].mxu0
      %v2407 = vpop.f32.mrb[0].mxu0
      %v2408 = vadd.f32 0.0, %v2407
      %v2409 = vpop.f32.mrb[0].mxu0
      %2410 = vmatprep.mubr.bf16.mxu0 0
      %2411 = vmatmul.mubr.bf16.gmra.mrb[0].mxu0 %v2228
      %v2412 = vpop.f32.mrb[0].mxu0
      %v2413 = vadd.f32 0.0, %v2412
      %v2414 = vpop.f32.mrb[0].mxu0
      %v2415 = vpop.f32.mrb[0].mxu0
      %v2416 = vadd.f32 0.0, %v2415
      %v2417 = vpop.f32.mrb[0].mxu0
      %2418 = vmatprep.mubr.bf16.mxu0 0
      %2419 = vmatmul.mubr.bf16.gmra.mrb[0].mxu0 %v2229
      %v2420 = vpop.f32.mrb[0].mxu0
      %v2421 = vadd.f32 0.0, %v2420
      %v2422 = vpop.f32.mrb[0].mxu0
      %v2423 = vpop.f32.mrb[0].mxu0
      %v2424 = vadd.f32 0.0, %v2423
      %v2425 = vpop.f32.mrb[0].mxu0
      %2426 = vmatprep.mubr.bf16.mxu0 0
      %2427 = vmatmul.mubr.bf16.gmra.mrb[0].mxu0 %v2230
      %v2428 = vpop.f32.mrb[0].mxu0
      %v2429 = vadd.f32 0.0, %v2428
      %v2430 = vpop.f32.mrb[0].mxu0
      %v2431 = vpop.f32.mrb[0].mxu0
      %v2432 = vadd.f32 0.0, %v2431
      %v2433 = vpop.f32.mrb[0].mxu0
      %2434 = vmatprep.mubr.bf16.mxu0 0
      %2435 = vmatmul.mubr.bf16.gmra.mrb[0].mxu0 %v2231
      %v2436 = vpop.f32.mrb[0].mxu0
      %v2437 = vadd.f32 0.0, %v2436
      %v2438 = vpop.f32.mrb[0].mxu0
      %v2439 = vpop.f32.mrb[0].mxu0
      %v2440 = vadd.f32 0.0, %v2439
      %v2441 = vpop.f32.mrb[0].mxu0
      %2442 = vmatprep.mubr.bf16.mxu0 0
      %2443 = vmatmul.mubr.bf16.gmra.mrb[0].mxu0 %v2232
      %v2444 = vpop.f32.mrb[0].mxu0
      %v2445 = vadd.f32 0.0, %v2444
      %v2446 = vpop.f32.mrb[0].mxu0
      %v2447 = vpop.f32.mrb[0].mxu0
      %v2448 = vadd.f32 0.0, %v2447
      %v2449 = vpop.f32.mrb[0].mxu0
      %2450 = vmatprep.mubr.bf16.mxu0 0
      %2451 = vmatmul.mubr.bf16.gmra.mrb[0].mxu0 %v2233
      %v2452 = vpop.f32.mrb[0].mxu0
      %v2453 = vadd.f32 0.0, %v2452
      %v2454 = vpop.f32.mrb[0].mxu0
      %v2455 = vpop.f32.mrb[0].mxu0
      %v2456 = vadd.f32 0.0, %v2455
      %v2457 = vpop.f32.mrb[0].mxu0
      %2458 = vdwg.mxu0
      %v2459 = vadd.f32 %v2105, %v2333
      %v2460 = vadd.f32 %v2106, %v2336
      %v2461 = vadd.f32 %v2107, %v2341
      %v2462 = vadd.f32 %v2108, %v2344
      %v2463 = vadd.f32 %v2109, %v2349
      %v2464 = vadd.f32 %v2110, %v2352
      %v2465 = vadd.f32 %v2111, %v2357
      %v2466 = vadd.f32 %v2112, %v2360
      %v2467 = vadd.f32 %v2113, %v2365
      %v2468 = vadd.f32 %v2114, %v2368
      %v2469 = vadd.f32 %v2115, %v2373
      %v2470 = vadd.f32 %v2116, %v2376
      %v2471 = vadd.f32 %v2117, %v2381
      %v2472 = vadd.f32 %v2118, %v2384
      %v2473 = vadd.f32 %v2119, %v2389
      %v2474 = vadd.f32 %v2120, %v2392
      %v2475 = vadd.f32 %v2121, %v2397
      %v2476 = vadd.f32 %v2122, %v2400
      %v2477 = vadd.f32 %v2123, %v2405
      %v2478 = vadd.f32 %v2124, %v2408
      %v2479 = vadd.f32 %v2125, %v2413
      %v2480 = vadd.f32 %v2126, %v2416
      %v2481 = vadd.f32 %v2127, %v2421
      %v2482 = vadd.f32 %v2128, %v2424
      %v2483 = vadd.f32 %v2129, %v2429
      %v2484 = vadd.f32 %v2130, %v2432
      %v2485 = vadd.f32 %v2131, %v2437
      %v2486 = vadd.f32 %v2132, %v2440
      %v2487 = vadd.f32 %v2133, %v2445
      %v2488 = vadd.f32 %v2134, %v2448
      %v2489 = vadd.f32 %v2135, %v2453
      %v2490 = vadd.f32 %v2136, %v2456
      %2491 = vst [vmem:[#allocation2] sm:$0xff] %v2459
      %2492 = vst [vmem:[#allocation2 + $0x8] sm:$0xff] %v2460
      %2493 = vst [vmem:[#allocation2 + $0x10] sm:$0xff] %v2461
      %2494 = vst [vmem:[#allocation2 + $0x18] sm:$0xff] %v2462
      %2495 = vst [vmem:[#allocation2 + $0x20] sm:$0xff] %v2463
      %2496 = vst [vmem:[#allocation2 + $0x28] sm:$0xff] %v2464
      %2497 = vst [vmem:[#allocation2 + $0x30] sm:$0xff] %v2465
      %2498 = vst [vmem:[#allocation2 + $0x38] sm:$0xff] %v2466
      %2499 = vst [vmem:[#allocation2 + $0x40] sm:$0xff] %v2467
      %2500 = vst [vmem:[#allocation2 + $0x48] sm:$0xff] %v2468
      %2501 = vst [vmem:[#allocation2 + $0x50] sm:$0xff] %v2469
      %2502 = vst [vmem:[#allocation2 + $0x58] sm:$0xff] %v2470
      %2503 = vst [vmem:[#allocation2 + $0x60] sm:$0xff] %v2471
      %2504 = vst [vmem:[#allocation2 + $0x68] sm:$0xff] %v2472
      %2505 = vst [vmem:[#allocation2 + $0x70] sm:$0xff] %v2473
      %2506 = vst [vmem:[#allocation2 + $0x78] sm:$0xff] %v2474
      %2507 = vst [vmem:[#allocation2 + $0x80] sm:$0xff] %v2475
      %2508 = vst [vmem:[#allocation2 + $0x88] sm:$0xff] %v2476
      %2509 = vst [vmem:[#allocation2 + $0x90] sm:$0xff] %v2477
      %2510 = vst [vmem:[#allocation2 + $0x98] sm:$0xff] %v2478
      %2511 = vst [vmem:[#allocation2 + $0xa0] sm:$0xff] %v2479
      %2512 = vst [vmem:[#allocation2 + $0xa8] sm:$0xff] %v2480
      %2513 = vst [vmem:[#allocation2 + $0xb0] sm:$0xff] %v2481
      %2514 = vst [vmem:[#allocation2 + $0xb8] sm:$0xff] %v2482
      %2515 = vst [vmem:[#allocation2 + $0xc0] sm:$0xff] %v2483
      %2516 = vst [vmem:[#allocation2 + $0xc8] sm:$0xff] %v2484
      %2517 = vst [vmem:[#allocation2 + $0xd0] sm:$0xff] %v2485
      %2518 = vst [vmem:[#allocation2 + $0xd8] sm:$0xff] %v2486
      %2519 = vst [vmem:[#allocation2 + $0xe0] sm:$0xff] %v2487
      %2520 = vst [vmem:[#allocation2 + $0xe8] sm:$0xff] %v2488
      %2521 = vst [vmem:[#allocation2 + $0xf0] sm:$0xff] %v2489
      %2522 = vst [vmem:[#allocation2 + $0xf8] sm:$0xff] %v2490
      %v2523 = vld [vmem:[%s2072] sm:$0xf]
      %v2524 = vld [vmem:[%s2072 + $0x4] sm:$0xf]
      %v2525 = vld [vmem:[%s2072 + $0x8] sm:$0x1]
      %v2526 = vld [vmem:[%s2072 + $0xc] sm:$0xf]
      %v2527 = vld [vmem:[%s2072 + $0x10] sm:$0xf]
      %v2528 = vld [vmem:[%s2072 + $0x14] sm:$0x1]
      %v2529 = vld [vmem:[%s2072 + $0x18] sm:$0xf]
      %v2530 = vld [vmem:[%s2072 + $0x1c] sm:$0xf]
      %v2531 = vld [vmem:[%s2072 + $0x20] sm:$0x1]
      %v2532 = vld [vmem:[%s2072 + $0x24] sm:$0xf]
      %v2533 = vld [vmem:[%s2072 + $0x28] sm:$0xf]
      %v2534 = vld [vmem:[%s2072 + $0x2c] sm:$0x1]
      %v2535 = vld [vmem:[%s2072 + $0x30] sm:$0xf]
      %v2536 = vld [vmem:[%s2072 + $0x34] sm:$0xf]
      %v2537 = vld [vmem:[%s2072 + $0x38] sm:$0x1]
      %v2538 = vld [vmem:[%s2072 + $0x3c] sm:$0xf]
      %v2539 = vld [vmem:[%s2072 + $0x40] sm:$0xf]
      %v2540 = vld [vmem:[%s2072 + $0x44] sm:$0x1]
      %v2541 = vld [vmem:[%s2072 + $0x48] sm:$0xf]
      %v2542 = vld [vmem:[%s2072 + $0x4c] sm:$0xf]
      %v2543 = vld [vmem:[%s2072 + $0x50] sm:$0x1]
      %v2544 = vld [vmem:[%s2072 + $0x54] sm:$0xf]
      %v2545 = vld [vmem:[%s2072 + $0x58] sm:$0xf]
      %v2546 = vld [vmem:[%s2072 + $0x5c] sm:$0x1]
      %v2547 = vld [vmem:[%s2072 + $0x60] sm:$0xf]
      %v2548 = vld [vmem:[%s2072 + $0x64] sm:$0xf]
      %v2549 = vld [vmem:[%s2072 + $0x68] sm:$0x1]
      %v2550 = vld [vmem:[%s2072 + $0x6c] sm:$0xf]
      %v2551 = vld [vmem:[%s2072 + $0x70] sm:$0xf]
      %v2552 = vld [vmem:[%s2072 + $0x74] sm:$0x1]
      %v2553 = vld [vmem:[%s2072 + $0x78] sm:$0xf]
      %v2554 = vld [vmem:[%s2072 + $0x7c] sm:$0xf]
      %v2555 = vld [vmem:[%s2072 + $0x80] sm:$0x1]
      %v2556 = vld [vmem:[%s2072 + $0x84] sm:$0xf]
      %v2557 = vld [vmem:[%s2072 + $0x88] sm:$0xf]
      %v2558 = vld [vmem:[%s2072 + $0x8c] sm:$0x1]
      %v2559 = vld [vmem:[%s2072 + $0x90] sm:$0xf]
      %v2560 = vld [vmem:[%s2072 + $0x94] sm:$0xf]
      %v2561 = vld [vmem:[%s2072 + $0x98] sm:$0x1]
      %v2562 = vld [vmem:[%s2072 + $0x9c] sm:$0xf]
      %v2563 = vld [vmem:[%s2072 + $0xa0] sm:$0xf]
      %v2564 = vld [vmem:[%s2072 + $0xa4] sm:$0x1]
      %v2565 = vld [vmem:[%s2072 + $0xa8] sm:$0xf]
      %v2566 = vld [vmem:[%s2072 + $0xac] sm:$0xf]
      %v2567 = vld [vmem:[%s2072 + $0xb0] sm:$0x1]
      %v2568 = vld [vmem:[%s2072 + $0xb4] sm:$0xf]
      %v2569 = vld [vmem:[%s2072 + $0xb8] sm:$0xf]
      %v2570 = vld [vmem:[%s2072 + $0xbc] sm:$0x1]
      %v2572 = vshrl.u32 %v2523, 16
      %v2574 = vrot.slane %v2572, 4
      %v2575 = vshll.u32 %v2523, 16
      %v2577 = vrot.slane %v2575, 5
      %v2578 = vor.u32 %v2574, %v2577
      %v2579 = vrot.slane %v2578, 4
      %v2581 = vshll.u32 %v2524, 16
      %v2583 = vrot.slane %v2581, 5
      %v2584 = vsel %vm704, %v2579, %v2583
      %v2585 = vshrl.u32 %v2524, 16
      %v2587 = vrot.slane %v2585, 4
      %v2588 = vor.u32 %v2587, %v2583
      %v2589 = vrot.slane %v2588, 4
      %v2591 = vshll.u32 %v2525, 16
      %v2593 = vrot.slane %v2591, 5
      %v2594 = vsel %vm704, %v2589, %v2593
      %v2596 = vshrl.u32 %v2526, 16
      %v2598 = vrot.slane %v2596, 4
      %v2599 = vshll.u32 %v2526, 16
      %v2601 = vrot.slane %v2599, 5
      %v2602 = vor.u32 %v2598, %v2601
      %v2603 = vrot.slane %v2602, 4
      %v2605 = vshll.u32 %v2527, 16
      %v2607 = vrot.slane %v2605, 5
      %v2608 = vsel %vm704, %v2603, %v2607
      %v2609 = vshrl.u32 %v2527, 16
      %v2611 = vrot.slane %v2609, 4
      %v2612 = vor.u32 %v2611, %v2607
      %v2613 = vrot.slane %v2612, 4
      %v2615 = vshll.u32 %v2528, 16
      %v2617 = vrot.slane %v2615, 5
      %v2618 = vsel %vm704, %v2613, %v2617
      %v2620 = vshrl.u32 %v2529, 16
      %v2622 = vrot.slane %v2620, 4
      %v2623 = vshll.u32 %v2529, 16
      %v2625 = vrot.slane %v2623, 5
      %v2626 = vor.u32 %v2622, %v2625
      %v2627 = vrot.slane %v2626, 4
      %v2629 = vshll.u32 %v2530, 16
      %v2631 = vrot.slane %v2629, 5
      %v2632 = vsel %vm704, %v2627, %v2631
      %v2633 = vshrl.u32 %v2530, 16
      %v2635 = vrot.slane %v2633, 4
      %v2636 = vor.u32 %v2635, %v2631
      %v2637 = vrot.slane %v2636, 4
      %v2639 = vshll.u32 %v2531, 16
      %v2641 = vrot.slane %v2639, 5
      %v2642 = vsel %vm704, %v2637, %v2641
      %v2644 = vshrl.u32 %v2532, 16
      %v2646 = vrot.slane %v2644, 4
      %v2647 = vshll.u32 %v2532, 16
      %v2649 = vrot.slane %v2647, 5
      %v2650 = vor.u32 %v2646, %v2649
      %v2651 = vrot.slane %v2650, 4
      %v2653 = vshll.u32 %v2533, 16
      %v2655 = vrot.slane %v2653, 5
      %v2656 = vsel %vm704, %v2651, %v2655
      %v2657 = vshrl.u32 %v2533, 16
      %v2659 = vrot.slane %v2657, 4
      %v2660 = vor.u32 %v2659, %v2655
      %v2661 = vrot.slane %v2660, 4
      %v2663 = vshll.u32 %v2534, 16
      %v2665 = vrot.slane %v2663, 5
      %v2666 = vsel %vm704, %v2661, %v2665
      %v2668 = vshrl.u32 %v2535, 16
      %v2670 = vrot.slane %v2668, 4
      %v2671 = vshll.u32 %v2535, 16
      %v2673 = vrot.slane %v2671, 5
      %v2674 = vor.u32 %v2670, %v2673
      %v2675 = vrot.slane %v2674, 4
      %v2677 = vshll.u32 %v2536, 16
      %v2679 = vrot.slane %v2677, 5
      %v2680 = vsel %vm704, %v2675, %v2679
      %v2681 = vshrl.u32 %v2536, 16
      %v2683 = vrot.slane %v2681, 4
      %v2684 = vor.u32 %v2683, %v2679
      %v2685 = vrot.slane %v2684, 4
      %v2687 = vshll.u32 %v2537, 16
      %v2689 = vrot.slane %v2687, 5
      %v2690 = vsel %vm704, %v2685, %v2689
      %v2692 = vshrl.u32 %v2538, 16
      %v2694 = vrot.slane %v2692, 4
      %v2695 = vshll.u32 %v2538, 16
      %v2697 = vrot.slane %v2695, 5
      %v2698 = vor.u32 %v2694, %v2697
      %v2699 = vrot.slane %v2698, 4
      %v2701 = vshll.u32 %v2539, 16
      %v2703 = vrot.slane %v2701, 5
      %v2704 = vsel %vm704, %v2699, %v2703
      %v2705 = vshrl.u32 %v2539, 16
      %v2707 = vrot.slane %v2705, 4
      %v2708 = vor.u32 %v2707, %v2703
      %v2709 = vrot.slane %v2708, 4
      %v2711 = vshll.u32 %v2540, 16
      %v2713 = vrot.slane %v2711, 5
      %v2714 = vsel %vm704, %v2709, %v2713
      %v2716 = vshrl.u32 %v2541, 16
      %v2718 = vrot.slane %v2716, 4
      %v2719 = vshll.u32 %v2541, 16
      %v2721 = vrot.slane %v2719, 5
      %v2722 = vor.u32 %v2718, %v2721
      %v2723 = vrot.slane %v2722, 4
      %v2725 = vshll.u32 %v2542, 16
      %v2727 = vrot.slane %v2725, 5
      %v2728 = vsel %vm704, %v2723, %v2727
      %v2729 = vshrl.u32 %v2542, 16
      %v2731 = vrot.slane %v2729, 4
      %v2732 = vor.u32 %v2731, %v2727
      %v2733 = vrot.slane %v2732, 4
      %v2735 = vshll.u32 %v2543, 16
      %v2737 = vrot.slane %v2735, 5
      %v2738 = vsel %vm704, %v2733, %v2737
      %v2740 = vshrl.u32 %v2544, 16
      %v2742 = vrot.slane %v2740, 4
      %v2743 = vshll.u32 %v2544, 16
      %v2745 = vrot.slane %v2743, 5
      %v2746 = vor.u32 %v2742, %v2745
      %v2747 = vrot.slane %v2746, 4
      %v2749 = vshll.u32 %v2545, 16
      %v2751 = vrot.slane %v2749, 5
      %v2752 = vsel %vm704, %v2747, %v2751
      %v2753 = vshrl.u32 %v2545, 16
      %v2755 = vrot.slane %v2753, 4
      %v2756 = vor.u32 %v2755, %v2751
      %v2757 = vrot.slane %v2756, 4
      %v2759 = vshll.u32 %v2546, 16
      %v2761 = vrot.slane %v2759, 5
      %v2762 = vsel %vm704, %v2757, %v2761
      %v2764 = vshrl.u32 %v2547, 16
      %v2766 = vrot.slane %v2764, 4
      %v2767 = vshll.u32 %v2547, 16
      %v2769 = vrot.slane %v2767, 5
      %v2770 = vor.u32 %v2766, %v2769
      %v2771 = vrot.slane %v2770, 4
      %v2773 = vshll.u32 %v2548, 16
      %v2775 = vrot.slane %v2773, 5
      %v2776 = vsel %vm704, %v2771, %v2775
      %v2777 = vshrl.u32 %v2548, 16
      %v2779 = vrot.slane %v2777, 4
      %v2780 = vor.u32 %v2779, %v2775
      %v2781 = vrot.slane %v2780, 4
      %v2783 = vshll.u32 %v2549, 16
      %v2785 = vrot.slane %v2783, 5
      %v2786 = vsel %vm704, %v2781, %v2785
      %v2788 = vshrl.u32 %v2550, 16
      %v2790 = vrot.slane %v2788, 4
      %v2791 = vshll.u32 %v2550, 16
      %v2793 = vrot.slane %v2791, 5
      %v2794 = vor.u32 %v2790, %v2793
      %v2795 = vrot.slane %v2794, 4
      %v2797 = vshll.u32 %v2551, 16
      %v2799 = vrot.slane %v2797, 5
      %v2800 = vsel %vm704, %v2795, %v2799
      %v2801 = vshrl.u32 %v2551, 16
      %v2803 = vrot.slane %v2801, 4
      %v2804 = vor.u32 %v2803, %v2799
      %v2805 = vrot.slane %v2804, 4
      %v2807 = vshll.u32 %v2552, 16
      %v2809 = vrot.slane %v2807, 5
      %v2810 = vsel %vm704, %v2805, %v2809
      %v2812 = vshrl.u32 %v2553, 16
      %v2814 = vrot.slane %v2812, 4
      %v2815 = vshll.u32 %v2553, 16
      %v2817 = vrot.slane %v2815, 5
      %v2818 = vor.u32 %v2814, %v2817
      %v2819 = vrot.slane %v2818, 4
      %v2821 = vshll.u32 %v2554, 16
      %v2823 = vrot.slane %v2821, 5
      %v2824 = vsel %vm704, %v2819, %v2823
      %v2825 = vshrl.u32 %v2554, 16
      %v2827 = vrot.slane %v2825, 4
      %v2828 = vor.u32 %v2827, %v2823
      %v2829 = vrot.slane %v2828, 4
      %v2831 = vshll.u32 %v2555, 16
      %v2833 = vrot.slane %v2831, 5
      %v2834 = vsel %vm704, %v2829, %v2833
      %v2836 = vshrl.u32 %v2556, 16
      %v2838 = vrot.slane %v2836, 4
      %v2839 = vshll.u32 %v2556, 16
      %v2841 = vrot.slane %v2839, 5
      %v2842 = vor.u32 %v2838, %v2841
      %v2843 = vrot.slane %v2842, 4
      %v2845 = vshll.u32 %v2557, 16
      %v2847 = vrot.slane %v2845, 5
      %v2848 = vsel %vm704, %v2843, %v2847
      %v2849 = vshrl.u32 %v2557, 16
      %v2851 = vrot.slane %v2849, 4
      %v2852 = vor.u32 %v2851, %v2847
      %v2853 = vrot.slane %v2852, 4
      %v2855 = vshll.u32 %v2558, 16
      %v2857 = vrot.slane %v2855, 5
      %v2858 = vsel %vm704, %v2853, %v2857
      %v2860 = vshrl.u32 %v2559, 16
      %v2862 = vrot.slane %v2860, 4
      %v2863 = vshll.u32 %v2559, 16
      %v2865 = vrot.slane %v2863, 5
      %v2866 = vor.u32 %v2862, %v2865
      %v2867 = vrot.slane %v2866, 4
      %v2869 = vshll.u32 %v2560, 16
      %v2871 = vrot.slane %v2869, 5
      %v2872 = vsel %vm704, %v2867, %v2871
      %v2873 = vshrl.u32 %v2560, 16
      %v2875 = vrot.slane %v2873, 4
      %v2876 = vor.u32 %v2875, %v2871
      %v2877 = vrot.slane %v2876, 4
      %v2879 = vshll.u32 %v2561, 16
      %v2881 = vrot.slane %v2879, 5
      %v2882 = vsel %vm704, %v2877, %v2881
      %v2884 = vshrl.u32 %v2562, 16
      %v2886 = vrot.slane %v2884, 4
      %v2887 = vshll.u32 %v2562, 16
      %v2889 = vrot.slane %v2887, 5
      %v2890 = vor.u32 %v2886, %v2889
      %v2891 = vrot.slane %v2890, 4
      %v2893 = vshll.u32 %v2563, 16
      %v2895 = vrot.slane %v2893, 5
      %v2896 = vsel %vm704, %v2891, %v2895
      %v2897 = vshrl.u32 %v2563, 16
      %v2899 = vrot.slane %v2897, 4
      %v2900 = vor.u32 %v2899, %v2895
      %v2901 = vrot.slane %v2900, 4
      %v2903 = vshll.u32 %v2564, 16
      %v2905 = vrot.slane %v2903, 5
      %v2906 = vsel %vm704, %v2901, %v2905
      %v2908 = vshrl.u32 %v2565, 16
      %v2910 = vrot.slane %v2908, 4
      %v2911 = vshll.u32 %v2565, 16
      %v2913 = vrot.slane %v2911, 5
      %v2914 = vor.u32 %v2910, %v2913
      %v2915 = vrot.slane %v2914, 4
      %v2917 = vshll.u32 %v2566, 16
      %v2919 = vrot.slane %v2917, 5
      %v2920 = vsel %vm704, %v2915, %v2919
      %v2921 = vshrl.u32 %v2566, 16
      %v2923 = vrot.slane %v2921, 4
      %v2924 = vor.u32 %v2923, %v2919
      %v2925 = vrot.slane %v2924, 4
      %v2927 = vshll.u32 %v2567, 16
      %v2929 = vrot.slane %v2927, 5
      %v2930 = vsel %vm704, %v2925, %v2929
      %v2932 = vshrl.u32 %v2568, 16
      %v2934 = vrot.slane %v2932, 4
      %v2935 = vshll.u32 %v2568, 16
      %v2937 = vrot.slane %v2935, 5
      %v2938 = vor.u32 %v2934, %v2937
      %v2939 = vrot.slane %v2938, 4
      %v2941 = vshll.u32 %v2569, 16
      %v2943 = vrot.slane %v2941, 5
      %v2944 = vsel %vm704, %v2939, %v2943
      %v2945 = vshrl.u32 %v2569, 16
      %v2947 = vrot.slane %v2945, 4
      %v2948 = vor.u32 %v2947, %v2943
      %v2949 = vrot.slane %v2948, 4
      %v2951 = vshll.u32 %v2570, 16
      %v2953 = vrot.slane %v2951, 5
      %v2954 = vsel %vm704, %v2949, %v2953
      %v2955 = vld [vmem:[#allocation2] sm:$0xff]
      %v2956 = vld [vmem:[#allocation2 + $0x8] sm:$0xff]
      %v2957 = vld [vmem:[#allocation2 + $0x10] sm:$0xff]
      %v2958 = vld [vmem:[#allocation2 + $0x18] sm:$0xff]
      %v2959 = vld [vmem:[#allocation2 + $0x20] sm:$0xff]
      %v2960 = vld [vmem:[#allocation2 + $0x28] sm:$0xff]
      %v2961 = vld [vmem:[#allocation2 + $0x30] sm:$0xff]
      %v2962 = vld [vmem:[#allocation2 + $0x38] sm:$0xff]
      %v2963 = vld [vmem:[#allocation2 + $0x40] sm:$0xff]
      %v2964 = vld [vmem:[#allocation2 + $0x48] sm:$0xff]
      %v2965 = vld [vmem:[#allocation2 + $0x50] sm:$0xff]
      %v2966 = vld [vmem:[#allocation2 + $0x58] sm:$0xff]
      %v2967 = vld [vmem:[#allocation2 + $0x60] sm:$0xff]
      %v2968 = vld [vmem:[#allocation2 + $0x68] sm:$0xff]
      %v2969 = vld [vmem:[#allocation2 + $0x70] sm:$0xff]
      %v2970 = vld [vmem:[#allocation2 + $0x78] sm:$0xff]
      %v2971 = vld [vmem:[#allocation2 + $0x80] sm:$0xff]
      %v2972 = vld [vmem:[#allocation2 + $0x88] sm:$0xff]
      %v2973 = vld [vmem:[#allocation2 + $0x90] sm:$0xff]
      %v2974 = vld [vmem:[#allocation2 + $0x98] sm:$0xff]
      %v2975 = vld [vmem:[#allocation2 + $0xa0] sm:$0xff]
      %v2976 = vld [vmem:[#allocation2 + $0xa8] sm:$0xff]
      %v2977 = vld [vmem:[#allocation2 + $0xb0] sm:$0xff]
      %v2978 = vld [vmem:[#allocation2 + $0xb8] sm:$0xff]
      %v2979 = vld [vmem:[#allocation2 + $0xc0] sm:$0xff]
      %v2980 = vld [vmem:[#allocation2 + $0xc8] sm:$0xff]
      %v2981 = vld [vmem:[#allocation2 + $0xd0] sm:$0xff]
      %v2982 = vld [vmem:[#allocation2 + $0xd8] sm:$0xff]
      %v2983 = vld [vmem:[#allocation2 + $0xe0] sm:$0xff]
      %v2984 = vld [vmem:[#allocation2 + $0xe8] sm:$0xff]
      %v2985 = vld [vmem:[#allocation2 + $0xf0] sm:$0xff]
      %v2986 = vld [vmem:[#allocation2 + $0xf8] sm:$0xff]
      %s2987 = scalar_lea.vmem %s1, 256
      %v2988 = vld [vmem:[%s2987] sm:$0xf]
      %v2989 = vld [vmem:[%s2987 + $0x4] sm:$0xf]
      %v2990 = vld [vmem:[%s2987 + $0x8] sm:$0xf]
      %v2991 = vld [vmem:[%s2987 + $0xc] sm:$0xf]
      %v2992 = vld [vmem:[%s2987 + $0x10] sm:$0xf]
      %v2993 = vld [vmem:[%s2987 + $0x14] sm:$0xf]
      %v2994 = vld [vmem:[%s2987 + $0x18] sm:$0xf]
      %v2995 = vld [vmem:[%s2987 + $0x1c] sm:$0xf]
      %v2996 = vld [vmem:[%s2987 + $0x20] sm:$0xf]
      %v2997 = vld [vmem:[%s2987 + $0x24] sm:$0xf]
      %v2998 = vld [vmem:[%s2987 + $0x28] sm:$0xf]
      %v2999 = vld [vmem:[%s2987 + $0x2c] sm:$0xf]
      %v3000 = vld [vmem:[%s2987 + $0x30] sm:$0xf]
      %v3001 = vld [vmem:[%s2987 + $0x34] sm:$0xf]
      %v3002 = vld [vmem:[%s2987 + $0x38] sm:$0xf]
      %v3003 = vld [vmem:[%s2987 + $0x3c] sm:$0xf]
      %v3004 = vunpack.c.l.b16 %v2584
      %v3005 = vunpack.c.l.b16 %v2594
      %v3006 = vunpack.c.l.b16 %v2608
      %v3007 = vunpack.c.l.b16 %v2618
      %v3008 = vunpack.c.l.b16 %v2632
      %v3009 = vunpack.c.l.b16 %v2642
      %v3010 = vunpack.c.l.b16 %v2656
      %v3011 = vunpack.c.l.b16 %v2666
      %v3012 = vunpack.c.l.b16 %v2680
      %v3013 = vunpack.c.l.b16 %v2690
      %v3014 = vunpack.c.l.b16 %v2704
      %v3015 = vunpack.c.l.b16 %v2714
      %v3016 = vunpack.c.l.b16 %v2728
      %v3017 = vunpack.c.l.b16 %v2738
      %v3018 = vunpack.c.l.b16 %v2752
      %v3019 = vunpack.c.l.b16 %v2762
      %v3020 = vunpack.c.l.b16 %v2776
      %v3021 = vunpack.c.l.b16 %v2786
      %v3022 = vunpack.c.l.b16 %v2800
      %v3023 = vunpack.c.l.b16 %v2810
      %v3024 = vunpack.c.l.b16 %v2824
      %v3025 = vunpack.c.l.b16 %v2834
      %v3026 = vunpack.c.l.b16 %v2848
      %v3027 = vunpack.c.l.b16 %v2858
      %v3028 = vunpack.c.l.b16 %v2872
      %v3029 = vunpack.c.l.b16 %v2882
      %v3030 = vunpack.c.l.b16 %v2896
      %v3031 = vunpack.c.l.b16 %v2906
      %v3032 = vunpack.c.l.b16 %v2920
      %v3033 = vunpack.c.l.b16 %v2930
      %v3034 = vunpack.c.l.b16 %v2944
      %v3035 = vunpack.c.l.b16 %v2954
      %v3036 = vpack.c.b16 %v3005, %v3004
      %v3037 = vpack.c.b16 %v3007, %v3006
      %v3038 = vpack.c.b16 %v3009, %v3008
      %v3039 = vpack.c.b16 %v3011, %v3010
      %v3040 = vpack.c.b16 %v3013, %v3012
      %v3041 = vpack.c.b16 %v3015, %v3014
      %v3042 = vpack.c.b16 %v3017, %v3016
      %v3043 = vpack.c.b16 %v3019, %v3018
      %v3044 = vpack.c.b16 %v3021, %v3020
      %v3045 = vpack.c.b16 %v3023, %v3022
      %v3046 = vpack.c.b16 %v3025, %v3024
      %v3047 = vpack.c.b16 %v3027, %v3026
      %v3048 = vpack.c.b16 %v3029, %v3028
      %v3049 = vpack.c.b16 %v3031, %v3030
      %v3050 = vpack.c.b16 %v3033, %v3032
      %v3051 = vpack.c.b16 %v3035, %v3034
      %v3084 = vunpack.c.l.b16 %v2988
      %v3085 = vunpack.c.l.b16 %v2989
      %v3086 = vunpack.c.l.b16 %v2990
      %v3087 = vunpack.c.l.b16 %v2991
      %v3088 = vunpack.c.l.b16 %v2992
      %v3089 = vunpack.c.l.b16 %v2993
      %v3090 = vunpack.c.l.b16 %v2994
      %v3091 = vunpack.c.l.b16 %v2995
      %v3092 = vunpack.c.l.b16 %v2996
      %v3093 = vunpack.c.l.b16 %v2997
      %v3094 = vunpack.c.l.b16 %v2998
      %v3095 = vunpack.c.l.b16 %v2999
      %v3096 = vunpack.c.l.b16 %v3000
      %v3097 = vunpack.c.l.b16 %v3001
      %v3098 = vunpack.c.l.b16 %v3002
      %v3099 = vunpack.c.l.b16 %v3003
      %v3100 = vpack.c.b16 %v3085, %v3084
      %v3101 = vpack.c.b16 %v3087, %v3086
      %v3102 = vpack.c.b16 %v3089, %v3088
      %v3103 = vpack.c.b16 %v3091, %v3090
      %v3104 = vpack.c.b16 %v3093, %v3092
      %v3105 = vpack.c.b16 %v3095, %v3094
      %v3106 = vpack.c.b16 %v3097, %v3096
      %v3107 = vpack.c.b16 %v3099, %v3098
      %3116 = vmatprep.subr.bf16.mxu0 0
      %3117 = vmatpush1.bf16.msra.mxu0 %v3100
      %3118 = vmatprep.subr.bf16.mxu0 0
      %3119 = vmatpush1.bf16.msra.mxu0 %v3101
      %3120 = vmatprep.subr.bf16.mxu0 0
      %3121 = vmatpush1.bf16.msra.mxu0 %v3102
      %3122 = vmatprep.subr.bf16.mxu0 0
      %3123 = vmatpush1.bf16.msra.mxu0 %v3103
      %3124 = vmatprep.subr.bf16.mxu0 0
      %3125 = vmatpush1.bf16.msra.mxu0 %v3104
      %3126 = vmatprep.subr.bf16.mxu0 0
      %3127 = vmatpush1.bf16.msra.mxu0 %v3105
      %3128 = vmatprep.subr.bf16.mxu0 0
      %3129 = vmatpush1.bf16.msra.mxu0 %v3106
      %3130 = vmatprep.subr.bf16.mxu0 0
      %3131 = vmatpush1.bf16.msra.mxu0 %v3107
      %3132 = vmatprep.subr.bf16.mxu0 0
      %3133 = vmatpush1.bf16.msra.mxu0 0
      %3134 = vmatprep.subr.bf16.mxu0 0
      %3135 = vmatpush1.bf16.msra.mxu0 0
      %3136 = vmatprep.subr.bf16.mxu0 0
      %3137 = vmatpush1.bf16.msra.mxu0 0
      %3138 = vmatprep.subr.bf16.mxu0 0
      %3139 = vmatpush1.bf16.msra.mxu0 0
      %3140 = vmatprep.subr.bf16.mxu0 0
      %3141 = vmatpush1.bf16.msra.mxu0 0
      %3142 = vmatprep.subr.bf16.mxu0 0
      %3143 = vmatpush1.bf16.msra.mxu0 0
      %3144 = vmatprep.subr.bf16.mxu0 0
      %3145 = vmatpush1.bf16.msra.mxu0 0
      %3146 = vmatprep.subr.bf16.mxu0 0
      %3147 = vmatpush1.bf16.msra.mxu0 0
      %3148 = vmatprep.mubr.bf16.mxu0 0
      %3149 = vmatmul.mubr.bf16.gmra.mrb[0].mxu0 %v3036
      %v3150 = vpop.f32.mrb[0].mxu0
      %v3151 = vadd.f32 0.0, %v3150
      %v3152 = vpop.f32.mrb[0].mxu0
      %v3153 = vpop.f32.mrb[0].mxu0
      %v3154 = vadd.f32 0.0, %v3153
      %v3155 = vpop.f32.mrb[0].mxu0
      %3156 = vmatprep.mubr.bf16.mxu0 0
      %3157 = vmatmul.mubr.bf16.gmra.mrb[0].mxu0 %v3037
      %v3158 = vpop.f32.mrb[0].mxu0
      %v3159 = vadd.f32 0.0, %v3158
      %v3160 = vpop.f32.mrb[0].mxu0
      %v3161 = vpop.f32.mrb[0].mxu0
      %v3162 = vadd.f32 0.0, %v3161
      %v3163 = vpop.f32.mrb[0].mxu0
      %3164 = vmatprep.mubr.bf16.mxu0 0
      %3165 = vmatmul.mubr.bf16.gmra.mrb[0].mxu0 %v3038
      %v3166 = vpop.f32.mrb[0].mxu0
      %v3167 = vadd.f32 0.0, %v3166
      %v3168 = vpop.f32.mrb[0].mxu0
      %v3169 = vpop.f32.mrb[0].mxu0
      %v3170 = vadd.f32 0.0, %v3169
      %v3171 = vpop.f32.mrb[0].mxu0
      %3172 = vmatprep.mubr.bf16.mxu0 0
      %3173 = vmatmul.mubr.bf16.gmra.mrb[0].mxu0 %v3039
      %v3174 = vpop.f32.mrb[0].mxu0
      %v3175 = vadd.f32 0.0, %v3174
      %v3176 = vpop.f32.mrb[0].mxu0
      %v3177 = vpop.f32.mrb[0].mxu0
      %v3178 = vadd.f32 0.0, %v3177
      %v3179 = vpop.f32.mrb[0].mxu0
      %3180 = vmatprep.mubr.bf16.mxu0 0
      %3181 = vmatmul.mubr.bf16.gmra.mrb[0].mxu0 %v3040
      %v3182 = vpop.f32.mrb[0].mxu0
      %v3183 = vadd.f32 0.0, %v3182
      %v3184 = vpop.f32.mrb[0].mxu0
      %v3185 = vpop.f32.mrb[0].mxu0
      %v3186 = vadd.f32 0.0, %v3185
      %v3187 = vpop.f32.mrb[0].mxu0
      %3188 = vmatprep.mubr.bf16.mxu0 0
      %3189 = vmatmul.mubr.bf16.gmra.mrb[0].mxu0 %v3041
      %v3190 = vpop.f32.mrb[0].mxu0
      %v3191 = vadd.f32 0.0, %v3190
      %v3192 = vpop.f32.mrb[0].mxu0
      %v3193 = vpop.f32.mrb[0].mxu0
      %v3194 = vadd.f32 0.0, %v3193
      %v3195 = vpop.f32.mrb[0].mxu0
      %3196 = vmatprep.mubr.bf16.mxu0 0
      %3197 = vmatmul.mubr.bf16.gmra.mrb[0].mxu0 %v3042
      %v3198 = vpop.f32.mrb[0].mxu0
      %v3199 = vadd.f32 0.0, %v3198
      %v3200 = vpop.f32.mrb[0].mxu0
      %v3201 = vpop.f32.mrb[0].mxu0
      %v3202 = vadd.f32 0.0, %v3201
      %v3203 = vpop.f32.mrb[0].mxu0
      %3204 = vmatprep.mubr.bf16.mxu0 0
      %3205 = vmatmul.mubr.bf16.gmra.mrb[0].mxu0 %v3043
      %v3206 = vpop.f32.mrb[0].mxu0
      %v3207 = vadd.f32 0.0, %v3206
      %v3208 = vpop.f32.mrb[0].mxu0
      %v3209 = vpop.f32.mrb[0].mxu0
      %v3210 = vadd.f32 0.0, %v3209
      %v3211 = vpop.f32.mrb[0].mxu0
      %3212 = vmatprep.mubr.bf16.mxu0 0
      %3213 = vmatmul.mubr.bf16.gmra.mrb[0].mxu0 %v3044
      %v3214 = vpop.f32.mrb[0].mxu0
      %v3215 = vadd.f32 0.0, %v3214
      %v3216 = vpop.f32.mrb[0].mxu0
      %v3217 = vpop.f32.mrb[0].mxu0
      %v3218 = vadd.f32 0.0, %v3217
      %v3219 = vpop.f32.mrb[0].mxu0
      %3220 = vmatprep.mubr.bf16.mxu0 0
      %3221 = vmatmul.mubr.bf16.gmra.mrb[0].mxu0 %v3045
      %v3222 = vpop.f32.mrb[0].mxu0
      %v3223 = vadd.f32 0.0, %v3222
      %v3224 = vpop.f32.mrb[0].mxu0
      %v3225 = vpop.f32.mrb[0].mxu0
      %v3226 = vadd.f32 0.0, %v3225
      %v3227 = vpop.f32.mrb[0].mxu0
      %3228 = vmatprep.mubr.bf16.mxu0 0
      %3229 = vmatmul.mubr.bf16.gmra.mrb[0].mxu0 %v3046
      %v3230 = vpop.f32.mrb[0].mxu0
      %v3231 = vadd.f32 0.0, %v3230
      %v3232 = vpop.f32.mrb[0].mxu0
      %v3233 = vpop.f32.mrb[0].mxu0
      %v3234 = vadd.f32 0.0, %v3233
      %v3235 = vpop.f32.mrb[0].mxu0
      %3236 = vmatprep.mubr.bf16.mxu0 0
      %3237 = vmatmul.mubr.bf16.gmra.mrb[0].mxu0 %v3047
      %v3238 = vpop.f32.mrb[0].mxu0
      %v3239 = vadd.f32 0.0, %v3238
      %v3240 = vpop.f32.mrb[0].mxu0
      %v3241 = vpop.f32.mrb[0].mxu0
      %v3242 = vadd.f32 0.0, %v3241
      %v3243 = vpop.f32.mrb[0].mxu0
      %3244 = vmatprep.mubr.bf16.mxu0 0
      %3245 = vmatmul.mubr.bf16.gmra.mrb[0].mxu0 %v3048
      %v3246 = vpop.f32.mrb[0].mxu0
      %v3247 = vadd.f32 0.0, %v3246
      %v3248 = vpop.f32.mrb[0].mxu0
      %v3249 = vpop.f32.mrb[0].mxu0
      %v3250 = vadd.f32 0.0, %v3249
      %v3251 = vpop.f32.mrb[0].mxu0
      %3252 = vmatprep.mubr.bf16.mxu0 0
      %3253 = vmatmul.mubr.bf16.gmra.mrb[0].mxu0 %v3049
      %v3254 = vpop.f32.mrb[0].mxu0
      %v3255 = vadd.f32 0.0, %v3254
      %v3256 = vpop.f32.mrb[0].mxu0
      %v3257 = vpop.f32.mrb[0].mxu0
      %v3258 = vadd.f32 0.0, %v3257
      %v3259 = vpop.f32.mrb[0].mxu0
      %3260 = vmatprep.mubr.bf16.mxu0 0
      %3261 = vmatmul.mubr.bf16.gmra.mrb[0].mxu0 %v3050
      %v3262 = vpop.f32.mrb[0].mxu0
      %v3263 = vadd.f32 0.0, %v3262
      %v3264 = vpop.f32.mrb[0].mxu0
      %v3265 = vpop.f32.mrb[0].mxu0
      %v3266 = vadd.f32 0.0, %v3265
      %v3267 = vpop.f32.mrb[0].mxu0
      %3268 = vmatprep.mubr.bf16.mxu0 0
      %3269 = vmatmul.mubr.bf16.gmra.mrb[0].mxu0 %v3051
      %v3270 = vpop.f32.mrb[0].mxu0
      %v3271 = vadd.f32 0.0, %v3270
      %v3272 = vpop.f32.mrb[0].mxu0
      %v3273 = vpop.f32.mrb[0].mxu0
      %v3274 = vadd.f32 0.0, %v3273
      %v3275 = vpop.f32.mrb[0].mxu0
      %3276 = vdwg.mxu0
      %v3277 = vadd.f32 %v2955, %v3151
      %v3278 = vadd.f32 %v2956, %v3154
      %v3279 = vadd.f32 %v2957, %v3159
      %v3280 = vadd.f32 %v2958, %v3162
      %v3281 = vadd.f32 %v2959, %v3167
      %v3282 = vadd.f32 %v2960, %v3170
      %v3283 = vadd.f32 %v2961, %v3175
      %v3284 = vadd.f32 %v2962, %v3178
      %v3285 = vadd.f32 %v2963, %v3183
      %v3286 = vadd.f32 %v2964, %v3186
      %v3287 = vadd.f32 %v2965, %v3191
      %v3288 = vadd.f32 %v2966, %v3194
      %v3289 = vadd.f32 %v2967, %v3199
      %v3290 = vadd.f32 %v2968, %v3202
      %v3291 = vadd.f32 %v2969, %v3207
      %v3292 = vadd.f32 %v2970, %v3210
      %v3293 = vadd.f32 %v2971, %v3215
      %v3294 = vadd.f32 %v2972, %v3218
      %v3295 = vadd.f32 %v2973, %v3223
      %v3296 = vadd.f32 %v2974, %v3226
      %v3297 = vadd.f32 %v2975, %v3231
      %v3298 = vadd.f32 %v2976, %v3234
      %v3299 = vadd.f32 %v2977, %v3239
      %v3300 = vadd.f32 %v2978, %v3242
      %v3301 = vadd.f32 %v2979, %v3247
      %v3302 = vadd.f32 %v2980, %v3250
      %v3303 = vadd.f32 %v2981, %v3255
      %v3304 = vadd.f32 %v2982, %v3258
      %v3305 = vadd.f32 %v2983, %v3263
      %v3306 = vadd.f32 %v2984, %v3266
      %v3307 = vadd.f32 %v2985, %v3271
      %v3308 = vadd.f32 %v2986, %v3274
      %3309 = vst [vmem:[#allocation2] sm:$0xff] %v3277
      %3310 = vst [vmem:[#allocation2 + $0x8] sm:$0xff] %v3278
      %3311 = vst [vmem:[#allocation2 + $0x10] sm:$0xff] %v3279
      %3312 = vst [vmem:[#allocation2 + $0x18] sm:$0xff] %v3280
      %3313 = vst [vmem:[#allocation2 + $0x20] sm:$0xff] %v3281
      %3314 = vst [vmem:[#allocation2 + $0x28] sm:$0xff] %v3282
      %3315 = vst [vmem:[#allocation2 + $0x30] sm:$0xff] %v3283
      %3316 = vst [vmem:[#allocation2 + $0x38] sm:$0xff] %v3284
      %3317 = vst [vmem:[#allocation2 + $0x40] sm:$0xff] %v3285
      %3318 = vst [vmem:[#allocation2 + $0x48] sm:$0xff] %v3286
      %3319 = vst [vmem:[#allocation2 + $0x50] sm:$0xff] %v3287
      %3320 = vst [vmem:[#allocation2 + $0x58] sm:$0xff] %v3288
      %3321 = vst [vmem:[#allocation2 + $0x60] sm:$0xff] %v3289
      %3322 = vst [vmem:[#allocation2 + $0x68] sm:$0xff] %v3290
      %3323 = vst [vmem:[#allocation2 + $0x70] sm:$0xff] %v3291
      %3324 = vst [vmem:[#allocation2 + $0x78] sm:$0xff] %v3292
      %3325 = vst [vmem:[#allocation2 + $0x80] sm:$0xff] %v3293
      %3326 = vst [vmem:[#allocation2 + $0x88] sm:$0xff] %v3294
      %3327 = vst [vmem:[#allocation2 + $0x90] sm:$0xff] %v3295
      %3328 = vst [vmem:[#allocation2 + $0x98] sm:$0xff] %v3296
      %3329 = vst [vmem:[#allocation2 + $0xa0] sm:$0xff] %v3297
      %3330 = vst [vmem:[#allocation2 + $0xa8] sm:$0xff] %v3298
      %3331 = vst [vmem:[#allocation2 + $0xb0] sm:$0xff] %v3299
      %3332 = vst [vmem:[#allocation2 + $0xb8] sm:$0xff] %v3300
      %3333 = vst [vmem:[#allocation2 + $0xc0] sm:$0xff] %v3301
      %3334 = vst [vmem:[#allocation2 + $0xc8] sm:$0xff] %v3302
      %3335 = vst [vmem:[#allocation2 + $0xd0] sm:$0xff] %v3303
      %3336 = vst [vmem:[#allocation2 + $0xd8] sm:$0xff] %v3304
      %3337 = vst [vmem:[#allocation2 + $0xe0] sm:$0xff] %v3305
      %3338 = vst [vmem:[#allocation2 + $0xe8] sm:$0xff] %v3306
      %3339 = vst [vmem:[#allocation2 + $0xf0] sm:$0xff] %v3307
      %3340 = vst [vmem:[#allocation2 + $0xf8] sm:$0xff] %v3308
      %v3341 = vld [vmem:[%s2072] sm:$0xe]
      %v3342 = vld [vmem:[%s2072 + $0x4] sm:$0xf]
      %v3343 = vld [vmem:[%s2072 + $0x8] sm:$0x1]
      %v3344 = vld [vmem:[%s2072 + $0xc] sm:$0xe]
      %v3345 = vld [vmem:[%s2072 + $0x10] sm:$0xf]
      %v3346 = vld [vmem:[%s2072 + $0x14] sm:$0x1]
      %v3347 = vld [vmem:[%s2072 + $0x18] sm:$0xe]
      %v3348 = vld [vmem:[%s2072 + $0x1c] sm:$0xf]
      %v3349 = vld [vmem:[%s2072 + $0x20] sm:$0x1]
      %v3350 = vld [vmem:[%s2072 + $0x24] sm:$0xe]
      %v3351 = vld [vmem:[%s2072 + $0x28] sm:$0xf]
      %v3352 = vld [vmem:[%s2072 + $0x2c] sm:$0x1]
      %v3353 = vld [vmem:[%s2072 + $0x30] sm:$0xe]
      %v3354 = vld [vmem:[%s2072 + $0x34] sm:$0xf]
      %v3355 = vld [vmem:[%s2072 + $0x38] sm:$0x1]
      %v3356 = vld [vmem:[%s2072 + $0x3c] sm:$0xe]
      %v3357 = vld [vmem:[%s2072 + $0x40] sm:$0xf]
      %v3358 = vld [vmem:[%s2072 + $0x44] sm:$0x1]
      %v3359 = vld [vmem:[%s2072 + $0x48] sm:$0xe]
      %v3360 = vld [vmem:[%s2072 + $0x4c] sm:$0xf]
      %v3361 = vld [vmem:[%s2072 + $0x50] sm:$0x1]
      %v3362 = vld [vmem:[%s2072 + $0x54] sm:$0xe]
      %v3363 = vld [vmem:[%s2072 + $0x58] sm:$0xf]
      %v3364 = vld [vmem:[%s2072 + $0x5c] sm:$0x1]
      %v3365 = vld [vmem:[%s2072 + $0x60] sm:$0xe]
      %v3366 = vld [vmem:[%s2072 + $0x64] sm:$0xf]
      %v3367 = vld [vmem:[%s2072 + $0x68] sm:$0x1]
      %v3368 = vld [vmem:[%s2072 + $0x6c] sm:$0xe]
      %v3369 = vld [vmem:[%s2072 + $0x70] sm:$0xf]
      %v3370 = vld [vmem:[%s2072 + $0x74] sm:$0x1]
      %v3371 = vld [vmem:[%s2072 + $0x78] sm:$0xe]
      %v3372 = vld [vmem:[%s2072 + $0x7c] sm:$0xf]
      %v3373 = vld [vmem:[%s2072 + $0x80] sm:$0x1]
      %v3374 = vld [vmem:[%s2072 + $0x84] sm:$0xe]
      %v3375 = vld [vmem:[%s2072 + $0x88] sm:$0xf]
      %v3376 = vld [vmem:[%s2072 + $0x8c] sm:$0x1]
      %v3377 = vld [vmem:[%s2072 + $0x90] sm:$0xe]
      %v3378 = vld [vmem:[%s2072 + $0x94] sm:$0xf]
      %v3379 = vld [vmem:[%s2072 + $0x98] sm:$0x1]
      %v3380 = vld [vmem:[%s2072 + $0x9c] sm:$0xe]
      %v3381 = vld [vmem:[%s2072 + $0xa0] sm:$0xf]
      %v3382 = vld [vmem:[%s2072 + $0xa4] sm:$0x1]
      %v3383 = vld [vmem:[%s2072 + $0xa8] sm:$0xe]
      %v3384 = vld [vmem:[%s2072 + $0xac] sm:$0xf]
      %v3385 = vld [vmem:[%s2072 + $0xb0] sm:$0x1]
      %v3386 = vld [vmem:[%s2072 + $0xb4] sm:$0xe]
      %v3387 = vld [vmem:[%s2072 + $0xb8] sm:$0xf]
      %v3388 = vld [vmem:[%s2072 + $0xbc] sm:$0x1]
      %v3437 = vrot.slane %v3341, 5
      %v3438 = vrot.slane %v3437, 4
      %v3439 = vrot.slane %v3342, 5
      %v3440 = vsel %vm1573, %v3438, %v3439
      %v3441 = vrot.slane %v3439, 4
      %v3442 = vrot.slane %v3343, 5
      %v3443 = vsel %vm1573, %v3441, %v3442
      %v3444 = vrot.slane %v3344, 5
      %v3445 = vrot.slane %v3444, 4
      %v3446 = vrot.slane %v3345, 5
      %v3447 = vsel %vm1573, %v3445, %v3446
      %v3448 = vrot.slane %v3446, 4
      %v3449 = vrot.slane %v3346, 5
      %v3450 = vsel %vm1573, %v3448, %v3449
      %v3451 = vrot.slane %v3347, 5
      %v3452 = vrot.slane %v3451, 4
      %v3453 = vrot.slane %v3348, 5
      %v3454 = vsel %vm1573, %v3452, %v3453
      %v3455 = vrot.slane %v3453, 4
      %v3456 = vrot.slane %v3349, 5
      %v3457 = vsel %vm1573, %v3455, %v3456
      %v3458 = vrot.slane %v3350, 5
      %v3459 = vrot.slane %v3458, 4
      %v3460 = vrot.slane %v3351, 5
      %v3461 = vsel %vm1573, %v3459, %v3460
      %v3462 = vrot.slane %v3460, 4
      %v3463 = vrot.slane %v3352, 5
      %v3464 = vsel %vm1573, %v3462, %v3463
      %v3465 = vrot.slane %v3353, 5
      %v3466 = vrot.slane %v3465, 4
      %v3467 = vrot.slane %v3354, 5
      %v3468 = vsel %vm1573, %v3466, %v3467
      %v3469 = vrot.slane %v3467, 4
      %v3470 = vrot.slane %v3355, 5
      %v3471 = vsel %vm1573, %v3469, %v3470
      %v3472 = vrot.slane %v3356, 5
      %v3473 = vrot.slane %v3472, 4
      %v3474 = vrot.slane %v3357, 5
      %v3475 = vsel %vm1573, %v3473, %v3474
      %v3476 = vrot.slane %v3474, 4
      %v3477 = vrot.slane %v3358, 5
      %v3478 = vsel %vm1573, %v3476, %v3477
      %v3479 = vrot.slane %v3359, 5
      %v3480 = vrot.slane %v3479, 4
      %v3481 = vrot.slane %v3360, 5
      %v3482 = vsel %vm1573, %v3480, %v3481
      %v3483 = vrot.slane %v3481, 4
      %v3484 = vrot.slane %v3361, 5
      %v3485 = vsel %vm1573, %v3483, %v3484
      %v3486 = vrot.slane %v3362, 5
      %v3487 = vrot.slane %v3486, 4
      %v3488 = vrot.slane %v3363, 5
      %v3489 = vsel %vm1573, %v3487, %v3488
      %v3490 = vrot.slane %v3488, 4
      %v3491 = vrot.slane %v3364, 5
      %v3492 = vsel %vm1573, %v3490, %v3491
      %v3493 = vrot.slane %v3365, 5
      %v3494 = vrot.slane %v3493, 4
      %v3495 = vrot.slane %v3366, 5
      %v3496 = vsel %vm1573, %v3494, %v3495
      %v3497 = vrot.slane %v3495, 4
      %v3498 = vrot.slane %v3367, 5
      %v3499 = vsel %vm1573, %v3497, %v3498
      %v3500 = vrot.slane %v3368, 5
      %v3501 = vrot.slane %v3500, 4
      %v3502 = vrot.slane %v3369, 5
      %v3503 = vsel %vm1573, %v3501, %v3502
      %v3504 = vrot.slane %v3502, 4
      %v3505 = vrot.slane %v3370, 5
      %v3506 = vsel %vm1573, %v3504, %v3505
      %v3507 = vrot.slane %v3371, 5
      %v3508 = vrot.slane %v3507, 4
      %v3509 = vrot.slane %v3372, 5
      %v3510 = vsel %vm1573, %v3508, %v3509
      %v3511 = vrot.slane %v3509, 4
      %v3512 = vrot.slane %v3373, 5
      %v3513 = vsel %vm1573, %v3511, %v3512
      %v3514 = vrot.slane %v3374, 5
      %v3515 = vrot.slane %v3514, 4
      %v3516 = vrot.slane %v3375, 5
      %v3517 = vsel %vm1573, %v3515, %v3516
      %v3518 = vrot.slane %v3516, 4
      %v3519 = vrot.slane %v3376, 5
      %v3520 = vsel %vm1573, %v3518, %v3519
      %v3521 = vrot.slane %v3377, 5
      %v3522 = vrot.slane %v3521, 4
      %v3523 = vrot.slane %v3378, 5
      %v3524 = vsel %vm1573, %v3522, %v3523
      %v3525 = vrot.slane %v3523, 4
      %v3526 = vrot.slane %v3379, 5
      %v3527 = vsel %vm1573, %v3525, %v3526
      %v3528 = vrot.slane %v3380, 5
      %v3529 = vrot.slane %v3528, 4
      %v3530 = vrot.slane %v3381, 5
      %v3531 = vsel %vm1573, %v3529, %v3530
      %v3532 = vrot.slane %v3530, 4
      %v3533 = vrot.slane %v3382, 5
      %v3534 = vsel %vm1573, %v3532, %v3533
      %v3535 = vrot.slane %v3383, 5
      %v3536 = vrot.slane %v3535, 4
      %v3537 = vrot.slane %v3384, 5
      %v3538 = vsel %vm1573, %v3536, %v3537
      %v3539 = vrot.slane %v3537, 4
      %v3540 = vrot.slane %v3385, 5
      %v3541 = vsel %vm1573, %v3539, %v3540
      %v3542 = vrot.slane %v3386, 5
      %v3543 = vrot.slane %v3542, 4
      %v3544 = vrot.slane %v3387, 5
      %v3545 = vsel %vm1573, %v3543, %v3544
      %v3546 = vrot.slane %v3544, 4
      %v3547 = vrot.slane %v3388, 5
      %v3548 = vsel %vm1573, %v3546, %v3547
      %v3549 = vld [vmem:[#allocation2] sm:$0xff]
      %v3550 = vld [vmem:[#allocation2 + $0x8] sm:$0xff]
      %v3551 = vld [vmem:[#allocation2 + $0x10] sm:$0xff]
      %v3552 = vld [vmem:[#allocation2 + $0x18] sm:$0xff]
      %v3553 = vld [vmem:[#allocation2 + $0x20] sm:$0xff]
      %v3554 = vld [vmem:[#allocation2 + $0x28] sm:$0xff]
      %v3555 = vld [vmem:[#allocation2 + $0x30] sm:$0xff]
      %v3556 = vld [vmem:[#allocation2 + $0x38] sm:$0xff]
      %v3557 = vld [vmem:[#allocation2 + $0x40] sm:$0xff]
      %v3558 = vld [vmem:[#allocation2 + $0x48] sm:$0xff]
      %v3559 = vld [vmem:[#allocation2 + $0x50] sm:$0xff]
      %v3560 = vld [vmem:[#allocation2 + $0x58] sm:$0xff]
      %v3561 = vld [vmem:[#allocation2 + $0x60] sm:$0xff]
      %v3562 = vld [vmem:[#allocation2 + $0x68] sm:$0xff]
      %v3563 = vld [vmem:[#allocation2 + $0x70] sm:$0xff]
      %v3564 = vld [vmem:[#allocation2 + $0x78] sm:$0xff]
      %v3565 = vld [vmem:[#allocation2 + $0x80] sm:$0xff]
      %v3566 = vld [vmem:[#allocation2 + $0x88] sm:$0xff]
      %v3567 = vld [vmem:[#allocation2 + $0x90] sm:$0xff]
      %v3568 = vld [vmem:[#allocation2 + $0x98] sm:$0xff]
      %v3569 = vld [vmem:[#allocation2 + $0xa0] sm:$0xff]
      %v3570 = vld [vmem:[#allocation2 + $0xa8] sm:$0xff]
      %v3571 = vld [vmem:[#allocation2 + $0xb0] sm:$0xff]
      %v3572 = vld [vmem:[#allocation2 + $0xb8] sm:$0xff]
      %v3573 = vld [vmem:[#allocation2 + $0xc0] sm:$0xff]
      %v3574 = vld [vmem:[#allocation2 + $0xc8] sm:$0xff]
      %v3575 = vld [vmem:[#allocation2 + $0xd0] sm:$0xff]
      %v3576 = vld [vmem:[#allocation2 + $0xd8] sm:$0xff]
      %v3577 = vld [vmem:[#allocation2 + $0xe0] sm:$0xff]
      %v3578 = vld [vmem:[#allocation2 + $0xe8] sm:$0xff]
      %v3579 = vld [vmem:[#allocation2 + $0xf0] sm:$0xff]
      %v3580 = vld [vmem:[#allocation2 + $0xf8] sm:$0xff]
      %s3581 = scalar_lea.vmem %s1, 320
      %v3582 = vld [vmem:[%s3581] sm:$0xf]
      %v3583 = vld [vmem:[%s3581 + $0x4] sm:$0xf]
      %v3584 = vld [vmem:[%s3581 + $0x8] sm:$0xf]
      %v3585 = vld [vmem:[%s3581 + $0xc] sm:$0xf]
      %v3586 = vld [vmem:[%s3581 + $0x10] sm:$0xf]
      %v3587 = vld [vmem:[%s3581 + $0x14] sm:$0xf]
      %v3588 = vld [vmem:[%s3581 + $0x18] sm:$0xf]
      %v3589 = vld [vmem:[%s3581 + $0x1c] sm:$0xf]
      %v3590 = vld [vmem:[%s3581 + $0x20] sm:$0xf]
      %v3591 = vld [vmem:[%s3581 + $0x24] sm:$0xf]
      %v3592 = vld [vmem:[%s3581 + $0x28] sm:$0xf]
      %v3593 = vld [vmem:[%s3581 + $0x2c] sm:$0xf]
      %v3594 = vld [vmem:[%s3581 + $0x30] sm:$0xf]
      %v3595 = vld [vmem:[%s3581 + $0x34] sm:$0xf]
      %v3596 = vld [vmem:[%s3581 + $0x38] sm:$0xf]
      %v3597 = vld [vmem:[%s3581 + $0x3c] sm:$0xf]
      %v3598 = vunpack.c.l.b16 %v3440
      %v3599 = vunpack.c.l.b16 %v3443
      %v3600 = vunpack.c.l.b16 %v3447
      %v3601 = vunpack.c.l.b16 %v3450
      %v3602 = vunpack.c.l.b16 %v3454
      %v3603 = vunpack.c.l.b16 %v3457
      %v3604 = vunpack.c.l.b16 %v3461
      %v3605 = vunpack.c.l.b16 %v3464
      %v3606 = vunpack.c.l.b16 %v3468
      %v3607 = vunpack.c.l.b16 %v3471
      %v3608 = vunpack.c.l.b16 %v3475
      %v3609 = vunpack.c.l.b16 %v3478
      %v3610 = vunpack.c.l.b16 %v3482
      %v3611 = vunpack.c.l.b16 %v3485
      %v3612 = vunpack.c.l.b16 %v3489
      %v3613 = vunpack.c.l.b16 %v3492
      %v3614 = vunpack.c.l.b16 %v3496
      %v3615 = vunpack.c.l.b16 %v3499
      %v3616 = vunpack.c.l.b16 %v3503
      %v3617 = vunpack.c.l.b16 %v3506
      %v3618 = vunpack.c.l.b16 %v3510
      %v3619 = vunpack.c.l.b16 %v3513
      %v3620 = vunpack.c.l.b16 %v3517
      %v3621 = vunpack.c.l.b16 %v3520
      %v3622 = vunpack.c.l.b16 %v3524
      %v3623 = vunpack.c.l.b16 %v3527
      %v3624 = vunpack.c.l.b16 %v3531
      %v3625 = vunpack.c.l.b16 %v3534
      %v3626 = vunpack.c.l.b16 %v3538
      %v3627 = vunpack.c.l.b16 %v3541
      %v3628 = vunpack.c.l.b16 %v3545
      %v3629 = vunpack.c.l.b16 %v3548
      %v3630 = vpack.c.b16 %v3599, %v3598
      %v3631 = vpack.c.b16 %v3601, %v3600
      %v3632 = vpack.c.b16 %v3603, %v3602
      %v3633 = vpack.c.b16 %v3605, %v3604
      %v3634 = vpack.c.b16 %v3607, %v3606
      %v3635 = vpack.c.b16 %v3609, %v3608
      %v3636 = vpack.c.b16 %v3611, %v3610
      %v3637 = vpack.c.b16 %v3613, %v3612
      %v3638 = vpack.c.b16 %v3615, %v3614
      %v3639 = vpack.c.b16 %v3617, %v3616
      %v3640 = vpack.c.b16 %v3619, %v3618
      %v3641 = vpack.c.b16 %v3621, %v3620
      %v3642 = vpack.c.b16 %v3623, %v3622
      %v3643 = vpack.c.b16 %v3625, %v3624
      %v3644 = vpack.c.b16 %v3627, %v3626
      %v3645 = vpack.c.b16 %v3629, %v3628
      %v3678 = vunpack.c.l.b16 %v3582
      %v3679 = vunpack.c.l.b16 %v3583
      %v3680 = vunpack.c.l.b16 %v3584
      %v3681 = vunpack.c.l.b16 %v3585
      %v3682 = vunpack.c.l.b16 %v3586
      %v3683 = vunpack.c.l.b16 %v3587
      %v3684 = vunpack.c.l.b16 %v3588
      %v3685 = vunpack.c.l.b16 %v3589
      %v3686 = vunpack.c.l.b16 %v3590
      %v3687 = vunpack.c.l.b16 %v3591
      %v3688 = vunpack.c.l.b16 %v3592
      %v3689 = vunpack.c.l.b16 %v3593
      %v3690 = vunpack.c.l.b16 %v3594
      %v3691 = vunpack.c.l.b16 %v3595
      %v3692 = vunpack.c.l.b16 %v3596
      %v3693 = vunpack.c.l.b16 %v3597
      %v3694 = vpack.c.b16 %v3679, %v3678
      %v3695 = vpack.c.b16 %v3681, %v3680
      %v3696 = vpack.c.b16 %v3683, %v3682
      %v3697 = vpack.c.b16 %v3685, %v3684
      %v3698 = vpack.c.b16 %v3687, %v3686
      %v3699 = vpack.c.b16 %v3689, %v3688
      %v3700 = vpack.c.b16 %v3691, %v3690
      %v3701 = vpack.c.b16 %v3693, %v3692
      %3710 = vmatprep.subr.bf16.mxu0 0
      %3711 = vmatpush1.bf16.msra.mxu0 %v3694
      %3712 = vmatprep.subr.bf16.mxu0 0
      %3713 = vmatpush1.bf16.msra.mxu0 %v3695
      %3714 = vmatprep.subr.bf16.mxu0 0
      %3715 = vmatpush1.bf16.msra.mxu0 %v3696
      %3716 = vmatprep.subr.bf16.mxu0 0
      %3717 = vmatpush1.bf16.msra.mxu0 %v3697
      %3718 = vmatprep.subr.bf16.mxu0 0
      %3719 = vmatpush1.bf16.msra.mxu0 %v3698
      %3720 = vmatprep.subr.bf16.mxu0 0
      %3721 = vmatpush1.bf16.msra.mxu0 %v3699
      %3722 = vmatprep.subr.bf16.mxu0 0
      %3723 = vmatpush1.bf16.msra.mxu0 %v3700
      %3724 = vmatprep.subr.bf16.mxu0 0
      %3725 = vmatpush1.bf16.msra.mxu0 %v3701
      %3726 = vmatprep.subr.bf16.mxu0 0
      %3727 = vmatpush1.bf16.msra.mxu0 0
      %3728 = vmatprep.subr.bf16.mxu0 0
      %3729 = vmatpush1.bf16.msra.mxu0 0
      %3730 = vmatprep.subr.bf16.mxu0 0
      %3731 = vmatpush1.bf16.msra.mxu0 0
      %3732 = vmatprep.subr.bf16.mxu0 0
      %3733 = vmatpush1.bf16.msra.mxu0 0
      %3734 = vmatprep.subr.bf16.mxu0 0
      %3735 = vmatpush1.bf16.msra.mxu0 0
      %3736 = vmatprep.subr.bf16.mxu0 0
      %3737 = vmatpush1.bf16.msra.mxu0 0
      %3738 = vmatprep.subr.bf16.mxu0 0
      %3739 = vmatpush1.bf16.msra.mxu0 0
      %3740 = vmatprep.subr.bf16.mxu0 0
      %3741 = vmatpush1.bf16.msra.mxu0 0
      %3742 = vmatprep.mubr.bf16.mxu0 0
      %3743 = vmatmul.mubr.bf16.gmra.mrb[0].mxu0 %v3630
      %v3744 = vpop.f32.mrb[0].mxu0
      %v3745 = vadd.f32 0.0, %v3744
      %v3746 = vpop.f32.mrb[0].mxu0
      %v3747 = vpop.f32.mrb[0].mxu0
      %v3748 = vadd.f32 0.0, %v3747
      %v3749 = vpop.f32.mrb[0].mxu0
      %3750 = vmatprep.mubr.bf16.mxu0 0
      %3751 = vmatmul.mubr.bf16.gmra.mrb[0].mxu0 %v3631
      %v3752 = vpop.f32.mrb[0].mxu0
      %v3753 = vadd.f32 0.0, %v3752
      %v3754 = vpop.f32.mrb[0].mxu0
      %v3755 = vpop.f32.mrb[0].mxu0
      %v3756 = vadd.f32 0.0, %v3755
      %v3757 = vpop.f32.mrb[0].mxu0
      %3758 = vmatprep.mubr.bf16.mxu0 0
      %3759 = vmatmul.mubr.bf16.gmra.mrb[0].mxu0 %v3632
      %v3760 = vpop.f32.mrb[0].mxu0
      %v3761 = vadd.f32 0.0, %v3760
      %v3762 = vpop.f32.mrb[0].mxu0
      %v3763 = vpop.f32.mrb[0].mxu0
      %v3764 = vadd.f32 0.0, %v3763
      %v3765 = vpop.f32.mrb[0].mxu0
      %3766 = vmatprep.mubr.bf16.mxu0 0
      %3767 = vmatmul.mubr.bf16.gmra.mrb[0].mxu0 %v3633
      %v3768 = vpop.f32.mrb[0].mxu0
      %v3769 = vadd.f32 0.0, %v3768
      %v3770 = vpop.f32.mrb[0].mxu0
      %v3771 = vpop.f32.mrb[0].mxu0
      %v3772 = vadd.f32 0.0, %v3771
      %v3773 = vpop.f32.mrb[0].mxu0
      %3774 = vmatprep.mubr.bf16.mxu0 0
      %3775 = vmatmul.mubr.bf16.gmra.mrb[0].mxu0 %v3634
      %v3776 = vpop.f32.mrb[0].mxu0
      %v3777 = vadd.f32 0.0, %v3776
      %v3778 = vpop.f32.mrb[0].mxu0
      %v3779 = vpop.f32.mrb[0].mxu0
      %v3780 = vadd.f32 0.0, %v3779
      %v3781 = vpop.f32.mrb[0].mxu0
      %3782 = vmatprep.mubr.bf16.mxu0 0
      %3783 = vmatmul.mubr.bf16.gmra.mrb[0].mxu0 %v3635
      %v3784 = vpop.f32.mrb[0].mxu0
      %v3785 = vadd.f32 0.0, %v3784
      %v3786 = vpop.f32.mrb[0].mxu0
      %v3787 = vpop.f32.mrb[0].mxu0
      %v3788 = vadd.f32 0.0, %v3787
      %v3789 = vpop.f32.mrb[0].mxu0
      %3790 = vmatprep.mubr.bf16.mxu0 0
      %3791 = vmatmul.mubr.bf16.gmra.mrb[0].mxu0 %v3636
      %v3792 = vpop.f32.mrb[0].mxu0
      %v3793 = vadd.f32 0.0, %v3792
      %v3794 = vpop.f32.mrb[0].mxu0
      %v3795 = vpop.f32.mrb[0].mxu0
      %v3796 = vadd.f32 0.0, %v3795
      %v3797 = vpop.f32.mrb[0].mxu0
      %3798 = vmatprep.mubr.bf16.mxu0 0
      %3799 = vmatmul.mubr.bf16.gmra.mrb[0].mxu0 %v3637
      %v3800 = vpop.f32.mrb[0].mxu0
      %v3801 = vadd.f32 0.0, %v3800
      %v3802 = vpop.f32.mrb[0].mxu0
      %v3803 = vpop.f32.mrb[0].mxu0
      %v3804 = vadd.f32 0.0, %v3803
      %v3805 = vpop.f32.mrb[0].mxu0
      %3806 = vmatprep.mubr.bf16.mxu0 0
      %3807 = vmatmul.mubr.bf16.gmra.mrb[0].mxu0 %v3638
      %v3808 = vpop.f32.mrb[0].mxu0
      %v3809 = vadd.f32 0.0, %v3808
      %v3810 = vpop.f32.mrb[0].mxu0
      %v3811 = vpop.f32.mrb[0].mxu0
      %v3812 = vadd.f32 0.0, %v3811
      %v3813 = vpop.f32.mrb[0].mxu0
      %3814 = vmatprep.mubr.bf16.mxu0 0
      %3815 = vmatmul.mubr.bf16.gmra.mrb[0].mxu0 %v3639
      %v3816 = vpop.f32.mrb[0].mxu0
      %v3817 = vadd.f32 0.0, %v3816
      %v3818 = vpop.f32.mrb[0].mxu0
      %v3819 = vpop.f32.mrb[0].mxu0
      %v3820 = vadd.f32 0.0, %v3819
      %v3821 = vpop.f32.mrb[0].mxu0
      %3822 = vmatprep.mubr.bf16.mxu0 0
      %3823 = vmatmul.mubr.bf16.gmra.mrb[0].mxu0 %v3640
      %v3824 = vpop.f32.mrb[0].mxu0
      %v3825 = vadd.f32 0.0, %v3824
      %v3826 = vpop.f32.mrb[0].mxu0
      %v3827 = vpop.f32.mrb[0].mxu0
      %v3828 = vadd.f32 0.0, %v3827
      %v3829 = vpop.f32.mrb[0].mxu0
      %3830 = vmatprep.mubr.bf16.mxu0 0
      %3831 = vmatmul.mubr.bf16.gmra.mrb[0].mxu0 %v3641
      %v3832 = vpop.f32.mrb[0].mxu0
      %v3833 = vadd.f32 0.0, %v3832
      %v3834 = vpop.f32.mrb[0].mxu0
      %v3835 = vpop.f32.mrb[0].mxu0
      %v3836 = vadd.f32 0.0, %v3835
      %v3837 = vpop.f32.mrb[0].mxu0
      %3838 = vmatprep.mubr.bf16.mxu0 0
      %3839 = vmatmul.mubr.bf16.gmra.mrb[0].mxu0 %v3642
      %v3840 = vpop.f32.mrb[0].mxu0
      %v3841 = vadd.f32 0.0, %v3840
      %v3842 = vpop.f32.mrb[0].mxu0
      %v3843 = vpop.f32.mrb[0].mxu0
      %v3844 = vadd.f32 0.0, %v3843
      %v3845 = vpop.f32.mrb[0].mxu0
      %3846 = vmatprep.mubr.bf16.mxu0 0
      %3847 = vmatmul.mubr.bf16.gmra.mrb[0].mxu0 %v3643
      %v3848 = vpop.f32.mrb[0].mxu0
      %v3849 = vadd.f32 0.0, %v3848
      %v3850 = vpop.f32.mrb[0].mxu0
      %v3851 = vpop.f32.mrb[0].mxu0
      %v3852 = vadd.f32 0.0, %v3851
      %v3853 = vpop.f32.mrb[0].mxu0
      %3854 = vmatprep.mubr.bf16.mxu0 0
      %3855 = vmatmul.mubr.bf16.gmra.mrb[0].mxu0 %v3644
      %v3856 = vpop.f32.mrb[0].mxu0
      %v3857 = vadd.f32 0.0, %v3856
      %v3858 = vpop.f32.mrb[0].mxu0
      %v3859 = vpop.f32.mrb[0].mxu0
      %v3860 = vadd.f32 0.0, %v3859
      %v3861 = vpop.f32.mrb[0].mxu0
      %3862 = vmatprep.mubr.bf16.mxu0 0
      %3863 = vmatmul.mubr.bf16.gmra.mrb[0].mxu0 %v3645
      %v3864 = vpop.f32.mrb[0].mxu0
      %v3865 = vadd.f32 0.0, %v3864
      %v3866 = vpop.f32.mrb[0].mxu0
      %v3867 = vpop.f32.mrb[0].mxu0
      %v3868 = vadd.f32 0.0, %v3867
      %v3869 = vpop.f32.mrb[0].mxu0
      %3870 = vdwg.mxu0
      %v3871 = vadd.f32 %v3549, %v3745
      %v3872 = vadd.f32 %v3550, %v3748
      %v3873 = vadd.f32 %v3551, %v3753
      %v3874 = vadd.f32 %v3552, %v3756
      %v3875 = vadd.f32 %v3553, %v3761
      %v3876 = vadd.f32 %v3554, %v3764
      %v3877 = vadd.f32 %v3555, %v3769
      %v3878 = vadd.f32 %v3556, %v3772
      %v3879 = vadd.f32 %v3557, %v3777
      %v3880 = vadd.f32 %v3558, %v3780
      %v3881 = vadd.f32 %v3559, %v3785
      %v3882 = vadd.f32 %v3560, %v3788
      %v3883 = vadd.f32 %v3561, %v3793
      %v3884 = vadd.f32 %v3562, %v3796
      %v3885 = vadd.f32 %v3563, %v3801
      %v3886 = vadd.f32 %v3564, %v3804
      %v3887 = vadd.f32 %v3565, %v3809
      %v3888 = vadd.f32 %v3566, %v3812
      %v3889 = vadd.f32 %v3567, %v3817
      %v3890 = vadd.f32 %v3568, %v3820
      %v3891 = vadd.f32 %v3569, %v3825
      %v3892 = vadd.f32 %v3570, %v3828
      %v3893 = vadd.f32 %v3571, %v3833
      %v3894 = vadd.f32 %v3572, %v3836
      %v3895 = vadd.f32 %v3573, %v3841
      %v3896 = vadd.f32 %v3574, %v3844
      %v3897 = vadd.f32 %v3575, %v3849
      %v3898 = vadd.f32 %v3576, %v3852
      %v3899 = vadd.f32 %v3577, %v3857
      %v3900 = vadd.f32 %v3578, %v3860
      %v3901 = vadd.f32 %v3579, %v3865
      %v3902 = vadd.f32 %v3580, %v3868
      %3903 = vst [vmem:[#allocation2] sm:$0xff] %v3871
      %3904 = vst [vmem:[#allocation2 + $0x8] sm:$0xff] %v3872
      %3905 = vst [vmem:[#allocation2 + $0x10] sm:$0xff] %v3873
      %3906 = vst [vmem:[#allocation2 + $0x18] sm:$0xff] %v3874
      %3907 = vst [vmem:[#allocation2 + $0x20] sm:$0xff] %v3875
      %3908 = vst [vmem:[#allocation2 + $0x28] sm:$0xff] %v3876
      %3909 = vst [vmem:[#allocation2 + $0x30] sm:$0xff] %v3877
      %3910 = vst [vmem:[#allocation2 + $0x38] sm:$0xff] %v3878
      %3911 = vst [vmem:[#allocation2 + $0x40] sm:$0xff] %v3879
      %3912 = vst [vmem:[#allocation2 + $0x48] sm:$0xff] %v3880
      %3913 = vst [vmem:[#allocation2 + $0x50] sm:$0xff] %v3881
      %3914 = vst [vmem:[#allocation2 + $0x58] sm:$0xff] %v3882
      %3915 = vst [vmem:[#allocation2 + $0x60] sm:$0xff] %v3883
      %3916 = vst [vmem:[#allocation2 + $0x68] sm:$0xff] %v3884
      %3917 = vst [vmem:[#allocation2 + $0x70] sm:$0xff] %v3885
      %3918 = vst [vmem:[#allocation2 + $0x78] sm:$0xff] %v3886
      %3919 = vst [vmem:[#allocation2 + $0x80] sm:$0xff] %v3887
      %3920 = vst [vmem:[#allocation2 + $0x88] sm:$0xff] %v3888
      %3921 = vst [vmem:[#allocation2 + $0x90] sm:$0xff] %v3889
      %3922 = vst [vmem:[#allocation2 + $0x98] sm:$0xff] %v3890
      %3923 = vst [vmem:[#allocation2 + $0xa0] sm:$0xff] %v3891
      %3924 = vst [vmem:[#allocation2 + $0xa8] sm:$0xff] %v3892
      %3925 = vst [vmem:[#allocation2 + $0xb0] sm:$0xff] %v3893
      %3926 = vst [vmem:[#allocation2 + $0xb8] sm:$0xff] %v3894
      %3927 = vst [vmem:[#allocation2 + $0xc0] sm:$0xff] %v3895
      %3928 = vst [vmem:[#allocation2 + $0xc8] sm:$0xff] %v3896
      %3929 = vst [vmem:[#allocation2 + $0xd0] sm:$0xff] %v3897
      %3930 = vst [vmem:[#allocation2 + $0xd8] sm:$0xff] %v3898
      %3931 = vst [vmem:[#allocation2 + $0xe0] sm:$0xff] %v3899
      %3932 = vst [vmem:[#allocation2 + $0xe8] sm:$0xff] %v3900
      %3933 = vst [vmem:[#allocation2 + $0xf0] sm:$0xff] %v3901
      %3934 = vst [vmem:[#allocation2 + $0xf8] sm:$0xff] %v3902
      %s3935 = scalar_lea.vmem %s165, 24
      %v3936 = vld [vmem:[%s3935] sm:$0xf]
      %v3937 = vld [vmem:[%s3935 + $0x4] sm:$0xf]
      %v3938 = vld [vmem:[%s3935 + $0xc] sm:$0xf]
      %v3939 = vld [vmem:[%s3935 + $0x10] sm:$0xf]
      %v3940 = vld [vmem:[%s3935 + $0x18] sm:$0xf]
      %v3941 = vld [vmem:[%s3935 + $0x1c] sm:$0xf]
      %v3942 = vld [vmem:[%s3935 + $0x24] sm:$0xf]
      %v3943 = vld [vmem:[%s3935 + $0x28] sm:$0xf]
      %v3944 = vld [vmem:[%s3935 + $0x30] sm:$0xf]
      %v3945 = vld [vmem:[%s3935 + $0x34] sm:$0xf]
      %v3946 = vld [vmem:[%s3935 + $0x3c] sm:$0xf]
      %v3947 = vld [vmem:[%s3935 + $0x40] sm:$0xf]
      %v3948 = vld [vmem:[%s3935 + $0x48] sm:$0xf]
      %v3949 = vld [vmem:[%s3935 + $0x4c] sm:$0xf]
      %v3950 = vld [vmem:[%s3935 + $0x54] sm:$0xf]
      %v3951 = vld [vmem:[%s3935 + $0x58] sm:$0xf]
      %v3952 = vld [vmem:[%s3935 + $0x60] sm:$0xf]
      %v3953 = vld [vmem:[%s3935 + $0x64] sm:$0xf]
      %v3954 = vld [vmem:[%s3935 + $0x6c] sm:$0xf]
      %v3955 = vld [vmem:[%s3935 + $0x70] sm:$0xf]
      %v3956 = vld [vmem:[%s3935 + $0x78] sm:$0xf]
      %v3957 = vld [vmem:[%s3935 + $0x7c] sm:$0xf]
      %v3958 = vld [vmem:[%s3935 + $0x84] sm:$0xf]
      %v3959 = vld [vmem:[%s3935 + $0x88] sm:$0xf]
      %v3960 = vld [vmem:[%s3935 + $0x90] sm:$0xf]
      %v3961 = vld [vmem:[%s3935 + $0x94] sm:$0xf]
      %v3962 = vld [vmem:[%s3935 + $0x9c] sm:$0xf]
      %v3963 = vld [vmem:[%s3935 + $0xa0] sm:$0xf]
      %v3964 = vld [vmem:[%s3935 + $0xa8] sm:$0xf]
      %v3965 = vld [vmem:[%s3935 + $0xac] sm:$0xf]
      %v3966 = vld [vmem:[%s3935 + $0xb4] sm:$0xf]
      %v3967 = vld [vmem:[%s3935 + $0xb8] sm:$0xf]
      %v3968 = vld [vmem:[#allocation2] sm:$0xff]
      %v3969 = vld [vmem:[#allocation2 + $0x8] sm:$0xff]
      %v3970 = vld [vmem:[#allocation2 + $0x10] sm:$0xff]
      %v3971 = vld [vmem:[#allocation2 + $0x18] sm:$0xff]
      %v3972 = vld [vmem:[#allocation2 + $0x20] sm:$0xff]
      %v3973 = vld [vmem:[#allocation2 + $0x28] sm:$0xff]
      %v3974 = vld [vmem:[#allocation2 + $0x30] sm:$0xff]
      %v3975 = vld [vmem:[#allocation2 + $0x38] sm:$0xff]
      %v3976 = vld [vmem:[#allocation2 + $0x40] sm:$0xff]
      %v3977 = vld [vmem:[#allocation2 + $0x48] sm:$0xff]
      %v3978 = vld [vmem:[#allocation2 + $0x50] sm:$0xff]
      %v3979 = vld [vmem:[#allocation2 + $0x58] sm:$0xff]
      %v3980 = vld [vmem:[#allocation2 + $0x60] sm:$0xff]
      %v3981 = vld [vmem:[#allocation2 + $0x68] sm:$0xff]
      %v3982 = vld [vmem:[#allocation2 + $0x70] sm:$0xff]
      %v3983 = vld [vmem:[#allocation2 + $0x78] sm:$0xff]
      %v3984 = vld [vmem:[#allocation2 + $0x80] sm:$0xff]
      %v3985 = vld [vmem:[#allocation2 + $0x88] sm:$0xff]
      %v3986 = vld [vmem:[#allocation2 + $0x90] sm:$0xff]
      %v3987 = vld [vmem:[#allocation2 + $0x98] sm:$0xff]
      %v3988 = vld [vmem:[#allocation2 + $0xa0] sm:$0xff]
      %v3989 = vld [vmem:[#allocation2 + $0xa8] sm:$0xff]
      %v3990 = vld [vmem:[#allocation2 + $0xb0] sm:$0xff]
      %v3991 = vld [vmem:[#allocation2 + $0xb8] sm:$0xff]
      %v3992 = vld [vmem:[#allocation2 + $0xc0] sm:$0xff]
      %v3993 = vld [vmem:[#allocation2 + $0xc8] sm:$0xff]
      %v3994 = vld [vmem:[#allocation2 + $0xd0] sm:$0xff]
      %v3995 = vld [vmem:[#allocation2 + $0xd8] sm:$0xff]
      %v3996 = vld [vmem:[#allocation2 + $0xe0] sm:$0xff]
      %v3997 = vld [vmem:[#allocation2 + $0xe8] sm:$0xff]
      %v3998 = vld [vmem:[#allocation2 + $0xf0] sm:$0xff]
      %v3999 = vld [vmem:[#allocation2 + $0xf8] sm:$0xff]
      %s4000 = scalar_lea.vmem %s1, 384
      %v4001 = vld [vmem:[%s4000] sm:$0xf]
      %v4002 = vld [vmem:[%s4000 + $0x4] sm:$0xf]
      %v4003 = vld [vmem:[%s4000 + $0x8] sm:$0xf]
      %v4004 = vld [vmem:[%s4000 + $0xc] sm:$0xf]
      %v4005 = vld [vmem:[%s4000 + $0x10] sm:$0xf]
      %v4006 = vld [vmem:[%s4000 + $0x14] sm:$0xf]
      %v4007 = vld [vmem:[%s4000 + $0x18] sm:$0xf]
      %v4008 = vld [vmem:[%s4000 + $0x1c] sm:$0xf]
      %v4009 = vld [vmem:[%s4000 + $0x20] sm:$0xf]
      %v4010 = vld [vmem:[%s4000 + $0x24] sm:$0xf]
      %v4011 = vld [vmem:[%s4000 + $0x28] sm:$0xf]
      %v4012 = vld [vmem:[%s4000 + $0x2c] sm:$0xf]
      %v4013 = vld [vmem:[%s4000 + $0x30] sm:$0xf]
      %v4014 = vld [vmem:[%s4000 + $0x34] sm:$0xf]
      %v4015 = vld [vmem:[%s4000 + $0x38] sm:$0xf]
      %v4016 = vld [vmem:[%s4000 + $0x3c] sm:$0xf]
      %v4049 = vunpack.c.l.b16 %v3936
      %v4050 = vunpack.c.l.b16 %v3937
      %v4051 = vunpack.c.l.b16 %v3938
      %v4052 = vunpack.c.l.b16 %v3939
      %v4053 = vunpack.c.l.b16 %v3940
      %v4054 = vunpack.c.l.b16 %v3941
      %v4055 = vunpack.c.l.b16 %v3942
      %v4056 = vunpack.c.l.b16 %v3943
      %v4057 = vunpack.c.l.b16 %v3944
      %v4058 = vunpack.c.l.b16 %v3945
      %v4059 = vunpack.c.l.b16 %v3946
      %v4060 = vunpack.c.l.b16 %v3947
      %v4061 = vunpack.c.l.b16 %v3948
      %v4062 = vunpack.c.l.b16 %v3949
      %v4063 = vunpack.c.l.b16 %v3950
      %v4064 = vunpack.c.l.b16 %v3951
      %v4065 = vunpack.c.l.b16 %v3952
      %v4066 = vunpack.c.l.b16 %v3953
      %v4067 = vunpack.c.l.b16 %v3954
      %v4068 = vunpack.c.l.b16 %v3955
      %v4069 = vunpack.c.l.b16 %v3956
      %v4070 = vunpack.c.l.b16 %v3957
      %v4071 = vunpack.c.l.b16 %v3958
      %v4072 = vunpack.c.l.b16 %v3959
      %v4073 = vunpack.c.l.b16 %v3960
      %v4074 = vunpack.c.l.b16 %v3961
      %v4075 = vunpack.c.l.b16 %v3962
      %v4076 = vunpack.c.l.b16 %v3963
      %v4077 = vunpack.c.l.b16 %v3964
      %v4078 = vunpack.c.l.b16 %v3965
      %v4079 = vunpack.c.l.b16 %v3966
      %v4080 = vunpack.c.l.b16 %v3967
      %v4081 = vpack.c.b16 %v4050, %v4049
      %v4082 = vpack.c.b16 %v4052, %v4051
      %v4083 = vpack.c.b16 %v4054, %v4053
      %v4084 = vpack.c.b16 %v4056, %v4055
      %v4085 = vpack.c.b16 %v4058, %v4057
      %v4086 = vpack.c.b16 %v4060, %v4059
      %v4087 = vpack.c.b16 %v4062, %v4061
      %v4088 = vpack.c.b16 %v4064, %v4063
      %v4089 = vpack.c.b16 %v4066, %v4065
      %v4090 = vpack.c.b16 %v4068, %v4067
      %v4091 = vpack.c.b16 %v4070, %v4069
      %v4092 = vpack.c.b16 %v4072, %v4071
      %v4093 = vpack.c.b16 %v4074, %v4073
      %v4094 = vpack.c.b16 %v4076, %v4075
      %v4095 = vpack.c.b16 %v4078, %v4077
      %v4096 = vpack.c.b16 %v4080, %v4079
      %v4129 = vunpack.c.l.b16 %v4001
      %v4130 = vunpack.c.l.b16 %v4002
      %v4131 = vunpack.c.l.b16 %v4003
      %v4132 = vunpack.c.l.b16 %v4004
      %v4133 = vunpack.c.l.b16 %v4005
      %v4134 = vunpack.c.l.b16 %v4006
      %v4135 = vunpack.c.l.b16 %v4007
      %v4136 = vunpack.c.l.b16 %v4008
      %v4137 = vunpack.c.l.b16 %v4009
      %v4138 = vunpack.c.l.b16 %v4010
      %v4139 = vunpack.c.l.b16 %v4011
      %v4140 = vunpack.c.l.b16 %v4012
      %v4141 = vunpack.c.l.b16 %v4013
      %v4142 = vunpack.c.l.b16 %v4014
      %v4143 = vunpack.c.l.b16 %v4015
      %v4144 = vunpack.c.l.b16 %v4016
      %v4145 = vpack.c.b16 %v4130, %v4129
      %v4146 = vpack.c.b16 %v4132, %v4131
      %v4147 = vpack.c.b16 %v4134, %v4133
      %v4148 = vpack.c.b16 %v4136, %v4135
      %v4149 = vpack.c.b16 %v4138, %v4137
      %v4150 = vpack.c.b16 %v4140, %v4139
      %v4151 = vpack.c.b16 %v4142, %v4141
      %v4152 = vpack.c.b16 %v4144, %v4143
      %4161 = vmatprep.subr.bf16.mxu0 0
      %4162 = vmatpush1.bf16.msra.mxu0 %v4145
      %4163 = vmatprep.subr.bf16.mxu0 0
      %4164 = vmatpush1.bf16.msra.mxu0 %v4146
      %4165 = vmatprep.subr.bf16.mxu0 0
      %4166 = vmatpush1.bf16.msra.mxu0 %v4147
      %4167 = vmatprep.subr.bf16.mxu0 0
      %4168 = vmatpush1.bf16.msra.mxu0 %v4148
      %4169 = vmatprep.subr.bf16.mxu0 0
      %4170 = vmatpush1.bf16.msra.mxu0 %v4149
      %4171 = vmatprep.subr.bf16.mxu0 0
      %4172 = vmatpush1.bf16.msra.mxu0 %v4150
      %4173 = vmatprep.subr.bf16.mxu0 0
      %4174 = vmatpush1.bf16.msra.mxu0 %v4151
      %4175 = vmatprep.subr.bf16.mxu0 0
      %4176 = vmatpush1.bf16.msra.mxu0 %v4152
      %4177 = vmatprep.subr.bf16.mxu0 0
      %4178 = vmatpush1.bf16.msra.mxu0 0
      %4179 = vmatprep.subr.bf16.mxu0 0
      %4180 = vmatpush1.bf16.msra.mxu0 0
      %4181 = vmatprep.subr.bf16.mxu0 0
      %4182 = vmatpush1.bf16.msra.mxu0 0
      %4183 = vmatprep.subr.bf16.mxu0 0
      %4184 = vmatpush1.bf16.msra.mxu0 0
      %4185 = vmatprep.subr.bf16.mxu0 0
      %4186 = vmatpush1.bf16.msra.mxu0 0
      %4187 = vmatprep.subr.bf16.mxu0 0
      %4188 = vmatpush1.bf16.msra.mxu0 0
      %4189 = vmatprep.subr.bf16.mxu0 0
      %4190 = vmatpush1.bf16.msra.mxu0 0
      %4191 = vmatprep.subr.bf16.mxu0 0
      %4192 = vmatpush1.bf16.msra.mxu0 0
      %4193 = vmatprep.mubr.bf16.mxu0 0
      %4194 = vmatmul.mubr.bf16.gmra.mrb[0].mxu0 %v4081
      %v4195 = vpop.f32.mrb[0].mxu0
      %v4196 = vadd.f32 0.0, %v4195
      %v4197 = vpop.f32.mrb[0].mxu0
      %v4198 = vpop.f32.mrb[0].mxu0
      %v4199 = vadd.f32 0.0, %v4198
      %v4200 = vpop.f32.mrb[0].mxu0
      %4201 = vmatprep.mubr.bf16.mxu0 0
      %4202 = vmatmul.mubr.bf16.gmra.mrb[0].mxu0 %v4082
      %v4203 = vpop.f32.mrb[0].mxu0
      %v4204 = vadd.f32 0.0, %v4203
      %v4205 = vpop.f32.mrb[0].mxu0
      %v4206 = vpop.f32.mrb[0].mxu0
      %v4207 = vadd.f32 0.0, %v4206
      %v4208 = vpop.f32.mrb[0].mxu0
      %4209 = vmatprep.mubr.bf16.mxu0 0
      %4210 = vmatmul.mubr.bf16.gmra.mrb[0].mxu0 %v4083
      %v4211 = vpop.f32.mrb[0].mxu0
      %v4212 = vadd.f32 0.0, %v4211
      %v4213 = vpop.f32.mrb[0].mxu0
      %v4214 = vpop.f32.mrb[0].mxu0
      %v4215 = vadd.f32 0.0, %v4214
      %v4216 = vpop.f32.mrb[0].mxu0
      %4217 = vmatprep.mubr.bf16.mxu0 0
      %4218 = vmatmul.mubr.bf16.gmra.mrb[0].mxu0 %v4084
      %v4219 = vpop.f32.mrb[0].mxu0
      %v4220 = vadd.f32 0.0, %v4219
      %v4221 = vpop.f32.mrb[0].mxu0
      %v4222 = vpop.f32.mrb[0].mxu0
      %v4223 = vadd.f32 0.0, %v4222
      %v4224 = vpop.f32.mrb[0].mxu0
      %4225 = vmatprep.mubr.bf16.mxu0 0
      %4226 = vmatmul.mubr.bf16.gmra.mrb[0].mxu0 %v4085
      %v4227 = vpop.f32.mrb[0].mxu0
      %v4228 = vadd.f32 0.0, %v4227
      %v4229 = vpop.f32.mrb[0].mxu0
      %v4230 = vpop.f32.mrb[0].mxu0
      %v4231 = vadd.f32 0.0, %v4230
      %v4232 = vpop.f32.mrb[0].mxu0
      %4233 = vmatprep.mubr.bf16.mxu0 0
      %4234 = vmatmul.mubr.bf16.gmra.mrb[0].mxu0 %v4086
      %v4235 = vpop.f32.mrb[0].mxu0
      %v4236 = vadd.f32 0.0, %v4235
      %v4237 = vpop.f32.mrb[0].mxu0
      %v4238 = vpop.f32.mrb[0].mxu0
      %v4239 = vadd.f32 0.0, %v4238
      %v4240 = vpop.f32.mrb[0].mxu0
      %4241 = vmatprep.mubr.bf16.mxu0 0
      %4242 = vmatmul.mubr.bf16.gmra.mrb[0].mxu0 %v4087
      %v4243 = vpop.f32.mrb[0].mxu0
      %v4244 = vadd.f32 0.0, %v4243
      %v4245 = vpop.f32.mrb[0].mxu0
      %v4246 = vpop.f32.mrb[0].mxu0
      %v4247 = vadd.f32 0.0, %v4246
      %v4248 = vpop.f32.mrb[0].mxu0
      %4249 = vmatprep.mubr.bf16.mxu0 0
      %4250 = vmatmul.mubr.bf16.gmra.mrb[0].mxu0 %v4088
      %v4251 = vpop.f32.mrb[0].mxu0
      %v4252 = vadd.f32 0.0, %v4251
      %v4253 = vpop.f32.mrb[0].mxu0
      %v4254 = vpop.f32.mrb[0].mxu0
      %v4255 = vadd.f32 0.0, %v4254
      %v4256 = vpop.f32.mrb[0].mxu0
      %4257 = vmatprep.mubr.bf16.mxu0 0
      %4258 = vmatmul.mubr.bf16.gmra.mrb[0].mxu0 %v4089
      %v4259 = vpop.f32.mrb[0].mxu0
      %v4260 = vadd.f32 0.0, %v4259
      %v4261 = vpop.f32.mrb[0].mxu0
      %v4262 = vpop.f32.mrb[0].mxu0
      %v4263 = vadd.f32 0.0, %v4262
      %v4264 = vpop.f32.mrb[0].mxu0
      %4265 = vmatprep.mubr.bf16.mxu0 0
      %4266 = vmatmul.mubr.bf16.gmra.mrb[0].mxu0 %v4090
      %v4267 = vpop.f32.mrb[0].mxu0
      %v4268 = vadd.f32 0.0, %v4267
      %v4269 = vpop.f32.mrb[0].mxu0
      %v4270 = vpop.f32.mrb[0].mxu0
      %v4271 = vadd.f32 0.0, %v4270
      %v4272 = vpop.f32.mrb[0].mxu0
      %4273 = vmatprep.mubr.bf16.mxu0 0
      %4274 = vmatmul.mubr.bf16.gmra.mrb[0].mxu0 %v4091
      %v4275 = vpop.f32.mrb[0].mxu0
      %v4276 = vadd.f32 0.0, %v4275
      %v4277 = vpop.f32.mrb[0].mxu0
      %v4278 = vpop.f32.mrb[0].mxu0
      %v4279 = vadd.f32 0.0, %v4278
      %v4280 = vpop.f32.mrb[0].mxu0
      %4281 = vmatprep.mubr.bf16.mxu0 0
      %4282 = vmatmul.mubr.bf16.gmra.mrb[0].mxu0 %v4092
      %v4283 = vpop.f32.mrb[0].mxu0
      %v4284 = vadd.f32 0.0, %v4283
      %v4285 = vpop.f32.mrb[0].mxu0
      %v4286 = vpop.f32.mrb[0].mxu0
      %v4287 = vadd.f32 0.0, %v4286
      %v4288 = vpop.f32.mrb[0].mxu0
      %4289 = vmatprep.mubr.bf16.mxu0 0
      %4290 = vmatmul.mubr.bf16.gmra.mrb[0].mxu0 %v4093
      %v4291 = vpop.f32.mrb[0].mxu0
      %v4292 = vadd.f32 0.0, %v4291
      %v4293 = vpop.f32.mrb[0].mxu0
      %v4294 = vpop.f32.mrb[0].mxu0
      %v4295 = vadd.f32 0.0, %v4294
      %v4296 = vpop.f32.mrb[0].mxu0
      %4297 = vmatprep.mubr.bf16.mxu0 0
      %4298 = vmatmul.mubr.bf16.gmra.mrb[0].mxu0 %v4094
      %v4299 = vpop.f32.mrb[0].mxu0
      %v4300 = vadd.f32 0.0, %v4299
      %v4301 = vpop.f32.mrb[0].mxu0
      %v4302 = vpop.f32.mrb[0].mxu0
      %v4303 = vadd.f32 0.0, %v4302
      %v4304 = vpop.f32.mrb[0].mxu0
      %4305 = vmatprep.mubr.bf16.mxu0 0
      %4306 = vmatmul.mubr.bf16.gmra.mrb[0].mxu0 %v4095
      %v4307 = vpop.f32.mrb[0].mxu0
      %v4308 = vadd.f32 0.0, %v4307
      %v4309 = vpop.f32.mrb[0].mxu0
      %v4310 = vpop.f32.mrb[0].mxu0
      %v4311 = vadd.f32 0.0, %v4310
      %v4312 = vpop.f32.mrb[0].mxu0
      %4313 = vmatprep.mubr.bf16.mxu0 0
      %4314 = vmatmul.mubr.bf16.gmra.mrb[0].mxu0 %v4096
      %v4315 = vpop.f32.mrb[0].mxu0
      %v4316 = vadd.f32 0.0, %v4315
      %v4317 = vpop.f32.mrb[0].mxu0
      %v4318 = vpop.f32.mrb[0].mxu0
      %v4319 = vadd.f32 0.0, %v4318
      %v4320 = vpop.f32.mrb[0].mxu0
      %4321 = vdwg.mxu0
      %v4322 = vadd.f32 %v3968, %v4196
      %v4323 = vadd.f32 %v3969, %v4199
      %v4324 = vadd.f32 %v3970, %v4204
      %v4325 = vadd.f32 %v3971, %v4207
      %v4326 = vadd.f32 %v3972, %v4212
      %v4327 = vadd.f32 %v3973, %v4215
      %v4328 = vadd.f32 %v3974, %v4220
      %v4329 = vadd.f32 %v3975, %v4223
      %v4330 = vadd.f32 %v3976, %v4228
      %v4331 = vadd.f32 %v3977, %v4231
      %v4332 = vadd.f32 %v3978, %v4236
      %v4333 = vadd.f32 %v3979, %v4239
      %v4334 = vadd.f32 %v3980, %v4244
      %v4335 = vadd.f32 %v3981, %v4247
      %v4336 = vadd.f32 %v3982, %v4252
      %v4337 = vadd.f32 %v3983, %v4255
      %v4338 = vadd.f32 %v3984, %v4260
      %v4339 = vadd.f32 %v3985, %v4263
      %v4340 = vadd.f32 %v3986, %v4268
      %v4341 = vadd.f32 %v3987, %v4271
      %v4342 = vadd.f32 %v3988, %v4276
      %v4343 = vadd.f32 %v3989, %v4279
      %v4344 = vadd.f32 %v3990, %v4284
      %v4345 = vadd.f32 %v3991, %v4287
      %v4346 = vadd.f32 %v3992, %v4292
      %v4347 = vadd.f32 %v3993, %v4295
      %v4348 = vadd.f32 %v3994, %v4300
      %v4349 = vadd.f32 %v3995, %v4303
      %v4350 = vadd.f32 %v3996, %v4308
      %v4351 = vadd.f32 %v3997, %v4311
      %v4352 = vadd.f32 %v3998, %v4316
      %v4353 = vadd.f32 %v3999, %v4319
      %4354 = vst [vmem:[#allocation2] sm:$0xff] %v4322
      %4355 = vst [vmem:[#allocation2 + $0x8] sm:$0xff] %v4323
      %4356 = vst [vmem:[#allocation2 + $0x10] sm:$0xff] %v4324
      %4357 = vst [vmem:[#allocation2 + $0x18] sm:$0xff] %v4325
      %4358 = vst [vmem:[#allocation2 + $0x20] sm:$0xff] %v4326
      %4359 = vst [vmem:[#allocation2 + $0x28] sm:$0xff] %v4327
      %4360 = vst [vmem:[#allocation2 + $0x30] sm:$0xff] %v4328
      %4361 = vst [vmem:[#allocation2 + $0x38] sm:$0xff] %v4329
      %4362 = vst [vmem:[#allocation2 + $0x40] sm:$0xff] %v4330
      %4363 = vst [vmem:[#allocation2 + $0x48] sm:$0xff] %v4331
      %4364 = vst [vmem:[#allocation2 + $0x50] sm:$0xff] %v4332
      %4365 = vst [vmem:[#allocation2 + $0x58] sm:$0xff] %v4333
      %4366 = vst [vmem:[#allocation2 + $0x60] sm:$0xff] %v4334
      %4367 = vst [vmem:[#allocation2 + $0x68] sm:$0xff] %v4335
      %4368 = vst [vmem:[#allocation2 + $0x70] sm:$0xff] %v4336
      %4369 = vst [vmem:[#allocation2 + $0x78] sm:$0xff] %v4337
      %4370 = vst [vmem:[#allocation2 + $0x80] sm:$0xff] %v4338
      %4371 = vst [vmem:[#allocation2 + $0x88] sm:$0xff] %v4339
      %4372 = vst [vmem:[#allocation2 + $0x90] sm:$0xff] %v4340
      %4373 = vst [vmem:[#allocation2 + $0x98] sm:$0xff] %v4341
      %4374 = vst [vmem:[#allocation2 + $0xa0] sm:$0xff] %v4342
      %4375 = vst [vmem:[#allocation2 + $0xa8] sm:$0xff] %v4343
      %4376 = vst [vmem:[#allocation2 + $0xb0] sm:$0xff] %v4344
      %4377 = vst [vmem:[#allocation2 + $0xb8] sm:$0xff] %v4345
      %4378 = vst [vmem:[#allocation2 + $0xc0] sm:$0xff] %v4346
      %4379 = vst [vmem:[#allocation2 + $0xc8] sm:$0xff] %v4347
      %4380 = vst [vmem:[#allocation2 + $0xd0] sm:$0xff] %v4348
      %4381 = vst [vmem:[#allocation2 + $0xd8] sm:$0xff] %v4349
      %4382 = vst [vmem:[#allocation2 + $0xe0] sm:$0xff] %v4350
      %4383 = vst [vmem:[#allocation2 + $0xe8] sm:$0xff] %v4351
      %4384 = vst [vmem:[#allocation2 + $0xf0] sm:$0xff] %v4352
      %4385 = vst [vmem:[#allocation2 + $0xf8] sm:$0xff] %v4353
      %v4386 = vld [vmem:[%s3935] sm:$0xf]
      %v4387 = vld [vmem:[%s3935 + $0x4] sm:$0xf]
      %v4388 = vld [vmem:[%s3935 + $0x8] sm:$0x1]
      %v4389 = vld [vmem:[%s3935 + $0xc] sm:$0xf]
      %v4390 = vld [vmem:[%s3935 + $0x10] sm:$0xf]
      %v4391 = vld [vmem:[%s3935 + $0x14] sm:$0x1]
      %v4392 = vld [vmem:[%s3935 + $0x18] sm:$0xf]
      %v4393 = vld [vmem:[%s3935 + $0x1c] sm:$0xf]
      %v4394 = vld [vmem:[%s3935 + $0x20] sm:$0x1]
      %v4395 = vld [vmem:[%s3935 + $0x24] sm:$0xf]
      %v4396 = vld [vmem:[%s3935 + $0x28] sm:$0xf]
      %v4397 = vld [vmem:[%s3935 + $0x2c] sm:$0x1]
      %v4398 = vld [vmem:[%s3935 + $0x30] sm:$0xf]
      %v4399 = vld [vmem:[%s3935 + $0x34] sm:$0xf]
      %v4400 = vld [vmem:[%s3935 + $0x38] sm:$0x1]
      %v4401 = vld [vmem:[%s3935 + $0x3c] sm:$0xf]
      %v4402 = vld [vmem:[%s3935 + $0x40] sm:$0xf]
      %v4403 = vld [vmem:[%s3935 + $0x44] sm:$0x1]
      %v4404 = vld [vmem:[%s3935 + $0x48] sm:$0xf]
      %v4405 = vld [vmem:[%s3935 + $0x4c] sm:$0xf]
      %v4406 = vld [vmem:[%s3935 + $0x50] sm:$0x1]
      %v4407 = vld [vmem:[%s3935 + $0x54] sm:$0xf]
      %v4408 = vld [vmem:[%s3935 + $0x58] sm:$0xf]
      %v4409 = vld [vmem:[%s3935 + $0x5c] sm:$0x1]
      %v4410 = vld [vmem:[%s3935 + $0x60] sm:$0xf]
      %v4411 = vld [vmem:[%s3935 + $0x64] sm:$0xf]
      %v4412 = vld [vmem:[%s3935 + $0x68] sm:$0x1]
      %v4413 = vld [vmem:[%s3935 + $0x6c] sm:$0xf]
      %v4414 = vld [vmem:[%s3935 + $0x70] sm:$0xf]
      %v4415 = vld [vmem:[%s3935 + $0x74] sm:$0x1]
      %v4416 = vld [vmem:[%s3935 + $0x78] sm:$0xf]
      %v4417 = vld [vmem:[%s3935 + $0x7c] sm:$0xf]
      %v4418 = vld [vmem:[%s3935 + $0x80] sm:$0x1]
      %v4419 = vld [vmem:[%s3935 + $0x84] sm:$0xf]
      %v4420 = vld [vmem:[%s3935 + $0x88] sm:$0xf]
      %v4421 = vld [vmem:[%s3935 + $0x8c] sm:$0x1]
      %v4422 = vld [vmem:[%s3935 + $0x90] sm:$0xf]
      %v4423 = vld [vmem:[%s3935 + $0x94] sm:$0xf]
      %v4424 = vld [vmem:[%s3935 + $0x98] sm:$0x1]
      %v4425 = vld [vmem:[%s3935 + $0x9c] sm:$0xf]
      %v4426 = vld [vmem:[%s3935 + $0xa0] sm:$0xf]
      %v4427 = vld [vmem:[%s3935 + $0xa4] sm:$0x1]
      %v4428 = vld [vmem:[%s3935 + $0xa8] sm:$0xf]
      %v4429 = vld [vmem:[%s3935 + $0xac] sm:$0xf]
      %v4430 = vld [vmem:[%s3935 + $0xb0] sm:$0x1]
      %v4431 = vld [vmem:[%s3935 + $0xb4] sm:$0xf]
      %v4432 = vld [vmem:[%s3935 + $0xb8] sm:$0xf]
      %v4433 = vld [vmem:[%s3935 + $0xbc] sm:$0x1]
      %v4435 = vshrl.u32 %v4386, 16
      %v4437 = vrot.slane %v4435, 4
      %v4438 = vshll.u32 %v4386, 16
      %v4440 = vrot.slane %v4438, 5
      %v4441 = vor.u32 %v4437, %v4440
      %v4442 = vrot.slane %v4441, 4
      %v4444 = vshll.u32 %v4387, 16
      %v4446 = vrot.slane %v4444, 5
      %v4447 = vsel %vm704, %v4442, %v4446
      %v4448 = vshrl.u32 %v4387, 16
      %v4450 = vrot.slane %v4448, 4
      %v4451 = vor.u32 %v4450, %v4446
      %v4452 = vrot.slane %v4451, 4
      %v4454 = vshll.u32 %v4388, 16
      %v4456 = vrot.slane %v4454, 5
      %v4457 = vsel %vm704, %v4452, %v4456
      %v4459 = vshrl.u32 %v4389, 16
      %v4461 = vrot.slane %v4459, 4
      %v4462 = vshll.u32 %v4389, 16
      %v4464 = vrot.slane %v4462, 5
      %v4465 = vor.u32 %v4461, %v4464
      %v4466 = vrot.slane %v4465, 4
      %v4468 = vshll.u32 %v4390, 16
      %v4470 = vrot.slane %v4468, 5
      %v4471 = vsel %vm704, %v4466, %v4470
      %v4472 = vshrl.u32 %v4390, 16
      %v4474 = vrot.slane %v4472, 4
      %v4475 = vor.u32 %v4474, %v4470
      %v4476 = vrot.slane %v4475, 4
      %v4478 = vshll.u32 %v4391, 16
      %v4480 = vrot.slane %v4478, 5
      %v4481 = vsel %vm704, %v4476, %v4480
      %v4483 = vshrl.u32 %v4392, 16
      %v4485 = vrot.slane %v4483, 4
      %v4486 = vshll.u32 %v4392, 16
      %v4488 = vrot.slane %v4486, 5
      %v4489 = vor.u32 %v4485, %v4488
      %v4490 = vrot.slane %v4489, 4
      %v4492 = vshll.u32 %v4393, 16
      %v4494 = vrot.slane %v4492, 5
      %v4495 = vsel %vm704, %v4490, %v4494
      %v4496 = vshrl.u32 %v4393, 16
      %v4498 = vrot.slane %v4496, 4
      %v4499 = vor.u32 %v4498, %v4494
      %v4500 = vrot.slane %v4499, 4
      %v4502 = vshll.u32 %v4394, 16
      %v4504 = vrot.slane %v4502, 5
      %v4505 = vsel %vm704, %v4500, %v4504
      %v4507 = vshrl.u32 %v4395, 16
      %v4509 = vrot.slane %v4507, 4
      %v4510 = vshll.u32 %v4395, 16
      %v4512 = vrot.slane %v4510, 5
      %v4513 = vor.u32 %v4509, %v4512
      %v4514 = vrot.slane %v4513, 4
      %v4516 = vshll.u32 %v4396, 16
      %v4518 = vrot.slane %v4516, 5
      %v4519 = vsel %vm704, %v4514, %v4518
      %v4520 = vshrl.u32 %v4396, 16
      %v4522 = vrot.slane %v4520, 4
      %v4523 = vor.u32 %v4522, %v4518
      %v4524 = vrot.slane %v4523, 4
      %v4526 = vshll.u32 %v4397, 16
      %v4528 = vrot.slane %v4526, 5
      %v4529 = vsel %vm704, %v4524, %v4528
      %v4531 = vshrl.u32 %v4398, 16
      %v4533 = vrot.slane %v4531, 4
      %v4534 = vshll.u32 %v4398, 16
      %v4536 = vrot.slane %v4534, 5
      %v4537 = vor.u32 %v4533, %v4536
      %v4538 = vrot.slane %v4537, 4
      %v4540 = vshll.u32 %v4399, 16
      %v4542 = vrot.slane %v4540, 5
      %v4543 = vsel %vm704, %v4538, %v4542
      %v4544 = vshrl.u32 %v4399, 16
      %v4546 = vrot.slane %v4544, 4
      %v4547 = vor.u32 %v4546, %v4542
      %v4548 = vrot.slane %v4547, 4
      %v4550 = vshll.u32 %v4400, 16
      %v4552 = vrot.slane %v4550, 5
      %v4553 = vsel %vm704, %v4548, %v4552
      %v4555 = vshrl.u32 %v4401, 16
      %v4557 = vrot.slane %v4555, 4
      %v4558 = vshll.u32 %v4401, 16
      %v4560 = vrot.slane %v4558, 5
      %v4561 = vor.u32 %v4557, %v4560
      %v4562 = vrot.slane %v4561, 4
      %v4564 = vshll.u32 %v4402, 16
      %v4566 = vrot.slane %v4564, 5
      %v4567 = vsel %vm704, %v4562, %v4566
      %v4568 = vshrl.u32 %v4402, 16
      %v4570 = vrot.slane %v4568, 4
      %v4571 = vor.u32 %v4570, %v4566
      %v4572 = vrot.slane %v4571, 4
      %v4574 = vshll.u32 %v4403, 16
      %v4576 = vrot.slane %v4574, 5
      %v4577 = vsel %vm704, %v4572, %v4576
      %v4579 = vshrl.u32 %v4404, 16
      %v4581 = vrot.slane %v4579, 4
      %v4582 = vshll.u32 %v4404, 16
      %v4584 = vrot.slane %v4582, 5
      %v4585 = vor.u32 %v4581, %v4584
      %v4586 = vrot.slane %v4585, 4
      %v4588 = vshll.u32 %v4405, 16
      %v4590 = vrot.slane %v4588, 5
      %v4591 = vsel %vm704, %v4586, %v4590
      %v4592 = vshrl.u32 %v4405, 16
      %v4594 = vrot.slane %v4592, 4
      %v4595 = vor.u32 %v4594, %v4590
      %v4596 = vrot.slane %v4595, 4
      %v4598 = vshll.u32 %v4406, 16
      %v4600 = vrot.slane %v4598, 5
      %v4601 = vsel %vm704, %v4596, %v4600
      %v4603 = vshrl.u32 %v4407, 16
      %v4605 = vrot.slane %v4603, 4
      %v4606 = vshll.u32 %v4407, 16
      %v4608 = vrot.slane %v4606, 5
      %v4609 = vor.u32 %v4605, %v4608
      %v4610 = vrot.slane %v4609, 4
      %v4612 = vshll.u32 %v4408, 16
      %v4614 = vrot.slane %v4612, 5
      %v4615 = vsel %vm704, %v4610, %v4614
      %v4616 = vshrl.u32 %v4408, 16
      %v4618 = vrot.slane %v4616, 4
      %v4619 = vor.u32 %v4618, %v4614
      %v4620 = vrot.slane %v4619, 4
      %v4622 = vshll.u32 %v4409, 16
      %v4624 = vrot.slane %v4622, 5
      %v4625 = vsel %vm704, %v4620, %v4624
      %v4627 = vshrl.u32 %v4410, 16
      %v4629 = vrot.slane %v4627, 4
      %v4630 = vshll.u32 %v4410, 16
      %v4632 = vrot.slane %v4630, 5
      %v4633 = vor.u32 %v4629, %v4632
      %v4634 = vrot.slane %v4633, 4
      %v4636 = vshll.u32 %v4411, 16
      %v4638 = vrot.slane %v4636, 5
      %v4639 = vsel %vm704, %v4634, %v4638
      %v4640 = vshrl.u32 %v4411, 16
      %v4642 = vrot.slane %v4640, 4
      %v4643 = vor.u32 %v4642, %v4638
      %v4644 = vrot.slane %v4643, 4
      %v4646 = vshll.u32 %v4412, 16
      %v4648 = vrot.slane %v4646, 5
      %v4649 = vsel %vm704, %v4644, %v4648
      %v4651 = vshrl.u32 %v4413, 16
      %v4653 = vrot.slane %v4651, 4
      %v4654 = vshll.u32 %v4413, 16
      %v4656 = vrot.slane %v4654, 5
      %v4657 = vor.u32 %v4653, %v4656
      %v4658 = vrot.slane %v4657, 4
      %v4660 = vshll.u32 %v4414, 16
      %v4662 = vrot.slane %v4660, 5
      %v4663 = vsel %vm704, %v4658, %v4662
      %v4664 = vshrl.u32 %v4414, 16
      %v4666 = vrot.slane %v4664, 4
      %v4667 = vor.u32 %v4666, %v4662
      %v4668 = vrot.slane %v4667, 4
      %v4670 = vshll.u32 %v4415, 16
      %v4672 = vrot.slane %v4670, 5
      %v4673 = vsel %vm704, %v4668, %v4672
      %v4675 = vshrl.u32 %v4416, 16
      %v4677 = vrot.slane %v4675, 4
      %v4678 = vshll.u32 %v4416, 16
      %v4680 = vrot.slane %v4678, 5
      %v4681 = vor.u32 %v4677, %v4680
      %v4682 = vrot.slane %v4681, 4
      %v4684 = vshll.u32 %v4417, 16
      %v4686 = vrot.slane %v4684, 5
      %v4687 = vsel %vm704, %v4682, %v4686
      %v4688 = vshrl.u32 %v4417, 16
      %v4690 = vrot.slane %v4688, 4
      %v4691 = vor.u32 %v4690, %v4686
      %v4692 = vrot.slane %v4691, 4
      %v4694 = vshll.u32 %v4418, 16
      %v4696 = vrot.slane %v4694, 5
      %v4697 = vsel %vm704, %v4692, %v4696
      %v4699 = vshrl.u32 %v4419, 16
      %v4701 = vrot.slane %v4699, 4
      %v4702 = vshll.u32 %v4419, 16
      %v4704 = vrot.slane %v4702, 5
      %v4705 = vor.u32 %v4701, %v4704
      %v4706 = vrot.slane %v4705, 4
      %v4708 = vshll.u32 %v4420, 16
      %v4710 = vrot.slane %v4708, 5
      %v4711 = vsel %vm704, %v4706, %v4710
      %v4712 = vshrl.u32 %v4420, 16
      %v4714 = vrot.slane %v4712, 4
      %v4715 = vor.u32 %v4714, %v4710
      %v4716 = vrot.slane %v4715, 4
      %v4718 = vshll.u32 %v4421, 16
      %v4720 = vrot.slane %v4718, 5
      %v4721 = vsel %vm704, %v4716, %v4720
      %v4723 = vshrl.u32 %v4422, 16
      %v4725 = vrot.slane %v4723, 4
      %v4726 = vshll.u32 %v4422, 16
      %v4728 = vrot.slane %v4726, 5
      %v4729 = vor.u32 %v4725, %v4728
      %v4730 = vrot.slane %v4729, 4
      %v4732 = vshll.u32 %v4423, 16
      %v4734 = vrot.slane %v4732, 5
      %v4735 = vsel %vm704, %v4730, %v4734
      %v4736 = vshrl.u32 %v4423, 16
      %v4738 = vrot.slane %v4736, 4
      %v4739 = vor.u32 %v4738, %v4734
      %v4740 = vrot.slane %v4739, 4
      %v4742 = vshll.u32 %v4424, 16
      %v4744 = vrot.slane %v4742, 5
      %v4745 = vsel %vm704, %v4740, %v4744
      %v4747 = vshrl.u32 %v4425, 16
      %v4749 = vrot.slane %v4747, 4
      %v4750 = vshll.u32 %v4425, 16
      %v4752 = vrot.slane %v4750, 5
      %v4753 = vor.u32 %v4749, %v4752
      %v4754 = vrot.slane %v4753, 4
      %v4756 = vshll.u32 %v4426, 16
      %v4758 = vrot.slane %v4756, 5
      %v4759 = vsel %vm704, %v4754, %v4758
      %v4760 = vshrl.u32 %v4426, 16
      %v4762 = vrot.slane %v4760, 4
      %v4763 = vor.u32 %v4762, %v4758
      %v4764 = vrot.slane %v4763, 4
      %v4766 = vshll.u32 %v4427, 16
      %v4768 = vrot.slane %v4766, 5
      %v4769 = vsel %vm704, %v4764, %v4768
      %v4771 = vshrl.u32 %v4428, 16
      %v4773 = vrot.slane %v4771, 4
      %v4774 = vshll.u32 %v4428, 16
      %v4776 = vrot.slane %v4774, 5
      %v4777 = vor.u32 %v4773, %v4776
      %v4778 = vrot.slane %v4777, 4
      %v4780 = vshll.u32 %v4429, 16
      %v4782 = vrot.slane %v4780, 5
      %v4783 = vsel %vm704, %v4778, %v4782
      %v4784 = vshrl.u32 %v4429, 16
      %v4786 = vrot.slane %v4784, 4
      %v4787 = vor.u32 %v4786, %v4782
      %v4788 = vrot.slane %v4787, 4
      %v4790 = vshll.u32 %v4430, 16
      %v4792 = vrot.slane %v4790, 5
      %v4793 = vsel %vm704, %v4788, %v4792
      %v4795 = vshrl.u32 %v4431, 16
      %v4797 = vrot.slane %v4795, 4
      %v4798 = vshll.u32 %v4431, 16
      %v4800 = vrot.slane %v4798, 5
      %v4801 = vor.u32 %v4797, %v4800
      %v4802 = vrot.slane %v4801, 4
      %v4804 = vshll.u32 %v4432, 16
      %v4806 = vrot.slane %v4804, 5
      %v4807 = vsel %vm704, %v4802, %v4806
      %v4808 = vshrl.u32 %v4432, 16
      %v4810 = vrot.slane %v4808, 4
      %v4811 = vor.u32 %v4810, %v4806
      %v4812 = vrot.slane %v4811, 4
      %v4814 = vshll.u32 %v4433, 16
      %v4816 = vrot.slane %v4814, 5
      %v4817 = vsel %vm704, %v4812, %v4816
      %v4818 = vld [vmem:[#allocation2] sm:$0xff]
      %v4819 = vld [vmem:[#allocation2 + $0x8] sm:$0xff]
      %v4820 = vld [vmem:[#allocation2 + $0x10] sm:$0xff]
      %v4821 = vld [vmem:[#allocation2 + $0x18] sm:$0xff]
      %v4822 = vld [vmem:[#allocation2 + $0x20] sm:$0xff]
      %v4823 = vld [vmem:[#allocation2 + $0x28] sm:$0xff]
      %v4824 = vld [vmem:[#allocation2 + $0x30] sm:$0xff]
      %v4825 = vld [vmem:[#allocation2 + $0x38] sm:$0xff]
      %v4826 = vld [vmem:[#allocation2 + $0x40] sm:$0xff]
      %v4827 = vld [vmem:[#allocation2 + $0x48] sm:$0xff]
      %v4828 = vld [vmem:[#allocation2 + $0x50] sm:$0xff]
      %v4829 = vld [vmem:[#allocation2 + $0x58] sm:$0xff]
      %v4830 = vld [vmem:[#allocation2 + $0x60] sm:$0xff]
      %v4831 = vld [vmem:[#allocation2 + $0x68] sm:$0xff]
      %v4832 = vld [vmem:[#allocation2 + $0x70] sm:$0xff]
      %v4833 = vld [vmem:[#allocation2 + $0x78] sm:$0xff]
      %v4834 = vld [vmem:[#allocation2 + $0x80] sm:$0xff]
      %v4835 = vld [vmem:[#allocation2 + $0x88] sm:$0xff]
      %v4836 = vld [vmem:[#allocation2 + $0x90] sm:$0xff]
      %v4837 = vld [vmem:[#allocation2 + $0x98] sm:$0xff]
      %v4838 = vld [vmem:[#allocation2 + $0xa0] sm:$0xff]
      %v4839 = vld [vmem:[#allocation2 + $0xa8] sm:$0xff]
      %v4840 = vld [vmem:[#allocation2 + $0xb0] sm:$0xff]
      %v4841 = vld [vmem:[#allocation2 + $0xb8] sm:$0xff]
      %v4842 = vld [vmem:[#allocation2 + $0xc0] sm:$0xff]
      %v4843 = vld [vmem:[#allocation2 + $0xc8] sm:$0xff]
      %v4844 = vld [vmem:[#allocation2 + $0xd0] sm:$0xff]
      %v4845 = vld [vmem:[#allocation2 + $0xd8] sm:$0xff]
      %v4846 = vld [vmem:[#allocation2 + $0xe0] sm:$0xff]
      %v4847 = vld [vmem:[#allocation2 + $0xe8] sm:$0xff]
      %v4848 = vld [vmem:[#allocation2 + $0xf0] sm:$0xff]
      %v4849 = vld [vmem:[#allocation2 + $0xf8] sm:$0xff]
      %s4850 = scalar_lea.vmem %s1, 448
      %v4851 = vld [vmem:[%s4850] sm:$0xf]
      %v4852 = vld [vmem:[%s4850 + $0x4] sm:$0xf]
      %v4853 = vld [vmem:[%s4850 + $0x8] sm:$0xf]
      %v4854 = vld [vmem:[%s4850 + $0xc] sm:$0xf]
      %v4855 = vld [vmem:[%s4850 + $0x10] sm:$0xf]
      %v4856 = vld [vmem:[%s4850 + $0x14] sm:$0xf]
      %v4857 = vld [vmem:[%s4850 + $0x18] sm:$0xf]
      %v4858 = vld [vmem:[%s4850 + $0x1c] sm:$0xf]
      %v4859 = vld [vmem:[%s4850 + $0x20] sm:$0xf]
      %v4860 = vld [vmem:[%s4850 + $0x24] sm:$0xf]
      %v4861 = vld [vmem:[%s4850 + $0x28] sm:$0xf]
      %v4862 = vld [vmem:[%s4850 + $0x2c] sm:$0xf]
      %v4863 = vld [vmem:[%s4850 + $0x30] sm:$0xf]
      %v4864 = vld [vmem:[%s4850 + $0x34] sm:$0xf]
      %v4865 = vld [vmem:[%s4850 + $0x38] sm:$0xf]
      %v4866 = vld [vmem:[%s4850 + $0x3c] sm:$0xf]
      %v4867 = vunpack.c.l.b16 %v4447
      %v4868 = vunpack.c.l.b16 %v4457
      %v4869 = vunpack.c.l.b16 %v4471
      %v4870 = vunpack.c.l.b16 %v4481
      %v4871 = vunpack.c.l.b16 %v4495
      %v4872 = vunpack.c.l.b16 %v4505
      %v4873 = vunpack.c.l.b16 %v4519
      %v4874 = vunpack.c.l.b16 %v4529
      %v4875 = vunpack.c.l.b16 %v4543
      %v4876 = vunpack.c.l.b16 %v4553
      %v4877 = vunpack.c.l.b16 %v4567
      %v4878 = vunpack.c.l.b16 %v4577
      %v4879 = vunpack.c.l.b16 %v4591
      %v4880 = vunpack.c.l.b16 %v4601
      %v4881 = vunpack.c.l.b16 %v4615
      %v4882 = vunpack.c.l.b16 %v4625
      %v4883 = vunpack.c.l.b16 %v4639
      %v4884 = vunpack.c.l.b16 %v4649
      %v4885 = vunpack.c.l.b16 %v4663
      %v4886 = vunpack.c.l.b16 %v4673
      %v4887 = vunpack.c.l.b16 %v4687
      %v4888 = vunpack.c.l.b16 %v4697
      %v4889 = vunpack.c.l.b16 %v4711
      %v4890 = vunpack.c.l.b16 %v4721
      %v4891 = vunpack.c.l.b16 %v4735
      %v4892 = vunpack.c.l.b16 %v4745
      %v4893 = vunpack.c.l.b16 %v4759
      %v4894 = vunpack.c.l.b16 %v4769
      %v4895 = vunpack.c.l.b16 %v4783
      %v4896 = vunpack.c.l.b16 %v4793
      %v4897 = vunpack.c.l.b16 %v4807
      %v4898 = vunpack.c.l.b16 %v4817
      %v4899 = vpack.c.b16 %v4868, %v4867
      %v4900 = vpack.c.b16 %v4870, %v4869
      %v4901 = vpack.c.b16 %v4872, %v4871
      %v4902 = vpack.c.b16 %v4874, %v4873
      %v4903 = vpack.c.b16 %v4876, %v4875
      %v4904 = vpack.c.b16 %v4878, %v4877
      %v4905 = vpack.c.b16 %v4880, %v4879
      %v4906 = vpack.c.b16 %v4882, %v4881
      %v4907 = vpack.c.b16 %v4884, %v4883
      %v4908 = vpack.c.b16 %v4886, %v4885
      %v4909 = vpack.c.b16 %v4888, %v4887
      %v4910 = vpack.c.b16 %v4890, %v4889
      %v4911 = vpack.c.b16 %v4892, %v4891
      %v4912 = vpack.c.b16 %v4894, %v4893
      %v4913 = vpack.c.b16 %v4896, %v4895
      %v4914 = vpack.c.b16 %v4898, %v4897
      %v4947 = vunpack.c.l.b16 %v4851
      %v4948 = vunpack.c.l.b16 %v4852
      %v4949 = vunpack.c.l.b16 %v4853
      %v4950 = vunpack.c.l.b16 %v4854
      %v4951 = vunpack.c.l.b16 %v4855
      %v4952 = vunpack.c.l.b16 %v4856
      %v4953 = vunpack.c.l.b16 %v4857
      %v4954 = vunpack.c.l.b16 %v4858
      %v4955 = vunpack.c.l.b16 %v4859
      %v4956 = vunpack.c.l.b16 %v4860
      %v4957 = vunpack.c.l.b16 %v4861
      %v4958 = vunpack.c.l.b16 %v4862
      %v4959 = vunpack.c.l.b16 %v4863
      %v4960 = vunpack.c.l.b16 %v4864
      %v4961 = vunpack.c.l.b16 %v4865
      %v4962 = vunpack.c.l.b16 %v4866
      %v4963 = vpack.c.b16 %v4948, %v4947
      %v4964 = vpack.c.b16 %v4950, %v4949
      %v4965 = vpack.c.b16 %v4952, %v4951
      %v4966 = vpack.c.b16 %v4954, %v4953
      %v4967 = vpack.c.b16 %v4956, %v4955
      %v4968 = vpack.c.b16 %v4958, %v4957
      %v4969 = vpack.c.b16 %v4960, %v4959
      %v4970 = vpack.c.b16 %v4962, %v4961
      %4979 = vmatprep.subr.bf16.mxu0 0
      %4980 = vmatpush1.bf16.msra.mxu0 %v4963
      %4981 = vmatprep.subr.bf16.mxu0 0
      %4982 = vmatpush1.bf16.msra.mxu0 %v4964
      %4983 = vmatprep.subr.bf16.mxu0 0
      %4984 = vmatpush1.bf16.msra.mxu0 %v4965
      %4985 = vmatprep.subr.bf16.mxu0 0
      %4986 = vmatpush1.bf16.msra.mxu0 %v4966
      %4987 = vmatprep.subr.bf16.mxu0 0
      %4988 = vmatpush1.bf16.msra.mxu0 %v4967
      %4989 = vmatprep.subr.bf16.mxu0 0
      %4990 = vmatpush1.bf16.msra.mxu0 %v4968
      %4991 = vmatprep.subr.bf16.mxu0 0
      %4992 = vmatpush1.bf16.msra.mxu0 %v4969
      %4993 = vmatprep.subr.bf16.mxu0 0
      %4994 = vmatpush1.bf16.msra.mxu0 %v4970
      %4995 = vmatprep.subr.bf16.mxu0 0
      %4996 = vmatpush1.bf16.msra.mxu0 0
      %4997 = vmatprep.subr.bf16.mxu0 0
      %4998 = vmatpush1.bf16.msra.mxu0 0
      %4999 = vmatprep.subr.bf16.mxu0 0
      %5000 = vmatpush1.bf16.msra.mxu0 0
      %5001 = vmatprep.subr.bf16.mxu0 0
      %5002 = vmatpush1.bf16.msra.mxu0 0
      %5003 = vmatprep.subr.bf16.mxu0 0
      %5004 = vmatpush1.bf16.msra.mxu0 0
      %5005 = vmatprep.subr.bf16.mxu0 0
      %5006 = vmatpush1.bf16.msra.mxu0 0
      %5007 = vmatprep.subr.bf16.mxu0 0
      %5008 = vmatpush1.bf16.msra.mxu0 0
      %5009 = vmatprep.subr.bf16.mxu0 0
      %5010 = vmatpush1.bf16.msra.mxu0 0
      %5011 = vmatprep.mubr.bf16.mxu0 0
      %5012 = vmatmul.mubr.bf16.gmra.mrb[0].mxu0 %v4899
      %v5013 = vpop.f32.mrb[0].mxu0
      %v5014 = vadd.f32 0.0, %v5013
      %v5015 = vpop.f32.mrb[0].mxu0
      %v5016 = vpop.f32.mrb[0].mxu0
      %v5017 = vadd.f32 0.0, %v5016
      %v5018 = vpop.f32.mrb[0].mxu0
      %5019 = vmatprep.mubr.bf16.mxu0 0
      %5020 = vmatmul.mubr.bf16.gmra.mrb[0].mxu0 %v4900
      %v5021 = vpop.f32.mrb[0].mxu0
      %v5022 = vadd.f32 0.0, %v5021
      %v5023 = vpop.f32.mrb[0].mxu0
      %v5024 = vpop.f32.mrb[0].mxu0
      %v5025 = vadd.f32 0.0, %v5024
      %v5026 = vpop.f32.mrb[0].mxu0
      %5027 = vmatprep.mubr.bf16.mxu0 0
      %5028 = vmatmul.mubr.bf16.gmra.mrb[0].mxu0 %v4901
      %v5029 = vpop.f32.mrb[0].mxu0
      %v5030 = vadd.f32 0.0, %v5029
      %v5031 = vpop.f32.mrb[0].mxu0
      %v5032 = vpop.f32.mrb[0].mxu0
      %v5033 = vadd.f32 0.0, %v5032
      %v5034 = vpop.f32.mrb[0].mxu0
      %5035 = vmatprep.mubr.bf16.mxu0 0
      %5036 = vmatmul.mubr.bf16.gmra.mrb[0].mxu0 %v4902
      %v5037 = vpop.f32.mrb[0].mxu0
      %v5038 = vadd.f32 0.0, %v5037
      %v5039 = vpop.f32.mrb[0].mxu0
      %v5040 = vpop.f32.mrb[0].mxu0
      %v5041 = vadd.f32 0.0, %v5040
      %v5042 = vpop.f32.mrb[0].mxu0
      %5043 = vmatprep.mubr.bf16.mxu0 0
      %5044 = vmatmul.mubr.bf16.gmra.mrb[0].mxu0 %v4903
      %v5045 = vpop.f32.mrb[0].mxu0
      %v5046 = vadd.f32 0.0, %v5045
      %v5047 = vpop.f32.mrb[0].mxu0
      %v5048 = vpop.f32.mrb[0].mxu0
      %v5049 = vadd.f32 0.0, %v5048
      %v5050 = vpop.f32.mrb[0].mxu0
      %5051 = vmatprep.mubr.bf16.mxu0 0
      %5052 = vmatmul.mubr.bf16.gmra.mrb[0].mxu0 %v4904
      %v5053 = vpop.f32.mrb[0].mxu0
      %v5054 = vadd.f32 0.0, %v5053
      %v5055 = vpop.f32.mrb[0].mxu0
      %v5056 = vpop.f32.mrb[0].mxu0
      %v5057 = vadd.f32 0.0, %v5056
      %v5058 = vpop.f32.mrb[0].mxu0
      %5059 = vmatprep.mubr.bf16.mxu0 0
      %5060 = vmatmul.mubr.bf16.gmra.mrb[0].mxu0 %v4905
      %v5061 = vpop.f32.mrb[0].mxu0
      %v5062 = vadd.f32 0.0, %v5061
      %v5063 = vpop.f32.mrb[0].mxu0
      %v5064 = vpop.f32.mrb[0].mxu0
      %v5065 = vadd.f32 0.0, %v5064
      %v5066 = vpop.f32.mrb[0].mxu0
      %5067 = vmatprep.mubr.bf16.mxu0 0
      %5068 = vmatmul.mubr.bf16.gmra.mrb[0].mxu0 %v4906
      %v5069 = vpop.f32.mrb[0].mxu0
      %v5070 = vadd.f32 0.0, %v5069
      %v5071 = vpop.f32.mrb[0].mxu0
      %v5072 = vpop.f32.mrb[0].mxu0
      %v5073 = vadd.f32 0.0, %v5072
      %v5074 = vpop.f32.mrb[0].mxu0
      %5075 = vmatprep.mubr.bf16.mxu0 0
      %5076 = vmatmul.mubr.bf16.gmra.mrb[0].mxu0 %v4907
      %v5077 = vpop.f32.mrb[0].mxu0
      %v5078 = vadd.f32 0.0, %v5077
      %v5079 = vpop.f32.mrb[0].mxu0
      %v5080 = vpop.f32.mrb[0].mxu0
      %v5081 = vadd.f32 0.0, %v5080
      %v5082 = vpop.f32.mrb[0].mxu0
      %5083 = vmatprep.mubr.bf16.mxu0 0
      %5084 = vmatmul.mubr.bf16.gmra.mrb[0].mxu0 %v4908
      %v5085 = vpop.f32.mrb[0].mxu0
      %v5086 = vadd.f32 0.0, %v5085
      %v5087 = vpop.f32.mrb[0].mxu0
      %v5088 = vpop.f32.mrb[0].mxu0
      %v5089 = vadd.f32 0.0, %v5088
      %v5090 = vpop.f32.mrb[0].mxu0
      %5091 = vmatprep.mubr.bf16.mxu0 0
      %5092 = vmatmul.mubr.bf16.gmra.mrb[0].mxu0 %v4909
      %v5093 = vpop.f32.mrb[0].mxu0
      %v5094 = vadd.f32 0.0, %v5093
      %v5095 = vpop.f32.mrb[0].mxu0
      %v5096 = vpop.f32.mrb[0].mxu0
      %v5097 = vadd.f32 0.0, %v5096
      %v5098 = vpop.f32.mrb[0].mxu0
      %5099 = vmatprep.mubr.bf16.mxu0 0
      %5100 = vmatmul.mubr.bf16.gmra.mrb[0].mxu0 %v4910
      %v5101 = vpop.f32.mrb[0].mxu0
      %v5102 = vadd.f32 0.0, %v5101
      %v5103 = vpop.f32.mrb[0].mxu0
      %v5104 = vpop.f32.mrb[0].mxu0
      %v5105 = vadd.f32 0.0, %v5104
      %v5106 = vpop.f32.mrb[0].mxu0
      %5107 = vmatprep.mubr.bf16.mxu0 0
      %5108 = vmatmul.mubr.bf16.gmra.mrb[0].mxu0 %v4911
      %v5109 = vpop.f32.mrb[0].mxu0
      %v5110 = vadd.f32 0.0, %v5109
      %v5111 = vpop.f32.mrb[0].mxu0
      %v5112 = vpop.f32.mrb[0].mxu0
      %v5113 = vadd.f32 0.0, %v5112
      %v5114 = vpop.f32.mrb[0].mxu0
      %5115 = vmatprep.mubr.bf16.mxu0 0
      %5116 = vmatmul.mubr.bf16.gmra.mrb[0].mxu0 %v4912
      %v5117 = vpop.f32.mrb[0].mxu0
      %v5118 = vadd.f32 0.0, %v5117
      %v5119 = vpop.f32.mrb[0].mxu0
      %v5120 = vpop.f32.mrb[0].mxu0
      %v5121 = vadd.f32 0.0, %v5120
      %v5122 = vpop.f32.mrb[0].mxu0
      %5123 = vmatprep.mubr.bf16.mxu0 0
      %5124 = vmatmul.mubr.bf16.gmra.mrb[0].mxu0 %v4913
      %v5125 = vpop.f32.mrb[0].mxu0
      %v5126 = vadd.f32 0.0, %v5125
      %v5127 = vpop.f32.mrb[0].mxu0
      %v5128 = vpop.f32.mrb[0].mxu0
      %v5129 = vadd.f32 0.0, %v5128
      %v5130 = vpop.f32.mrb[0].mxu0
      %5131 = vmatprep.mubr.bf16.mxu0 0
      %5132 = vmatmul.mubr.bf16.gmra.mrb[0].mxu0 %v4914
      %v5133 = vpop.f32.mrb[0].mxu0
      %v5134 = vadd.f32 0.0, %v5133
      %v5135 = vpop.f32.mrb[0].mxu0
      %v5136 = vpop.f32.mrb[0].mxu0
      %v5137 = vadd.f32 0.0, %v5136
      %v5138 = vpop.f32.mrb[0].mxu0
      %5139 = vdwg.mxu0
      %v5140 = vadd.f32 %v4818, %v5014
      %v5141 = vadd.f32 %v4819, %v5017
      %v5142 = vadd.f32 %v4820, %v5022
      %v5143 = vadd.f32 %v4821, %v5025
      %v5144 = vadd.f32 %v4822, %v5030
      %v5145 = vadd.f32 %v4823, %v5033
      %v5146 = vadd.f32 %v4824, %v5038
      %v5147 = vadd.f32 %v4825, %v5041
      %v5148 = vadd.f32 %v4826, %v5046
      %v5149 = vadd.f32 %v4827, %v5049
      %v5150 = vadd.f32 %v4828, %v5054
      %v5151 = vadd.f32 %v4829, %v5057
      %v5152 = vadd.f32 %v4830, %v5062
      %v5153 = vadd.f32 %v4831, %v5065
      %v5154 = vadd.f32 %v4832, %v5070
      %v5155 = vadd.f32 %v4833, %v5073
      %v5156 = vadd.f32 %v4834, %v5078
      %v5157 = vadd.f32 %v4835, %v5081
      %v5158 = vadd.f32 %v4836, %v5086
      %v5159 = vadd.f32 %v4837, %v5089
      %v5160 = vadd.f32 %v4838, %v5094
      %v5161 = vadd.f32 %v4839, %v5097
      %v5162 = vadd.f32 %v4840, %v5102
      %v5163 = vadd.f32 %v4841, %v5105
      %v5164 = vadd.f32 %v4842, %v5110
      %v5165 = vadd.f32 %v4843, %v5113
      %v5166 = vadd.f32 %v4844, %v5118
      %v5167 = vadd.f32 %v4845, %v5121
      %v5168 = vadd.f32 %v4846, %v5126
      %v5169 = vadd.f32 %v4847, %v5129
      %v5170 = vadd.f32 %v4848, %v5134
      %v5171 = vadd.f32 %v4849, %v5137
      %5172 = vst [vmem:[#allocation2] sm:$0xff] %v5140
      %5173 = vst [vmem:[#allocation2 + $0x8] sm:$0xff] %v5141
      %5174 = vst [vmem:[#allocation2 + $0x10] sm:$0xff] %v5142
      %5175 = vst [vmem:[#allocation2 + $0x18] sm:$0xff] %v5143
      %5176 = vst [vmem:[#allocation2 + $0x20] sm:$0xff] %v5144
      %5177 = vst [vmem:[#allocation2 + $0x28] sm:$0xff] %v5145
      %5178 = vst [vmem:[#allocation2 + $0x30] sm:$0xff] %v5146
      %5179 = vst [vmem:[#allocation2 + $0x38] sm:$0xff] %v5147
      %5180 = vst [vmem:[#allocation2 + $0x40] sm:$0xff] %v5148
      %5181 = vst [vmem:[#allocation2 + $0x48] sm:$0xff] %v5149
      %5182 = vst [vmem:[#allocation2 + $0x50] sm:$0xff] %v5150
      %5183 = vst [vmem:[#allocation2 + $0x58] sm:$0xff] %v5151
      %5184 = vst [vmem:[#allocation2 + $0x60] sm:$0xff] %v5152
      %5185 = vst [vmem:[#allocation2 + $0x68] sm:$0xff] %v5153
      %5186 = vst [vmem:[#allocation2 + $0x70] sm:$0xff] %v5154
      %5187 = vst [vmem:[#allocation2 + $0x78] sm:$0xff] %v5155
      %5188 = vst [vmem:[#allocation2 + $0x80] sm:$0xff] %v5156
      %5189 = vst [vmem:[#allocation2 + $0x88] sm:$0xff] %v5157
      %5190 = vst [vmem:[#allocation2 + $0x90] sm:$0xff] %v5158
      %5191 = vst [vmem:[#allocation2 + $0x98] sm:$0xff] %v5159
      %5192 = vst [vmem:[#allocation2 + $0xa0] sm:$0xff] %v5160
      %5193 = vst [vmem:[#allocation2 + $0xa8] sm:$0xff] %v5161
      %5194 = vst [vmem:[#allocation2 + $0xb0] sm:$0xff] %v5162
      %5195 = vst [vmem:[#allocation2 + $0xb8] sm:$0xff] %v5163
      %5196 = vst [vmem:[#allocation2 + $0xc0] sm:$0xff] %v5164
      %5197 = vst [vmem:[#allocation2 + $0xc8] sm:$0xff] %v5165
      %5198 = vst [vmem:[#allocation2 + $0xd0] sm:$0xff] %v5166
      %5199 = vst [vmem:[#allocation2 + $0xd8] sm:$0xff] %v5167
      %5200 = vst [vmem:[#allocation2 + $0xe0] sm:$0xff] %v5168
      %5201 = vst [vmem:[#allocation2 + $0xe8] sm:$0xff] %v5169
      %5202 = vst [vmem:[#allocation2 + $0xf0] sm:$0xff] %v5170
      %5203 = vst [vmem:[#allocation2 + $0xf8] sm:$0xff] %v5171
      %v5204 = vld [vmem:[%s3935] sm:$0xe]
      %v5205 = vld [vmem:[%s3935 + $0x4] sm:$0xf]
      %v5206 = vld [vmem:[%s3935 + $0x8] sm:$0x1]
      %v5207 = vld [vmem:[%s3935 + $0xc] sm:$0xe]
      %v5208 = vld [vmem:[%s3935 + $0x10] sm:$0xf]
      %v5209 = vld [vmem:[%s3935 + $0x14] sm:$0x1]
      %v5210 = vld [vmem:[%s3935 + $0x18] sm:$0xe]
      %v5211 = vld [vmem:[%s3935 + $0x1c] sm:$0xf]
      %v5212 = vld [vmem:[%s3935 + $0x20] sm:$0x1]
      %v5213 = vld [vmem:[%s3935 + $0x24] sm:$0xe]
      %v5214 = vld [vmem:[%s3935 + $0x28] sm:$0xf]
      %v5215 = vld [vmem:[%s3935 + $0x2c] sm:$0x1]
      %v5216 = vld [vmem:[%s3935 + $0x30] sm:$0xe]
      %v5217 = vld [vmem:[%s3935 + $0x34] sm:$0xf]
      %v5218 = vld [vmem:[%s3935 + $0x38] sm:$0x1]
      %v5219 = vld [vmem:[%s3935 + $0x3c] sm:$0xe]
      %v5220 = vld [vmem:[%s3935 + $0x40] sm:$0xf]
      %v5221 = vld [vmem:[%s3935 + $0x44] sm:$0x1]
      %v5222 = vld [vmem:[%s3935 + $0x48] sm:$0xe]
      %v5223 = vld [vmem:[%s3935 + $0x4c] sm:$0xf]
      %v5224 = vld [vmem:[%s3935 + $0x50] sm:$0x1]
      %v5225 = vld [vmem:[%s3935 + $0x54] sm:$0xe]
      %v5226 = vld [vmem:[%s3935 + $0x58] sm:$0xf]
      %v5227 = vld [vmem:[%s3935 + $0x5c] sm:$0x1]
      %v5228 = vld [vmem:[%s3935 + $0x60] sm:$0xe]
      %v5229 = vld [vmem:[%s3935 + $0x64] sm:$0xf]
      %v5230 = vld [vmem:[%s3935 + $0x68] sm:$0x1]
      %v5231 = vld [vmem:[%s3935 + $0x6c] sm:$0xe]
      %v5232 = vld [vmem:[%s3935 + $0x70] sm:$0xf]
      %v5233 = vld [vmem:[%s3935 + $0x74] sm:$0x1]
      %v5234 = vld [vmem:[%s3935 + $0x78] sm:$0xe]
      %v5235 = vld [vmem:[%s3935 + $0x7c] sm:$0xf]
      %v5236 = vld [vmem:[%s3935 + $0x80] sm:$0x1]
      %v5237 = vld [vmem:[%s3935 + $0x84] sm:$0xe]
      %v5238 = vld [vmem:[%s3935 + $0x88] sm:$0xf]
      %v5239 = vld [vmem:[%s3935 + $0x8c] sm:$0x1]
      %v5240 = vld [vmem:[%s3935 + $0x90] sm:$0xe]
      %v5241 = vld [vmem:[%s3935 + $0x94] sm:$0xf]
      %v5242 = vld [vmem:[%s3935 + $0x98] sm:$0x1]
      %v5243 = vld [vmem:[%s3935 + $0x9c] sm:$0xe]
      %v5244 = vld [vmem:[%s3935 + $0xa0] sm:$0xf]
      %v5245 = vld [vmem:[%s3935 + $0xa4] sm:$0x1]
      %v5246 = vld [vmem:[%s3935 + $0xa8] sm:$0xe]
      %v5247 = vld [vmem:[%s3935 + $0xac] sm:$0xf]
      %v5248 = vld [vmem:[%s3935 + $0xb0] sm:$0x1]
      %v5249 = vld [vmem:[%s3935 + $0xb4] sm:$0xe]
      %v5250 = vld [vmem:[%s3935 + $0xb8] sm:$0xf]
      %v5251 = vld [vmem:[%s3935 + $0xbc] sm:$0x1]
      %v5300 = vrot.slane %v5204, 5
      %v5301 = vrot.slane %v5300, 4
      %v5302 = vrot.slane %v5205, 5
      %v5303 = vsel %vm1573, %v5301, %v5302
      %v5304 = vrot.slane %v5302, 4
      %v5305 = vrot.slane %v5206, 5
      %v5306 = vsel %vm1573, %v5304, %v5305
      %v5307 = vrot.slane %v5207, 5
      %v5308 = vrot.slane %v5307, 4
      %v5309 = vrot.slane %v5208, 5
      %v5310 = vsel %vm1573, %v5308, %v5309
      %v5311 = vrot.slane %v5309, 4
      %v5312 = vrot.slane %v5209, 5
      %v5313 = vsel %vm1573, %v5311, %v5312
      %v5314 = vrot.slane %v5210, 5
      %v5315 = vrot.slane %v5314, 4
      %v5316 = vrot.slane %v5211, 5
      %v5317 = vsel %vm1573, %v5315, %v5316
      %v5318 = vrot.slane %v5316, 4
      %v5319 = vrot.slane %v5212, 5
      %v5320 = vsel %vm1573, %v5318, %v5319
      %v5321 = vrot.slane %v5213, 5
      %v5322 = vrot.slane %v5321, 4
      %v5323 = vrot.slane %v5214, 5
      %v5324 = vsel %vm1573, %v5322, %v5323
      %v5325 = vrot.slane %v5323, 4
      %v5326 = vrot.slane %v5215, 5
      %v5327 = vsel %vm1573, %v5325, %v5326
      %v5328 = vrot.slane %v5216, 5
      %v5329 = vrot.slane %v5328, 4
      %v5330 = vrot.slane %v5217, 5
      %v5331 = vsel %vm1573, %v5329, %v5330
      %v5332 = vrot.slane %v5330, 4
      %v5333 = vrot.slane %v5218, 5
      %v5334 = vsel %vm1573, %v5332, %v5333
      %v5335 = vrot.slane %v5219, 5
      %v5336 = vrot.slane %v5335, 4
      %v5337 = vrot.slane %v5220, 5
      %v5338 = vsel %vm1573, %v5336, %v5337
      %v5339 = vrot.slane %v5337, 4
      %v5340 = vrot.slane %v5221, 5
      %v5341 = vsel %vm1573, %v5339, %v5340
      %v5342 = vrot.slane %v5222, 5
      %v5343 = vrot.slane %v5342, 4
      %v5344 = vrot.slane %v5223, 5
      %v5345 = vsel %vm1573, %v5343, %v5344
      %v5346 = vrot.slane %v5344, 4
      %v5347 = vrot.slane %v5224, 5
      %v5348 = vsel %vm1573, %v5346, %v5347
      %v5349 = vrot.slane %v5225, 5
      %v5350 = vrot.slane %v5349, 4
      %v5351 = vrot.slane %v5226, 5
      %v5352 = vsel %vm1573, %v5350, %v5351
      %v5353 = vrot.slane %v5351, 4
      %v5354 = vrot.slane %v5227, 5
      %v5355 = vsel %vm1573, %v5353, %v5354
      %v5356 = vrot.slane %v5228, 5
      %v5357 = vrot.slane %v5356, 4
      %v5358 = vrot.slane %v5229, 5
      %v5359 = vsel %vm1573, %v5357, %v5358
      %v5360 = vrot.slane %v5358, 4
      %v5361 = vrot.slane %v5230, 5
      %v5362 = vsel %vm1573, %v5360, %v5361
      %v5363 = vrot.slane %v5231, 5
      %v5364 = vrot.slane %v5363, 4
      %v5365 = vrot.slane %v5232, 5
      %v5366 = vsel %vm1573, %v5364, %v5365
      %v5367 = vrot.slane %v5365, 4
      %v5368 = vrot.slane %v5233, 5
      %v5369 = vsel %vm1573, %v5367, %v5368
      %v5370 = vrot.slane %v5234, 5
      %v5371 = vrot.slane %v5370, 4
      %v5372 = vrot.slane %v5235, 5
      %v5373 = vsel %vm1573, %v5371, %v5372
      %v5374 = vrot.slane %v5372, 4
      %v5375 = vrot.slane %v5236, 5
      %v5376 = vsel %vm1573, %v5374, %v5375
      %v5377 = vrot.slane %v5237, 5
      %v5378 = vrot.slane %v5377, 4
      %v5379 = vrot.slane %v5238, 5
      %v5380 = vsel %vm1573, %v5378, %v5379
      %v5381 = vrot.slane %v5379, 4
      %v5382 = vrot.slane %v5239, 5
      %v5383 = vsel %vm1573, %v5381, %v5382
      %v5384 = vrot.slane %v5240, 5
      %v5385 = vrot.slane %v5384, 4
      %v5386 = vrot.slane %v5241, 5
      %v5387 = vsel %vm1573, %v5385, %v5386
      %v5388 = vrot.slane %v5386, 4
      %v5389 = vrot.slane %v5242, 5
      %v5390 = vsel %vm1573, %v5388, %v5389
      %v5391 = vrot.slane %v5243, 5
      %v5392 = vrot.slane %v5391, 4
      %v5393 = vrot.slane %v5244, 5
      %v5394 = vsel %vm1573, %v5392, %v5393
      %v5395 = vrot.slane %v5393, 4
      %v5396 = vrot.slane %v5245, 5
      %v5397 = vsel %vm1573, %v5395, %v5396
      %v5398 = vrot.slane %v5246, 5
      %v5399 = vrot.slane %v5398, 4
      %v5400 = vrot.slane %v5247, 5
      %v5401 = vsel %vm1573, %v5399, %v5400
      %v5402 = vrot.slane %v5400, 4
      %v5403 = vrot.slane %v5248, 5
      %v5404 = vsel %vm1573, %v5402, %v5403
      %v5405 = vrot.slane %v5249, 5
      %v5406 = vrot.slane %v5405, 4
      %v5407 = vrot.slane %v5250, 5
      %v5408 = vsel %vm1573, %v5406, %v5407
      %v5409 = vrot.slane %v5407, 4
      %v5410 = vrot.slane %v5251, 5
      %v5411 = vsel %vm1573, %v5409, %v5410
      %v5412 = vld [vmem:[#allocation2] sm:$0xff]
      %v5413 = vld [vmem:[#allocation2 + $0x8] sm:$0xff]
      %v5414 = vld [vmem:[#allocation2 + $0x10] sm:$0xff]
      %v5415 = vld [vmem:[#allocation2 + $0x18] sm:$0xff]
      %v5416 = vld [vmem:[#allocation2 + $0x20] sm:$0xff]
      %v5417 = vld [vmem:[#allocation2 + $0x28] sm:$0xff]
      %v5418 = vld [vmem:[#allocation2 + $0x30] sm:$0xff]
      %v5419 = vld [vmem:[#allocation2 + $0x38] sm:$0xff]
      %v5420 = vld [vmem:[#allocation2 + $0x40] sm:$0xff]
      %v5421 = vld [vmem:[#allocation2 + $0x48] sm:$0xff]
      %v5422 = vld [vmem:[#allocation2 + $0x50] sm:$0xff]
      %v5423 = vld [vmem:[#allocation2 + $0x58] sm:$0xff]
      %v5424 = vld [vmem:[#allocation2 + $0x60] sm:$0xff]
      %v5425 = vld [vmem:[#allocation2 + $0x68] sm:$0xff]
      %v5426 = vld [vmem:[#allocation2 + $0x70] sm:$0xff]
      %v5427 = vld [vmem:[#allocation2 + $0x78] sm:$0xff]
      %v5428 = vld [vmem:[#allocation2 + $0x80] sm:$0xff]
      %v5429 = vld [vmem:[#allocation2 + $0x88] sm:$0xff]
      %v5430 = vld [vmem:[#allocation2 + $0x90] sm:$0xff]
      %v5431 = vld [vmem:[#allocation2 + $0x98] sm:$0xff]
      %v5432 = vld [vmem:[#allocation2 + $0xa0] sm:$0xff]
      %v5433 = vld [vmem:[#allocation2 + $0xa8] sm:$0xff]
      %v5434 = vld [vmem:[#allocation2 + $0xb0] sm:$0xff]
      %v5435 = vld [vmem:[#allocation2 + $0xb8] sm:$0xff]
      %v5436 = vld [vmem:[#allocation2 + $0xc0] sm:$0xff]
      %v5437 = vld [vmem:[#allocation2 + $0xc8] sm:$0xff]
      %v5438 = vld [vmem:[#allocation2 + $0xd0] sm:$0xff]
      %v5439 = vld [vmem:[#allocation2 + $0xd8] sm:$0xff]
      %v5440 = vld [vmem:[#allocation2 + $0xe0] sm:$0xff]
      %v5441 = vld [vmem:[#allocation2 + $0xe8] sm:$0xff]
      %v5442 = vld [vmem:[#allocation2 + $0xf0] sm:$0xff]
      %v5443 = vld [vmem:[#allocation2 + $0xf8] sm:$0xff]
      %s5444 = scalar_lea.vmem %s1, 512
      %v5445 = vld [vmem:[%s5444] sm:$0xf]
      %v5446 = vld [vmem:[%s5444 + $0x4] sm:$0xf]
      %v5447 = vld [vmem:[%s5444 + $0x8] sm:$0xf]
      %v5448 = vld [vmem:[%s5444 + $0xc] sm:$0xf]
      %v5449 = vld [vmem:[%s5444 + $0x10] sm:$0xf]
      %v5450 = vld [vmem:[%s5444 + $0x14] sm:$0xf]
      %v5451 = vld [vmem:[%s5444 + $0x18] sm:$0xf]
      %v5452 = vld [vmem:[%s5444 + $0x1c] sm:$0xf]
      %v5453 = vld [vmem:[%s5444 + $0x20] sm:$0xf]
      %v5454 = vld [vmem:[%s5444 + $0x24] sm:$0xf]
      %v5455 = vld [vmem:[%s5444 + $0x28] sm:$0xf]
      %v5456 = vld [vmem:[%s5444 + $0x2c] sm:$0xf]
      %v5457 = vld [vmem:[%s5444 + $0x30] sm:$0xf]
      %v5458 = vld [vmem:[%s5444 + $0x34] sm:$0xf]
      %v5459 = vld [vmem:[%s5444 + $0x38] sm:$0xf]
      %v5460 = vld [vmem:[%s5444 + $0x3c] sm:$0xf]
      %v5461 = vunpack.c.l.b16 %v5303
      %v5462 = vunpack.c.l.b16 %v5306
      %v5463 = vunpack.c.l.b16 %v5310
      %v5464 = vunpack.c.l.b16 %v5313
      %v5465 = vunpack.c.l.b16 %v5317
      %v5466 = vunpack.c.l.b16 %v5320
      %v5467 = vunpack.c.l.b16 %v5324
      %v5468 = vunpack.c.l.b16 %v5327
      %v5469 = vunpack.c.l.b16 %v5331
      %v5470 = vunpack.c.l.b16 %v5334
      %v5471 = vunpack.c.l.b16 %v5338
      %v5472 = vunpack.c.l.b16 %v5341
      %v5473 = vunpack.c.l.b16 %v5345
      %v5474 = vunpack.c.l.b16 %v5348
      %v5475 = vunpack.c.l.b16 %v5352
      %v5476 = vunpack.c.l.b16 %v5355
      %v5477 = vunpack.c.l.b16 %v5359
      %v5478 = vunpack.c.l.b16 %v5362
      %v5479 = vunpack.c.l.b16 %v5366
      %v5480 = vunpack.c.l.b16 %v5369
      %v5481 = vunpack.c.l.b16 %v5373
      %v5482 = vunpack.c.l.b16 %v5376
      %v5483 = vunpack.c.l.b16 %v5380
      %v5484 = vunpack.c.l.b16 %v5383
      %v5485 = vunpack.c.l.b16 %v5387
      %v5486 = vunpack.c.l.b16 %v5390
      %v5487 = vunpack.c.l.b16 %v5394
      %v5488 = vunpack.c.l.b16 %v5397
      %v5489 = vunpack.c.l.b16 %v5401
      %v5490 = vunpack.c.l.b16 %v5404
      %v5491 = vunpack.c.l.b16 %v5408
      %v5492 = vunpack.c.l.b16 %v5411
      %v5493 = vpack.c.b16 %v5462, %v5461
      %v5494 = vpack.c.b16 %v5464, %v5463
      %v5495 = vpack.c.b16 %v5466, %v5465
      %v5496 = vpack.c.b16 %v5468, %v5467
      %v5497 = vpack.c.b16 %v5470, %v5469
      %v5498 = vpack.c.b16 %v5472, %v5471
      %v5499 = vpack.c.b16 %v5474, %v5473
      %v5500 = vpack.c.b16 %v5476, %v5475
      %v5501 = vpack.c.b16 %v5478, %v5477
      %v5502 = vpack.c.b16 %v5480, %v5479
      %v5503 = vpack.c.b16 %v5482, %v5481
      %v5504 = vpack.c.b16 %v5484, %v5483
      %v5505 = vpack.c.b16 %v5486, %v5485
      %v5506 = vpack.c.b16 %v5488, %v5487
      %v5507 = vpack.c.b16 %v5490, %v5489
      %v5508 = vpack.c.b16 %v5492, %v5491
      %v5541 = vunpack.c.l.b16 %v5445
      %v5542 = vunpack.c.l.b16 %v5446
      %v5543 = vunpack.c.l.b16 %v5447
      %v5544 = vunpack.c.l.b16 %v5448
      %v5545 = vunpack.c.l.b16 %v5449
      %v5546 = vunpack.c.l.b16 %v5450
      %v5547 = vunpack.c.l.b16 %v5451
      %v5548 = vunpack.c.l.b16 %v5452
      %v5549 = vunpack.c.l.b16 %v5453
      %v5550 = vunpack.c.l.b16 %v5454
      %v5551 = vunpack.c.l.b16 %v5455
      %v5552 = vunpack.c.l.b16 %v5456
      %v5553 = vunpack.c.l.b16 %v5457
      %v5554 = vunpack.c.l.b16 %v5458
      %v5555 = vunpack.c.l.b16 %v5459
      %v5556 = vunpack.c.l.b16 %v5460
      %v5557 = vpack.c.b16 %v5542, %v5541
      %v5558 = vpack.c.b16 %v5544, %v5543
      %v5559 = vpack.c.b16 %v5546, %v5545
      %v5560 = vpack.c.b16 %v5548, %v5547
      %v5561 = vpack.c.b16 %v5550, %v5549
      %v5562 = vpack.c.b16 %v5552, %v5551
      %v5563 = vpack.c.b16 %v5554, %v5553
      %v5564 = vpack.c.b16 %v5556, %v5555
      %5573 = vmatprep.subr.bf16.mxu0 0
      %5574 = vmatpush1.bf16.msra.mxu0 %v5557
      %5575 = vmatprep.subr.bf16.mxu0 0
      %5576 = vmatpush1.bf16.msra.mxu0 %v5558
      %5577 = vmatprep.subr.bf16.mxu0 0
      %5578 = vmatpush1.bf16.msra.mxu0 %v5559
      %5579 = vmatprep.subr.bf16.mxu0 0
      %5580 = vmatpush1.bf16.msra.mxu0 %v5560
      %5581 = vmatprep.subr.bf16.mxu0 0
      %5582 = vmatpush1.bf16.msra.mxu0 %v5561
      %5583 = vmatprep.subr.bf16.mxu0 0
      %5584 = vmatpush1.bf16.msra.mxu0 %v5562
      %5585 = vmatprep.subr.bf16.mxu0 0
      %5586 = vmatpush1.bf16.msra.mxu0 %v5563
      %5587 = vmatprep.subr.bf16.mxu0 0
      %5588 = vmatpush1.bf16.msra.mxu0 %v5564
      %5589 = vmatprep.subr.bf16.mxu0 0
      %5590 = vmatpush1.bf16.msra.mxu0 0
      %5591 = vmatprep.subr.bf16.mxu0 0
      %5592 = vmatpush1.bf16.msra.mxu0 0
      %5593 = vmatprep.subr.bf16.mxu0 0
      %5594 = vmatpush1.bf16.msra.mxu0 0
      %5595 = vmatprep.subr.bf16.mxu0 0
      %5596 = vmatpush1.bf16.msra.mxu0 0
      %5597 = vmatprep.subr.bf16.mxu0 0
      %5598 = vmatpush1.bf16.msra.mxu0 0
      %5599 = vmatprep.subr.bf16.mxu0 0
      %5600 = vmatpush1.bf16.msra.mxu0 0
      %5601 = vmatprep.subr.bf16.mxu0 0
      %5602 = vmatpush1.bf16.msra.mxu0 0
      %5603 = vmatprep.subr.bf16.mxu0 0
      %5604 = vmatpush1.bf16.msra.mxu0 0
      %5605 = vmatprep.mubr.bf16.mxu0 0
      %5606 = vmatmul.mubr.bf16.gmra.mrb[0].mxu0 %v5493
      %v5607 = vpop.f32.mrb[0].mxu0
      %v5608 = vadd.f32 0.0, %v5607
      %v5609 = vpop.f32.mrb[0].mxu0
      %v5610 = vpop.f32.mrb[0].mxu0
      %v5611 = vadd.f32 0.0, %v5610
      %v5612 = vpop.f32.mrb[0].mxu0
      %5613 = vmatprep.mubr.bf16.mxu0 0
      %5614 = vmatmul.mubr.bf16.gmra.mrb[0].mxu0 %v5494
      %v5615 = vpop.f32.mrb[0].mxu0
      %v5616 = vadd.f32 0.0, %v5615
      %v5617 = vpop.f32.mrb[0].mxu0
      %v5618 = vpop.f32.mrb[0].mxu0
      %v5619 = vadd.f32 0.0, %v5618
      %v5620 = vpop.f32.mrb[0].mxu0
      %5621 = vmatprep.mubr.bf16.mxu0 0
      %5622 = vmatmul.mubr.bf16.gmra.mrb[0].mxu0 %v5495
      %v5623 = vpop.f32.mrb[0].mxu0
      %v5624 = vadd.f32 0.0, %v5623
      %v5625 = vpop.f32.mrb[0].mxu0
      %v5626 = vpop.f32.mrb[0].mxu0
      %v5627 = vadd.f32 0.0, %v5626
      %v5628 = vpop.f32.mrb[0].mxu0
      %5629 = vmatprep.mubr.bf16.mxu0 0
      %5630 = vmatmul.mubr.bf16.gmra.mrb[0].mxu0 %v5496
      %v5631 = vpop.f32.mrb[0].mxu0
      %v5632 = vadd.f32 0.0, %v5631
      %v5633 = vpop.f32.mrb[0].mxu0
      %v5634 = vpop.f32.mrb[0].mxu0
      %v5635 = vadd.f32 0.0, %v5634
      %v5636 = vpop.f32.mrb[0].mxu0
      %5637 = vmatprep.mubr.bf16.mxu0 0
      %5638 = vmatmul.mubr.bf16.gmra.mrb[0].mxu0 %v5497
      %v5639 = vpop.f32.mrb[0].mxu0
      %v5640 = vadd.f32 0.0, %v5639
      %v5641 = vpop.f32.mrb[0].mxu0
      %v5642 = vpop.f32.mrb[0].mxu0
      %v5643 = vadd.f32 0.0, %v5642
      %v5644 = vpop.f32.mrb[0].mxu0
      %5645 = vmatprep.mubr.bf16.mxu0 0
      %5646 = vmatmul.mubr.bf16.gmra.mrb[0].mxu0 %v5498
      %v5647 = vpop.f32.mrb[0].mxu0
      %v5648 = vadd.f32 0.0, %v5647
      %v5649 = vpop.f32.mrb[0].mxu0
      %v5650 = vpop.f32.mrb[0].mxu0
      %v5651 = vadd.f32 0.0, %v5650
      %v5652 = vpop.f32.mrb[0].mxu0
      %5653 = vmatprep.mubr.bf16.mxu0 0
      %5654 = vmatmul.mubr.bf16.gmra.mrb[0].mxu0 %v5499
      %v5655 = vpop.f32.mrb[0].mxu0
      %v5656 = vadd.f32 0.0, %v5655
      %v5657 = vpop.f32.mrb[0].mxu0
      %v5658 = vpop.f32.mrb[0].mxu0
      %v5659 = vadd.f32 0.0, %v5658
      %v5660 = vpop.f32.mrb[0].mxu0
      %5661 = vmatprep.mubr.bf16.mxu0 0
      %5662 = vmatmul.mubr.bf16.gmra.mrb[0].mxu0 %v5500
      %v5663 = vpop.f32.mrb[0].mxu0
      %v5664 = vadd.f32 0.0, %v5663
      %v5665 = vpop.f32.mrb[0].mxu0
      %v5666 = vpop.f32.mrb[0].mxu0
      %v5667 = vadd.f32 0.0, %v5666
      %v5668 = vpop.f32.mrb[0].mxu0
      %5669 = vmatprep.mubr.bf16.mxu0 0
      %5670 = vmatmul.mubr.bf16.gmra.mrb[0].mxu0 %v5501
      %v5671 = vpop.f32.mrb[0].mxu0
      %v5672 = vadd.f32 0.0, %v5671
      %v5673 = vpop.f32.mrb[0].mxu0
      %v5674 = vpop.f32.mrb[0].mxu0
      %v5675 = vadd.f32 0.0, %v5674
      %v5676 = vpop.f32.mrb[0].mxu0
      %5677 = vmatprep.mubr.bf16.mxu0 0
      %5678 = vmatmul.mubr.bf16.gmra.mrb[0].mxu0 %v5502
      %v5679 = vpop.f32.mrb[0].mxu0
      %v5680 = vadd.f32 0.0, %v5679
      %v5681 = vpop.f32.mrb[0].mxu0
      %v5682 = vpop.f32.mrb[0].mxu0
      %v5683 = vadd.f32 0.0, %v5682
      %v5684 = vpop.f32.mrb[0].mxu0
      %5685 = vmatprep.mubr.bf16.mxu0 0
      %5686 = vmatmul.mubr.bf16.gmra.mrb[0].mxu0 %v5503
      %v5687 = vpop.f32.mrb[0].mxu0
      %v5688 = vadd.f32 0.0, %v5687
      %v5689 = vpop.f32.mrb[0].mxu0
      %v5690 = vpop.f32.mrb[0].mxu0
      %v5691 = vadd.f32 0.0, %v5690
      %v5692 = vpop.f32.mrb[0].mxu0
      %5693 = vmatprep.mubr.bf16.mxu0 0
      %5694 = vmatmul.mubr.bf16.gmra.mrb[0].mxu0 %v5504
      %v5695 = vpop.f32.mrb[0].mxu0
      %v5696 = vadd.f32 0.0, %v5695
      %v5697 = vpop.f32.mrb[0].mxu0
      %v5698 = vpop.f32.mrb[0].mxu0
      %v5699 = vadd.f32 0.0, %v5698
      %v5700 = vpop.f32.mrb[0].mxu0
      %5701 = vmatprep.mubr.bf16.mxu0 0
      %5702 = vmatmul.mubr.bf16.gmra.mrb[0].mxu0 %v5505
      %v5703 = vpop.f32.mrb[0].mxu0
      %v5704 = vadd.f32 0.0, %v5703
      %v5705 = vpop.f32.mrb[0].mxu0
      %v5706 = vpop.f32.mrb[0].mxu0
      %v5707 = vadd.f32 0.0, %v5706
      %v5708 = vpop.f32.mrb[0].mxu0
      %5709 = vmatprep.mubr.bf16.mxu0 0
      %5710 = vmatmul.mubr.bf16.gmra.mrb[0].mxu0 %v5506
      %v5711 = vpop.f32.mrb[0].mxu0
      %v5712 = vadd.f32 0.0, %v5711
      %v5713 = vpop.f32.mrb[0].mxu0
      %v5714 = vpop.f32.mrb[0].mxu0
      %v5715 = vadd.f32 0.0, %v5714
      %v5716 = vpop.f32.mrb[0].mxu0
      %5717 = vmatprep.mubr.bf16.mxu0 0
      %5718 = vmatmul.mubr.bf16.gmra.mrb[0].mxu0 %v5507
      %v5719 = vpop.f32.mrb[0].mxu0
      %v5720 = vadd.f32 0.0, %v5719
      %v5721 = vpop.f32.mrb[0].mxu0
      %v5722 = vpop.f32.mrb[0].mxu0
      %v5723 = vadd.f32 0.0, %v5722
      %v5724 = vpop.f32.mrb[0].mxu0
      %5725 = vmatprep.mubr.bf16.mxu0 0
      %5726 = vmatmul.mubr.bf16.gmra.mrb[0].mxu0 %v5508
      %v5727 = vpop.f32.mrb[0].mxu0
      %v5728 = vadd.f32 0.0, %v5727
      %v5729 = vpop.f32.mrb[0].mxu0
      %v5730 = vpop.f32.mrb[0].mxu0
      %v5731 = vadd.f32 0.0, %v5730
      %v5732 = vpop.f32.mrb[0].mxu0
      %5733 = vdwg.mxu0
      %v5734 = vadd.f32 %v5412, %v5608
      %v5735 = vadd.f32 %v5413, %v5611
      %v5736 = vadd.f32 %v5414, %v5616
      %v5737 = vadd.f32 %v5415, %v5619
      %v5738 = vadd.f32 %v5416, %v5624
      %v5739 = vadd.f32 %v5417, %v5627
      %v5740 = vadd.f32 %v5418, %v5632
      %v5741 = vadd.f32 %v5419, %v5635
      %v5742 = vadd.f32 %v5420, %v5640
      %v5743 = vadd.f32 %v5421, %v5643
      %v5744 = vadd.f32 %v5422, %v5648
      %v5745 = vadd.f32 %v5423, %v5651
      %v5746 = vadd.f32 %v5424, %v5656
      %v5747 = vadd.f32 %v5425, %v5659
      %v5748 = vadd.f32 %v5426, %v5664
      %v5749 = vadd.f32 %v5427, %v5667
      %v5750 = vadd.f32 %v5428, %v5672
      %v5751 = vadd.f32 %v5429, %v5675
      %v5752 = vadd.f32 %v5430, %v5680
      %v5753 = vadd.f32 %v5431, %v5683
      %v5754 = vadd.f32 %v5432, %v5688
      %v5755 = vadd.f32 %v5433, %v5691
      %v5756 = vadd.f32 %v5434, %v5696
      %v5757 = vadd.f32 %v5435, %v5699
      %v5758 = vadd.f32 %v5436, %v5704
      %v5759 = vadd.f32 %v5437, %v5707
      %v5760 = vadd.f32 %v5438, %v5712
      %v5761 = vadd.f32 %v5439, %v5715
      %v5762 = vadd.f32 %v5440, %v5720
      %v5763 = vadd.f32 %v5441, %v5723
      %v5764 = vadd.f32 %v5442, %v5728
      %v5765 = vadd.f32 %v5443, %v5731
      %5766 = vst [vmem:[#allocation2] sm:$0xff] %v5734
      %5767 = vst [vmem:[#allocation2 + $0x8] sm:$0xff] %v5735
      %5768 = vst [vmem:[#allocation2 + $0x10] sm:$0xff] %v5736
      %5769 = vst [vmem:[#allocation2 + $0x18] sm:$0xff] %v5737
      %5770 = vst [vmem:[#allocation2 + $0x20] sm:$0xff] %v5738
      %5771 = vst [vmem:[#allocation2 + $0x28] sm:$0xff] %v5739
      %5772 = vst [vmem:[#allocation2 + $0x30] sm:$0xff] %v5740
      %5773 = vst [vmem:[#allocation2 + $0x38] sm:$0xff] %v5741
      %5774 = vst [vmem:[#allocation2 + $0x40] sm:$0xff] %v5742
      %5775 = vst [vmem:[#allocation2 + $0x48] sm:$0xff] %v5743
      %5776 = vst [vmem:[#allocation2 + $0x50] sm:$0xff] %v5744
      %5777 = vst [vmem:[#allocation2 + $0x58] sm:$0xff] %v5745
      %5778 = vst [vmem:[#allocation2 + $0x60] sm:$0xff] %v5746
      %5779 = vst [vmem:[#allocation2 + $0x68] sm:$0xff] %v5747
      %5780 = vst [vmem:[#allocation2 + $0x70] sm:$0xff] %v5748
      %5781 = vst [vmem:[#allocation2 + $0x78] sm:$0xff] %v5749
      %5782 = vst [vmem:[#allocation2 + $0x80] sm:$0xff] %v5750
      %5783 = vst [vmem:[#allocation2 + $0x88] sm:$0xff] %v5751
      %5784 = vst [vmem:[#allocation2 + $0x90] sm:$0xff] %v5752
      %5785 = vst [vmem:[#allocation2 + $0x98] sm:$0xff] %v5753
      %5786 = vst [vmem:[#allocation2 + $0xa0] sm:$0xff] %v5754
      %5787 = vst [vmem:[#allocation2 + $0xa8] sm:$0xff] %v5755
      %5788 = vst [vmem:[#allocation2 + $0xb0] sm:$0xff] %v5756
      %5789 = vst [vmem:[#allocation2 + $0xb8] sm:$0xff] %v5757
      %5790 = vst [vmem:[#allocation2 + $0xc0] sm:$0xff] %v5758
      %5791 = vst [vmem:[#allocation2 + $0xc8] sm:$0xff] %v5759
      %5792 = vst [vmem:[#allocation2 + $0xd0] sm:$0xff] %v5760
      %5793 = vst [vmem:[#allocation2 + $0xd8] sm:$0xff] %v5761
      %5794 = vst [vmem:[#allocation2 + $0xe0] sm:$0xff] %v5762
      %5795 = vst [vmem:[#allocation2 + $0xe8] sm:$0xff] %v5763
      %5796 = vst [vmem:[#allocation2 + $0xf0] sm:$0xff] %v5764
      %5797 = vst [vmem:[#allocation2 + $0xf8] sm:$0xff] %v5765
      %v5798 = vld [vmem:[#allocation2] sm:$0xff]
      %v5799 = vld [vmem:[#allocation2 + $0x8] sm:$0xff]
      %v5800 = vld [vmem:[#allocation2 + $0x10] sm:$0xff]
      %v5801 = vld [vmem:[#allocation2 + $0x18] sm:$0xff]
      %v5802 = vld [vmem:[#allocation2 + $0x20] sm:$0xff]
      %v5803 = vld [vmem:[#allocation2 + $0x28] sm:$0xff]
      %v5804 = vld [vmem:[#allocation2 + $0x30] sm:$0xff]
      %v5805 = vld [vmem:[#allocation2 + $0x38] sm:$0xff]
      %v5806 = vld [vmem:[#allocation2 + $0x40] sm:$0xff]
      %v5807 = vld [vmem:[#allocation2 + $0x48] sm:$0xff]
      %v5808 = vld [vmem:[#allocation2 + $0x50] sm:$0xff]
      %v5809 = vld [vmem:[#allocation2 + $0x58] sm:$0xff]
      %v5810 = vld [vmem:[#allocation2 + $0x60] sm:$0xff]
      %v5811 = vld [vmem:[#allocation2 + $0x68] sm:$0xff]
      %v5812 = vld [vmem:[#allocation2 + $0x70] sm:$0xff]
      %v5813 = vld [vmem:[#allocation2 + $0x78] sm:$0xff]
      %v5814 = vld [vmem:[#allocation2 + $0x80] sm:$0xff]
      %v5815 = vld [vmem:[#allocation2 + $0x88] sm:$0xff]
      %v5816 = vld [vmem:[#allocation2 + $0x90] sm:$0xff]
      %v5817 = vld [vmem:[#allocation2 + $0x98] sm:$0xff]
      %v5818 = vld [vmem:[#allocation2 + $0xa0] sm:$0xff]
      %v5819 = vld [vmem:[#allocation2 + $0xa8] sm:$0xff]
      %v5820 = vld [vmem:[#allocation2 + $0xb0] sm:$0xff]
      %v5821 = vld [vmem:[#allocation2 + $0xb8] sm:$0xff]
      %v5822 = vld [vmem:[#allocation2 + $0xc0] sm:$0xff]
      %v5823 = vld [vmem:[#allocation2 + $0xc8] sm:$0xff]
      %v5824 = vld [vmem:[#allocation2 + $0xd0] sm:$0xff]
      %v5825 = vld [vmem:[#allocation2 + $0xd8] sm:$0xff]
      %v5826 = vld [vmem:[#allocation2 + $0xe0] sm:$0xff]
      %v5827 = vld [vmem:[#allocation2 + $0xe8] sm:$0xff]
      %v5828 = vld [vmem:[#allocation2 + $0xf0] sm:$0xff]
      %v5829 = vld [vmem:[#allocation2 + $0xf8] sm:$0xff]
      %v5830 = vld [vmem:[%s2] sm:$0x1]
      %v5832 = vlaneseq
      %v5833 = vshrl.u32 %v5832, 7
      %v5834 = vsub.s32 0, %v5833
      %v5835 = vrot.slane %v5830, %v5834
      %v5837 = vadd.f32 %v5798, %v5835
      %v5838 = vadd.f32 %v5799, %v5835
      %v5839 = vadd.f32 %v5800, %v5835
      %v5840 = vadd.f32 %v5801, %v5835
      %v5841 = vadd.f32 %v5802, %v5835
      %v5842 = vadd.f32 %v5803, %v5835
      %v5843 = vadd.f32 %v5804, %v5835
      %v5844 = vadd.f32 %v5805, %v5835
      %v5845 = vadd.f32 %v5806, %v5835
      %v5846 = vadd.f32 %v5807, %v5835
      %v5847 = vadd.f32 %v5808, %v5835
      %v5848 = vadd.f32 %v5809, %v5835
      %v5849 = vadd.f32 %v5810, %v5835
      %v5850 = vadd.f32 %v5811, %v5835
      %v5851 = vadd.f32 %v5812, %v5835
      %v5852 = vadd.f32 %v5813, %v5835
      %v5853 = vadd.f32 %v5814, %v5835
      %v5854 = vadd.f32 %v5815, %v5835
      %v5855 = vadd.f32 %v5816, %v5835
      %v5856 = vadd.f32 %v5817, %v5835
      %v5857 = vadd.f32 %v5818, %v5835
      %v5858 = vadd.f32 %v5819, %v5835
      %v5859 = vadd.f32 %v5820, %v5835
      %v5860 = vadd.f32 %v5821, %v5835
      %v5861 = vadd.f32 %v5822, %v5835
      %v5862 = vadd.f32 %v5823, %v5835
      %v5863 = vadd.f32 %v5824, %v5835
      %v5864 = vadd.f32 %v5825, %v5835
      %v5865 = vadd.f32 %v5826, %v5835
      %v5866 = vadd.f32 %v5827, %v5835
      %v5867 = vadd.f32 %v5828, %v5835
      %v5868 = vadd.f32 %v5829, %v5835
      %v5869 = vmax.f32 %v5837, 0.0
      %v5870 = vmax.f32 %v5838, 0.0
      %v5871 = vmax.f32 %v5839, 0.0
      %v5872 = vmax.f32 %v5840, 0.0
      %v5873 = vmax.f32 %v5841, 0.0
      %v5874 = vmax.f32 %v5842, 0.0
      %v5875 = vmax.f32 %v5843, 0.0
      %v5876 = vmax.f32 %v5844, 0.0
      %v5877 = vmax.f32 %v5845, 0.0
      %v5878 = vmax.f32 %v5846, 0.0
      %v5879 = vmax.f32 %v5847, 0.0
      %v5880 = vmax.f32 %v5848, 0.0
      %v5881 = vmax.f32 %v5849, 0.0
      %v5882 = vmax.f32 %v5850, 0.0
      %v5883 = vmax.f32 %v5851, 0.0
      %v5884 = vmax.f32 %v5852, 0.0
      %v5885 = vmax.f32 %v5853, 0.0
      %v5886 = vmax.f32 %v5854, 0.0
      %v5887 = vmax.f32 %v5855, 0.0
      %v5888 = vmax.f32 %v5856, 0.0
      %v5889 = vmax.f32 %v5857, 0.0
      %v5890 = vmax.f32 %v5858, 0.0
      %v5891 = vmax.f32 %v5859, 0.0
      %v5892 = vmax.f32 %v5860, 0.0
      %v5893 = vmax.f32 %v5861, 0.0
      %v5894 = vmax.f32 %v5862, 0.0
      %v5895 = vmax.f32 %v5863, 0.0
      %v5896 = vmax.f32 %v5864, 0.0
      %v5897 = vmax.f32 %v5865, 0.0
      %v5898 = vmax.f32 %v5866, 0.0
      %v5899 = vmax.f32 %v5867, 0.0
      %v5900 = vmax.f32 %v5868, 0.0
      %v5901 = vpack.c.bf16 %v5870, %v5869
      %v5902 = vpack.c.bf16 %v5872, %v5871
      %v5903 = vpack.c.bf16 %v5874, %v5873
      %v5904 = vpack.c.bf16 %v5876, %v5875
      %v5905 = vpack.c.bf16 %v5878, %v5877
      %v5906 = vpack.c.bf16 %v5880, %v5879
      %v5907 = vpack.c.bf16 %v5882, %v5881
      %v5908 = vpack.c.bf16 %v5884, %v5883
      %v5909 = vpack.c.bf16 %v5886, %v5885
      %v5910 = vpack.c.bf16 %v5888, %v5887
      %v5911 = vpack.c.bf16 %v5890, %v5889
      %v5912 = vpack.c.bf16 %v5892, %v5891
      %v5913 = vpack.c.bf16 %v5894, %v5893
      %v5914 = vpack.c.bf16 %v5896, %v5895
      %v5915 = vpack.c.bf16 %v5898, %v5897
      %v5916 = vpack.c.bf16 %v5900, %v5899
      %v5933 = vunpack.c.l.b16 %v5901
      %v5934 = vunpack.c.h.b16 %v5901
      %v5935 = vunpack.c.l.b16 %v5902
      %v5936 = vunpack.c.h.b16 %v5902
      %v5937 = vunpack.c.l.b16 %v5903
      %v5938 = vunpack.c.h.b16 %v5903
      %v5939 = vunpack.c.l.b16 %v5904
      %v5940 = vunpack.c.h.b16 %v5904
      %v5941 = vunpack.c.l.b16 %v5905
      %v5942 = vunpack.c.h.b16 %v5905
      %v5943 = vunpack.c.l.b16 %v5906
      %v5944 = vunpack.c.h.b16 %v5906
      %v5945 = vunpack.c.l.b16 %v5907
      %v5946 = vunpack.c.h.b16 %v5907
      %v5947 = vunpack.c.l.b16 %v5908
      %v5948 = vunpack.c.h.b16 %v5908
      %v5949 = vunpack.c.l.b16 %v5909
      %v5950 = vunpack.c.h.b16 %v5909
      %v5951 = vunpack.c.l.b16 %v5910
      %v5952 = vunpack.c.h.b16 %v5910
      %v5953 = vunpack.c.l.b16 %v5911
      %v5954 = vunpack.c.h.b16 %v5911
      %v5955 = vunpack.c.l.b16 %v5912
      %v5956 = vunpack.c.h.b16 %v5912
      %v5957 = vunpack.c.l.b16 %v5913
      %v5958 = vunpack.c.h.b16 %v5913
      %v5959 = vunpack.c.l.b16 %v5914
      %v5960 = vunpack.c.h.b16 %v5914
      %v5961 = vunpack.c.l.b16 %v5915
      %v5962 = vunpack.c.h.b16 %v5915
      %v5963 = vunpack.c.l.b16 %v5916
      %v5964 = vunpack.c.h.b16 %v5916
      %v5965 = vpack.c.b16 %v5933, %v5933
      %v5966 = vpack.c.b16 %v5934, %v5934
      %v5967 = vpack.c.b16 %v5935, %v5935
      %v5968 = vpack.c.b16 %v5936, %v5936
      %v5969 = vpack.c.b16 %v5937, %v5937
      %v5970 = vpack.c.b16 %v5938, %v5938
      %v5971 = vpack.c.b16 %v5939, %v5939
      %v5972 = vpack.c.b16 %v5940, %v5940
      %v5973 = vpack.c.b16 %v5941, %v5941
      %v5974 = vpack.c.b16 %v5942, %v5942
      %v5975 = vpack.c.b16 %v5943, %v5943
      %v5976 = vpack.c.b16 %v5944, %v5944
      %v5977 = vpack.c.b16 %v5945, %v5945
      %v5978 = vpack.c.b16 %v5946, %v5946
      %v5979 = vpack.c.b16 %v5947, %v5947
      %v5980 = vpack.c.b16 %v5948, %v5948
      %v5981 = vpack.c.b16 %v5949, %v5949
      %v5982 = vpack.c.b16 %v5950, %v5950
      %v5983 = vpack.c.b16 %v5951, %v5951
      %v5984 = vpack.c.b16 %v5952, %v5952
      %v5985 = vpack.c.b16 %v5953, %v5953
      %v5986 = vpack.c.b16 %v5954, %v5954
      %v5987 = vpack.c.b16 %v5955, %v5955
      %v5988 = vpack.c.b16 %v5956, %v5956
      %v5989 = vpack.c.b16 %v5957, %v5957
      %v5990 = vpack.c.b16 %v5958, %v5958
      %v5991 = vpack.c.b16 %v5959, %v5959
      %v5992 = vpack.c.b16 %v5960, %v5960
      %v5993 = vpack.c.b16 %v5961, %v5961
      %v5994 = vpack.c.b16 %v5962, %v5962
      %v5995 = vpack.c.b16 %v5963, %v5963
      %v5996 = vpack.c.b16 %v5964, %v5964
      %6029 = vst [vmem:[%s170] sm:$0xf] %v5965
      %6030 = vst [vmem:[%s170 + $0x4] sm:$0xf] %v5966
      %6031 = vst [vmem:[%s170 + $0x8] sm:$0xf] %v5967
      %6032 = vst [vmem:[%s170 + $0xc] sm:$0xf] %v5968
      %6033 = vst [vmem:[%s170 + $0x10] sm:$0xf] %v5969
      %6034 = vst [vmem:[%s170 + $0x14] sm:$0xf] %v5970
      %6035 = vst [vmem:[%s170 + $0x18] sm:$0xf] %v5971
      %6036 = vst [vmem:[%s170 + $0x1c] sm:$0xf] %v5972
      %6037 = vst [vmem:[%s170 + $0x20] sm:$0xf] %v5973
      %6038 = vst [vmem:[%s170 + $0x24] sm:$0xf] %v5974
      %6039 = vst [vmem:[%s170 + $0x28] sm:$0xf] %v5975
      %6040 = vst [vmem:[%s170 + $0x2c] sm:$0xf] %v5976
      %6041 = vst [vmem:[%s170 + $0x30] sm:$0xf] %v5977
      %6042 = vst [vmem:[%s170 + $0x34] sm:$0xf] %v5978
      %6043 = vst [vmem:[%s170 + $0x38] sm:$0xf] %v5979
      %6044 = vst [vmem:[%s170 + $0x3c] sm:$0xf] %v5980
      %6045 = vst [vmem:[%s170 + $0x40] sm:$0xf] %v5981
      %6046 = vst [vmem:[%s170 + $0x44] sm:$0xf] %v5982
      %6047 = vst [vmem:[%s170 + $0x48] sm:$0xf] %v5983
      %6048 = vst [vmem:[%s170 + $0x4c] sm:$0xf] %v5984
      %6049 = vst [vmem:[%s170 + $0x50] sm:$0xf] %v5985
      %6050 = vst [vmem:[%s170 + $0x54] sm:$0xf] %v5986
      %6051 = vst [vmem:[%s170 + $0x58] sm:$0xf] %v5987
      %6052 = vst [vmem:[%s170 + $0x5c] sm:$0xf] %v5988
      %6053 = vst [vmem:[%s170 + $0x60] sm:$0xf] %v5989
      %6054 = vst [vmem:[%s170 + $0x64] sm:$0xf] %v5990
      %6055 = vst [vmem:[%s170 + $0x68] sm:$0xf] %v5991
      %6056 = vst [vmem:[%s170 + $0x6c] sm:$0xf] %v5992
      %6057 = vst [vmem:[%s170 + $0x70] sm:$0xf] %v5993
      %6058 = vst [vmem:[%s170 + $0x74] sm:$0xf] %v5994
      %6059 = vst [vmem:[%s170 + $0x78] sm:$0xf] %v5995
      %6060 = vst [vmem:[%s170 + $0x7c] sm:$0xf] %v5996
      %s6061 = smul.u32 32, %s14
      %p6062 = scmp.lt.s32.totalorder %s6061, 63
      %s6063 = scalar_select %p6062, %s6061, 63
      %s6064 = smul.addr %s6063, 4
      %s6065 = scalar_lea.vmem %s3, %s6064
      // Predicated region
      $region33: #{bottleneck_forward.4} parent=31 // pred_check
        %p6066 = pneg %p100
      $region34: #{bottleneck_forward.4} parent=31 // pred_check_branch
        %6068 = sbr.rel (%p6066) target = $region36
      $region35: #{bottleneck_forward.4} parent=31 // pred_region
        %s6069 = smul.u32 32, %s14
      $region36: #{bottleneck_forward.4} parent=31 // pred_fallthru
        _
    $region32: #{bottleneck_forward.4} parent=5 // pred_fallthru
      _
    %p6070 = scmp.le.s32.totalorder 2, %s9
    // Predicated region
    $region37: #{bottleneck_forward.4} parent=5 // pred_check
      %p6071 = pneg %p6070
    $region38: #{bottleneck_forward.4} parent=5 // pred_check_branch
      %6073 = sbr.rel (%p6071) target = $region40
    $region39: #{bottleneck_forward.4} parent=5 // pred_region
      %s6074 = ssub.s32 %s9, 2
      // Predicated region
      $region41: #{bottleneck_forward.4} parent=39 // pred_check
        %p6075 = pneg %p106
      $region42: #{bottleneck_forward.4} parent=39 // pred_check_branch
        %6077 = sbr.rel (%p6075) target = $region44
      $region43: #{bottleneck_forward.4} parent=39 // pred_region
        %s6078 = smul.u32 32, %s15
        %p6079 = scmp.lt.s32.totalorder %s6078, 63
        %s6080 = scalar_select %p6079, %s6078, 63
        %s6081 = smul.addr %s6080, 4
        %s6082 = scalar_lea.vmem %s3, %s6081
      $region44: #{bottleneck_forward.4} parent=39 // pred_fallthru
        _
    $region40: #{bottleneck_forward.4} parent=5 // pred_fallthru
      _
  $region6: #{bottleneck_forward.4} parent=0 // loop_footer
    %s13 = sadd.s32 1, %s9
  $region7: #{bottleneck_forward.4} parent=0 // loop_footer_branch
    %8 = sbr.rel target = $region3
  $region8: #{bottleneck_forward.4} parent=0 // loop_exit
    _

</llo_original>
